<compile_context>
chip_gen: v7x
topology: tpu7x:2x2x1
jax: 0.10.0
libtpu: 0.0.40
codegen_flags: <defaults>
</compile_context>

<pallas_src>
import functools
import math

import jax
import jax.numpy as jnp
from jax import lax
from jax.experimental import pallas as pl
from jax.experimental.pallas import tpu as pltpu

EPS = 1e-5


def _batchnorm(acc, gamma, beta):
    """Training-mode BatchNorm over axis 0 of an (M, Cout) f32 accumulator.
    One pass, centered on a per-channel pivot to tame E[x^2]-mean^2 cancellation."""
    m = acc.shape[0]
    inv_m = 1.0 / float(m)
    pivot = acc[0:1, :]                              # cheap per-channel shift
    d = acc - pivot
    s1 = jnp.sum(d, axis=0, keepdims=True)
    s2 = jnp.sum(d * d, axis=0, keepdims=True)
    mean_d = s1 * inv_m
    var = jnp.maximum(s2 * inv_m - mean_d * mean_d, 0.0)
    mean = mean_d + pivot
    scale = gamma * lax.rsqrt(var + EPS)
    shift = beta - mean * scale
    return acc * scale + shift


def _fill_padded(pad_ref, interior):
    """Write `interior` (N,H,W,C) into the (N,H+2,W+2,C) scratch with a 1-px zero halo.
    Only the halo border is zero-filled; the interior is stored exactly once."""
    n, hp, wp, c = pad_ref.shape
    h, w = hp - 2, wp - 2
    zrow = jnp.zeros((n, 1, wp, c), pad_ref.dtype)
    pad_ref[:, 0:1, :, :] = zrow                     # top halo row
    pad_ref[:, h + 1:h + 2, :, :] = zrow             # bottom halo row
    zcol = jnp.zeros((n, hp, 1, c), pad_ref.dtype)
    pad_ref[:, :, 0:1, :] = zcol                     # left halo col
    pad_ref[:, :, w + 1:w + 2, :] = zcol             # right halo col
    pad_ref[:, 1:h + 1, 1:w + 1, :] = interior.astype(pad_ref.dtype)


def _im2col(src_ref, *, stride, ho, wo):
    """Gather the 9 taps of a 3x3 conv from a padded NHWC scratch ref and concatenate
    them along the channel (lane) axis -> (M, 9*Cin) bf16 MXU operand.  One matmul with
    K = 9*Cin instead of nine K = Cin matmuls; one bf16 cast instead of nine."""
    n, _, _, cin = src_ref.shape
    m = n * ho * wo
    taps = []
    for ky in range(3):
        for kx in range(3):
            if stride == 1:
                p = src_ref[:, pl.ds(ky, ho), pl.ds(kx, wo), :]
            else:
                p = src_ref[:, pl.ds(ky, ho, stride), pl.ds(kx, wo, stride), :]
            taps.append(p.reshape(m, cin))
    return jnp.concatenate(taps, axis=-1).astype(jnp.bfloat16)


def _basic_block_kernel(x_ref, w1_ref, g1_ref, b1_ref,
                        w2_ref, g2_ref, b2_ref, *rest,
                        stride, has_projection, out_hw):
    """Fused ResNet basic block; everything stays in VMEM between stages."""
    if has_projection:
        ws_ref, gs_ref, bs_ref, out_ref, xpad_ref, y1pad_ref = rest
    else:
        out_ref, xpad_ref, y1pad_ref = rest

    n, h, w, cin = x_ref.shape
    ho, wo = out_hw
    cout = g1_ref.shape[-1]
    m = n * ho * wo

    # ---- conv1 (3x3, stride s) + BN1 + ReLU ------------------------------------------
    _fill_padded(xpad_ref, x_ref[...])
    lhs1 = _im2col(xpad_ref, stride=stride, ho=ho, wo=wo)          # (m, 9*cin) bf16
    acc1 = jnp.dot(lhs1, w1_ref[...], preferred_element_type=jnp.float32)
    y1 = jnp.maximum(_batchnorm(acc1, g1_ref[...], b1_ref[...]), 0.0)

    # ---- conv2 (3x3, stride 1) + BN2 (y1 never leaves VMEM) ---------------------------
    _fill_padded(y1pad_ref, y1.reshape(n, ho, wo, cout))
    lhs2 = _im2col(y1pad_ref, stride=1, ho=ho, wo=wo)              # (m, 9*cout) bf16
    acc2 = jnp.dot(lhs2, w2_ref[...], preferred_element_type=jnp.float32)
    y2 = _batchnorm(acc2, g2_ref[...], b2_ref[...])

    # ---- shortcut ----------------------------------------------------------------------
    if has_projection:
        # 1x1 stride-s conv + BN.  Reuse the center tap (ky=1,kx=1) of the conv1 im2col:
        # it is exactly x[:, 0::s, 0::s, :], already loaded and already bf16.
        xs = lhs1[:, 4 * cin:5 * cin]
        accs = jnp.dot(xs, ws_ref[...], preferred_element_type=jnp.float32)
        residual = _batchnorm(accs, gs_ref[...], bs_ref[...])
    else:
        # Identity shortcut (stride == 1, cin == cout).
        residual = x_ref[...].reshape(m, cout).astype(jnp.float32)

    # ---- add residual + ReLU, store ----------------------------------------------------
    out = jnp.maximum(y2 + residual, 0.0)
    out_ref[...] = out.reshape(n, ho, wo, cout).astype(out_ref.dtype)


def _vmem_padded_bytes(shape, dtype):
    """Rough VMEM footprint of one buffer, honoring (sublane, 128-lane) tiling."""
    itemsize = jnp.dtype(dtype).itemsize
    sub = max(8, 32 // itemsize)                       # f32: 8, bf16: 16
    lead = math.prod(shape[:-2]) if len(shape) > 2 else 1
    rows = -(-shape[-2] // sub) * sub
    cols = -(-shape[-1] // 128) * 128
    return lead * rows * cols * itemsize


def resnet_basic_block(x_nchw, params, *, stride):
    """Forward pass of ResNetBasicBlock.  Input/output are NCHW like PyTorch."""
    x = jnp.transpose(x_nchw, (0, 2, 3, 1))            # NCHW -> NHWC
    n, h, w, cin = x.shape
    cout = params["w1"].shape[-1]
    ho = (h + 2 - 3) // stride + 1
    wo = (w + 2 - 3) // stride + 1
    has_projection = (stride != 1) or (cin != cout)

    # Pre-reshape conv weights to the im2col layout (kh*kw*Cin, Cout); bf16 MXU operands
    # (f32 accumulation inside the kernel).
    args = [x,
            params["w1"].reshape(9 * cin, cout).astype(jnp.bfloat16),
            params["g1"].reshape(1, cout), params["b1"].reshape(1, cout),
            params["w2"].reshape(9 * cout, cout).astype(jnp.bfloat16),
            params["g2"].reshape(1, cout), params["b2"].reshape(1, cout)]
    if has_projection:
        args += [params["ws"].reshape(cin, cout).astype(jnp.bfloat16),
                 params["gs"].reshape(1, cout), params["bs"].reshape(1, cout)]

    xpad_shape = (n, h + 2, w + 2, cin)
    y1pad_shape = (n, ho + 2, wo + 2, cout)
    scratch_shapes = [pltpu.VMEM(xpad_shape, jnp.float32),     # padded input for conv1
                      pltpu.VMEM(y1pad_shape, jnp.float32)]    # padded y1 for conv2

    out_shape = jax.ShapeDtypeStruct((n, ho, wo, cout), x.dtype)

    # Size the scoped-VMEM limit from the actual footprint (whole-block residency,
    # no grid => no double buffering), plus headroom for the im2col operands and f32
    # working values.  v5e/v6e: 128 MiB physical (default scoped 16/32 MiB) -> allow up
    # to ~100 MiB.  TODO(synk): v7x has 64 MiB; large shapes need the tiled-grid design.
    m = n * ho * wo
    est = sum(_vmem_padded_bytes(a.shape, a.dtype) for a in args)
    est += _vmem_padded_bytes(out_shape.shape, out_shape.dtype)
    est += _vmem_padded_bytes(xpad_shape, jnp.float32)
    est += _vmem_padded_bytes(y1pad_shape, jnp.float32)
    est += _vmem_padded_bytes((m, 9 * cin), jnp.bfloat16)      # conv1 im2col operand
    est += _vmem_padded_bytes((m, 9 * cout), jnp.bfloat16)     # conv2 im2col operand
    est += 6 * _vmem_padded_bytes((m, cout), jnp.float32)      # accumulators / y1 / y2
    vmem_limit = int(min(max(2 * est, 32 * 2**20), 100 * 2**20))

    kernel = functools.partial(_basic_block_kernel, stride=stride,
                               has_projection=has_projection, out_hw=(ho, wo))
    vmem = pl.BlockSpec(memory_space=pltpu.MemorySpace.VMEM)
    out_nhwc = pl.pallas_call(
        kernel,
        out_shape=out_shape,
        in_specs=[vmem] * len(args),
        out_specs=vmem,
        scratch_shapes=scratch_shapes,
        compiler_params=pltpu.CompilerParams(vmem_limit_bytes=vmem_limit),
    )(*args)
    return jnp.transpose(out_nhwc, (0, 3, 1, 2))       # NHWC -> NCHW


# ----------------------- pure-JAX reference (for verification) -----------------------
def _ref_block(x_nchw, params, stride):
    def conv(x, w_hwio, s, p):
        return lax.conv_general_dilated(
            x, w_hwio, (s, s), [(p, p), (p, p)],
            dimension_numbers=("NCHW", "HWIO", "NCHW"))

    def bn(x, g, b):
        mean = jnp.mean(x, axis=(0, 2, 3), keepdims=True)
        var = jnp.mean((x - mean) ** 2, axis=(0, 2, 3), keepdims=True)
        return (x - mean) * lax.rsqrt(var + EPS) * g.reshape(1, -1, 1, 1) \
            + b.reshape(1, -1, 1, 1)

    in_c = x_nchw.shape[1]
    out_c = params["w1"].shape[-1]
    if stride != 1 or in_c != out_c:
        residual = bn(conv(x_nchw, params["ws"], stride, 0), params["gs"], params["bs"])
    else:
        residual = x_nchw
    h = jax.nn.relu(bn(conv(x_nchw, params["w1"], stride, 1), params["g1"], params["b1"]))
    h = bn(conv(h, params["w2"], 1, 1), params["g2"], params["b2"])
    return jax.nn.relu(h + residual)


if __name__ == "__main__":
    def make_params(keys, cin, cout, with_proj):
        p = {"w1": 0.2 * jax.random.normal(keys[0], (3, 3, cin, cout), jnp.float32),
             "g1": 1.0 + 0.1 * jax.random.normal(keys[1], (cout,), jnp.float32),
             "b1": 0.1 * jax.random.normal(keys[2], (cout,), jnp.float32),
             "w2": 0.2 * jax.random.normal(keys[3], (3, 3, cout, cout), jnp.float32),
             "g2": 1.0 + 0.1 * jax.random.normal(keys[4], (cout,), jnp.float32),
             "b2": 0.1 * jax.random.normal(keys[5], (cout,), jnp.float32)}
        if with_proj:
            p["ws"] = 0.2 * jax.random.normal(keys[6], (1, 1, cin, cout), jnp.float32)
            p["gs"] = 1.0 + 0.1 * jax.random.normal(keys[7], (cout,), jnp.float32)
            p["bs"] = 0.1 * jax.random.normal(keys[8], (cout,), jnp.float32)
        return p

    # Case 1: projection shortcut (in_channels != out_channels), stride=1.
    N, Cin, H, W, Cout, stride = 2, 4, 16, 16, 8, 1
    ks = jax.random.split(jax.random.PRNGKey(0), 10)
    x = jax.random.normal(ks[0], (N, Cin, H, W), jnp.float32)
    params = make_params(ks[1:], Cin, Cout, with_proj=True)

    fwd = jax.jit(functools.partial(resnet_basic_block, stride=stride))
    out = jax.block_until_ready(fwd(x, params))
    assert out.shape == (N, Cout, H // stride, W // stride), out.shape

    ref = _ref_block(x, params, stride)
    # bf16 MXU operands (f32 accumulation) => looser tolerance than a pure-f32 check.
    if not jnp.allclose(out, ref, atol=5e-2, rtol=5e-2):
        raise AssertionError("projection case mismatch, max_abs_err="
                             f"{float(jnp.max(jnp.abs(out - ref)))}")

    # Case 2: identity shortcut (in_channels == out_channels), stride=1.
    ks2 = jax.random.split(jax.random.PRNGKey(1), 10)
    C2 = 8
    x2 = jax.random.normal(ks2[0], (N, C2, H, W), jnp.float32)
    params2 = make_params(ks2[1:], C2, C2, with_proj=False)
    out2 = jax.block_until_ready(
        jax.jit(functools.partial(resnet_basic_block, stride=1))(x2, params2))
    ref2 = _ref_block(x2, params2, 1)
    if not jnp.allclose(out2, ref2, atol=5e-2, rtol=5e-2):
        raise AssertionError("identity case mismatch, max_abs_err="
                             f"{float(jnp.max(jnp.abs(out2 - ref2)))}")

    print("KERNEL_OK")
</pallas_src>

<mosaic_0001>
module attributes {stable_mosaic.version = 11 : i64} {
  func.func @_basic_block_kernel(%arg0: memref<2x16x16x4xf32, #tpu.memory_space<vmem>>, %arg1: memref<36x8xbf16, #tpu.memory_space<vmem>>, %arg2: memref<1x8xf32, #tpu.memory_space<vmem>>, %arg3: memref<1x8xf32, #tpu.memory_space<vmem>>, %arg4: memref<72x8xbf16, #tpu.memory_space<vmem>>, %arg5: memref<1x8xf32, #tpu.memory_space<vmem>>, %arg6: memref<1x8xf32, #tpu.memory_space<vmem>>, %arg7: memref<4x8xbf16, #tpu.memory_space<vmem>>, %arg8: memref<1x8xf32, #tpu.memory_space<vmem>>, %arg9: memref<1x8xf32, #tpu.memory_space<vmem>>, %arg10: memref<2x16x16x8xf32, #tpu.memory_space<vmem>>, %arg11: memref<2x18x18x4xf32, #tpu.memory_space<vmem>>, %arg12: memref<2x18x18x8xf32, #tpu.memory_space<vmem>>) attributes {dimension_semantics = [], scalar_prefetch = 0 : i64, scratch_operands = 2 : i64, tpu.core_type = #tpu.core_type<tc>} {
    %c0 = arith.constant 0 : index
    %c0_0 = arith.constant 0 : index
    %c0_1 = arith.constant 0 : index
    %c0_2 = arith.constant 0 : index
    %0 = vector.load %arg0[%c0, %c0_0, %c0_1, %c0_2] : memref<2x16x16x4xf32, #tpu.memory_space<vmem>>, vector<2x16x16x4xf32>
    %cst = arith.constant 0.000000e+00 : f32
    %1 = vector.broadcast %cst : f32 to vector<2x1x18x4xf32>
    %c0_3 = arith.constant 0 : index
    %c0_4 = arith.constant 0 : index
    %c0_5 = arith.constant 0 : index
    %c0_6 = arith.constant 0 : index
    %2 = vector.load %arg11[%c0_3, %c0_4, %c0_5, %c0_6] : memref<2x18x18x4xf32, #tpu.memory_space<vmem>>, vector<2x1x18x4xf32>
    tpu.vector_store %arg11[%c0_3, %c0_4, %c0_5, %c0_6], %1 {strides = array<i32>} : memref<2x18x18x4xf32, #tpu.memory_space<vmem>>, vector<2x1x18x4xf32>,
    %c0_7 = arith.constant 0 : index
    %c17 = arith.constant 17 : index
    %c0_8 = arith.constant 0 : index
    %c0_9 = arith.constant 0 : index
    %3 = vector.load %arg11[%c0_7, %c17, %c0_8, %c0_9] : memref<2x18x18x4xf32, #tpu.memory_space<vmem>>, vector<2x1x18x4xf32>
    tpu.vector_store %arg11[%c0_7, %c17, %c0_8, %c0_9], %1 {strides = array<i32>} : memref<2x18x18x4xf32, #tpu.memory_space<vmem>>, vector<2x1x18x4xf32>,
    %cst_10 = arith.constant 0.000000e+00 : f32
    %4 = vector.broadcast %cst_10 : f32 to vector<2x18x1x4xf32>
    %c0_11 = arith.constant 0 : index
    %c0_12 = arith.constant 0 : index
    %c0_13 = arith.constant 0 : index
    %c0_14 = arith.constant 0 : index
    %5 = vector.load %arg11[%c0_11, %c0_12, %c0_13, %c0_14] : memref<2x18x18x4xf32, #tpu.memory_space<vmem>>, vector<2x18x1x4xf32>
    tpu.vector_store %arg11[%c0_11, %c0_12, %c0_13, %c0_14], %4 {strides = array<i32>} : memref<2x18x18x4xf32, #tpu.memory_space<vmem>>, vector<2x18x1x4xf32>,
    %c0_15 = arith.constant 0 : index
    %c0_16 = arith.constant 0 : index
    %c17_17 = arith.constant 17 : index
    %c0_18 = arith.constant 0 : index
    %6 = vector.load %arg11[%c0_15, %c0_16, %c17_17, %c0_18] : memref<2x18x18x4xf32, #tpu.memory_space<vmem>>, vector<2x18x1x4xf32>
    tpu.vector_store %arg11[%c0_15, %c0_16, %c17_17, %c0_18], %4 {strides = array<i32>} : memref<2x18x18x4xf32, #tpu.memory_space<vmem>>, vector<2x18x1x4xf32>,
    %c0_19 = arith.constant 0 : index
    %c1 = arith.constant 1 : index
    %c1_20 = arith.constant 1 : index
    %c0_21 = arith.constant 0 : index
    %7 = vector.load %arg11[%c0_19, %c1, %c1_20, %c0_21] : memref<2x18x18x4xf32, #tpu.memory_space<vmem>>, vector<2x16x16x4xf32>
    tpu.vector_store %arg11[%c0_19, %c1, %c1_20, %c0_21], %0 {strides = array<i32>} : memref<2x18x18x4xf32, #tpu.memory_space<vmem>>, vector<2x16x16x4xf32>,
    %c0_22 = arith.constant 0 : index
    %c0_23 = arith.constant 0 : index
    %c0_24 = arith.constant 0 : index
    %c0_25 = arith.constant 0 : index
    %8 = vector.load %arg11[%c0_22, %c0_23, %c0_24, %c0_25] : memref<2x18x18x4xf32, #tpu.memory_space<vmem>>, vector<2x16x16x4xf32>
    %9 = vector.shape_cast %8 : vector<2x16x16x4xf32> to vector<512x4xf32>
    %c0_26 = arith.constant 0 : index
    %c0_27 = arith.constant 0 : index
    %c1_28 = arith.constant 1 : index
    %c0_29 = arith.constant 0 : index
    %10 = vector.load %arg11[%c0_26, %c0_27, %c1_28, %c0_29] : memref<2x18x18x4xf32, #tpu.memory_space<vmem>>, vector<2x16x16x4xf32>
    %11 = vector.shape_cast %10 : vector<2x16x16x4xf32> to vector<512x4xf32>
    %c0_30 = arith.constant 0 : index
    %c0_31 = arith.constant 0 : index
    %c2 = arith.constant 2 : index
    %c0_32 = arith.constant 0 : index
    %12 = vector.load %arg11[%c0_30, %c0_31, %c2, %c0_32] : memref<2x18x18x4xf32, #tpu.memory_space<vmem>>, vector<2x16x16x4xf32>
    %13 = vector.shape_cast %12 : vector<2x16x16x4xf32> to vector<512x4xf32>
    %c0_33 = arith.constant 0 : index
    %c1_34 = arith.constant 1 : index
    %c0_35 = arith.constant 0 : index
    %c0_36 = arith.constant 0 : index
    %14 = vector.load %arg11[%c0_33, %c1_34, %c0_35, %c0_36] : memref<2x18x18x4xf32, #tpu.memory_space<vmem>>, vector<2x16x16x4xf32>
    %15 = vector.shape_cast %14 : vector<2x16x16x4xf32> to vector<512x4xf32>
    %c0_37 = arith.constant 0 : index
    %c1_38 = arith.constant 1 : index
    %c1_39 = arith.constant 1 : index
    %c0_40 = arith.constant 0 : index
    %16 = vector.load %arg11[%c0_37, %c1_38, %c1_39, %c0_40] : memref<2x18x18x4xf32, #tpu.memory_space<vmem>>, vector<2x16x16x4xf32>
    %17 = vector.shape_cast %16 : vector<2x16x16x4xf32> to vector<512x4xf32>
    %c0_41 = arith.constant 0 : index
    %c1_42 = arith.constant 1 : index
    %c2_43 = arith.constant 2 : index
    %c0_44 = arith.constant 0 : index
    %18 = vector.load %arg11[%c0_41, %c1_42, %c2_43, %c0_44] : memref<2x18x18x4xf32, #tpu.memory_space<vmem>>, vector<2x16x16x4xf32>
    %19 = vector.shape_cast %18 : vector<2x16x16x4xf32> to vector<512x4xf32>
    %c0_45 = arith.constant 0 : index
    %c2_46 = arith.constant 2 : index
    %c0_47 = arith.constant 0 : index
    %c0_48 = arith.constant 0 : index
    %20 = vector.load %arg11[%c0_45, %c2_46, %c0_47, %c0_48] : memref<2x18x18x4xf32, #tpu.memory_space<vmem>>, vector<2x16x16x4xf32>
    %21 = vector.shape_cast %20 : vector<2x16x16x4xf32> to vector<512x4xf32>
    %c0_49 = arith.constant 0 : index
    %c2_50 = arith.constant 2 : index
    %c1_51 = arith.constant 1 : index
    %c0_52 = arith.constant 0 : index
    %22 = vector.load %arg11[%c0_49, %c2_50, %c1_51, %c0_52] : memref<2x18x18x4xf32, #tpu.memory_space<vmem>>, vector<2x16x16x4xf32>
    %23 = vector.shape_cast %22 : vector<2x16x16x4xf32> to vector<512x4xf32>
    %c0_53 = arith.constant 0 : index
    %c2_54 = arith.constant 2 : index
    %c2_55 = arith.constant 2 : index
    %c0_56 = arith.constant 0 : index
    %24 = vector.load %arg11[%c0_53, %c2_54, %c2_55, %c0_56] : memref<2x18x18x4xf32, #tpu.memory_space<vmem>>, vector<2x16x16x4xf32>
    %25 = vector.shape_cast %24 : vector<2x16x16x4xf32> to vector<512x4xf32>
    %26 = tpu.concatenate %9, %11, %13, %15, %17, %19, %21, %23, %25 in 1 : vector<512x4xf32>, vector<512x4xf32>, vector<512x4xf32>, vector<512x4xf32>, vector<512x4xf32>, vector<512x4xf32>, vector<512x4xf32>, vector<512x4xf32>, vector<512x4xf32> -> vector<512x36xf32>
    %27 = arith.truncf %26 : vector<512x36xf32> to vector<512x36xbf16>
    %c0_57 = arith.constant 0 : index
    %c0_58 = arith.constant 0 : index
    %28 = vector.load %arg1[%c0_57, %c0_58] : memref<36x8xbf16, #tpu.memory_space<vmem>>, vector<36x8xbf16>
    %cst_59 = arith.constant dense<0.000000e+00> : vector<512x8xf32>
    %29 = tpu.matmul %27, %28, %cst_59 {dimension_numbers = #tpu.dot_dimension_numbers<[1], [0], [0], [1], [0, 0, 1, 1], [], []>} : vector<512x36xbf16>, vector<36x8xbf16>, vector<512x8xf32> -> vector<512x8xf32>
    %c0_60 = arith.constant 0 : index
    %c0_61 = arith.constant 0 : index
    %30 = vector.load %arg2[%c0_60, %c0_61] : memref<1x8xf32, #tpu.memory_space<vmem>>, vector<1x8xf32>
    %c0_62 = arith.constant 0 : index
    %c0_63 = arith.constant 0 : index
    %31 = vector.load %arg3[%c0_62, %c0_63] : memref<1x8xf32, #tpu.memory_space<vmem>>, vector<1x8xf32>
    %32 = vector.extract_strided_slice %29 {offsets = [0, 0], sizes = [1, 8], strides = [1, 1]} : vector<512x8xf32> to vector<1x8xf32>
    %33 = vector.broadcast %32 : vector<1x8xf32> to vector<512x8xf32>
    %34 = arith.subf %29, %33 : vector<512x8xf32>
    %cst_64 = arith.constant dense<0.000000e+00> : vector<8xf32>
    %35 = vector.multi_reduction <add>, %34, %cst_64 [0] : vector<512x8xf32> to vector<8xf32>
    %36 = vector.shape_cast %35 : vector<8xf32> to vector<1x8xf32>
    %37 = arith.mulf %34, %34 : vector<512x8xf32>
    %cst_65 = arith.constant dense<0.000000e+00> : vector<8xf32>
    %38 = vector.multi_reduction <add>, %37, %cst_65 [0] : vector<512x8xf32> to vector<8xf32>
    %39 = vector.shape_cast %38 : vector<8xf32> to vector<1x8xf32>
    %cst_66 = arith.constant 0.001953125 : f32
    %40 = vector.broadcast %cst_66 : f32 to vector<1x8xf32>
    %41 = arith.mulf %36, %40 : vector<1x8xf32>
    %cst_67 = arith.constant 0.001953125 : f32
    %42 = vector.broadcast %cst_67 : f32 to vector<1x8xf32>
    %43 = arith.mulf %39, %42 : vector<1x8xf32>
    %44 = arith.mulf %41, %41 : vector<1x8xf32>
    %45 = arith.subf %43, %44 : vector<1x8xf32>
    %cst_68 = arith.constant 0.000000e+00 : f32
    %46 = vector.broadcast %cst_68 : f32 to vector<1x8xf32>
    %47 = arith.maximumf %45, %46 : vector<1x8xf32>
    %48 = arith.addf %41, %32 : vector<1x8xf32>
    %cst_69 = arith.constant 9.99999974E-6 : f32
    %49 = vector.broadcast %cst_69 : f32 to vector<1x8xf32>
    %50 = arith.addf %47, %49 : vector<1x8xf32>
    %51 = math.rsqrt %50 : vector<1x8xf32>
    %52 = arith.mulf %30, %51 : vector<1x8xf32>
    %53 = arith.mulf %48, %52 : vector<1x8xf32>
    %54 = arith.subf %31, %53 : vector<1x8xf32>
    %55 = vector.broadcast %52 : vector<1x8xf32> to vector<512x8xf32>
    %56 = arith.mulf %29, %55 : vector<512x8xf32>
    %57 = vector.broadcast %54 : vector<1x8xf32> to vector<512x8xf32>
    %58 = arith.addf %56, %57 : vector<512x8xf32>
    %cst_70 = arith.constant 0.000000e+00 : f32
    %59 = vector.broadcast %cst_70 : f32 to vector<512x8xf32>
    %60 = arith.maximumf %58, %59 : vector<512x8xf32>
    %61 = vector.shape_cast %60 : vector<512x8xf32> to vector<2x16x16x8xf32>
    %cst_71 = arith.constant 0.000000e+00 : f32
    %62 = vector.broadcast %cst_71 : f32 to vector<2x1x18x8xf32>
    %c0_72 = arith.constant 0 : index
    %c0_73 = arith.constant 0 : index
    %c0_74 = arith.constant 0 : index
    %c0_75 = arith.constant 0 : index
    %63 = vector.load %arg12[%c0_72, %c0_73, %c0_74, %c0_75] : memref<2x18x18x8xf32, #tpu.memory_space<vmem>>, vector<2x1x18x8xf32>
    tpu.vector_store %arg12[%c0_72, %c0_73, %c0_74, %c0_75], %62 {strides = array<i32>} : memref<2x18x18x8xf32, #tpu.memory_space<vmem>>, vector<2x1x18x8xf32>,
    %c0_76 = arith.constant 0 : index
    %c17_77 = arith.constant 17 : index
    %c0_78 = arith.constant 0 : index
    %c0_79 = arith.constant 0 : index
    %64 = vector.load %arg12[%c0_76, %c17_77, %c0_78, %c0_79] : memref<2x18x18x8xf32, #tpu.memory_space<vmem>>, vector<2x1x18x8xf32>
    tpu.vector_store %arg12[%c0_76, %c17_77, %c0_78, %c0_79], %62 {strides = array<i32>} : memref<2x18x18x8xf32, #tpu.memory_space<vmem>>, vector<2x1x18x8xf32>,
    %cst_80 = arith.constant 0.000000e+00 : f32
    %65 = vector.broadcast %cst_80 : f32 to vector<2x18x1x8xf32>
    %c0_81 = arith.constant 0 : index
    %c0_82 = arith.constant 0 : index
    %c0_83 = arith.constant 0 : index
    %c0_84 = arith.constant 0 : index
    %66 = vector.load %arg12[%c0_81, %c0_82, %c0_83, %c0_84] : memref<2x18x18x8xf32, #tpu.memory_space<vmem>>, vector<2x18x1x8xf32>
    tpu.vector_store %arg12[%c0_81, %c0_82, %c0_83, %c0_84], %65 {strides = array<i32>} : memref<2x18x18x8xf32, #tpu.memory_space<vmem>>, vector<2x18x1x8xf32>,
    %c0_85 = arith.constant 0 : index
    %c0_86 = arith.constant 0 : index
    %c17_87 = arith.constant 17 : index
    %c0_88 = arith.constant 0 : index
    %67 = vector.load %arg12[%c0_85, %c0_86, %c17_87, %c0_88] : memref<2x18x18x8xf32, #tpu.memory_space<vmem>>, vector<2x18x1x8xf32>
    tpu.vector_store %arg12[%c0_85, %c0_86, %c17_87, %c0_88], %65 {strides = array<i32>} : memref<2x18x18x8xf32, #tpu.memory_space<vmem>>, vector<2x18x1x8xf32>,
    %c0_89 = arith.constant 0 : index
    %c1_90 = arith.constant 1 : index
    %c1_91 = arith.constant 1 : index
    %c0_92 = arith.constant 0 : index
    %68 = vector.load %arg12[%c0_89, %c1_90, %c1_91, %c0_92] : memref<2x18x18x8xf32, #tpu.memory_space<vmem>>, vector<2x16x16x8xf32>
    tpu.vector_store %arg12[%c0_89, %c1_90, %c1_91, %c0_92], %61 {strides = array<i32>} : memref<2x18x18x8xf32, #tpu.memory_space<vmem>>, vector<2x16x16x8xf32>,
    %c0_93 = arith.constant 0 : index
    %c0_94 = arith.constant 0 : index
    %c0_95 = arith.constant 0 : index
    %c0_96 = arith.constant 0 : index
    %69 = vector.load %arg12[%c0_93, %c0_94, %c0_95, %c0_96] : memref<2x18x18x8xf32, #tpu.memory_space<vmem>>, vector<2x16x16x8xf32>
    %70 = vector.shape_cast %69 : vector<2x16x16x8xf32> to vector<512x8xf32>
    %c0_97 = arith.constant 0 : index
    %c0_98 = arith.constant 0 : index
    %c1_99 = arith.constant 1 : index
    %c0_100 = arith.constant 0 : index
    %71 = vector.load %arg12[%c0_97, %c0_98, %c1_99, %c0_100] : memref<2x18x18x8xf32, #tpu.memory_space<vmem>>, vector<2x16x16x8xf32>
    %72 = vector.shape_cast %71 : vector<2x16x16x8xf32> to vector<512x8xf32>
    %c0_101 = arith.constant 0 : index
    %c0_102 = arith.constant 0 : index
    %c2_103 = arith.constant 2 : index
    %c0_104 = arith.constant 0 : index
    %73 = vector.load %arg12[%c0_101, %c0_102, %c2_103, %c0_104] : memref<2x18x18x8xf32, #tpu.memory_space<vmem>>, vector<2x16x16x8xf32>
    %74 = vector.shape_cast %73 : vector<2x16x16x8xf32> to vector<512x8xf32>
    %c0_105 = arith.constant 0 : index
    %c1_106 = arith.constant 1 : index
    %c0_107 = arith.constant 0 : index
    %c0_108 = arith.constant 0 : index
    %75 = vector.load %arg12[%c0_105, %c1_106, %c0_107, %c0_108] : memref<2x18x18x8xf32, #tpu.memory_space<vmem>>, vector<2x16x16x8xf32>
    %76 = vector.shape_cast %75 : vector<2x16x16x8xf32> to vector<512x8xf32>
    %c0_109 = arith.constant 0 : index
    %c1_110 = arith.constant 1 : index
    %c1_111 = arith.constant 1 : index
    %c0_112 = arith.constant 0 : index
    %77 = vector.load %arg12[%c0_109, %c1_110, %c1_111, %c0_112] : memref<2x18x18x8xf32, #tpu.memory_space<vmem>>, vector<2x16x16x8xf32>
    %78 = vector.shape_cast %77 : vector<2x16x16x8xf32> to vector<512x8xf32>
    %c0_113 = arith.constant 0 : index
    %c1_114 = arith.constant 1 : index
    %c2_115 = arith.constant 2 : index
    %c0_116 = arith.constant 0 : index
    %79 = vector.load %arg12[%c0_113, %c1_114, %c2_115, %c0_116] : memref<2x18x18x8xf32, #tpu.memory_space<vmem>>, vector<2x16x16x8xf32>
    %80 = vector.shape_cast %79 : vector<2x16x16x8xf32> to vector<512x8xf32>
    %c0_117 = arith.constant 0 : index
    %c2_118 = arith.constant 2 : index
    %c0_119 = arith.constant 0 : index
    %c0_120 = arith.constant 0 : index
    %81 = vector.load %arg12[%c0_117, %c2_118, %c0_119, %c0_120] : memref<2x18x18x8xf32, #tpu.memory_space<vmem>>, vector<2x16x16x8xf32>
    %82 = vector.shape_cast %81 : vector<2x16x16x8xf32> to vector<512x8xf32>
    %c0_121 = arith.constant 0 : index
    %c2_122 = arith.constant 2 : index
    %c1_123 = arith.constant 1 : index
    %c0_124 = arith.constant 0 : index
    %83 = vector.load %arg12[%c0_121, %c2_122, %c1_123, %c0_124] : memref<2x18x18x8xf32, #tpu.memory_space<vmem>>, vector<2x16x16x8xf32>
    %84 = vector.shape_cast %83 : vector<2x16x16x8xf32> to vector<512x8xf32>
    %c0_125 = arith.constant 0 : index
    %c2_126 = arith.constant 2 : index
    %c2_127 = arith.constant 2 : index
    %c0_128 = arith.constant 0 : index
    %85 = vector.load %arg12[%c0_125, %c2_126, %c2_127, %c0_128] : memref<2x18x18x8xf32, #tpu.memory_space<vmem>>, vector<2x16x16x8xf32>
    %86 = vector.shape_cast %85 : vector<2x16x16x8xf32> to vector<512x8xf32>
    %87 = tpu.concatenate %70, %72, %74, %76, %78, %80, %82, %84, %86 in 1 : vector<512x8xf32>, vector<512x8xf32>, vector<512x8xf32>, vector<512x8xf32>, vector<512x8xf32>, vector<512x8xf32>, vector<512x8xf32>, vector<512x8xf32>, vector<512x8xf32> -> vector<512x72xf32>
    %88 = arith.truncf %87 : vector<512x72xf32> to vector<512x72xbf16>
    %c0_129 = arith.constant 0 : index
    %c0_130 = arith.constant 0 : index
    %89 = vector.load %arg4[%c0_129, %c0_130] : memref<72x8xbf16, #tpu.memory_space<vmem>>, vector<72x8xbf16>
    %cst_131 = arith.constant dense<0.000000e+00> : vector<512x8xf32>
    %90 = tpu.matmul %88, %89, %cst_131 {dimension_numbers = #tpu.dot_dimension_numbers<[1], [0], [0], [1], [0, 0, 1, 1], [], []>} : vector<512x72xbf16>, vector<72x8xbf16>, vector<512x8xf32> -> vector<512x8xf32>
    %c0_132 = arith.constant 0 : index
    %c0_133 = arith.constant 0 : index
    %91 = vector.load %arg5[%c0_132, %c0_133] : memref<1x8xf32, #tpu.memory_space<vmem>>, vector<1x8xf32>
    %c0_134 = arith.constant 0 : index
    %c0_135 = arith.constant 0 : index
    %92 = vector.load %arg6[%c0_134, %c0_135] : memref<1x8xf32, #tpu.memory_space<vmem>>, vector<1x8xf32>
    %93 = vector.extract_strided_slice %90 {offsets = [0, 0], sizes = [1, 8], strides = [1, 1]} : vector<512x8xf32> to vector<1x8xf32>
    %94 = vector.broadcast %93 : vector<1x8xf32> to vector<512x8xf32>
    %95 = arith.subf %90, %94 : vector<512x8xf32>
    %cst_136 = arith.constant dense<0.000000e+00> : vector<8xf32>
    %96 = vector.multi_reduction <add>, %95, %cst_136 [0] : vector<512x8xf32> to vector<8xf32>
    %97 = vector.shape_cast %96 : vector<8xf32> to vector<1x8xf32>
    %98 = arith.mulf %95, %95 : vector<512x8xf32>
    %cst_137 = arith.constant dense<0.000000e+00> : vector<8xf32>
    %99 = vector.multi_reduction <add>, %98, %cst_137 [0] : vector<512x8xf32> to vector<8xf32>
    %100 = vector.shape_cast %99 : vector<8xf32> to vector<1x8xf32>
    %cst_138 = arith.constant 0.001953125 : f32
    %101 = vector.broadcast %cst_138 : f32 to vector<1x8xf32>
    %102 = arith.mulf %97, %101 : vector<1x8xf32>
    %cst_139 = arith.constant 0.001953125 : f32
    %103 = vector.broadcast %cst_139 : f32 to vector<1x8xf32>
    %104 = arith.mulf %100, %103 : vector<1x8xf32>
    %105 = arith.mulf %102, %102 : vector<1x8xf32>
    %106 = arith.subf %104, %105 : vector<1x8xf32>
    %cst_140 = arith.constant 0.000000e+00 : f32
    %107 = vector.broadcast %cst_140 : f32 to vector<1x8xf32>
    %108 = arith.maximumf %106, %107 : vector<1x8xf32>
    %109 = arith.addf %102, %93 : vector<1x8xf32>
    %cst_141 = arith.constant 9.99999974E-6 : f32
    %110 = vector.broadcast %cst_141 : f32 to vector<1x8xf32>
    %111 = arith.addf %108, %110 : vector<1x8xf32>
    %112 = math.rsqrt %111 : vector<1x8xf32>
    %113 = arith.mulf %91, %112 : vector<1x8xf32>
    %114 = arith.mulf %109, %113 : vector<1x8xf32>
    %115 = arith.subf %92, %114 : vector<1x8xf32>
    %116 = vector.broadcast %113 : vector<1x8xf32> to vector<512x8xf32>
    %117 = arith.mulf %90, %116 : vector<512x8xf32>
    %118 = vector.broadcast %115 : vector<1x8xf32> to vector<512x8xf32>
    %119 = arith.addf %117, %118 : vector<512x8xf32>
    %120 = vector.extract_strided_slice %27 {offsets = [0, 16], sizes = [512, 4], strides = [1, 1]} : vector<512x36xbf16> to vector<512x4xbf16>
    %c0_142 = arith.constant 0 : index
    %c0_143 = arith.constant 0 : index
    %121 = vector.load %arg7[%c0_142, %c0_143] : memref<4x8xbf16, #tpu.memory_space<vmem>>, vector<4x8xbf16>
    %cst_144 = arith.constant dense<0.000000e+00> : vector<512x8xf32>
    %122 = tpu.matmul %120, %121, %cst_144 {dimension_numbers = #tpu.dot_dimension_numbers<[1], [0], [0], [1], [0, 0, 1, 1], [], []>} : vector<512x4xbf16>, vector<4x8xbf16>, vector<512x8xf32> -> vector<512x8xf32>
    %c0_145 = arith.constant 0 : index
    %c0_146 = arith.constant 0 : index
    %123 = vector.load %arg8[%c0_145, %c0_146] : memref<1x8xf32, #tpu.memory_space<vmem>>, vector<1x8xf32>
    %c0_147 = arith.constant 0 : index
    %c0_148 = arith.constant 0 : index
    %124 = vector.load %arg9[%c0_147, %c0_148] : memref<1x8xf32, #tpu.memory_space<vmem>>, vector<1x8xf32>
    %125 = vector.extract_strided_slice %122 {offsets = [0, 0], sizes = [1, 8], strides = [1, 1]} : vector<512x8xf32> to vector<1x8xf32>
    %126 = vector.broadcast %125 : vector<1x8xf32> to vector<512x8xf32>
    %127 = arith.subf %122, %126 : vector<512x8xf32>
    %cst_149 = arith.constant dense<0.000000e+00> : vector<8xf32>
    %128 = vector.multi_reduction <add>, %127, %cst_149 [0] : vector<512x8xf32> to vector<8xf32>
    %129 = vector.shape_cast %128 : vector<8xf32> to vector<1x8xf32>
    %130 = arith.mulf %127, %127 : vector<512x8xf32>
    %cst_150 = arith.constant dense<0.000000e+00> : vector<8xf32>
    %131 = vector.multi_reduction <add>, %130, %cst_150 [0] : vector<512x8xf32> to vector<8xf32>
    %132 = vector.shape_cast %131 : vector<8xf32> to vector<1x8xf32>
    %cst_151 = arith.constant 0.001953125 : f32
    %133 = vector.broadcast %cst_151 : f32 to vector<1x8xf32>
    %134 = arith.mulf %129, %133 : vector<1x8xf32>
    %cst_152 = arith.constant 0.001953125 : f32
    %135 = vector.broadcast %cst_152 : f32 to vector<1x8xf32>
    %136 = arith.mulf %132, %135 : vector<1x8xf32>
    %137 = arith.mulf %134, %134 : vector<1x8xf32>
    %138 = arith.subf %136, %137 : vector<1x8xf32>
    %cst_153 = arith.constant 0.000000e+00 : f32
    %139 = vector.broadcast %cst_153 : f32 to vector<1x8xf32>
    %140 = arith.maximumf %138, %139 : vector<1x8xf32>
    %141 = arith.addf %134, %125 : vector<1x8xf32>
    %cst_154 = arith.constant 9.99999974E-6 : f32
    %142 = vector.broadcast %cst_154 : f32 to vector<1x8xf32>
    %143 = arith.addf %140, %142 : vector<1x8xf32>
    %144 = math.rsqrt %143 : vector<1x8xf32>
    %145 = arith.mulf %123, %144 : vector<1x8xf32>
    %146 = arith.mulf %141, %145 : vector<1x8xf32>
    %147 = arith.subf %124, %146 : vector<1x8xf32>
    %148 = vector.broadcast %145 : vector<1x8xf32> to vector<512x8xf32>
    %149 = arith.mulf %122, %148 : vector<512x8xf32>
    %150 = vector.broadcast %147 : vector<1x8xf32> to vector<512x8xf32>
    %151 = arith.addf %149, %150 : vector<512x8xf32>
    %152 = arith.addf %119, %151 : vector<512x8xf32>
    %cst_155 = arith.constant 0.000000e+00 : f32
    %153 = vector.broadcast %cst_155 : f32 to vector<512x8xf32>
    %154 = arith.maximumf %152, %153 : vector<512x8xf32>
    %155 = vector.shape_cast %154 : vector<512x8xf32> to vector<2x16x16x8xf32>
    %c0_156 = arith.constant 0 : index
    %c0_157 = arith.constant 0 : index
    %c0_158 = arith.constant 0 : index
    %c0_159 = arith.constant 0 : index
    %156 = vector.load %arg10[%c0_156, %c0_157, %c0_158, %c0_159] : memref<2x16x16x8xf32, #tpu.memory_space<vmem>>, vector<2x16x16x8xf32>
    tpu.vector_store %arg10[%c0_156, %c0_157, %c0_158, %c0_159], %155 {strides = array<i32>} : memref<2x16x16x8xf32, #tpu.memory_space<vmem>>, vector<2x16x16x8xf32>,
    return
  }
}

</mosaic_0001>

<llo_original>
// kernel: resnet_basic_block.1
$region0: #{resnet_basic_block.1}
  #allocation0 [shape = 'u32[]', space=smem, size = 0x4, offset = 0x4, fixed_abs, tag = 'smem constant byte address 0x4 - core index']
  #allocation1 [shape = 'u32[144,128]{1,0:T(1,128)}', space=vmem, size = 0x12000, scoped, tag = 'internal scratch']
  #allocation2 [shape = 'f32[2,18,18,4]{3,2,1,0:T(8,128)}', space=vmem, size = 0x6c000, scoped, tag = 'scratch operand']
  #allocation3 [shape = 'f32[2,18,18,8]{3,2,1,0:T(8,128)}', space=vmem, size = 0x6c000, scoped, tag = 'scratch operand']
  %s0 = inlined_call_operand.vmem [shape: f32[2,16,16,4], index: 0, kind: input, shape index: {}]
  %s1 = inlined_call_operand.vmem [shape: bf16[36,8], index: 1, kind: input, shape index: {}]
  %s2 = inlined_call_operand.vmem [shape: f32[1,8], index: 2, kind: input, shape index: {}]
  %s3 = inlined_call_operand.vmem [shape: f32[1,8], index: 3, kind: input, shape index: {}]
  %s4 = inlined_call_operand.vmem [shape: bf16[72,8], index: 4, kind: input, shape index: {}]
  %s5 = inlined_call_operand.vmem [shape: f32[1,8], index: 5, kind: input, shape index: {}]
  %s6 = inlined_call_operand.vmem [shape: f32[1,8], index: 6, kind: input, shape index: {}]
  %s7 = inlined_call_operand.vmem [shape: bf16[4,8], index: 7, kind: input, shape index: {}]
  %s8 = inlined_call_operand.vmem [shape: f32[1,8], index: 8, kind: input, shape index: {}]
  %s9 = inlined_call_operand.vmem [shape: f32[1,8], index: 9, kind: input, shape index: {}]
  %s10 = inlined_call_operand.vmem [shape: f32[2,16,16,8], index: 10, kind: output, shape index: {}]
  %s11 = sld [smem:[#allocation0]]
  $region50: #{resnet_basic_block.1} parent=0
    _
  %s13 = ssub.s32 1, %s11
  %s14 = scalar_select 0, %s13, %s11
  // Predicated region
  $region2: #{resnet_basic_block.1} parent=0 // pred_check
    _
  $region3: #{resnet_basic_block.1} parent=0 // pred_check_branch
    %16 = sbr.rel (0) target = $region5
  $region4: #{resnet_basic_block.1} parent=0 // pred_region
    _
  $region5: #{resnet_basic_block.1} parent=0 // pred_fallthru
    _
  // Predicated region
  $region6: #{resnet_basic_block.1} parent=0 // pred_check
    _
  $region7: #{resnet_basic_block.1} parent=0 // pred_check_branch
    %18 = sbr.rel (0) target = $region9
  $region8: #{resnet_basic_block.1} parent=0 // pred_region
    _
  $region9: #{resnet_basic_block.1} parent=0 // pred_fallthru
    _
  // Predicated region
  $region10: #{resnet_basic_block.1} parent=0 // pred_check
    _
  $region11: #{resnet_basic_block.1} parent=0 // pred_check_branch
    %20 = sbr.rel (0) target = $region13
  $region12: #{resnet_basic_block.1} parent=0 // pred_region
    _
  $region13: #{resnet_basic_block.1} parent=0 // pred_fallthru
    _
  // Predicated region
  $region14: #{resnet_basic_block.1} parent=0 // pred_check
    _
  $region15: #{resnet_basic_block.1} parent=0 // pred_check_branch
    %22 = sbr.rel (0) target = $region17
  $region16: #{resnet_basic_block.1} parent=0 // pred_region
    _
  $region17: #{resnet_basic_block.1} parent=0 // pred_fallthru
    _
  // Predicated region
  $region18: #{resnet_basic_block.1} parent=0 // pred_check
    _
  $region19: #{resnet_basic_block.1} parent=0 // pred_check_branch
    %24 = sbr.rel (0) target = $region21
  $region20: #{resnet_basic_block.1} parent=0 // pred_region
    _
  $region21: #{resnet_basic_block.1} parent=0 // pred_fallthru
    _
  // Predicated region
  $region22: #{resnet_basic_block.1} parent=0 // pred_check
    _
  $region23: #{resnet_basic_block.1} parent=0 // pred_check_branch
    %26 = sbr.rel (0) target = $region25
  $region24: #{resnet_basic_block.1} parent=0 // pred_region
    _
  $region25: #{resnet_basic_block.1} parent=0 // pred_fallthru
    _
  // Predicated region
  $region26: #{resnet_basic_block.1} parent=0 // pred_check
    _
  $region27: #{resnet_basic_block.1} parent=0 // pred_check_branch
    %28 = sbr.rel (0) target = $region29
  $region28: #{resnet_basic_block.1} parent=0 // pred_region
    _
  $region29: #{resnet_basic_block.1} parent=0 // pred_fallthru
    _
  // Predicated region
  $region30: #{resnet_basic_block.1} parent=0 // pred_check
    _
  $region31: #{resnet_basic_block.1} parent=0 // pred_check_branch
    %30 = sbr.rel (0) target = $region33
  $region32: #{resnet_basic_block.1} parent=0 // pred_region
    _
  $region33: #{resnet_basic_block.1} parent=0 // pred_fallthru
    _
  // Predicated region
  $region34: #{resnet_basic_block.1} parent=0 // pred_check
    _
  $region35: #{resnet_basic_block.1} parent=0 // pred_check_branch
    %32 = sbr.rel (0) target = $region37
  $region36: #{resnet_basic_block.1} parent=0 // pred_region
    _
  $region37: #{resnet_basic_block.1} parent=0 // pred_fallthru
    _
  // Predicated region
  $region38: #{resnet_basic_block.1} parent=0 // pred_check
    _
  $region39: #{resnet_basic_block.1} parent=0 // pred_check_branch
    %34 = sbr.rel (0) target = $region41
  $region40: #{resnet_basic_block.1} parent=0 // pred_region
    _
  $region41: #{resnet_basic_block.1} parent=0 // pred_fallthru
    _
  %v36 = vld [vmem:[%s0] sm:$0xff]
  %v37 = vld [vmem:[%s0 + $0x8] sm:$0xff]
  %v38 = vld [vmem:[%s0 + $0x10] sm:$0xff]
  %v39 = vld [vmem:[%s0 + $0x18] sm:$0xff]
  %v40 = vld [vmem:[%s0 + $0x20] sm:$0xff]
  %v41 = vld [vmem:[%s0 + $0x28] sm:$0xff]
  %v42 = vld [vmem:[%s0 + $0x30] sm:$0xff]
  %v43 = vld [vmem:[%s0 + $0x38] sm:$0xff]
  %v44 = vld [vmem:[%s0 + $0x40] sm:$0xff]
  %v45 = vld [vmem:[%s0 + $0x48] sm:$0xff]
  %v46 = vld [vmem:[%s0 + $0x50] sm:$0xff]
  %v47 = vld [vmem:[%s0 + $0x58] sm:$0xff]
  %v48 = vld [vmem:[%s0 + $0x60] sm:$0xff]
  %v49 = vld [vmem:[%s0 + $0x68] sm:$0xff]
  %v50 = vld [vmem:[%s0 + $0x70] sm:$0xff]
  %v51 = vld [vmem:[%s0 + $0x78] sm:$0xff]
  %v52 = vld [vmem:[%s0 + $0x80] sm:$0xff]
  %v53 = vld [vmem:[%s0 + $0x88] sm:$0xff]
  %v54 = vld [vmem:[%s0 + $0x90] sm:$0xff]
  %v55 = vld [vmem:[%s0 + $0x98] sm:$0xff]
  %v56 = vld [vmem:[%s0 + $0xa0] sm:$0xff]
  %v57 = vld [vmem:[%s0 + $0xa8] sm:$0xff]
  %v58 = vld [vmem:[%s0 + $0xb0] sm:$0xff]
  %v59 = vld [vmem:[%s0 + $0xb8] sm:$0xff]
  %v60 = vld [vmem:[%s0 + $0xc0] sm:$0xff]
  %v61 = vld [vmem:[%s0 + $0xc8] sm:$0xff]
  %v62 = vld [vmem:[%s0 + $0xd0] sm:$0xff]
  %v63 = vld [vmem:[%s0 + $0xd8] sm:$0xff]
  %v64 = vld [vmem:[%s0 + $0xe0] sm:$0xff]
  %v65 = vld [vmem:[%s0 + $0xe8] sm:$0xff]
  %v66 = vld [vmem:[%s0 + $0xf0] sm:$0xff]
  %v67 = vld [vmem:[%s0 + $0xf8] sm:$0xff]
  %v68 = vld [vmem:[%s0 + $0x100] sm:$0xff]
  %v69 = vld [vmem:[%s0 + $0x108] sm:$0xff]
  %v70 = vld [vmem:[%s0 + $0x110] sm:$0xff]
  %v71 = vld [vmem:[%s0 + $0x118] sm:$0xff]
  %v72 = vld [vmem:[%s0 + $0x120] sm:$0xff]
  %v73 = vld [vmem:[%s0 + $0x128] sm:$0xff]
  %v74 = vld [vmem:[%s0 + $0x130] sm:$0xff]
  %v75 = vld [vmem:[%s0 + $0x138] sm:$0xff]
  %v76 = vld [vmem:[%s0 + $0x140] sm:$0xff]
  %v77 = vld [vmem:[%s0 + $0x148] sm:$0xff]
  %v78 = vld [vmem:[%s0 + $0x150] sm:$0xff]
  %v79 = vld [vmem:[%s0 + $0x158] sm:$0xff]
  %v80 = vld [vmem:[%s0 + $0x160] sm:$0xff]
  %v81 = vld [vmem:[%s0 + $0x168] sm:$0xff]
  %v82 = vld [vmem:[%s0 + $0x170] sm:$0xff]
  %v83 = vld [vmem:[%s0 + $0x178] sm:$0xff]
  %v84 = vld [vmem:[%s0 + $0x180] sm:$0xff]
  %v85 = vld [vmem:[%s0 + $0x188] sm:$0xff]
  %v86 = vld [vmem:[%s0 + $0x190] sm:$0xff]
  %v87 = vld [vmem:[%s0 + $0x198] sm:$0xff]
  %v88 = vld [vmem:[%s0 + $0x1a0] sm:$0xff]
  %v89 = vld [vmem:[%s0 + $0x1a8] sm:$0xff]
  %v90 = vld [vmem:[%s0 + $0x1b0] sm:$0xff]
  %v91 = vld [vmem:[%s0 + $0x1b8] sm:$0xff]
  %v92 = vld [vmem:[%s0 + $0x1c0] sm:$0xff]
  %v93 = vld [vmem:[%s0 + $0x1c8] sm:$0xff]
  %v94 = vld [vmem:[%s0 + $0x1d0] sm:$0xff]
  %v95 = vld [vmem:[%s0 + $0x1d8] sm:$0xff]
  %v96 = vld [vmem:[%s0 + $0x1e0] sm:$0xff]
  %v97 = vld [vmem:[%s0 + $0x1e8] sm:$0xff]
  %v98 = vld [vmem:[%s0 + $0x1f0] sm:$0xff]
  %v99 = vld [vmem:[%s0 + $0x1f8] sm:$0xff]
  %vm100 = vcmask 31744
  %101 = vst.msk [vmem:[#allocation2] sm:$0xff] %vm100, 0.0
  %102 = vst.msk [vmem:[#allocation2 + $0x8] sm:$0xff] %vm100, 0.0
  %vm103 = vcmask 25600
  %104 = vst.msk [vmem:[#allocation2 + $0x10] sm:$0x3] %vm103, 0.0
  %105 = vst.msk [vmem:[#allocation2 + $0x1b0] sm:$0xff] %vm100, 0.0
  %106 = vst.msk [vmem:[#allocation2 + $0x1b8] sm:$0xff] %vm100, 0.0
  %107 = vst.msk [vmem:[#allocation2 + $0x1c0] sm:$0x3] %vm103, 0.0
  %s108 = scalar_lea.vmem [#allocation2], 408
  %109 = vst.msk [vmem:[%s108] sm:$0xff] %vm100, 0.0
  %110 = vst.msk [vmem:[%s108 + $0x8] sm:$0xff] %vm100, 0.0
  %111 = vst.msk [vmem:[%s108 + $0x10] sm:$0x3] %vm103, 0.0
  %112 = vst.msk [vmem:[%s108 + $0x1b0] sm:$0xff] %vm100, 0.0
  %113 = vst.msk [vmem:[%s108 + $0x1b8] sm:$0xff] %vm100, 0.0
  %114 = vst.msk [vmem:[%s108 + $0x1c0] sm:$0x3] %vm103, 0.0
  %vm115 = vcmask 24576
  %116 = vst.msk [vmem:[#allocation2] sm:$0x1] %vm115, 0.0
  %117 = vst.msk [vmem:[#allocation2 + $0x18] sm:$0x1] %vm115, 0.0
  %118 = vst.msk [vmem:[#allocation2 + $0x30] sm:$0x1] %vm115, 0.0
  %119 = vst.msk [vmem:[#allocation2 + $0x48] sm:$0x1] %vm115, 0.0
  %120 = vst.msk [vmem:[#allocation2 + $0x60] sm:$0x1] %vm115, 0.0
  %121 = vst.msk [vmem:[#allocation2 + $0x78] sm:$0x1] %vm115, 0.0
  %122 = vst.msk [vmem:[#allocation2 + $0x90] sm:$0x1] %vm115, 0.0
  %123 = vst.msk [vmem:[#allocation2 + $0xa8] sm:$0x1] %vm115, 0.0
  %124 = vst.msk [vmem:[#allocation2 + $0xc0] sm:$0x1] %vm115, 0.0
  %125 = vst.msk [vmem:[#allocation2 + $0xd8] sm:$0x1] %vm115, 0.0
  %126 = vst.msk [vmem:[#allocation2 + $0xf0] sm:$0x1] %vm115, 0.0
  %127 = vst.msk [vmem:[#allocation2 + $0x108] sm:$0x1] %vm115, 0.0
  %128 = vst.msk [vmem:[#allocation2 + $0x120] sm:$0x1] %vm115, 0.0
  %129 = vst.msk [vmem:[#allocation2 + $0x138] sm:$0x1] %vm115, 0.0
  %130 = vst.msk [vmem:[#allocation2 + $0x150] sm:$0x1] %vm115, 0.0
  %131 = vst.msk [vmem:[#allocation2 + $0x168] sm:$0x1] %vm115, 0.0
  %132 = vst.msk [vmem:[#allocation2 + $0x180] sm:$0x1] %vm115, 0.0
  %133 = vst.msk [vmem:[#allocation2 + $0x198] sm:$0x1] %vm115, 0.0
  %134 = vst.msk [vmem:[#allocation2 + $0x1b0] sm:$0x1] %vm115, 0.0
  %135 = vst.msk [vmem:[#allocation2 + $0x1c8] sm:$0x1] %vm115, 0.0
  %136 = vst.msk [vmem:[#allocation2 + $0x1e0] sm:$0x1] %vm115, 0.0
  %137 = vst.msk [vmem:[#allocation2 + $0x1f8] sm:$0x1] %vm115, 0.0
  %138 = vst.msk [vmem:[#allocation2 + $0x210] sm:$0x1] %vm115, 0.0
  %139 = vst.msk [vmem:[#allocation2 + $0x228] sm:$0x1] %vm115, 0.0
  %140 = vst.msk [vmem:[#allocation2 + $0x240] sm:$0x1] %vm115, 0.0
  %141 = vst.msk [vmem:[#allocation2 + $0x258] sm:$0x1] %vm115, 0.0
  %142 = vst.msk [vmem:[#allocation2 + $0x270] sm:$0x1] %vm115, 0.0
  %143 = vst.msk [vmem:[#allocation2 + $0x288] sm:$0x1] %vm115, 0.0
  %144 = vst.msk [vmem:[#allocation2 + $0x2a0] sm:$0x1] %vm115, 0.0
  %145 = vst.msk [vmem:[#allocation2 + $0x2b8] sm:$0x1] %vm115, 0.0
  %146 = vst.msk [vmem:[#allocation2 + $0x2d0] sm:$0x1] %vm115, 0.0
  %147 = vst.msk [vmem:[#allocation2 + $0x2e8] sm:$0x1] %vm115, 0.0
  %148 = vst.msk [vmem:[#allocation2 + $0x300] sm:$0x1] %vm115, 0.0
  %149 = vst.msk [vmem:[#allocation2 + $0x318] sm:$0x1] %vm115, 0.0
  %150 = vst.msk [vmem:[#allocation2 + $0x330] sm:$0x1] %vm115, 0.0
  %151 = vst.msk [vmem:[#allocation2 + $0x348] sm:$0x1] %vm115, 0.0
  %152 = vst.msk [vmem:[#allocation2 + $0x11] sm:$0x1] %vm115, 0.0
  %153 = vst.msk [vmem:[#allocation2 + $0x29] sm:$0x1] %vm115, 0.0
  %154 = vst.msk [vmem:[#allocation2 + $0x41] sm:$0x1] %vm115, 0.0
  %155 = vst.msk [vmem:[#allocation2 + $0x59] sm:$0x1] %vm115, 0.0
  %156 = vst.msk [vmem:[#allocation2 + $0x71] sm:$0x1] %vm115, 0.0
  %157 = vst.msk [vmem:[#allocation2 + $0x89] sm:$0x1] %vm115, 0.0
  %158 = vst.msk [vmem:[#allocation2 + $0xa1] sm:$0x1] %vm115, 0.0
  %159 = vst.msk [vmem:[#allocation2 + $0xb9] sm:$0x1] %vm115, 0.0
  %160 = vst.msk [vmem:[#allocation2 + $0xd1] sm:$0x1] %vm115, 0.0
  %161 = vst.msk [vmem:[#allocation2 + $0xe9] sm:$0x1] %vm115, 0.0
  %162 = vst.msk [vmem:[#allocation2 + $0x101] sm:$0x1] %vm115, 0.0
  %163 = vst.msk [vmem:[#allocation2 + $0x119] sm:$0x1] %vm115, 0.0
  %164 = vst.msk [vmem:[#allocation2 + $0x131] sm:$0x1] %vm115, 0.0
  %165 = vst.msk [vmem:[#allocation2 + $0x149] sm:$0x1] %vm115, 0.0
  %166 = vst.msk [vmem:[#allocation2 + $0x161] sm:$0x1] %vm115, 0.0
  %167 = vst.msk [vmem:[#allocation2 + $0x179] sm:$0x1] %vm115, 0.0
  %168 = vst.msk [vmem:[#allocation2 + $0x191] sm:$0x1] %vm115, 0.0
  %169 = vst.msk [vmem:[#allocation2 + $0x1a9] sm:$0x1] %vm115, 0.0
  %170 = vst.msk [vmem:[#allocation2 + $0x1c1] sm:$0x1] %vm115, 0.0
  %171 = vst.msk [vmem:[#allocation2 + $0x1d9] sm:$0x1] %vm115, 0.0
  %172 = vst.msk [vmem:[#allocation2 + $0x1f1] sm:$0x1] %vm115, 0.0
  %173 = vst.msk [vmem:[#allocation2 + $0x209] sm:$0x1] %vm115, 0.0
  %174 = vst.msk [vmem:[#allocation2 + $0x221] sm:$0x1] %vm115, 0.0
  %175 = vst.msk [vmem:[#allocation2 + $0x239] sm:$0x1] %vm115, 0.0
  %176 = vst.msk [vmem:[#allocation2 + $0x251] sm:$0x1] %vm115, 0.0
  %177 = vst.msk [vmem:[#allocation2 + $0x269] sm:$0x1] %vm115, 0.0
  %178 = vst.msk [vmem:[#allocation2 + $0x281] sm:$0x1] %vm115, 0.0
  %179 = vst.msk [vmem:[#allocation2 + $0x299] sm:$0x1] %vm115, 0.0
  %180 = vst.msk [vmem:[#allocation2 + $0x2b1] sm:$0x1] %vm115, 0.0
  %181 = vst.msk [vmem:[#allocation2 + $0x2c9] sm:$0x1] %vm115, 0.0
  %182 = vst.msk [vmem:[#allocation2 + $0x2e1] sm:$0x1] %vm115, 0.0
  %183 = vst.msk [vmem:[#allocation2 + $0x2f9] sm:$0x1] %vm115, 0.0
  %184 = vst.msk [vmem:[#allocation2 + $0x311] sm:$0x1] %vm115, 0.0
  %185 = vst.msk [vmem:[#allocation2 + $0x329] sm:$0x1] %vm115, 0.0
  %186 = vst.msk [vmem:[#allocation2 + $0x341] sm:$0x1] %vm115, 0.0
  %187 = vst.msk [vmem:[#allocation2 + $0x359] sm:$0x1] %vm115, 0.0
  %s188 = scalar_lea.vmem [#allocation2], 24
  %189 = vst.msk [vmem:[%s188 + $0x1] sm:$0xff] %vm100, %v36
  %190 = vst.msk [vmem:[%s188 + $0x9] sm:$0xff] %vm100, %v37
  %191 = vst.msk [vmem:[%s188 + $0x19] sm:$0xff] %vm100, %v38
  %192 = vst.msk [vmem:[%s188 + $0x21] sm:$0xff] %vm100, %v39
  %193 = vst.msk [vmem:[%s188 + $0x31] sm:$0xff] %vm100, %v40
  %194 = vst.msk [vmem:[%s188 + $0x39] sm:$0xff] %vm100, %v41
  %195 = vst.msk [vmem:[%s188 + $0x49] sm:$0xff] %vm100, %v42
  %196 = vst.msk [vmem:[%s188 + $0x51] sm:$0xff] %vm100, %v43
  %197 = vst.msk [vmem:[%s188 + $0x61] sm:$0xff] %vm100, %v44
  %198 = vst.msk [vmem:[%s188 + $0x69] sm:$0xff] %vm100, %v45
  %199 = vst.msk [vmem:[%s188 + $0x79] sm:$0xff] %vm100, %v46
  %200 = vst.msk [vmem:[%s188 + $0x81] sm:$0xff] %vm100, %v47
  %201 = vst.msk [vmem:[%s188 + $0x91] sm:$0xff] %vm100, %v48
  %202 = vst.msk [vmem:[%s188 + $0x99] sm:$0xff] %vm100, %v49
  %203 = vst.msk [vmem:[%s188 + $0xa9] sm:$0xff] %vm100, %v50
  %204 = vst.msk [vmem:[%s188 + $0xb1] sm:$0xff] %vm100, %v51
  %205 = vst.msk [vmem:[%s188 + $0xc1] sm:$0xff] %vm100, %v52
  %206 = vst.msk [vmem:[%s188 + $0xc9] sm:$0xff] %vm100, %v53
  %207 = vst.msk [vmem:[%s188 + $0xd9] sm:$0xff] %vm100, %v54
  %208 = vst.msk [vmem:[%s188 + $0xe1] sm:$0xff] %vm100, %v55
  %209 = vst.msk [vmem:[%s188 + $0xf1] sm:$0xff] %vm100, %v56
  %210 = vst.msk [vmem:[%s188 + $0xf9] sm:$0xff] %vm100, %v57
  %211 = vst.msk [vmem:[%s188 + $0x109] sm:$0xff] %vm100, %v58
  %212 = vst.msk [vmem:[%s188 + $0x111] sm:$0xff] %vm100, %v59
  %213 = vst.msk [vmem:[%s188 + $0x121] sm:$0xff] %vm100, %v60
  %214 = vst.msk [vmem:[%s188 + $0x129] sm:$0xff] %vm100, %v61
  %215 = vst.msk [vmem:[%s188 + $0x139] sm:$0xff] %vm100, %v62
  %216 = vst.msk [vmem:[%s188 + $0x141] sm:$0xff] %vm100, %v63
  %217 = vst.msk [vmem:[%s188 + $0x151] sm:$0xff] %vm100, %v64
  %218 = vst.msk [vmem:[%s188 + $0x159] sm:$0xff] %vm100, %v65
  %219 = vst.msk [vmem:[%s188 + $0x169] sm:$0xff] %vm100, %v66
  %220 = vst.msk [vmem:[%s188 + $0x171] sm:$0xff] %vm100, %v67
  %221 = vst.msk [vmem:[%s188 + $0x1b1] sm:$0xff] %vm100, %v68
  %222 = vst.msk [vmem:[%s188 + $0x1b9] sm:$0xff] %vm100, %v69
  %223 = vst.msk [vmem:[%s188 + $0x1c9] sm:$0xff] %vm100, %v70
  %224 = vst.msk [vmem:[%s188 + $0x1d1] sm:$0xff] %vm100, %v71
  %225 = vst.msk [vmem:[%s188 + $0x1e1] sm:$0xff] %vm100, %v72
  %226 = vst.msk [vmem:[%s188 + $0x1e9] sm:$0xff] %vm100, %v73
  %227 = vst.msk [vmem:[%s188 + $0x1f9] sm:$0xff] %vm100, %v74
  %228 = vst.msk [vmem:[%s188 + $0x201] sm:$0xff] %vm100, %v75
  %229 = vst.msk [vmem:[%s188 + $0x211] sm:$0xff] %vm100, %v76
  %230 = vst.msk [vmem:[%s188 + $0x219] sm:$0xff] %vm100, %v77
  %231 = vst.msk [vmem:[%s188 + $0x229] sm:$0xff] %vm100, %v78
  %232 = vst.msk [vmem:[%s188 + $0x231] sm:$0xff] %vm100, %v79
  %233 = vst.msk [vmem:[%s188 + $0x241] sm:$0xff] %vm100, %v80
  %234 = vst.msk [vmem:[%s188 + $0x249] sm:$0xff] %vm100, %v81
  %235 = vst.msk [vmem:[%s188 + $0x259] sm:$0xff] %vm100, %v82
  %236 = vst.msk [vmem:[%s188 + $0x261] sm:$0xff] %vm100, %v83
  %237 = vst.msk [vmem:[%s188 + $0x271] sm:$0xff] %vm100, %v84
  %238 = vst.msk [vmem:[%s188 + $0x279] sm:$0xff] %vm100, %v85
  %239 = vst.msk [vmem:[%s188 + $0x289] sm:$0xff] %vm100, %v86
  %240 = vst.msk [vmem:[%s188 + $0x291] sm:$0xff] %vm100, %v87
  %241 = vst.msk [vmem:[%s188 + $0x2a1] sm:$0xff] %vm100, %v88
  %242 = vst.msk [vmem:[%s188 + $0x2a9] sm:$0xff] %vm100, %v89
  %243 = vst.msk [vmem:[%s188 + $0x2b9] sm:$0xff] %vm100, %v90
  %244 = vst.msk [vmem:[%s188 + $0x2c1] sm:$0xff] %vm100, %v91
  %245 = vst.msk [vmem:[%s188 + $0x2d1] sm:$0xff] %vm100, %v92
  %246 = vst.msk [vmem:[%s188 + $0x2d9] sm:$0xff] %vm100, %v93
  %247 = vst.msk [vmem:[%s188 + $0x2e9] sm:$0xff] %vm100, %v94
  %248 = vst.msk [vmem:[%s188 + $0x2f1] sm:$0xff] %vm100, %v95
  %249 = vst.msk [vmem:[%s188 + $0x301] sm:$0xff] %vm100, %v96
  %250 = vst.msk [vmem:[%s188 + $0x309] sm:$0xff] %vm100, %v97
  %251 = vst.msk [vmem:[%s188 + $0x319] sm:$0xff] %vm100, %v98
  %252 = vst.msk [vmem:[%s188 + $0x321] sm:$0xff] %vm100, %v99
  %v253 = vld [vmem:[#allocation2] sm:$0xff]
  %v254 = vld [vmem:[#allocation2 + $0x8] sm:$0xff]
  %v255 = vld [vmem:[#allocation2 + $0x18] sm:$0xff]
  %v256 = vld [vmem:[#allocation2 + $0x20] sm:$0xff]
  %v257 = vld [vmem:[#allocation2 + $0x30] sm:$0xff]
  %v258 = vld [vmem:[#allocation2 + $0x38] sm:$0xff]
  %v259 = vld [vmem:[#allocation2 + $0x48] sm:$0xff]
  %v260 = vld [vmem:[#allocation2 + $0x50] sm:$0xff]
  %v261 = vld [vmem:[#allocation2 + $0x60] sm:$0xff]
  %v262 = vld [vmem:[#allocation2 + $0x68] sm:$0xff]
  %v263 = vld [vmem:[#allocation2 + $0x78] sm:$0xff]
  %v264 = vld [vmem:[#allocation2 + $0x80] sm:$0xff]
  %v265 = vld [vmem:[#allocation2 + $0x90] sm:$0xff]
  %v266 = vld [vmem:[#allocation2 + $0x98] sm:$0xff]
  %v267 = vld [vmem:[#allocation2 + $0xa8] sm:$0xff]
  %v268 = vld [vmem:[#allocation2 + $0xb0] sm:$0xff]
  %v269 = vld [vmem:[#allocation2 + $0xc0] sm:$0xff]
  %v270 = vld [vmem:[#allocation2 + $0xc8] sm:$0xff]
  %v271 = vld [vmem:[#allocation2 + $0xd8] sm:$0xff]
  %v272 = vld [vmem:[#allocation2 + $0xe0] sm:$0xff]
  %v273 = vld [vmem:[#allocation2 + $0xf0] sm:$0xff]
  %v274 = vld [vmem:[#allocation2 + $0xf8] sm:$0xff]
  %v275 = vld [vmem:[#allocation2 + $0x108] sm:$0xff]
  %v276 = vld [vmem:[#allocation2 + $0x110] sm:$0xff]
  %v277 = vld [vmem:[#allocation2 + $0x120] sm:$0xff]
  %v278 = vld [vmem:[#allocation2 + $0x128] sm:$0xff]
  %v279 = vld [vmem:[#allocation2 + $0x138] sm:$0xff]
  %v280 = vld [vmem:[#allocation2 + $0x140] sm:$0xff]
  %v281 = vld [vmem:[#allocation2 + $0x150] sm:$0xff]
  %v282 = vld [vmem:[#allocation2 + $0x158] sm:$0xff]
  %v283 = vld [vmem:[#allocation2 + $0x168] sm:$0xff]
  %v284 = vld [vmem:[#allocation2 + $0x170] sm:$0xff]
  %v285 = vld [vmem:[#allocation2 + $0x1b0] sm:$0xff]
  %v286 = vld [vmem:[#allocation2 + $0x1b8] sm:$0xff]
  %v287 = vld [vmem:[#allocation2 + $0x1c8] sm:$0xff]
  %v288 = vld [vmem:[#allocation2 + $0x1d0] sm:$0xff]
  %v289 = vld [vmem:[#allocation2 + $0x1e0] sm:$0xff]
  %v290 = vld [vmem:[#allocation2 + $0x1e8] sm:$0xff]
  %v291 = vld [vmem:[#allocation2 + $0x1f8] sm:$0xff]
  %v292 = vld [vmem:[#allocation2 + $0x200] sm:$0xff]
  %v293 = vld [vmem:[#allocation2 + $0x210] sm:$0xff]
  %v294 = vld [vmem:[#allocation2 + $0x218] sm:$0xff]
  %v295 = vld [vmem:[#allocation2 + $0x228] sm:$0xff]
  %v296 = vld [vmem:[#allocation2 + $0x230] sm:$0xff]
  %v297 = vld [vmem:[#allocation2 + $0x240] sm:$0xff]
  %v298 = vld [vmem:[#allocation2 + $0x248] sm:$0xff]
  %v299 = vld [vmem:[#allocation2 + $0x258] sm:$0xff]
  %v300 = vld [vmem:[#allocation2 + $0x260] sm:$0xff]
  %v301 = vld [vmem:[#allocation2 + $0x270] sm:$0xff]
  %v302 = vld [vmem:[#allocation2 + $0x278] sm:$0xff]
  %v303 = vld [vmem:[#allocation2 + $0x288] sm:$0xff]
  %v304 = vld [vmem:[#allocation2 + $0x290] sm:$0xff]
  %v305 = vld [vmem:[#allocation2 + $0x2a0] sm:$0xff]
  %v306 = vld [vmem:[#allocation2 + $0x2a8] sm:$0xff]
  %v307 = vld [vmem:[#allocation2 + $0x2b8] sm:$0xff]
  %v308 = vld [vmem:[#allocation2 + $0x2c0] sm:$0xff]
  %v309 = vld [vmem:[#allocation2 + $0x2d0] sm:$0xff]
  %v310 = vld [vmem:[#allocation2 + $0x2d8] sm:$0xff]
  %v311 = vld [vmem:[#allocation2 + $0x2e8] sm:$0xff]
  %v312 = vld [vmem:[#allocation2 + $0x2f0] sm:$0xff]
  %v313 = vld [vmem:[#allocation2 + $0x300] sm:$0xff]
  %v314 = vld [vmem:[#allocation2 + $0x308] sm:$0xff]
  %v315 = vld [vmem:[#allocation2 + $0x318] sm:$0xff]
  %v316 = vld [vmem:[#allocation2 + $0x320] sm:$0xff]
  %v317 = vld [vmem:[#allocation2 + $0x1] sm:$0xff]
  %v318 = vld [vmem:[#allocation2 + $0x9] sm:$0xff]
  %v319 = vld [vmem:[#allocation2 + $0x19] sm:$0xff]
  %v320 = vld [vmem:[#allocation2 + $0x21] sm:$0xff]
  %v321 = vld [vmem:[#allocation2 + $0x31] sm:$0xff]
  %v322 = vld [vmem:[#allocation2 + $0x39] sm:$0xff]
  %v323 = vld [vmem:[#allocation2 + $0x49] sm:$0xff]
  %v324 = vld [vmem:[#allocation2 + $0x51] sm:$0xff]
  %v325 = vld [vmem:[#allocation2 + $0x61] sm:$0xff]
  %v326 = vld [vmem:[#allocation2 + $0x69] sm:$0xff]
  %v327 = vld [vmem:[#allocation2 + $0x79] sm:$0xff]
  %v328 = vld [vmem:[#allocation2 + $0x81] sm:$0xff]
  %v329 = vld [vmem:[#allocation2 + $0x91] sm:$0xff]
  %v330 = vld [vmem:[#allocation2 + $0x99] sm:$0xff]
  %v331 = vld [vmem:[#allocation2 + $0xa9] sm:$0xff]
  %v332 = vld [vmem:[#allocation2 + $0xb1] sm:$0xff]
  %v333 = vld [vmem:[#allocation2 + $0xc1] sm:$0xff]
  %v334 = vld [vmem:[#allocation2 + $0xc9] sm:$0xff]
  %v335 = vld [vmem:[#allocation2 + $0xd9] sm:$0xff]
  %v336 = vld [vmem:[#allocation2 + $0xe1] sm:$0xff]
  %v337 = vld [vmem:[#allocation2 + $0xf1] sm:$0xff]
  %v338 = vld [vmem:[#allocation2 + $0xf9] sm:$0xff]
  %v339 = vld [vmem:[#allocation2 + $0x109] sm:$0xff]
  %v340 = vld [vmem:[#allocation2 + $0x111] sm:$0xff]
  %v341 = vld [vmem:[#allocation2 + $0x121] sm:$0xff]
  %v342 = vld [vmem:[#allocation2 + $0x129] sm:$0xff]
  %v343 = vld [vmem:[#allocation2 + $0x139] sm:$0xff]
  %v344 = vld [vmem:[#allocation2 + $0x141] sm:$0xff]
  %v345 = vld [vmem:[#allocation2 + $0x151] sm:$0xff]
  %v346 = vld [vmem:[#allocation2 + $0x159] sm:$0xff]
  %v347 = vld [vmem:[#allocation2 + $0x169] sm:$0xff]
  %v348 = vld [vmem:[#allocation2 + $0x171] sm:$0xff]
  %v349 = vld [vmem:[#allocation2 + $0x1b1] sm:$0xff]
  %v350 = vld [vmem:[#allocation2 + $0x1b9] sm:$0xff]
  %v351 = vld [vmem:[#allocation2 + $0x1c9] sm:$0xff]
  %v352 = vld [vmem:[#allocation2 + $0x1d1] sm:$0xff]
  %v353 = vld [vmem:[#allocation2 + $0x1e1] sm:$0xff]
  %v354 = vld [vmem:[#allocation2 + $0x1e9] sm:$0xff]
  %v355 = vld [vmem:[#allocation2 + $0x1f9] sm:$0xff]
  %v356 = vld [vmem:[#allocation2 + $0x201] sm:$0xff]
  %v357 = vld [vmem:[#allocation2 + $0x211] sm:$0xff]
  %v358 = vld [vmem:[#allocation2 + $0x219] sm:$0xff]
  %v359 = vld [vmem:[#allocation2 + $0x229] sm:$0xff]
  %v360 = vld [vmem:[#allocation2 + $0x231] sm:$0xff]
  %v361 = vld [vmem:[#allocation2 + $0x241] sm:$0xff]
  %v362 = vld [vmem:[#allocation2 + $0x249] sm:$0xff]
  %v363 = vld [vmem:[#allocation2 + $0x259] sm:$0xff]
  %v364 = vld [vmem:[#allocation2 + $0x261] sm:$0xff]
  %v365 = vld [vmem:[#allocation2 + $0x271] sm:$0xff]
  %v366 = vld [vmem:[#allocation2 + $0x279] sm:$0xff]
  %v367 = vld [vmem:[#allocation2 + $0x289] sm:$0xff]
  %v368 = vld [vmem:[#allocation2 + $0x291] sm:$0xff]
  %v369 = vld [vmem:[#allocation2 + $0x2a1] sm:$0xff]
  %v370 = vld [vmem:[#allocation2 + $0x2a9] sm:$0xff]
  %v371 = vld [vmem:[#allocation2 + $0x2b9] sm:$0xff]
  %v372 = vld [vmem:[#allocation2 + $0x2c1] sm:$0xff]
  %v373 = vld [vmem:[#allocation2 + $0x2d1] sm:$0xff]
  %v374 = vld [vmem:[#allocation2 + $0x2d9] sm:$0xff]
  %v375 = vld [vmem:[#allocation2 + $0x2e9] sm:$0xff]
  %v376 = vld [vmem:[#allocation2 + $0x2f1] sm:$0xff]
  %v377 = vld [vmem:[#allocation2 + $0x301] sm:$0xff]
  %v378 = vld [vmem:[#allocation2 + $0x309] sm:$0xff]
  %v379 = vld [vmem:[#allocation2 + $0x319] sm:$0xff]
  %v380 = vld [vmem:[#allocation2 + $0x321] sm:$0xff]
  %v381 = vld [vmem:[#allocation2 + $0x2] sm:$0xff]
  %v382 = vld [vmem:[#allocation2 + $0xa] sm:$0xff]
  %v383 = vld [vmem:[#allocation2 + $0x1a] sm:$0xff]
  %v384 = vld [vmem:[#allocation2 + $0x22] sm:$0xff]
  %v385 = vld [vmem:[#allocation2 + $0x32] sm:$0xff]
  %v386 = vld [vmem:[#allocation2 + $0x3a] sm:$0xff]
  %v387 = vld [vmem:[#allocation2 + $0x4a] sm:$0xff]
  %v388 = vld [vmem:[#allocation2 + $0x52] sm:$0xff]
  %v389 = vld [vmem:[#allocation2 + $0x62] sm:$0xff]
  %v390 = vld [vmem:[#allocation2 + $0x6a] sm:$0xff]
  %v391 = vld [vmem:[#allocation2 + $0x7a] sm:$0xff]
  %v392 = vld [vmem:[#allocation2 + $0x82] sm:$0xff]
  %v393 = vld [vmem:[#allocation2 + $0x92] sm:$0xff]
  %v394 = vld [vmem:[#allocation2 + $0x9a] sm:$0xff]
  %v395 = vld [vmem:[#allocation2 + $0xaa] sm:$0xff]
  %v396 = vld [vmem:[#allocation2 + $0xb2] sm:$0xff]
  %v397 = vld [vmem:[#allocation2 + $0xc2] sm:$0xff]
  %v398 = vld [vmem:[#allocation2 + $0xca] sm:$0xff]
  %v399 = vld [vmem:[#allocation2 + $0xda] sm:$0xff]
  %v400 = vld [vmem:[#allocation2 + $0xe2] sm:$0xff]
  %v401 = vld [vmem:[#allocation2 + $0xf2] sm:$0xff]
  %v402 = vld [vmem:[#allocation2 + $0xfa] sm:$0xff]
  %v403 = vld [vmem:[#allocation2 + $0x10a] sm:$0xff]
  %v404 = vld [vmem:[#allocation2 + $0x112] sm:$0xff]
  %v405 = vld [vmem:[#allocation2 + $0x122] sm:$0xff]
  %v406 = vld [vmem:[#allocation2 + $0x12a] sm:$0xff]
  %v407 = vld [vmem:[#allocation2 + $0x13a] sm:$0xff]
  %v408 = vld [vmem:[#allocation2 + $0x142] sm:$0xff]
  %v409 = vld [vmem:[#allocation2 + $0x152] sm:$0xff]
  %v410 = vld [vmem:[#allocation2 + $0x15a] sm:$0xff]
  %v411 = vld [vmem:[#allocation2 + $0x16a] sm:$0xff]
  %v412 = vld [vmem:[#allocation2 + $0x172] sm:$0xff]
  %v413 = vld [vmem:[#allocation2 + $0x1b2] sm:$0xff]
  %v414 = vld [vmem:[#allocation2 + $0x1ba] sm:$0xff]
  %v415 = vld [vmem:[#allocation2 + $0x1ca] sm:$0xff]
  %v416 = vld [vmem:[#allocation2 + $0x1d2] sm:$0xff]
  %v417 = vld [vmem:[#allocation2 + $0x1e2] sm:$0xff]
  %v418 = vld [vmem:[#allocation2 + $0x1ea] sm:$0xff]
  %v419 = vld [vmem:[#allocation2 + $0x1fa] sm:$0xff]
  %v420 = vld [vmem:[#allocation2 + $0x202] sm:$0xff]
  %v421 = vld [vmem:[#allocation2 + $0x212] sm:$0xff]
  %v422 = vld [vmem:[#allocation2 + $0x21a] sm:$0xff]
  %v423 = vld [vmem:[#allocation2 + $0x22a] sm:$0xff]
  %v424 = vld [vmem:[#allocation2 + $0x232] sm:$0xff]
  %v425 = vld [vmem:[#allocation2 + $0x242] sm:$0xff]
  %v426 = vld [vmem:[#allocation2 + $0x24a] sm:$0xff]
  %v427 = vld [vmem:[#allocation2 + $0x25a] sm:$0xff]
  %v428 = vld [vmem:[#allocation2 + $0x262] sm:$0xff]
  %v429 = vld [vmem:[#allocation2 + $0x272] sm:$0xff]
  %v430 = vld [vmem:[#allocation2 + $0x27a] sm:$0xff]
  %v431 = vld [vmem:[#allocation2 + $0x28a] sm:$0xff]
  %v432 = vld [vmem:[#allocation2 + $0x292] sm:$0xff]
  %v433 = vld [vmem:[#allocation2 + $0x2a2] sm:$0xff]
  %v434 = vld [vmem:[#allocation2 + $0x2aa] sm:$0xff]
  %v435 = vld [vmem:[#allocation2 + $0x2ba] sm:$0xff]
  %v436 = vld [vmem:[#allocation2 + $0x2c2] sm:$0xff]
  %v437 = vld [vmem:[#allocation2 + $0x2d2] sm:$0xff]
  %v438 = vld [vmem:[#allocation2 + $0x2da] sm:$0xff]
  %v439 = vld [vmem:[#allocation2 + $0x2ea] sm:$0xff]
  %v440 = vld [vmem:[#allocation2 + $0x2f2] sm:$0xff]
  %v441 = vld [vmem:[#allocation2 + $0x302] sm:$0xff]
  %v442 = vld [vmem:[#allocation2 + $0x30a] sm:$0xff]
  %v443 = vld [vmem:[#allocation2 + $0x31a] sm:$0xff]
  %v444 = vld [vmem:[#allocation2 + $0x322] sm:$0xff]
  %v445 = vld [vmem:[%s188] sm:$0xff]
  %v446 = vld [vmem:[%s188 + $0x8] sm:$0xff]
  %v447 = vld [vmem:[%s188 + $0x18] sm:$0xff]
  %v448 = vld [vmem:[%s188 + $0x20] sm:$0xff]
  %v449 = vld [vmem:[%s188 + $0x30] sm:$0xff]
  %v450 = vld [vmem:[%s188 + $0x38] sm:$0xff]
  %v451 = vld [vmem:[%s188 + $0x48] sm:$0xff]
  %v452 = vld [vmem:[%s188 + $0x50] sm:$0xff]
  %v453 = vld [vmem:[%s188 + $0x60] sm:$0xff]
  %v454 = vld [vmem:[%s188 + $0x68] sm:$0xff]
  %v455 = vld [vmem:[%s188 + $0x78] sm:$0xff]
  %v456 = vld [vmem:[%s188 + $0x80] sm:$0xff]
  %v457 = vld [vmem:[%s188 + $0x90] sm:$0xff]
  %v458 = vld [vmem:[%s188 + $0x98] sm:$0xff]
  %v459 = vld [vmem:[%s188 + $0xa8] sm:$0xff]
  %v460 = vld [vmem:[%s188 + $0xb0] sm:$0xff]
  %v461 = vld [vmem:[%s188 + $0xc0] sm:$0xff]
  %v462 = vld [vmem:[%s188 + $0xc8] sm:$0xff]
  %v463 = vld [vmem:[%s188 + $0xd8] sm:$0xff]
  %v464 = vld [vmem:[%s188 + $0xe0] sm:$0xff]
  %v465 = vld [vmem:[%s188 + $0xf0] sm:$0xff]
  %v466 = vld [vmem:[%s188 + $0xf8] sm:$0xff]
  %v467 = vld [vmem:[%s188 + $0x108] sm:$0xff]
  %v468 = vld [vmem:[%s188 + $0x110] sm:$0xff]
  %v469 = vld [vmem:[%s188 + $0x120] sm:$0xff]
  %v470 = vld [vmem:[%s188 + $0x128] sm:$0xff]
  %v471 = vld [vmem:[%s188 + $0x138] sm:$0xff]
  %v472 = vld [vmem:[%s188 + $0x140] sm:$0xff]
  %v473 = vld [vmem:[%s188 + $0x150] sm:$0xff]
  %v474 = vld [vmem:[%s188 + $0x158] sm:$0xff]
  %v475 = vld [vmem:[%s188 + $0x168] sm:$0xff]
  %v476 = vld [vmem:[%s188 + $0x170] sm:$0xff]
  %v477 = vld [vmem:[%s188 + $0x1b0] sm:$0xff]
  %v478 = vld [vmem:[%s188 + $0x1b8] sm:$0xff]
  %v479 = vld [vmem:[%s188 + $0x1c8] sm:$0xff]
  %v480 = vld [vmem:[%s188 + $0x1d0] sm:$0xff]
  %v481 = vld [vmem:[%s188 + $0x1e0] sm:$0xff]
  %v482 = vld [vmem:[%s188 + $0x1e8] sm:$0xff]
  %v483 = vld [vmem:[%s188 + $0x1f8] sm:$0xff]
  %v484 = vld [vmem:[%s188 + $0x200] sm:$0xff]
  %v485 = vld [vmem:[%s188 + $0x210] sm:$0xff]
  %v486 = vld [vmem:[%s188 + $0x218] sm:$0xff]
  %v487 = vld [vmem:[%s188 + $0x228] sm:$0xff]
  %v488 = vld [vmem:[%s188 + $0x230] sm:$0xff]
  %v489 = vld [vmem:[%s188 + $0x240] sm:$0xff]
  %v490 = vld [vmem:[%s188 + $0x248] sm:$0xff]
  %v491 = vld [vmem:[%s188 + $0x258] sm:$0xff]
  %v492 = vld [vmem:[%s188 + $0x260] sm:$0xff]
  %v493 = vld [vmem:[%s188 + $0x270] sm:$0xff]
  %v494 = vld [vmem:[%s188 + $0x278] sm:$0xff]
  %v495 = vld [vmem:[%s188 + $0x288] sm:$0xff]
  %v496 = vld [vmem:[%s188 + $0x290] sm:$0xff]
  %v497 = vld [vmem:[%s188 + $0x2a0] sm:$0xff]
  %v498 = vld [vmem:[%s188 + $0x2a8] sm:$0xff]
  %v499 = vld [vmem:[%s188 + $0x2b8] sm:$0xff]
  %v500 = vld [vmem:[%s188 + $0x2c0] sm:$0xff]
  %v501 = vld [vmem:[%s188 + $0x2d0] sm:$0xff]
  %v502 = vld [vmem:[%s188 + $0x2d8] sm:$0xff]
  %v503 = vld [vmem:[%s188 + $0x2e8] sm:$0xff]
  %v504 = vld [vmem:[%s188 + $0x2f0] sm:$0xff]
  %v505 = vld [vmem:[%s188 + $0x300] sm:$0xff]
  %v506 = vld [vmem:[%s188 + $0x308] sm:$0xff]
  %v507 = vld [vmem:[%s188 + $0x318] sm:$0xff]
  %v508 = vld [vmem:[%s188 + $0x320] sm:$0xff]
  %v509 = vld [vmem:[%s188 + $0x1] sm:$0xff]
  %v510 = vld [vmem:[%s188 + $0x9] sm:$0xff]
  %v511 = vld [vmem:[%s188 + $0x19] sm:$0xff]
  %v512 = vld [vmem:[%s188 + $0x21] sm:$0xff]
  %v513 = vld [vmem:[%s188 + $0x31] sm:$0xff]
  %v514 = vld [vmem:[%s188 + $0x39] sm:$0xff]
  %v515 = vld [vmem:[%s188 + $0x49] sm:$0xff]
  %v516 = vld [vmem:[%s188 + $0x51] sm:$0xff]
  %v517 = vld [vmem:[%s188 + $0x61] sm:$0xff]
  %v518 = vld [vmem:[%s188 + $0x69] sm:$0xff]
  %v519 = vld [vmem:[%s188 + $0x79] sm:$0xff]
  %v520 = vld [vmem:[%s188 + $0x81] sm:$0xff]
  %v521 = vld [vmem:[%s188 + $0x91] sm:$0xff]
  %v522 = vld [vmem:[%s188 + $0x99] sm:$0xff]
  %v523 = vld [vmem:[%s188 + $0xa9] sm:$0xff]
  %v524 = vld [vmem:[%s188 + $0xb1] sm:$0xff]
  %v525 = vld [vmem:[%s188 + $0xc1] sm:$0xff]
  %v526 = vld [vmem:[%s188 + $0xc9] sm:$0xff]
  %v527 = vld [vmem:[%s188 + $0xd9] sm:$0xff]
  %v528 = vld [vmem:[%s188 + $0xe1] sm:$0xff]
  %v529 = vld [vmem:[%s188 + $0xf1] sm:$0xff]
  %v530 = vld [vmem:[%s188 + $0xf9] sm:$0xff]
  %v531 = vld [vmem:[%s188 + $0x109] sm:$0xff]
  %v532 = vld [vmem:[%s188 + $0x111] sm:$0xff]
  %v533 = vld [vmem:[%s188 + $0x121] sm:$0xff]
  %v534 = vld [vmem:[%s188 + $0x129] sm:$0xff]
  %v535 = vld [vmem:[%s188 + $0x139] sm:$0xff]
  %v536 = vld [vmem:[%s188 + $0x141] sm:$0xff]
  %v537 = vld [vmem:[%s188 + $0x151] sm:$0xff]
  %v538 = vld [vmem:[%s188 + $0x159] sm:$0xff]
  %v539 = vld [vmem:[%s188 + $0x169] sm:$0xff]
  %v540 = vld [vmem:[%s188 + $0x171] sm:$0xff]
  %v541 = vld [vmem:[%s188 + $0x1b1] sm:$0xff]
  %v542 = vld [vmem:[%s188 + $0x1b9] sm:$0xff]
  %v543 = vld [vmem:[%s188 + $0x1c9] sm:$0xff]
  %v544 = vld [vmem:[%s188 + $0x1d1] sm:$0xff]
  %v545 = vld [vmem:[%s188 + $0x1e1] sm:$0xff]
  %v546 = vld [vmem:[%s188 + $0x1e9] sm:$0xff]
  %v547 = vld [vmem:[%s188 + $0x1f9] sm:$0xff]
  %v548 = vld [vmem:[%s188 + $0x201] sm:$0xff]
  %v549 = vld [vmem:[%s188 + $0x211] sm:$0xff]
  %v550 = vld [vmem:[%s188 + $0x219] sm:$0xff]
  %v551 = vld [vmem:[%s188 + $0x229] sm:$0xff]
  %v552 = vld [vmem:[%s188 + $0x231] sm:$0xff]
  %v553 = vld [vmem:[%s188 + $0x241] sm:$0xff]
  %v554 = vld [vmem:[%s188 + $0x249] sm:$0xff]
  %v555 = vld [vmem:[%s188 + $0x259] sm:$0xff]
  %v556 = vld [vmem:[%s188 + $0x261] sm:$0xff]
  %v557 = vld [vmem:[%s188 + $0x271] sm:$0xff]
  %v558 = vld [vmem:[%s188 + $0x279] sm:$0xff]
  %v559 = vld [vmem:[%s188 + $0x289] sm:$0xff]
  %v560 = vld [vmem:[%s188 + $0x291] sm:$0xff]
  %v561 = vld [vmem:[%s188 + $0x2a1] sm:$0xff]
  %v562 = vld [vmem:[%s188 + $0x2a9] sm:$0xff]
  %v563 = vld [vmem:[%s188 + $0x2b9] sm:$0xff]
  %v564 = vld [vmem:[%s188 + $0x2c1] sm:$0xff]
  %v565 = vld [vmem:[%s188 + $0x2d1] sm:$0xff]
  %v566 = vld [vmem:[%s188 + $0x2d9] sm:$0xff]
  %v567 = vld [vmem:[%s188 + $0x2e9] sm:$0xff]
  %v568 = vld [vmem:[%s188 + $0x2f1] sm:$0xff]
  %v569 = vld [vmem:[%s188 + $0x301] sm:$0xff]
  %v570 = vld [vmem:[%s188 + $0x309] sm:$0xff]
  %v571 = vld [vmem:[%s188 + $0x319] sm:$0xff]
  %v572 = vld [vmem:[%s188 + $0x321] sm:$0xff]
  %v573 = vld [vmem:[%s188 + $0x2] sm:$0xff]
  %v574 = vld [vmem:[%s188 + $0xa] sm:$0xff]
  %v575 = vld [vmem:[%s188 + $0x1a] sm:$0xff]
  %v576 = vld [vmem:[%s188 + $0x22] sm:$0xff]
  %v577 = vld [vmem:[%s188 + $0x32] sm:$0xff]
  %v578 = vld [vmem:[%s188 + $0x3a] sm:$0xff]
  %v579 = vld [vmem:[%s188 + $0x4a] sm:$0xff]
  %v580 = vld [vmem:[%s188 + $0x52] sm:$0xff]
  %v581 = vld [vmem:[%s188 + $0x62] sm:$0xff]
  %v582 = vld [vmem:[%s188 + $0x6a] sm:$0xff]
  %v583 = vld [vmem:[%s188 + $0x7a] sm:$0xff]
  %v584 = vld [vmem:[%s188 + $0x82] sm:$0xff]
  %v585 = vld [vmem:[%s188 + $0x92] sm:$0xff]
  %v586 = vld [vmem:[%s188 + $0x9a] sm:$0xff]
  %v587 = vld [vmem:[%s188 + $0xaa] sm:$0xff]
  %v588 = vld [vmem:[%s188 + $0xb2] sm:$0xff]
  %v589 = vld [vmem:[%s188 + $0xc2] sm:$0xff]
  %v590 = vld [vmem:[%s188 + $0xca] sm:$0xff]
  %v591 = vld [vmem:[%s188 + $0xda] sm:$0xff]
  %v592 = vld [vmem:[%s188 + $0xe2] sm:$0xff]
  %v593 = vld [vmem:[%s188 + $0xf2] sm:$0xff]
  %v594 = vld [vmem:[%s188 + $0xfa] sm:$0xff]
  %v595 = vld [vmem:[%s188 + $0x10a] sm:$0xff]
  %v596 = vld [vmem:[%s188 + $0x112] sm:$0xff]
  %v597 = vld [vmem:[%s188 + $0x122] sm:$0xff]
  %v598 = vld [vmem:[%s188 + $0x12a] sm:$0xff]
  %v599 = vld [vmem:[%s188 + $0x13a] sm:$0xff]
  %v600 = vld [vmem:[%s188 + $0x142] sm:$0xff]
  %v601 = vld [vmem:[%s188 + $0x152] sm:$0xff]
  %v602 = vld [vmem:[%s188 + $0x15a] sm:$0xff]
  %v603 = vld [vmem:[%s188 + $0x16a] sm:$0xff]
  %v604 = vld [vmem:[%s188 + $0x172] sm:$0xff]
  %v605 = vld [vmem:[%s188 + $0x1b2] sm:$0xff]
  %v606 = vld [vmem:[%s188 + $0x1ba] sm:$0xff]
  %v607 = vld [vmem:[%s188 + $0x1ca] sm:$0xff]
  %v608 = vld [vmem:[%s188 + $0x1d2] sm:$0xff]
  %v609 = vld [vmem:[%s188 + $0x1e2] sm:$0xff]
  %v610 = vld [vmem:[%s188 + $0x1ea] sm:$0xff]
  %v611 = vld [vmem:[%s188 + $0x1fa] sm:$0xff]
  %v612 = vld [vmem:[%s188 + $0x202] sm:$0xff]
  %v613 = vld [vmem:[%s188 + $0x212] sm:$0xff]
  %v614 = vld [vmem:[%s188 + $0x21a] sm:$0xff]
  %v615 = vld [vmem:[%s188 + $0x22a] sm:$0xff]
  %v616 = vld [vmem:[%s188 + $0x232] sm:$0xff]
  %v617 = vld [vmem:[%s188 + $0x242] sm:$0xff]
  %v618 = vld [vmem:[%s188 + $0x24a] sm:$0xff]
  %v619 = vld [vmem:[%s188 + $0x25a] sm:$0xff]
  %v620 = vld [vmem:[%s188 + $0x262] sm:$0xff]
  %v621 = vld [vmem:[%s188 + $0x272] sm:$0xff]
  %v622 = vld [vmem:[%s188 + $0x27a] sm:$0xff]
  %v623 = vld [vmem:[%s188 + $0x28a] sm:$0xff]
  %v624 = vld [vmem:[%s188 + $0x292] sm:$0xff]
  %v625 = vld [vmem:[%s188 + $0x2a2] sm:$0xff]
  %v626 = vld [vmem:[%s188 + $0x2aa] sm:$0xff]
  %v627 = vld [vmem:[%s188 + $0x2ba] sm:$0xff]
  %v628 = vld [vmem:[%s188 + $0x2c2] sm:$0xff]
  %v629 = vld [vmem:[%s188 + $0x2d2] sm:$0xff]
  %v630 = vld [vmem:[%s188 + $0x2da] sm:$0xff]
  %v631 = vld [vmem:[%s188 + $0x2ea] sm:$0xff]
  %v632 = vld [vmem:[%s188 + $0x2f2] sm:$0xff]
  %v633 = vld [vmem:[%s188 + $0x302] sm:$0xff]
  %v634 = vld [vmem:[%s188 + $0x30a] sm:$0xff]
  %v635 = vld [vmem:[%s188 + $0x31a] sm:$0xff]
  %v636 = vld [vmem:[%s188 + $0x322] sm:$0xff]
  %s637 = scalar_lea.vmem [#allocation2], 48
  %v638 = vld [vmem:[%s637] sm:$0xff]
  %v639 = vld [vmem:[%s637 + $0x8] sm:$0xff]
  %v640 = vld [vmem:[%s637 + $0x18] sm:$0xff]
  %v641 = vld [vmem:[%s637 + $0x20] sm:$0xff]
  %v642 = vld [vmem:[%s637 + $0x30] sm:$0xff]
  %v643 = vld [vmem:[%s637 + $0x38] sm:$0xff]
  %v644 = vld [vmem:[%s637 + $0x48] sm:$0xff]
  %v645 = vld [vmem:[%s637 + $0x50] sm:$0xff]
  %v646 = vld [vmem:[%s637 + $0x60] sm:$0xff]
  %v647 = vld [vmem:[%s637 + $0x68] sm:$0xff]
  %v648 = vld [vmem:[%s637 + $0x78] sm:$0xff]
  %v649 = vld [vmem:[%s637 + $0x80] sm:$0xff]
  %v650 = vld [vmem:[%s637 + $0x90] sm:$0xff]
  %v651 = vld [vmem:[%s637 + $0x98] sm:$0xff]
  %v652 = vld [vmem:[%s637 + $0xa8] sm:$0xff]
  %v653 = vld [vmem:[%s637 + $0xb0] sm:$0xff]
  %v654 = vld [vmem:[%s637 + $0xc0] sm:$0xff]
  %v655 = vld [vmem:[%s637 + $0xc8] sm:$0xff]
  %v656 = vld [vmem:[%s637 + $0xd8] sm:$0xff]
  %v657 = vld [vmem:[%s637 + $0xe0] sm:$0xff]
  %v658 = vld [vmem:[%s637 + $0xf0] sm:$0xff]
  %v659 = vld [vmem:[%s637 + $0xf8] sm:$0xff]
  %v660 = vld [vmem:[%s637 + $0x108] sm:$0xff]
  %v661 = vld [vmem:[%s637 + $0x110] sm:$0xff]
  %v662 = vld [vmem:[%s637 + $0x120] sm:$0xff]
  %v663 = vld [vmem:[%s637 + $0x128] sm:$0xff]
  %v664 = vld [vmem:[%s637 + $0x138] sm:$0xff]
  %v665 = vld [vmem:[%s637 + $0x140] sm:$0xff]
  %v666 = vld [vmem:[%s637 + $0x150] sm:$0xff]
  %v667 = vld [vmem:[%s637 + $0x158] sm:$0xff]
  %v668 = vld [vmem:[%s637 + $0x168] sm:$0xff]
  %v669 = vld [vmem:[%s637 + $0x170] sm:$0xff]
  %v670 = vld [vmem:[%s637 + $0x1b0] sm:$0xff]
  %v671 = vld [vmem:[%s637 + $0x1b8] sm:$0xff]
  %v672 = vld [vmem:[%s637 + $0x1c8] sm:$0xff]
  %v673 = vld [vmem:[%s637 + $0x1d0] sm:$0xff]
  %v674 = vld [vmem:[%s637 + $0x1e0] sm:$0xff]
  %v675 = vld [vmem:[%s637 + $0x1e8] sm:$0xff]
  %v676 = vld [vmem:[%s637 + $0x1f8] sm:$0xff]
  %v677 = vld [vmem:[%s637 + $0x200] sm:$0xff]
  %v678 = vld [vmem:[%s637 + $0x210] sm:$0xff]
  %v679 = vld [vmem:[%s637 + $0x218] sm:$0xff]
  %v680 = vld [vmem:[%s637 + $0x228] sm:$0xff]
  %v681 = vld [vmem:[%s637 + $0x230] sm:$0xff]
  %v682 = vld [vmem:[%s637 + $0x240] sm:$0xff]
  %v683 = vld [vmem:[%s637 + $0x248] sm:$0xff]
  %v684 = vld [vmem:[%s637 + $0x258] sm:$0xff]
  %v685 = vld [vmem:[%s637 + $0x260] sm:$0xff]
  %v686 = vld [vmem:[%s637 + $0x270] sm:$0xff]
  %v687 = vld [vmem:[%s637 + $0x278] sm:$0xff]
  %v688 = vld [vmem:[%s637 + $0x288] sm:$0xff]
  %v689 = vld [vmem:[%s637 + $0x290] sm:$0xff]
  %v690 = vld [vmem:[%s637 + $0x2a0] sm:$0xff]
  %v691 = vld [vmem:[%s637 + $0x2a8] sm:$0xff]
  %v692 = vld [vmem:[%s637 + $0x2b8] sm:$0xff]
  %v693 = vld [vmem:[%s637 + $0x2c0] sm:$0xff]
  %v694 = vld [vmem:[%s637 + $0x2d0] sm:$0xff]
  %v695 = vld [vmem:[%s637 + $0x2d8] sm:$0xff]
  %v696 = vld [vmem:[%s637 + $0x2e8] sm:$0xff]
  %v697 = vld [vmem:[%s637 + $0x2f0] sm:$0xff]
  %v698 = vld [vmem:[%s637 + $0x300] sm:$0xff]
  %v699 = vld [vmem:[%s637 + $0x308] sm:$0xff]
  %v700 = vld [vmem:[%s637 + $0x318] sm:$0xff]
  %v701 = vld [vmem:[%s637 + $0x320] sm:$0xff]
  %v702 = vld [vmem:[%s637 + $0x1] sm:$0xff]
  %v703 = vld [vmem:[%s637 + $0x9] sm:$0xff]
  %v704 = vld [vmem:[%s637 + $0x19] sm:$0xff]
  %v705 = vld [vmem:[%s637 + $0x21] sm:$0xff]
  %v706 = vld [vmem:[%s637 + $0x31] sm:$0xff]
  %v707 = vld [vmem:[%s637 + $0x39] sm:$0xff]
  %v708 = vld [vmem:[%s637 + $0x49] sm:$0xff]
  %v709 = vld [vmem:[%s637 + $0x51] sm:$0xff]
  %v710 = vld [vmem:[%s637 + $0x61] sm:$0xff]
  %v711 = vld [vmem:[%s637 + $0x69] sm:$0xff]
  %v712 = vld [vmem:[%s637 + $0x79] sm:$0xff]
  %v713 = vld [vmem:[%s637 + $0x81] sm:$0xff]
  %v714 = vld [vmem:[%s637 + $0x91] sm:$0xff]
  %v715 = vld [vmem:[%s637 + $0x99] sm:$0xff]
  %v716 = vld [vmem:[%s637 + $0xa9] sm:$0xff]
  %v717 = vld [vmem:[%s637 + $0xb1] sm:$0xff]
  %v718 = vld [vmem:[%s637 + $0xc1] sm:$0xff]
  %v719 = vld [vmem:[%s637 + $0xc9] sm:$0xff]
  %v720 = vld [vmem:[%s637 + $0xd9] sm:$0xff]
  %v721 = vld [vmem:[%s637 + $0xe1] sm:$0xff]
  %v722 = vld [vmem:[%s637 + $0xf1] sm:$0xff]
  %v723 = vld [vmem:[%s637 + $0xf9] sm:$0xff]
  %v724 = vld [vmem:[%s637 + $0x109] sm:$0xff]
  %v725 = vld [vmem:[%s637 + $0x111] sm:$0xff]
  %v726 = vld [vmem:[%s637 + $0x121] sm:$0xff]
  %v727 = vld [vmem:[%s637 + $0x129] sm:$0xff]
  %v728 = vld [vmem:[%s637 + $0x139] sm:$0xff]
  %v729 = vld [vmem:[%s637 + $0x141] sm:$0xff]
  %v730 = vld [vmem:[%s637 + $0x151] sm:$0xff]
  %v731 = vld [vmem:[%s637 + $0x159] sm:$0xff]
  %v732 = vld [vmem:[%s637 + $0x169] sm:$0xff]
  %v733 = vld [vmem:[%s637 + $0x171] sm:$0xff]
  %v734 = vld [vmem:[%s637 + $0x1b1] sm:$0xff]
  %v735 = vld [vmem:[%s637 + $0x1b9] sm:$0xff]
  %v736 = vld [vmem:[%s637 + $0x1c9] sm:$0xff]
  %v737 = vld [vmem:[%s637 + $0x1d1] sm:$0xff]
  %v738 = vld [vmem:[%s637 + $0x1e1] sm:$0xff]
  %v739 = vld [vmem:[%s637 + $0x1e9] sm:$0xff]
  %v740 = vld [vmem:[%s637 + $0x1f9] sm:$0xff]
  %v741 = vld [vmem:[%s637 + $0x201] sm:$0xff]
  %v742 = vld [vmem:[%s637 + $0x211] sm:$0xff]
  %v743 = vld [vmem:[%s637 + $0x219] sm:$0xff]
  %v744 = vld [vmem:[%s637 + $0x229] sm:$0xff]
  %v745 = vld [vmem:[%s637 + $0x231] sm:$0xff]
  %v746 = vld [vmem:[%s637 + $0x241] sm:$0xff]
  %v747 = vld [vmem:[%s637 + $0x249] sm:$0xff]
  %v748 = vld [vmem:[%s637 + $0x259] sm:$0xff]
  %v749 = vld [vmem:[%s637 + $0x261] sm:$0xff]
  %v750 = vld [vmem:[%s637 + $0x271] sm:$0xff]
  %v751 = vld [vmem:[%s637 + $0x279] sm:$0xff]
  %v752 = vld [vmem:[%s637 + $0x289] sm:$0xff]
  %v753 = vld [vmem:[%s637 + $0x291] sm:$0xff]
  %v754 = vld [vmem:[%s637 + $0x2a1] sm:$0xff]
  %v755 = vld [vmem:[%s637 + $0x2a9] sm:$0xff]
  %v756 = vld [vmem:[%s637 + $0x2b9] sm:$0xff]
  %v757 = vld [vmem:[%s637 + $0x2c1] sm:$0xff]
  %v758 = vld [vmem:[%s637 + $0x2d1] sm:$0xff]
  %v759 = vld [vmem:[%s637 + $0x2d9] sm:$0xff]
  %v760 = vld [vmem:[%s637 + $0x2e9] sm:$0xff]
  %v761 = vld [vmem:[%s637 + $0x2f1] sm:$0xff]
  %v762 = vld [vmem:[%s637 + $0x301] sm:$0xff]
  %v763 = vld [vmem:[%s637 + $0x309] sm:$0xff]
  %v764 = vld [vmem:[%s637 + $0x319] sm:$0xff]
  %v765 = vld [vmem:[%s637 + $0x321] sm:$0xff]
  %v766 = vld [vmem:[%s637 + $0x2] sm:$0xff]
  %v767 = vld [vmem:[%s637 + $0xa] sm:$0xff]
  %v768 = vld [vmem:[%s637 + $0x1a] sm:$0xff]
  %v769 = vld [vmem:[%s637 + $0x22] sm:$0xff]
  %v770 = vld [vmem:[%s637 + $0x32] sm:$0xff]
  %v771 = vld [vmem:[%s637 + $0x3a] sm:$0xff]
  %v772 = vld [vmem:[%s637 + $0x4a] sm:$0xff]
  %v773 = vld [vmem:[%s637 + $0x52] sm:$0xff]
  %v774 = vld [vmem:[%s637 + $0x62] sm:$0xff]
  %v775 = vld [vmem:[%s637 + $0x6a] sm:$0xff]
  %v776 = vld [vmem:[%s637 + $0x7a] sm:$0xff]
  %v777 = vld [vmem:[%s637 + $0x82] sm:$0xff]
  %v778 = vld [vmem:[%s637 + $0x92] sm:$0xff]
  %v779 = vld [vmem:[%s637 + $0x9a] sm:$0xff]
  %v780 = vld [vmem:[%s637 + $0xaa] sm:$0xff]
  %v781 = vld [vmem:[%s637 + $0xb2] sm:$0xff]
  %v782 = vld [vmem:[%s637 + $0xc2] sm:$0xff]
  %v783 = vld [vmem:[%s637 + $0xca] sm:$0xff]
  %v784 = vld [vmem:[%s637 + $0xda] sm:$0xff]
  %v785 = vld [vmem:[%s637 + $0xe2] sm:$0xff]
  %v786 = vld [vmem:[%s637 + $0xf2] sm:$0xff]
  %v787 = vld [vmem:[%s637 + $0xfa] sm:$0xff]
  %v788 = vld [vmem:[%s637 + $0x10a] sm:$0xff]
  %v789 = vld [vmem:[%s637 + $0x112] sm:$0xff]
  %v790 = vld [vmem:[%s637 + $0x122] sm:$0xff]
  %v791 = vld [vmem:[%s637 + $0x12a] sm:$0xff]
  %v792 = vld [vmem:[%s637 + $0x13a] sm:$0xff]
  %v793 = vld [vmem:[%s637 + $0x142] sm:$0xff]
  %v794 = vld [vmem:[%s637 + $0x152] sm:$0xff]
  %v795 = vld [vmem:[%s637 + $0x15a] sm:$0xff]
  %v796 = vld [vmem:[%s637 + $0x16a] sm:$0xff]
  %v797 = vld [vmem:[%s637 + $0x172] sm:$0xff]
  %v798 = vld [vmem:[%s637 + $0x1b2] sm:$0xff]
  %v799 = vld [vmem:[%s637 + $0x1ba] sm:$0xff]
  %v800 = vld [vmem:[%s637 + $0x1ca] sm:$0xff]
  %v801 = vld [vmem:[%s637 + $0x1d2] sm:$0xff]
  %v802 = vld [vmem:[%s637 + $0x1e2] sm:$0xff]
  %v803 = vld [vmem:[%s637 + $0x1ea] sm:$0xff]
  %v804 = vld [vmem:[%s637 + $0x1fa] sm:$0xff]
  %v805 = vld [vmem:[%s637 + $0x202] sm:$0xff]
  %v806 = vld [vmem:[%s637 + $0x212] sm:$0xff]
  %v807 = vld [vmem:[%s637 + $0x21a] sm:$0xff]
  %v808 = vld [vmem:[%s637 + $0x22a] sm:$0xff]
  %v809 = vld [vmem:[%s637 + $0x232] sm:$0xff]
  %v810 = vld [vmem:[%s637 + $0x242] sm:$0xff]
  %v811 = vld [vmem:[%s637 + $0x24a] sm:$0xff]
  %v812 = vld [vmem:[%s637 + $0x25a] sm:$0xff]
  %v813 = vld [vmem:[%s637 + $0x262] sm:$0xff]
  %v814 = vld [vmem:[%s637 + $0x272] sm:$0xff]
  %v815 = vld [vmem:[%s637 + $0x27a] sm:$0xff]
  %v816 = vld [vmem:[%s637 + $0x28a] sm:$0xff]
  %v817 = vld [vmem:[%s637 + $0x292] sm:$0xff]
  %v818 = vld [vmem:[%s637 + $0x2a2] sm:$0xff]
  %v819 = vld [vmem:[%s637 + $0x2aa] sm:$0xff]
  %v820 = vld [vmem:[%s637 + $0x2ba] sm:$0xff]
  %v821 = vld [vmem:[%s637 + $0x2c2] sm:$0xff]
  %v822 = vld [vmem:[%s637 + $0x2d2] sm:$0xff]
  %v823 = vld [vmem:[%s637 + $0x2da] sm:$0xff]
  %v824 = vld [vmem:[%s637 + $0x2ea] sm:$0xff]
  %v825 = vld [vmem:[%s637 + $0x2f2] sm:$0xff]
  %v826 = vld [vmem:[%s637 + $0x302] sm:$0xff]
  %v827 = vld [vmem:[%s637 + $0x30a] sm:$0xff]
  %v828 = vld [vmem:[%s637 + $0x31a] sm:$0xff]
  %v829 = vld [vmem:[%s637 + $0x322] sm:$0xff]
  %894 = vrot.lane.b32.xlu0 %v317, 4
  %v895 = vpop.permute.xlu0 %894
  %896 = vrot.lane.b32.xlu0 %v318, 4
  %v897 = vpop.permute.xlu0 %896
  %898 = vrot.lane.b32.xlu0 %v319, 4
  %v899 = vpop.permute.xlu0 %898
  %900 = vrot.lane.b32.xlu0 %v320, 4
  %v901 = vpop.permute.xlu0 %900
  %902 = vrot.lane.b32.xlu0 %v321, 4
  %v903 = vpop.permute.xlu0 %902
  %904 = vrot.lane.b32.xlu0 %v322, 4
  %v905 = vpop.permute.xlu0 %904
  %906 = vrot.lane.b32.xlu0 %v323, 4
  %v907 = vpop.permute.xlu0 %906
  %908 = vrot.lane.b32.xlu0 %v324, 4
  %v909 = vpop.permute.xlu0 %908
  %910 = vrot.lane.b32.xlu0 %v325, 4
  %v911 = vpop.permute.xlu0 %910
  %912 = vrot.lane.b32.xlu0 %v326, 4
  %v913 = vpop.permute.xlu0 %912
  %914 = vrot.lane.b32.xlu0 %v327, 4
  %v915 = vpop.permute.xlu0 %914
  %916 = vrot.lane.b32.xlu0 %v328, 4
  %v917 = vpop.permute.xlu0 %916
  %918 = vrot.lane.b32.xlu0 %v329, 4
  %v919 = vpop.permute.xlu0 %918
  %920 = vrot.lane.b32.xlu0 %v330, 4
  %v921 = vpop.permute.xlu0 %920
  %922 = vrot.lane.b32.xlu0 %v331, 4
  %v923 = vpop.permute.xlu0 %922
  %924 = vrot.lane.b32.xlu0 %v332, 4
  %v925 = vpop.permute.xlu0 %924
  %926 = vrot.lane.b32.xlu0 %v333, 4
  %v927 = vpop.permute.xlu0 %926
  %928 = vrot.lane.b32.xlu0 %v334, 4
  %v929 = vpop.permute.xlu0 %928
  %930 = vrot.lane.b32.xlu0 %v335, 4
  %v931 = vpop.permute.xlu0 %930
  %932 = vrot.lane.b32.xlu0 %v336, 4
  %v933 = vpop.permute.xlu0 %932
  %934 = vrot.lane.b32.xlu0 %v337, 4
  %v935 = vpop.permute.xlu0 %934
  %936 = vrot.lane.b32.xlu0 %v338, 4
  %v937 = vpop.permute.xlu0 %936
  %938 = vrot.lane.b32.xlu0 %v339, 4
  %v939 = vpop.permute.xlu0 %938
  %940 = vrot.lane.b32.xlu0 %v340, 4
  %v941 = vpop.permute.xlu0 %940
  %942 = vrot.lane.b32.xlu0 %v341, 4
  %v943 = vpop.permute.xlu0 %942
  %944 = vrot.lane.b32.xlu0 %v342, 4
  %v945 = vpop.permute.xlu0 %944
  %946 = vrot.lane.b32.xlu0 %v343, 4
  %v947 = vpop.permute.xlu0 %946
  %948 = vrot.lane.b32.xlu0 %v344, 4
  %v949 = vpop.permute.xlu0 %948
  %950 = vrot.lane.b32.xlu0 %v345, 4
  %v951 = vpop.permute.xlu0 %950
  %952 = vrot.lane.b32.xlu0 %v346, 4
  %v953 = vpop.permute.xlu0 %952
  %954 = vrot.lane.b32.xlu0 %v347, 4
  %v955 = vpop.permute.xlu0 %954
  %956 = vrot.lane.b32.xlu0 %v348, 4
  %v957 = vpop.permute.xlu0 %956
  %958 = vrot.lane.b32.xlu0 %v349, 4
  %v959 = vpop.permute.xlu0 %958
  %960 = vrot.lane.b32.xlu0 %v350, 4
  %v961 = vpop.permute.xlu0 %960
  %962 = vrot.lane.b32.xlu0 %v351, 4
  %v963 = vpop.permute.xlu0 %962
  %964 = vrot.lane.b32.xlu0 %v352, 4
  %v965 = vpop.permute.xlu0 %964
  %966 = vrot.lane.b32.xlu0 %v353, 4
  %v967 = vpop.permute.xlu0 %966
  %968 = vrot.lane.b32.xlu0 %v354, 4
  %v969 = vpop.permute.xlu0 %968
  %970 = vrot.lane.b32.xlu0 %v355, 4
  %v971 = vpop.permute.xlu0 %970
  %972 = vrot.lane.b32.xlu0 %v356, 4
  %v973 = vpop.permute.xlu0 %972
  %974 = vrot.lane.b32.xlu0 %v357, 4
  %v975 = vpop.permute.xlu0 %974
  %976 = vrot.lane.b32.xlu0 %v358, 4
  %v977 = vpop.permute.xlu0 %976
  %978 = vrot.lane.b32.xlu0 %v359, 4
  %v979 = vpop.permute.xlu0 %978
  %980 = vrot.lane.b32.xlu0 %v360, 4
  %v981 = vpop.permute.xlu0 %980
  %982 = vrot.lane.b32.xlu0 %v361, 4
  %v983 = vpop.permute.xlu0 %982
  %984 = vrot.lane.b32.xlu0 %v362, 4
  %v985 = vpop.permute.xlu0 %984
  %986 = vrot.lane.b32.xlu0 %v363, 4
  %v987 = vpop.permute.xlu0 %986
  %988 = vrot.lane.b32.xlu0 %v364, 4
  %v989 = vpop.permute.xlu0 %988
  %990 = vrot.lane.b32.xlu0 %v365, 4
  %v991 = vpop.permute.xlu0 %990
  %992 = vrot.lane.b32.xlu0 %v366, 4
  %v993 = vpop.permute.xlu0 %992
  %994 = vrot.lane.b32.xlu0 %v367, 4
  %v995 = vpop.permute.xlu0 %994
  %996 = vrot.lane.b32.xlu0 %v368, 4
  %v997 = vpop.permute.xlu0 %996
  %998 = vrot.lane.b32.xlu0 %v369, 4
  %v999 = vpop.permute.xlu0 %998
  %1000 = vrot.lane.b32.xlu0 %v370, 4
  %v1001 = vpop.permute.xlu0 %1000
  %1002 = vrot.lane.b32.xlu0 %v371, 4
  %v1003 = vpop.permute.xlu0 %1002
  %1004 = vrot.lane.b32.xlu0 %v372, 4
  %v1005 = vpop.permute.xlu0 %1004
  %1006 = vrot.lane.b32.xlu0 %v373, 4
  %v1007 = vpop.permute.xlu0 %1006
  %1008 = vrot.lane.b32.xlu0 %v374, 4
  %v1009 = vpop.permute.xlu0 %1008
  %1010 = vrot.lane.b32.xlu0 %v375, 4
  %v1011 = vpop.permute.xlu0 %1010
  %1012 = vrot.lane.b32.xlu0 %v376, 4
  %v1013 = vpop.permute.xlu0 %1012
  %1014 = vrot.lane.b32.xlu0 %v377, 4
  %v1015 = vpop.permute.xlu0 %1014
  %1016 = vrot.lane.b32.xlu0 %v378, 4
  %v1017 = vpop.permute.xlu0 %1016
  %1018 = vrot.lane.b32.xlu0 %v379, 4
  %v1019 = vpop.permute.xlu0 %1018
  %1020 = vrot.lane.b32.xlu0 %v380, 4
  %v1021 = vpop.permute.xlu0 %1020
  %1150 = vrot.lane.b32.xlu0 %v381, 8
  %v1151 = vpop.permute.xlu0 %1150
  %1152 = vrot.lane.b32.xlu0 %v382, 8
  %v1153 = vpop.permute.xlu0 %1152
  %1154 = vrot.lane.b32.xlu0 %v383, 8
  %v1155 = vpop.permute.xlu0 %1154
  %1156 = vrot.lane.b32.xlu0 %v384, 8
  %v1157 = vpop.permute.xlu0 %1156
  %1158 = vrot.lane.b32.xlu0 %v385, 8
  %v1159 = vpop.permute.xlu0 %1158
  %1160 = vrot.lane.b32.xlu0 %v386, 8
  %v1161 = vpop.permute.xlu0 %1160
  %1162 = vrot.lane.b32.xlu0 %v387, 8
  %v1163 = vpop.permute.xlu0 %1162
  %1164 = vrot.lane.b32.xlu0 %v388, 8
  %v1165 = vpop.permute.xlu0 %1164
  %1166 = vrot.lane.b32.xlu0 %v389, 8
  %v1167 = vpop.permute.xlu0 %1166
  %1168 = vrot.lane.b32.xlu0 %v390, 8
  %v1169 = vpop.permute.xlu0 %1168
  %1170 = vrot.lane.b32.xlu0 %v391, 8
  %v1171 = vpop.permute.xlu0 %1170
  %1172 = vrot.lane.b32.xlu0 %v392, 8
  %v1173 = vpop.permute.xlu0 %1172
  %1174 = vrot.lane.b32.xlu0 %v393, 8
  %v1175 = vpop.permute.xlu0 %1174
  %1176 = vrot.lane.b32.xlu0 %v394, 8
  %v1177 = vpop.permute.xlu0 %1176
  %1178 = vrot.lane.b32.xlu0 %v395, 8
  %v1179 = vpop.permute.xlu0 %1178
  %1180 = vrot.lane.b32.xlu0 %v396, 8
  %v1181 = vpop.permute.xlu0 %1180
  %1182 = vrot.lane.b32.xlu0 %v397, 8
  %v1183 = vpop.permute.xlu0 %1182
  %1184 = vrot.lane.b32.xlu0 %v398, 8
  %v1185 = vpop.permute.xlu0 %1184
  %1186 = vrot.lane.b32.xlu0 %v399, 8
  %v1187 = vpop.permute.xlu0 %1186
  %1188 = vrot.lane.b32.xlu0 %v400, 8
  %v1189 = vpop.permute.xlu0 %1188
  %1190 = vrot.lane.b32.xlu0 %v401, 8
  %v1191 = vpop.permute.xlu0 %1190
  %1192 = vrot.lane.b32.xlu0 %v402, 8
  %v1193 = vpop.permute.xlu0 %1192
  %1194 = vrot.lane.b32.xlu0 %v403, 8
  %v1195 = vpop.permute.xlu0 %1194
  %1196 = vrot.lane.b32.xlu0 %v404, 8
  %v1197 = vpop.permute.xlu0 %1196
  %1198 = vrot.lane.b32.xlu0 %v405, 8
  %v1199 = vpop.permute.xlu0 %1198
  %1200 = vrot.lane.b32.xlu0 %v406, 8
  %v1201 = vpop.permute.xlu0 %1200
  %1202 = vrot.lane.b32.xlu0 %v407, 8
  %v1203 = vpop.permute.xlu0 %1202
  %1204 = vrot.lane.b32.xlu0 %v408, 8
  %v1205 = vpop.permute.xlu0 %1204
  %1206 = vrot.lane.b32.xlu0 %v409, 8
  %v1207 = vpop.permute.xlu0 %1206
  %1208 = vrot.lane.b32.xlu0 %v410, 8
  %v1209 = vpop.permute.xlu0 %1208
  %1210 = vrot.lane.b32.xlu0 %v411, 8
  %v1211 = vpop.permute.xlu0 %1210
  %1212 = vrot.lane.b32.xlu0 %v412, 8
  %v1213 = vpop.permute.xlu0 %1212
  %1214 = vrot.lane.b32.xlu0 %v413, 8
  %v1215 = vpop.permute.xlu0 %1214
  %1216 = vrot.lane.b32.xlu0 %v414, 8
  %v1217 = vpop.permute.xlu0 %1216
  %1218 = vrot.lane.b32.xlu0 %v415, 8
  %v1219 = vpop.permute.xlu0 %1218
  %1220 = vrot.lane.b32.xlu0 %v416, 8
  %v1221 = vpop.permute.xlu0 %1220
  %1222 = vrot.lane.b32.xlu0 %v417, 8
  %v1223 = vpop.permute.xlu0 %1222
  %1224 = vrot.lane.b32.xlu0 %v418, 8
  %v1225 = vpop.permute.xlu0 %1224
  %1226 = vrot.lane.b32.xlu0 %v419, 8
  %v1227 = vpop.permute.xlu0 %1226
  %1228 = vrot.lane.b32.xlu0 %v420, 8
  %v1229 = vpop.permute.xlu0 %1228
  %1230 = vrot.lane.b32.xlu0 %v421, 8
  %v1231 = vpop.permute.xlu0 %1230
  %1232 = vrot.lane.b32.xlu0 %v422, 8
  %v1233 = vpop.permute.xlu0 %1232
  %1234 = vrot.lane.b32.xlu0 %v423, 8
  %v1235 = vpop.permute.xlu0 %1234
  %1236 = vrot.lane.b32.xlu0 %v424, 8
  %v1237 = vpop.permute.xlu0 %1236
  %1238 = vrot.lane.b32.xlu0 %v425, 8
  %v1239 = vpop.permute.xlu0 %1238
  %1240 = vrot.lane.b32.xlu0 %v426, 8
  %v1241 = vpop.permute.xlu0 %1240
  %1242 = vrot.lane.b32.xlu0 %v427, 8
  %v1243 = vpop.permute.xlu0 %1242
  %1244 = vrot.lane.b32.xlu0 %v428, 8
  %v1245 = vpop.permute.xlu0 %1244
  %1246 = vrot.lane.b32.xlu0 %v429, 8
  %v1247 = vpop.permute.xlu0 %1246
  %1248 = vrot.lane.b32.xlu0 %v430, 8
  %v1249 = vpop.permute.xlu0 %1248
  %1250 = vrot.lane.b32.xlu0 %v431, 8
  %v1251 = vpop.permute.xlu0 %1250
  %1252 = vrot.lane.b32.xlu0 %v432, 8
  %v1253 = vpop.permute.xlu0 %1252
  %1254 = vrot.lane.b32.xlu0 %v433, 8
  %v1255 = vpop.permute.xlu0 %1254
  %1256 = vrot.lane.b32.xlu0 %v434, 8
  %v1257 = vpop.permute.xlu0 %1256
  %1258 = vrot.lane.b32.xlu0 %v435, 8
  %v1259 = vpop.permute.xlu0 %1258
  %1260 = vrot.lane.b32.xlu0 %v436, 8
  %v1261 = vpop.permute.xlu0 %1260
  %1262 = vrot.lane.b32.xlu0 %v437, 8
  %v1263 = vpop.permute.xlu0 %1262
  %1264 = vrot.lane.b32.xlu0 %v438, 8
  %v1265 = vpop.permute.xlu0 %1264
  %1266 = vrot.lane.b32.xlu0 %v439, 8
  %v1267 = vpop.permute.xlu0 %1266
  %1268 = vrot.lane.b32.xlu0 %v440, 8
  %v1269 = vpop.permute.xlu0 %1268
  %1270 = vrot.lane.b32.xlu0 %v441, 8
  %v1271 = vpop.permute.xlu0 %1270
  %1272 = vrot.lane.b32.xlu0 %v442, 8
  %v1273 = vpop.permute.xlu0 %1272
  %1274 = vrot.lane.b32.xlu0 %v443, 8
  %v1275 = vpop.permute.xlu0 %1274
  %1276 = vrot.lane.b32.xlu0 %v444, 8
  %v1277 = vpop.permute.xlu0 %1276
  %1406 = vrot.lane.b32.xlu0 %v445, 12
  %v1407 = vpop.permute.xlu0 %1406
  %1408 = vrot.lane.b32.xlu0 %v446, 12
  %v1409 = vpop.permute.xlu0 %1408
  %1410 = vrot.lane.b32.xlu0 %v447, 12
  %v1411 = vpop.permute.xlu0 %1410
  %1412 = vrot.lane.b32.xlu0 %v448, 12
  %v1413 = vpop.permute.xlu0 %1412
  %1414 = vrot.lane.b32.xlu0 %v449, 12
  %v1415 = vpop.permute.xlu0 %1414
  %1416 = vrot.lane.b32.xlu0 %v450, 12
  %v1417 = vpop.permute.xlu0 %1416
  %1418 = vrot.lane.b32.xlu0 %v451, 12
  %v1419 = vpop.permute.xlu0 %1418
  %1420 = vrot.lane.b32.xlu0 %v452, 12
  %v1421 = vpop.permute.xlu0 %1420
  %1422 = vrot.lane.b32.xlu0 %v453, 12
  %v1423 = vpop.permute.xlu0 %1422
  %1424 = vrot.lane.b32.xlu0 %v454, 12
  %v1425 = vpop.permute.xlu0 %1424
  %1426 = vrot.lane.b32.xlu0 %v455, 12
  %v1427 = vpop.permute.xlu0 %1426
  %1428 = vrot.lane.b32.xlu0 %v456, 12
  %v1429 = vpop.permute.xlu0 %1428
  %1430 = vrot.lane.b32.xlu0 %v457, 12
  %v1431 = vpop.permute.xlu0 %1430
  %1432 = vrot.lane.b32.xlu0 %v458, 12
  %v1433 = vpop.permute.xlu0 %1432
  %1434 = vrot.lane.b32.xlu0 %v459, 12
  %v1435 = vpop.permute.xlu0 %1434
  %1436 = vrot.lane.b32.xlu0 %v460, 12
  %v1437 = vpop.permute.xlu0 %1436
  %1438 = vrot.lane.b32.xlu0 %v461, 12
  %v1439 = vpop.permute.xlu0 %1438
  %1440 = vrot.lane.b32.xlu0 %v462, 12
  %v1441 = vpop.permute.xlu0 %1440
  %1442 = vrot.lane.b32.xlu0 %v463, 12
  %v1443 = vpop.permute.xlu0 %1442
  %1444 = vrot.lane.b32.xlu0 %v464, 12
  %v1445 = vpop.permute.xlu0 %1444
  %1446 = vrot.lane.b32.xlu0 %v465, 12
  %v1447 = vpop.permute.xlu0 %1446
  %1448 = vrot.lane.b32.xlu0 %v466, 12
  %v1449 = vpop.permute.xlu0 %1448
  %1450 = vrot.lane.b32.xlu0 %v467, 12
  %v1451 = vpop.permute.xlu0 %1450
  %1452 = vrot.lane.b32.xlu0 %v468, 12
  %v1453 = vpop.permute.xlu0 %1452
  %1454 = vrot.lane.b32.xlu0 %v469, 12
  %v1455 = vpop.permute.xlu0 %1454
  %1456 = vrot.lane.b32.xlu0 %v470, 12
  %v1457 = vpop.permute.xlu0 %1456
  %1458 = vrot.lane.b32.xlu0 %v471, 12
  %v1459 = vpop.permute.xlu0 %1458
  %1460 = vrot.lane.b32.xlu0 %v472, 12
  %v1461 = vpop.permute.xlu0 %1460
  %1462 = vrot.lane.b32.xlu0 %v473, 12
  %v1463 = vpop.permute.xlu0 %1462
  %1464 = vrot.lane.b32.xlu0 %v474, 12
  %v1465 = vpop.permute.xlu0 %1464
  %1466 = vrot.lane.b32.xlu0 %v475, 12
  %v1467 = vpop.permute.xlu0 %1466
  %1468 = vrot.lane.b32.xlu0 %v476, 12
  %v1469 = vpop.permute.xlu0 %1468
  %1470 = vrot.lane.b32.xlu0 %v477, 12
  %v1471 = vpop.permute.xlu0 %1470
  %1472 = vrot.lane.b32.xlu0 %v478, 12
  %v1473 = vpop.permute.xlu0 %1472
  %1474 = vrot.lane.b32.xlu0 %v479, 12
  %v1475 = vpop.permute.xlu0 %1474
  %1476 = vrot.lane.b32.xlu0 %v480, 12
  %v1477 = vpop.permute.xlu0 %1476
  %1478 = vrot.lane.b32.xlu0 %v481, 12
  %v1479 = vpop.permute.xlu0 %1478
  %1480 = vrot.lane.b32.xlu0 %v482, 12
  %v1481 = vpop.permute.xlu0 %1480
  %1482 = vrot.lane.b32.xlu0 %v483, 12
  %v1483 = vpop.permute.xlu0 %1482
  %1484 = vrot.lane.b32.xlu0 %v484, 12
  %v1485 = vpop.permute.xlu0 %1484
  %1486 = vrot.lane.b32.xlu0 %v485, 12
  %v1487 = vpop.permute.xlu0 %1486
  %1488 = vrot.lane.b32.xlu0 %v486, 12
  %v1489 = vpop.permute.xlu0 %1488
  %1490 = vrot.lane.b32.xlu0 %v487, 12
  %v1491 = vpop.permute.xlu0 %1490
  %1492 = vrot.lane.b32.xlu0 %v488, 12
  %v1493 = vpop.permute.xlu0 %1492
  %1494 = vrot.lane.b32.xlu0 %v489, 12
  %v1495 = vpop.permute.xlu0 %1494
  %1496 = vrot.lane.b32.xlu0 %v490, 12
  %v1497 = vpop.permute.xlu0 %1496
  %1498 = vrot.lane.b32.xlu0 %v491, 12
  %v1499 = vpop.permute.xlu0 %1498
  %1500 = vrot.lane.b32.xlu0 %v492, 12
  %v1501 = vpop.permute.xlu0 %1500
  %1502 = vrot.lane.b32.xlu0 %v493, 12
  %v1503 = vpop.permute.xlu0 %1502
  %1504 = vrot.lane.b32.xlu0 %v494, 12
  %v1505 = vpop.permute.xlu0 %1504
  %1506 = vrot.lane.b32.xlu0 %v495, 12
  %v1507 = vpop.permute.xlu0 %1506
  %1508 = vrot.lane.b32.xlu0 %v496, 12
  %v1509 = vpop.permute.xlu0 %1508
  %1510 = vrot.lane.b32.xlu0 %v497, 12
  %v1511 = vpop.permute.xlu0 %1510
  %1512 = vrot.lane.b32.xlu0 %v498, 12
  %v1513 = vpop.permute.xlu0 %1512
  %1514 = vrot.lane.b32.xlu0 %v499, 12
  %v1515 = vpop.permute.xlu0 %1514
  %1516 = vrot.lane.b32.xlu0 %v500, 12
  %v1517 = vpop.permute.xlu0 %1516
  %1518 = vrot.lane.b32.xlu0 %v501, 12
  %v1519 = vpop.permute.xlu0 %1518
  %1520 = vrot.lane.b32.xlu0 %v502, 12
  %v1521 = vpop.permute.xlu0 %1520
  %1522 = vrot.lane.b32.xlu0 %v503, 12
  %v1523 = vpop.permute.xlu0 %1522
  %1524 = vrot.lane.b32.xlu0 %v504, 12
  %v1525 = vpop.permute.xlu0 %1524
  %1526 = vrot.lane.b32.xlu0 %v505, 12
  %v1527 = vpop.permute.xlu0 %1526
  %1528 = vrot.lane.b32.xlu0 %v506, 12
  %v1529 = vpop.permute.xlu0 %1528
  %1530 = vrot.lane.b32.xlu0 %v507, 12
  %v1531 = vpop.permute.xlu0 %1530
  %1532 = vrot.lane.b32.xlu0 %v508, 12
  %v1533 = vpop.permute.xlu0 %1532
  %1662 = vrot.lane.b32.xlu0 %v509, 16
  %v1663 = vpop.permute.xlu0 %1662
  %1664 = vrot.lane.b32.xlu0 %v510, 16
  %v1665 = vpop.permute.xlu0 %1664
  %1666 = vrot.lane.b32.xlu0 %v511, 16
  %v1667 = vpop.permute.xlu0 %1666
  %1668 = vrot.lane.b32.xlu0 %v512, 16
  %v1669 = vpop.permute.xlu0 %1668
  %1670 = vrot.lane.b32.xlu0 %v513, 16
  %v1671 = vpop.permute.xlu0 %1670
  %1672 = vrot.lane.b32.xlu0 %v514, 16
  %v1673 = vpop.permute.xlu0 %1672
  %1674 = vrot.lane.b32.xlu0 %v515, 16
  %v1675 = vpop.permute.xlu0 %1674
  %1676 = vrot.lane.b32.xlu0 %v516, 16
  %v1677 = vpop.permute.xlu0 %1676
  %1678 = vrot.lane.b32.xlu0 %v517, 16
  %v1679 = vpop.permute.xlu0 %1678
  %1680 = vrot.lane.b32.xlu0 %v518, 16
  %v1681 = vpop.permute.xlu0 %1680
  %1682 = vrot.lane.b32.xlu0 %v519, 16
  %v1683 = vpop.permute.xlu0 %1682
  %1684 = vrot.lane.b32.xlu0 %v520, 16
  %v1685 = vpop.permute.xlu0 %1684
  %1686 = vrot.lane.b32.xlu0 %v521, 16
  %v1687 = vpop.permute.xlu0 %1686
  %1688 = vrot.lane.b32.xlu0 %v522, 16
  %v1689 = vpop.permute.xlu0 %1688
  %1690 = vrot.lane.b32.xlu0 %v523, 16
  %v1691 = vpop.permute.xlu0 %1690
  %1692 = vrot.lane.b32.xlu0 %v524, 16
  %v1693 = vpop.permute.xlu0 %1692
  %1694 = vrot.lane.b32.xlu0 %v525, 16
  %v1695 = vpop.permute.xlu0 %1694
  %1696 = vrot.lane.b32.xlu0 %v526, 16
  %v1697 = vpop.permute.xlu0 %1696
  %1698 = vrot.lane.b32.xlu0 %v527, 16
  %v1699 = vpop.permute.xlu0 %1698
  %1700 = vrot.lane.b32.xlu0 %v528, 16
  %v1701 = vpop.permute.xlu0 %1700
  %1702 = vrot.lane.b32.xlu0 %v529, 16
  %v1703 = vpop.permute.xlu0 %1702
  %1704 = vrot.lane.b32.xlu0 %v530, 16
  %v1705 = vpop.permute.xlu0 %1704
  %1706 = vrot.lane.b32.xlu0 %v531, 16
  %v1707 = vpop.permute.xlu0 %1706
  %1708 = vrot.lane.b32.xlu0 %v532, 16
  %v1709 = vpop.permute.xlu0 %1708
  %1710 = vrot.lane.b32.xlu0 %v533, 16
  %v1711 = vpop.permute.xlu0 %1710
  %1712 = vrot.lane.b32.xlu0 %v534, 16
  %v1713 = vpop.permute.xlu0 %1712
  %1714 = vrot.lane.b32.xlu0 %v535, 16
  %v1715 = vpop.permute.xlu0 %1714
  %1716 = vrot.lane.b32.xlu0 %v536, 16
  %v1717 = vpop.permute.xlu0 %1716
  %1718 = vrot.lane.b32.xlu0 %v537, 16
  %v1719 = vpop.permute.xlu0 %1718
  %1720 = vrot.lane.b32.xlu0 %v538, 16
  %v1721 = vpop.permute.xlu0 %1720
  %1722 = vrot.lane.b32.xlu0 %v539, 16
  %v1723 = vpop.permute.xlu0 %1722
  %1724 = vrot.lane.b32.xlu0 %v540, 16
  %v1725 = vpop.permute.xlu0 %1724
  %1726 = vrot.lane.b32.xlu0 %v541, 16
  %v1727 = vpop.permute.xlu0 %1726
  %1728 = vrot.lane.b32.xlu0 %v542, 16
  %v1729 = vpop.permute.xlu0 %1728
  %1730 = vrot.lane.b32.xlu0 %v543, 16
  %v1731 = vpop.permute.xlu0 %1730
  %1732 = vrot.lane.b32.xlu0 %v544, 16
  %v1733 = vpop.permute.xlu0 %1732
  %1734 = vrot.lane.b32.xlu0 %v545, 16
  %v1735 = vpop.permute.xlu0 %1734
  %1736 = vrot.lane.b32.xlu0 %v546, 16
  %v1737 = vpop.permute.xlu0 %1736
  %1738 = vrot.lane.b32.xlu0 %v547, 16
  %v1739 = vpop.permute.xlu0 %1738
  %1740 = vrot.lane.b32.xlu0 %v548, 16
  %v1741 = vpop.permute.xlu0 %1740
  %1742 = vrot.lane.b32.xlu0 %v549, 16
  %v1743 = vpop.permute.xlu0 %1742
  %1744 = vrot.lane.b32.xlu0 %v550, 16
  %v1745 = vpop.permute.xlu0 %1744
  %1746 = vrot.lane.b32.xlu0 %v551, 16
  %v1747 = vpop.permute.xlu0 %1746
  %1748 = vrot.lane.b32.xlu0 %v552, 16
  %v1749 = vpop.permute.xlu0 %1748
  %1750 = vrot.lane.b32.xlu0 %v553, 16
  %v1751 = vpop.permute.xlu0 %1750
  %1752 = vrot.lane.b32.xlu0 %v554, 16
  %v1753 = vpop.permute.xlu0 %1752
  %1754 = vrot.lane.b32.xlu0 %v555, 16
  %v1755 = vpop.permute.xlu0 %1754
  %1756 = vrot.lane.b32.xlu0 %v556, 16
  %v1757 = vpop.permute.xlu0 %1756
  %1758 = vrot.lane.b32.xlu0 %v557, 16
  %v1759 = vpop.permute.xlu0 %1758
  %1760 = vrot.lane.b32.xlu0 %v558, 16
  %v1761 = vpop.permute.xlu0 %1760
  %1762 = vrot.lane.b32.xlu0 %v559, 16
  %v1763 = vpop.permute.xlu0 %1762
  %1764 = vrot.lane.b32.xlu0 %v560, 16
  %v1765 = vpop.permute.xlu0 %1764
  %1766 = vrot.lane.b32.xlu0 %v561, 16
  %v1767 = vpop.permute.xlu0 %1766
  %1768 = vrot.lane.b32.xlu0 %v562, 16
  %v1769 = vpop.permute.xlu0 %1768
  %1770 = vrot.lane.b32.xlu0 %v563, 16
  %v1771 = vpop.permute.xlu0 %1770
  %1772 = vrot.lane.b32.xlu0 %v564, 16
  %v1773 = vpop.permute.xlu0 %1772
  %1774 = vrot.lane.b32.xlu0 %v565, 16
  %v1775 = vpop.permute.xlu0 %1774
  %1776 = vrot.lane.b32.xlu0 %v566, 16
  %v1777 = vpop.permute.xlu0 %1776
  %1778 = vrot.lane.b32.xlu0 %v567, 16
  %v1779 = vpop.permute.xlu0 %1778
  %1780 = vrot.lane.b32.xlu0 %v568, 16
  %v1781 = vpop.permute.xlu0 %1780
  %1782 = vrot.lane.b32.xlu0 %v569, 16
  %v1783 = vpop.permute.xlu0 %1782
  %1784 = vrot.lane.b32.xlu0 %v570, 16
  %v1785 = vpop.permute.xlu0 %1784
  %1786 = vrot.lane.b32.xlu0 %v571, 16
  %v1787 = vpop.permute.xlu0 %1786
  %1788 = vrot.lane.b32.xlu0 %v572, 16
  %v1789 = vpop.permute.xlu0 %1788
  %1918 = vrot.lane.b32.xlu0 %v573, 20
  %v1919 = vpop.permute.xlu0 %1918
  %1920 = vrot.lane.b32.xlu0 %v574, 20
  %v1921 = vpop.permute.xlu0 %1920
  %1922 = vrot.lane.b32.xlu0 %v575, 20
  %v1923 = vpop.permute.xlu0 %1922
  %1924 = vrot.lane.b32.xlu0 %v576, 20
  %v1925 = vpop.permute.xlu0 %1924
  %1926 = vrot.lane.b32.xlu0 %v577, 20
  %v1927 = vpop.permute.xlu0 %1926
  %1928 = vrot.lane.b32.xlu0 %v578, 20
  %v1929 = vpop.permute.xlu0 %1928
  %1930 = vrot.lane.b32.xlu0 %v579, 20
  %v1931 = vpop.permute.xlu0 %1930
  %1932 = vrot.lane.b32.xlu0 %v580, 20
  %v1933 = vpop.permute.xlu0 %1932
  %1934 = vrot.lane.b32.xlu0 %v581, 20
  %v1935 = vpop.permute.xlu0 %1934
  %1936 = vrot.lane.b32.xlu0 %v582, 20
  %v1937 = vpop.permute.xlu0 %1936
  %1938 = vrot.lane.b32.xlu0 %v583, 20
  %v1939 = vpop.permute.xlu0 %1938
  %1940 = vrot.lane.b32.xlu0 %v584, 20
  %v1941 = vpop.permute.xlu0 %1940
  %1942 = vrot.lane.b32.xlu0 %v585, 20
  %v1943 = vpop.permute.xlu0 %1942
  %1944 = vrot.lane.b32.xlu0 %v586, 20
  %v1945 = vpop.permute.xlu0 %1944
  %1946 = vrot.lane.b32.xlu0 %v587, 20
  %v1947 = vpop.permute.xlu0 %1946
  %1948 = vrot.lane.b32.xlu0 %v588, 20
  %v1949 = vpop.permute.xlu0 %1948
  %1950 = vrot.lane.b32.xlu0 %v589, 20
  %v1951 = vpop.permute.xlu0 %1950
  %1952 = vrot.lane.b32.xlu0 %v590, 20
  %v1953 = vpop.permute.xlu0 %1952
  %1954 = vrot.lane.b32.xlu0 %v591, 20
  %v1955 = vpop.permute.xlu0 %1954
  %1956 = vrot.lane.b32.xlu0 %v592, 20
  %v1957 = vpop.permute.xlu0 %1956
  %1958 = vrot.lane.b32.xlu0 %v593, 20
  %v1959 = vpop.permute.xlu0 %1958
  %1960 = vrot.lane.b32.xlu0 %v594, 20
  %v1961 = vpop.permute.xlu0 %1960
  %1962 = vrot.lane.b32.xlu0 %v595, 20
  %v1963 = vpop.permute.xlu0 %1962
  %1964 = vrot.lane.b32.xlu0 %v596, 20
  %v1965 = vpop.permute.xlu0 %1964
  %1966 = vrot.lane.b32.xlu0 %v597, 20
  %v1967 = vpop.permute.xlu0 %1966
  %1968 = vrot.lane.b32.xlu0 %v598, 20
  %v1969 = vpop.permute.xlu0 %1968
  %1970 = vrot.lane.b32.xlu0 %v599, 20
  %v1971 = vpop.permute.xlu0 %1970
  %1972 = vrot.lane.b32.xlu0 %v600, 20
  %v1973 = vpop.permute.xlu0 %1972
  %1974 = vrot.lane.b32.xlu0 %v601, 20
  %v1975 = vpop.permute.xlu0 %1974
  %1976 = vrot.lane.b32.xlu0 %v602, 20
  %v1977 = vpop.permute.xlu0 %1976
  %1978 = vrot.lane.b32.xlu0 %v603, 20
  %v1979 = vpop.permute.xlu0 %1978
  %1980 = vrot.lane.b32.xlu0 %v604, 20
  %v1981 = vpop.permute.xlu0 %1980
  %1982 = vrot.lane.b32.xlu0 %v605, 20
  %v1983 = vpop.permute.xlu0 %1982
  %1984 = vrot.lane.b32.xlu0 %v606, 20
  %v1985 = vpop.permute.xlu0 %1984
  %1986 = vrot.lane.b32.xlu0 %v607, 20
  %v1987 = vpop.permute.xlu0 %1986
  %1988 = vrot.lane.b32.xlu0 %v608, 20
  %v1989 = vpop.permute.xlu0 %1988
  %1990 = vrot.lane.b32.xlu0 %v609, 20
  %v1991 = vpop.permute.xlu0 %1990
  %1992 = vrot.lane.b32.xlu0 %v610, 20
  %v1993 = vpop.permute.xlu0 %1992
  %1994 = vrot.lane.b32.xlu0 %v611, 20
  %v1995 = vpop.permute.xlu0 %1994
  %1996 = vrot.lane.b32.xlu0 %v612, 20
  %v1997 = vpop.permute.xlu0 %1996
  %1998 = vrot.lane.b32.xlu0 %v613, 20
  %v1999 = vpop.permute.xlu0 %1998
  %2000 = vrot.lane.b32.xlu0 %v614, 20
  %v2001 = vpop.permute.xlu0 %2000
  %2002 = vrot.lane.b32.xlu0 %v615, 20
  %v2003 = vpop.permute.xlu0 %2002
  %2004 = vrot.lane.b32.xlu0 %v616, 20
  %v2005 = vpop.permute.xlu0 %2004
  %2006 = vrot.lane.b32.xlu0 %v617, 20
  %v2007 = vpop.permute.xlu0 %2006
  %2008 = vrot.lane.b32.xlu0 %v618, 20
  %v2009 = vpop.permute.xlu0 %2008
  %2010 = vrot.lane.b32.xlu0 %v619, 20
  %v2011 = vpop.permute.xlu0 %2010
  %2012 = vrot.lane.b32.xlu0 %v620, 20
  %v2013 = vpop.permute.xlu0 %2012
  %2014 = vrot.lane.b32.xlu0 %v621, 20
  %v2015 = vpop.permute.xlu0 %2014
  %2016 = vrot.lane.b32.xlu0 %v622, 20
  %v2017 = vpop.permute.xlu0 %2016
  %2018 = vrot.lane.b32.xlu0 %v623, 20
  %v2019 = vpop.permute.xlu0 %2018
  %2020 = vrot.lane.b32.xlu0 %v624, 20
  %v2021 = vpop.permute.xlu0 %2020
  %2022 = vrot.lane.b32.xlu0 %v625, 20
  %v2023 = vpop.permute.xlu0 %2022
  %2024 = vrot.lane.b32.xlu0 %v626, 20
  %v2025 = vpop.permute.xlu0 %2024
  %2026 = vrot.lane.b32.xlu0 %v627, 20
  %v2027 = vpop.permute.xlu0 %2026
  %2028 = vrot.lane.b32.xlu0 %v628, 20
  %v2029 = vpop.permute.xlu0 %2028
  %2030 = vrot.lane.b32.xlu0 %v629, 20
  %v2031 = vpop.permute.xlu0 %2030
  %2032 = vrot.lane.b32.xlu0 %v630, 20
  %v2033 = vpop.permute.xlu0 %2032
  %2034 = vrot.lane.b32.xlu0 %v631, 20
  %v2035 = vpop.permute.xlu0 %2034
  %2036 = vrot.lane.b32.xlu0 %v632, 20
  %v2037 = vpop.permute.xlu0 %2036
  %2038 = vrot.lane.b32.xlu0 %v633, 20
  %v2039 = vpop.permute.xlu0 %2038
  %2040 = vrot.lane.b32.xlu0 %v634, 20
  %v2041 = vpop.permute.xlu0 %2040
  %2042 = vrot.lane.b32.xlu0 %v635, 20
  %v2043 = vpop.permute.xlu0 %2042
  %2044 = vrot.lane.b32.xlu0 %v636, 20
  %v2045 = vpop.permute.xlu0 %2044
  %2174 = vrot.lane.b32.xlu0 %v638, 24
  %v2175 = vpop.permute.xlu0 %2174
  %2176 = vrot.lane.b32.xlu0 %v639, 24
  %v2177 = vpop.permute.xlu0 %2176
  %2178 = vrot.lane.b32.xlu0 %v640, 24
  %v2179 = vpop.permute.xlu0 %2178
  %2180 = vrot.lane.b32.xlu0 %v641, 24
  %v2181 = vpop.permute.xlu0 %2180
  %2182 = vrot.lane.b32.xlu0 %v642, 24
  %v2183 = vpop.permute.xlu0 %2182
  %2184 = vrot.lane.b32.xlu0 %v643, 24
  %v2185 = vpop.permute.xlu0 %2184
  %2186 = vrot.lane.b32.xlu0 %v644, 24
  %v2187 = vpop.permute.xlu0 %2186
  %2188 = vrot.lane.b32.xlu0 %v645, 24
  %v2189 = vpop.permute.xlu0 %2188
  %2190 = vrot.lane.b32.xlu0 %v646, 24
  %v2191 = vpop.permute.xlu0 %2190
  %2192 = vrot.lane.b32.xlu0 %v647, 24
  %v2193 = vpop.permute.xlu0 %2192
  %2194 = vrot.lane.b32.xlu0 %v648, 24
  %v2195 = vpop.permute.xlu0 %2194
  %2196 = vrot.lane.b32.xlu0 %v649, 24
  %v2197 = vpop.permute.xlu0 %2196
  %2198 = vrot.lane.b32.xlu0 %v650, 24
  %v2199 = vpop.permute.xlu0 %2198
  %2200 = vrot.lane.b32.xlu0 %v651, 24
  %v2201 = vpop.permute.xlu0 %2200
  %2202 = vrot.lane.b32.xlu0 %v652, 24
  %v2203 = vpop.permute.xlu0 %2202
  %2204 = vrot.lane.b32.xlu0 %v653, 24
  %v2205 = vpop.permute.xlu0 %2204
  %2206 = vrot.lane.b32.xlu0 %v654, 24
  %v2207 = vpop.permute.xlu0 %2206
  %2208 = vrot.lane.b32.xlu0 %v655, 24
  %v2209 = vpop.permute.xlu0 %2208
  %2210 = vrot.lane.b32.xlu0 %v656, 24
  %v2211 = vpop.permute.xlu0 %2210
  %2212 = vrot.lane.b32.xlu0 %v657, 24
  %v2213 = vpop.permute.xlu0 %2212
  %2214 = vrot.lane.b32.xlu0 %v658, 24
  %v2215 = vpop.permute.xlu0 %2214
  %2216 = vrot.lane.b32.xlu0 %v659, 24
  %v2217 = vpop.permute.xlu0 %2216
  %2218 = vrot.lane.b32.xlu0 %v660, 24
  %v2219 = vpop.permute.xlu0 %2218
  %2220 = vrot.lane.b32.xlu0 %v661, 24
  %v2221 = vpop.permute.xlu0 %2220
  %2222 = vrot.lane.b32.xlu0 %v662, 24
  %v2223 = vpop.permute.xlu0 %2222
  %2224 = vrot.lane.b32.xlu0 %v663, 24
  %v2225 = vpop.permute.xlu0 %2224
  %2226 = vrot.lane.b32.xlu0 %v664, 24
  %v2227 = vpop.permute.xlu0 %2226
  %2228 = vrot.lane.b32.xlu0 %v665, 24
  %v2229 = vpop.permute.xlu0 %2228
  %2230 = vrot.lane.b32.xlu0 %v666, 24
  %v2231 = vpop.permute.xlu0 %2230
  %2232 = vrot.lane.b32.xlu0 %v667, 24
  %v2233 = vpop.permute.xlu0 %2232
  %2234 = vrot.lane.b32.xlu0 %v668, 24
  %v2235 = vpop.permute.xlu0 %2234
  %2236 = vrot.lane.b32.xlu0 %v669, 24
  %v2237 = vpop.permute.xlu0 %2236
  %2238 = vrot.lane.b32.xlu0 %v670, 24
  %v2239 = vpop.permute.xlu0 %2238
  %2240 = vrot.lane.b32.xlu0 %v671, 24
  %v2241 = vpop.permute.xlu0 %2240
  %2242 = vrot.lane.b32.xlu0 %v672, 24
  %v2243 = vpop.permute.xlu0 %2242
  %2244 = vrot.lane.b32.xlu0 %v673, 24
  %v2245 = vpop.permute.xlu0 %2244
  %2246 = vrot.lane.b32.xlu0 %v674, 24
  %v2247 = vpop.permute.xlu0 %2246
  %2248 = vrot.lane.b32.xlu0 %v675, 24
  %v2249 = vpop.permute.xlu0 %2248
  %2250 = vrot.lane.b32.xlu0 %v676, 24
  %v2251 = vpop.permute.xlu0 %2250
  %2252 = vrot.lane.b32.xlu0 %v677, 24
  %v2253 = vpop.permute.xlu0 %2252
  %2254 = vrot.lane.b32.xlu0 %v678, 24
  %v2255 = vpop.permute.xlu0 %2254
  %2256 = vrot.lane.b32.xlu0 %v679, 24
  %v2257 = vpop.permute.xlu0 %2256
  %2258 = vrot.lane.b32.xlu0 %v680, 24
  %v2259 = vpop.permute.xlu0 %2258
  %2260 = vrot.lane.b32.xlu0 %v681, 24
  %v2261 = vpop.permute.xlu0 %2260
  %2262 = vrot.lane.b32.xlu0 %v682, 24
  %v2263 = vpop.permute.xlu0 %2262
  %2264 = vrot.lane.b32.xlu0 %v683, 24
  %v2265 = vpop.permute.xlu0 %2264
  %2266 = vrot.lane.b32.xlu0 %v684, 24
  %v2267 = vpop.permute.xlu0 %2266
  %2268 = vrot.lane.b32.xlu0 %v685, 24
  %v2269 = vpop.permute.xlu0 %2268
  %2270 = vrot.lane.b32.xlu0 %v686, 24
  %v2271 = vpop.permute.xlu0 %2270
  %2272 = vrot.lane.b32.xlu0 %v687, 24
  %v2273 = vpop.permute.xlu0 %2272
  %2274 = vrot.lane.b32.xlu0 %v688, 24
  %v2275 = vpop.permute.xlu0 %2274
  %2276 = vrot.lane.b32.xlu0 %v689, 24
  %v2277 = vpop.permute.xlu0 %2276
  %2278 = vrot.lane.b32.xlu0 %v690, 24
  %v2279 = vpop.permute.xlu0 %2278
  %2280 = vrot.lane.b32.xlu0 %v691, 24
  %v2281 = vpop.permute.xlu0 %2280
  %2282 = vrot.lane.b32.xlu0 %v692, 24
  %v2283 = vpop.permute.xlu0 %2282
  %2284 = vrot.lane.b32.xlu0 %v693, 24
  %v2285 = vpop.permute.xlu0 %2284
  %2286 = vrot.lane.b32.xlu0 %v694, 24
  %v2287 = vpop.permute.xlu0 %2286
  %2288 = vrot.lane.b32.xlu0 %v695, 24
  %v2289 = vpop.permute.xlu0 %2288
  %2290 = vrot.lane.b32.xlu0 %v696, 24
  %v2291 = vpop.permute.xlu0 %2290
  %2292 = vrot.lane.b32.xlu0 %v697, 24
  %v2293 = vpop.permute.xlu0 %2292
  %2294 = vrot.lane.b32.xlu0 %v698, 24
  %v2295 = vpop.permute.xlu0 %2294
  %2296 = vrot.lane.b32.xlu0 %v699, 24
  %v2297 = vpop.permute.xlu0 %2296
  %2298 = vrot.lane.b32.xlu0 %v700, 24
  %v2299 = vpop.permute.xlu0 %2298
  %2300 = vrot.lane.b32.xlu0 %v701, 24
  %v2301 = vpop.permute.xlu0 %2300
  %2430 = vrot.lane.b32.xlu0 %v702, 28
  %v2431 = vpop.permute.xlu0 %2430
  %2432 = vrot.lane.b32.xlu0 %v703, 28
  %v2433 = vpop.permute.xlu0 %2432
  %2434 = vrot.lane.b32.xlu0 %v704, 28
  %v2435 = vpop.permute.xlu0 %2434
  %2436 = vrot.lane.b32.xlu0 %v705, 28
  %v2437 = vpop.permute.xlu0 %2436
  %2438 = vrot.lane.b32.xlu0 %v706, 28
  %v2439 = vpop.permute.xlu0 %2438
  %2440 = vrot.lane.b32.xlu0 %v707, 28
  %v2441 = vpop.permute.xlu0 %2440
  %2442 = vrot.lane.b32.xlu0 %v708, 28
  %v2443 = vpop.permute.xlu0 %2442
  %2444 = vrot.lane.b32.xlu0 %v709, 28
  %v2445 = vpop.permute.xlu0 %2444
  %2446 = vrot.lane.b32.xlu0 %v710, 28
  %v2447 = vpop.permute.xlu0 %2446
  %2448 = vrot.lane.b32.xlu0 %v711, 28
  %v2449 = vpop.permute.xlu0 %2448
  %2450 = vrot.lane.b32.xlu0 %v712, 28
  %v2451 = vpop.permute.xlu0 %2450
  %2452 = vrot.lane.b32.xlu0 %v713, 28
  %v2453 = vpop.permute.xlu0 %2452
  %2454 = vrot.lane.b32.xlu0 %v714, 28
  %v2455 = vpop.permute.xlu0 %2454
  %2456 = vrot.lane.b32.xlu0 %v715, 28
  %v2457 = vpop.permute.xlu0 %2456
  %2458 = vrot.lane.b32.xlu0 %v716, 28
  %v2459 = vpop.permute.xlu0 %2458
  %2460 = vrot.lane.b32.xlu0 %v717, 28
  %v2461 = vpop.permute.xlu0 %2460
  %2462 = vrot.lane.b32.xlu0 %v718, 28
  %v2463 = vpop.permute.xlu0 %2462
  %2464 = vrot.lane.b32.xlu0 %v719, 28
  %v2465 = vpop.permute.xlu0 %2464
  %2466 = vrot.lane.b32.xlu0 %v720, 28
  %v2467 = vpop.permute.xlu0 %2466
  %2468 = vrot.lane.b32.xlu0 %v721, 28
  %v2469 = vpop.permute.xlu0 %2468
  %2470 = vrot.lane.b32.xlu0 %v722, 28
  %v2471 = vpop.permute.xlu0 %2470
  %2472 = vrot.lane.b32.xlu0 %v723, 28
  %v2473 = vpop.permute.xlu0 %2472
  %2474 = vrot.lane.b32.xlu0 %v724, 28
  %v2475 = vpop.permute.xlu0 %2474
  %2476 = vrot.lane.b32.xlu0 %v725, 28
  %v2477 = vpop.permute.xlu0 %2476
  %2478 = vrot.lane.b32.xlu0 %v726, 28
  %v2479 = vpop.permute.xlu0 %2478
  %2480 = vrot.lane.b32.xlu0 %v727, 28
  %v2481 = vpop.permute.xlu0 %2480
  %2482 = vrot.lane.b32.xlu0 %v728, 28
  %v2483 = vpop.permute.xlu0 %2482
  %2484 = vrot.lane.b32.xlu0 %v729, 28
  %v2485 = vpop.permute.xlu0 %2484
  %2486 = vrot.lane.b32.xlu0 %v730, 28
  %v2487 = vpop.permute.xlu0 %2486
  %2488 = vrot.lane.b32.xlu0 %v731, 28
  %v2489 = vpop.permute.xlu0 %2488
  %2490 = vrot.lane.b32.xlu0 %v732, 28
  %v2491 = vpop.permute.xlu0 %2490
  %2492 = vrot.lane.b32.xlu0 %v733, 28
  %v2493 = vpop.permute.xlu0 %2492
  %2494 = vrot.lane.b32.xlu0 %v734, 28
  %v2495 = vpop.permute.xlu0 %2494
  %2496 = vrot.lane.b32.xlu0 %v735, 28
  %v2497 = vpop.permute.xlu0 %2496
  %2498 = vrot.lane.b32.xlu0 %v736, 28
  %v2499 = vpop.permute.xlu0 %2498
  %2500 = vrot.lane.b32.xlu0 %v737, 28
  %v2501 = vpop.permute.xlu0 %2500
  %2502 = vrot.lane.b32.xlu0 %v738, 28
  %v2503 = vpop.permute.xlu0 %2502
  %2504 = vrot.lane.b32.xlu0 %v739, 28
  %v2505 = vpop.permute.xlu0 %2504
  %2506 = vrot.lane.b32.xlu0 %v740, 28
  %v2507 = vpop.permute.xlu0 %2506
  %2508 = vrot.lane.b32.xlu0 %v741, 28
  %v2509 = vpop.permute.xlu0 %2508
  %2510 = vrot.lane.b32.xlu0 %v742, 28
  %v2511 = vpop.permute.xlu0 %2510
  %2512 = vrot.lane.b32.xlu0 %v743, 28
  %v2513 = vpop.permute.xlu0 %2512
  %2514 = vrot.lane.b32.xlu0 %v744, 28
  %v2515 = vpop.permute.xlu0 %2514
  %2516 = vrot.lane.b32.xlu0 %v745, 28
  %v2517 = vpop.permute.xlu0 %2516
  %2518 = vrot.lane.b32.xlu0 %v746, 28
  %v2519 = vpop.permute.xlu0 %2518
  %2520 = vrot.lane.b32.xlu0 %v747, 28
  %v2521 = vpop.permute.xlu0 %2520
  %2522 = vrot.lane.b32.xlu0 %v748, 28
  %v2523 = vpop.permute.xlu0 %2522
  %2524 = vrot.lane.b32.xlu0 %v749, 28
  %v2525 = vpop.permute.xlu0 %2524
  %2526 = vrot.lane.b32.xlu0 %v750, 28
  %v2527 = vpop.permute.xlu0 %2526
  %2528 = vrot.lane.b32.xlu0 %v751, 28
  %v2529 = vpop.permute.xlu0 %2528
  %2530 = vrot.lane.b32.xlu0 %v752, 28
  %v2531 = vpop.permute.xlu0 %2530
  %2532 = vrot.lane.b32.xlu0 %v753, 28
  %v2533 = vpop.permute.xlu0 %2532
  %2534 = vrot.lane.b32.xlu0 %v754, 28
  %v2535 = vpop.permute.xlu0 %2534
  %2536 = vrot.lane.b32.xlu0 %v755, 28
  %v2537 = vpop.permute.xlu0 %2536
  %2538 = vrot.lane.b32.xlu0 %v756, 28
  %v2539 = vpop.permute.xlu0 %2538
  %2540 = vrot.lane.b32.xlu0 %v757, 28
  %v2541 = vpop.permute.xlu0 %2540
  %2542 = vrot.lane.b32.xlu0 %v758, 28
  %v2543 = vpop.permute.xlu0 %2542
  %2544 = vrot.lane.b32.xlu0 %v759, 28
  %v2545 = vpop.permute.xlu0 %2544
  %2546 = vrot.lane.b32.xlu0 %v760, 28
  %v2547 = vpop.permute.xlu0 %2546
  %2548 = vrot.lane.b32.xlu0 %v761, 28
  %v2549 = vpop.permute.xlu0 %2548
  %2550 = vrot.lane.b32.xlu0 %v762, 28
  %v2551 = vpop.permute.xlu0 %2550
  %2552 = vrot.lane.b32.xlu0 %v763, 28
  %v2553 = vpop.permute.xlu0 %2552
  %2554 = vrot.lane.b32.xlu0 %v764, 28
  %v2555 = vpop.permute.xlu0 %2554
  %2556 = vrot.lane.b32.xlu0 %v765, 28
  %v2557 = vpop.permute.xlu0 %2556
  %2686 = vrot.lane.b32.xlu0 %v766, 32
  %v2687 = vpop.permute.xlu0 %2686
  %2688 = vrot.lane.b32.xlu0 %v767, 32
  %v2689 = vpop.permute.xlu0 %2688
  %2690 = vrot.lane.b32.xlu0 %v768, 32
  %v2691 = vpop.permute.xlu0 %2690
  %2692 = vrot.lane.b32.xlu0 %v769, 32
  %v2693 = vpop.permute.xlu0 %2692
  %2694 = vrot.lane.b32.xlu0 %v770, 32
  %v2695 = vpop.permute.xlu0 %2694
  %2696 = vrot.lane.b32.xlu0 %v771, 32
  %v2697 = vpop.permute.xlu0 %2696
  %2698 = vrot.lane.b32.xlu0 %v772, 32
  %v2699 = vpop.permute.xlu0 %2698
  %2700 = vrot.lane.b32.xlu0 %v773, 32
  %v2701 = vpop.permute.xlu0 %2700
  %2702 = vrot.lane.b32.xlu0 %v774, 32
  %v2703 = vpop.permute.xlu0 %2702
  %2704 = vrot.lane.b32.xlu0 %v775, 32
  %v2705 = vpop.permute.xlu0 %2704
  %2706 = vrot.lane.b32.xlu0 %v776, 32
  %v2707 = vpop.permute.xlu0 %2706
  %2708 = vrot.lane.b32.xlu0 %v777, 32
  %v2709 = vpop.permute.xlu0 %2708
  %2710 = vrot.lane.b32.xlu0 %v778, 32
  %v2711 = vpop.permute.xlu0 %2710
  %2712 = vrot.lane.b32.xlu0 %v779, 32
  %v2713 = vpop.permute.xlu0 %2712
  %2714 = vrot.lane.b32.xlu0 %v780, 32
  %v2715 = vpop.permute.xlu0 %2714
  %2716 = vrot.lane.b32.xlu0 %v781, 32
  %v2717 = vpop.permute.xlu0 %2716
  %2718 = vrot.lane.b32.xlu0 %v782, 32
  %v2719 = vpop.permute.xlu0 %2718
  %2720 = vrot.lane.b32.xlu0 %v783, 32
  %v2721 = vpop.permute.xlu0 %2720
  %2722 = vrot.lane.b32.xlu0 %v784, 32
  %v2723 = vpop.permute.xlu0 %2722
  %2724 = vrot.lane.b32.xlu0 %v785, 32
  %v2725 = vpop.permute.xlu0 %2724
  %2726 = vrot.lane.b32.xlu0 %v786, 32
  %v2727 = vpop.permute.xlu0 %2726
  %2728 = vrot.lane.b32.xlu0 %v787, 32
  %v2729 = vpop.permute.xlu0 %2728
  %2730 = vrot.lane.b32.xlu0 %v788, 32
  %v2731 = vpop.permute.xlu0 %2730
  %2732 = vrot.lane.b32.xlu0 %v789, 32
  %v2733 = vpop.permute.xlu0 %2732
  %2734 = vrot.lane.b32.xlu0 %v790, 32
  %v2735 = vpop.permute.xlu0 %2734
  %2736 = vrot.lane.b32.xlu0 %v791, 32
  %v2737 = vpop.permute.xlu0 %2736
  %2738 = vrot.lane.b32.xlu0 %v792, 32
  %v2739 = vpop.permute.xlu0 %2738
  %2740 = vrot.lane.b32.xlu0 %v793, 32
  %v2741 = vpop.permute.xlu0 %2740
  %2742 = vrot.lane.b32.xlu0 %v794, 32
  %v2743 = vpop.permute.xlu0 %2742
  %2744 = vrot.lane.b32.xlu0 %v795, 32
  %v2745 = vpop.permute.xlu0 %2744
  %2746 = vrot.lane.b32.xlu0 %v796, 32
  %v2747 = vpop.permute.xlu0 %2746
  %2748 = vrot.lane.b32.xlu0 %v797, 32
  %v2749 = vpop.permute.xlu0 %2748
  %2750 = vrot.lane.b32.xlu0 %v798, 32
  %v2751 = vpop.permute.xlu0 %2750
  %2752 = vrot.lane.b32.xlu0 %v799, 32
  %v2753 = vpop.permute.xlu0 %2752
  %2754 = vrot.lane.b32.xlu0 %v800, 32
  %v2755 = vpop.permute.xlu0 %2754
  %2756 = vrot.lane.b32.xlu0 %v801, 32
  %v2757 = vpop.permute.xlu0 %2756
  %2758 = vrot.lane.b32.xlu0 %v802, 32
  %v2759 = vpop.permute.xlu0 %2758
  %2760 = vrot.lane.b32.xlu0 %v803, 32
  %v2761 = vpop.permute.xlu0 %2760
  %2762 = vrot.lane.b32.xlu0 %v804, 32
  %v2763 = vpop.permute.xlu0 %2762
  %2764 = vrot.lane.b32.xlu0 %v805, 32
  %v2765 = vpop.permute.xlu0 %2764
  %2766 = vrot.lane.b32.xlu0 %v806, 32
  %v2767 = vpop.permute.xlu0 %2766
  %2768 = vrot.lane.b32.xlu0 %v807, 32
  %v2769 = vpop.permute.xlu0 %2768
  %2770 = vrot.lane.b32.xlu0 %v808, 32
  %v2771 = vpop.permute.xlu0 %2770
  %2772 = vrot.lane.b32.xlu0 %v809, 32
  %v2773 = vpop.permute.xlu0 %2772
  %2774 = vrot.lane.b32.xlu0 %v810, 32
  %v2775 = vpop.permute.xlu0 %2774
  %2776 = vrot.lane.b32.xlu0 %v811, 32
  %v2777 = vpop.permute.xlu0 %2776
  %2778 = vrot.lane.b32.xlu0 %v812, 32
  %v2779 = vpop.permute.xlu0 %2778
  %2780 = vrot.lane.b32.xlu0 %v813, 32
  %v2781 = vpop.permute.xlu0 %2780
  %2782 = vrot.lane.b32.xlu0 %v814, 32
  %v2783 = vpop.permute.xlu0 %2782
  %2784 = vrot.lane.b32.xlu0 %v815, 32
  %v2785 = vpop.permute.xlu0 %2784
  %2786 = vrot.lane.b32.xlu0 %v816, 32
  %v2787 = vpop.permute.xlu0 %2786
  %2788 = vrot.lane.b32.xlu0 %v817, 32
  %v2789 = vpop.permute.xlu0 %2788
  %2790 = vrot.lane.b32.xlu0 %v818, 32
  %v2791 = vpop.permute.xlu0 %2790
  %2792 = vrot.lane.b32.xlu0 %v819, 32
  %v2793 = vpop.permute.xlu0 %2792
  %2794 = vrot.lane.b32.xlu0 %v820, 32
  %v2795 = vpop.permute.xlu0 %2794
  %2796 = vrot.lane.b32.xlu0 %v821, 32
  %v2797 = vpop.permute.xlu0 %2796
  %2798 = vrot.lane.b32.xlu0 %v822, 32
  %v2799 = vpop.permute.xlu0 %2798
  %2800 = vrot.lane.b32.xlu0 %v823, 32
  %v2801 = vpop.permute.xlu0 %2800
  %2802 = vrot.lane.b32.xlu0 %v824, 32
  %v2803 = vpop.permute.xlu0 %2802
  %2804 = vrot.lane.b32.xlu0 %v825, 32
  %v2805 = vpop.permute.xlu0 %2804
  %2806 = vrot.lane.b32.xlu0 %v826, 32
  %v2807 = vpop.permute.xlu0 %2806
  %2808 = vrot.lane.b32.xlu0 %v827, 32
  %v2809 = vpop.permute.xlu0 %2808
  %2810 = vrot.lane.b32.xlu0 %v828, 32
  %v2811 = vpop.permute.xlu0 %2810
  %2812 = vrot.lane.b32.xlu0 %v829, 32
  %v2813 = vpop.permute.xlu0 %2812
  %v2878 = vsel %vm100, %v253, %v895
  %v2879 = vsel %vm100, %v254, %v897
  %v2880 = vsel %vm100, %v255, %v899
  %v2881 = vsel %vm100, %v256, %v901
  %v2882 = vsel %vm100, %v257, %v903
  %v2883 = vsel %vm100, %v258, %v905
  %v2884 = vsel %vm100, %v259, %v907
  %v2885 = vsel %vm100, %v260, %v909
  %v2886 = vsel %vm100, %v261, %v911
  %v2887 = vsel %vm100, %v262, %v913
  %v2888 = vsel %vm100, %v263, %v915
  %v2889 = vsel %vm100, %v264, %v917
  %v2890 = vsel %vm100, %v265, %v919
  %v2891 = vsel %vm100, %v266, %v921
  %v2892 = vsel %vm100, %v267, %v923
  %v2893 = vsel %vm100, %v268, %v925
  %v2894 = vsel %vm100, %v269, %v927
  %v2895 = vsel %vm100, %v270, %v929
  %v2896 = vsel %vm100, %v271, %v931
  %v2897 = vsel %vm100, %v272, %v933
  %v2898 = vsel %vm100, %v273, %v935
  %v2899 = vsel %vm100, %v274, %v937
  %v2900 = vsel %vm100, %v275, %v939
  %v2901 = vsel %vm100, %v276, %v941
  %v2902 = vsel %vm100, %v277, %v943
  %v2903 = vsel %vm100, %v278, %v945
  %v2904 = vsel %vm100, %v279, %v947
  %v2905 = vsel %vm100, %v280, %v949
  %v2906 = vsel %vm100, %v281, %v951
  %v2907 = vsel %vm100, %v282, %v953
  %v2908 = vsel %vm100, %v283, %v955
  %v2909 = vsel %vm100, %v284, %v957
  %v2910 = vsel %vm100, %v285, %v959
  %v2911 = vsel %vm100, %v286, %v961
  %v2912 = vsel %vm100, %v287, %v963
  %v2913 = vsel %vm100, %v288, %v965
  %v2914 = vsel %vm100, %v289, %v967
  %v2915 = vsel %vm100, %v290, %v969
  %v2916 = vsel %vm100, %v291, %v971
  %v2917 = vsel %vm100, %v292, %v973
  %v2918 = vsel %vm100, %v293, %v975
  %v2919 = vsel %vm100, %v294, %v977
  %v2920 = vsel %vm100, %v295, %v979
  %v2921 = vsel %vm100, %v296, %v981
  %v2922 = vsel %vm100, %v297, %v983
  %v2923 = vsel %vm100, %v298, %v985
  %v2924 = vsel %vm100, %v299, %v987
  %v2925 = vsel %vm100, %v300, %v989
  %v2926 = vsel %vm100, %v301, %v991
  %v2927 = vsel %vm100, %v302, %v993
  %v2928 = vsel %vm100, %v303, %v995
  %v2929 = vsel %vm100, %v304, %v997
  %v2930 = vsel %vm100, %v305, %v999
  %v2931 = vsel %vm100, %v306, %v1001
  %v2932 = vsel %vm100, %v307, %v1003
  %v2933 = vsel %vm100, %v308, %v1005
  %v2934 = vsel %vm100, %v309, %v1007
  %v2935 = vsel %vm100, %v310, %v1009
  %v2936 = vsel %vm100, %v311, %v1011
  %v2937 = vsel %vm100, %v312, %v1013
  %v2938 = vsel %vm100, %v313, %v1015
  %v2939 = vsel %vm100, %v314, %v1017
  %v2940 = vsel %vm100, %v315, %v1019
  %v2941 = vsel %vm100, %v316, %v1021
  %vm2942 = vcmask 64512
  %v2943 = vsel %vm2942, %v2878, %v1151
  %v2944 = vsel %vm2942, %v2879, %v1153
  %v2945 = vsel %vm2942, %v2880, %v1155
  %v2946 = vsel %vm2942, %v2881, %v1157
  %v2947 = vsel %vm2942, %v2882, %v1159
  %v2948 = vsel %vm2942, %v2883, %v1161
  %v2949 = vsel %vm2942, %v2884, %v1163
  %v2950 = vsel %vm2942, %v2885, %v1165
  %v2951 = vsel %vm2942, %v2886, %v1167
  %v2952 = vsel %vm2942, %v2887, %v1169
  %v2953 = vsel %vm2942, %v2888, %v1171
  %v2954 = vsel %vm2942, %v2889, %v1173
  %v2955 = vsel %vm2942, %v2890, %v1175
  %v2956 = vsel %vm2942, %v2891, %v1177
  %v2957 = vsel %vm2942, %v2892, %v1179
  %v2958 = vsel %vm2942, %v2893, %v1181
  %v2959 = vsel %vm2942, %v2894, %v1183
  %v2960 = vsel %vm2942, %v2895, %v1185
  %v2961 = vsel %vm2942, %v2896, %v1187
  %v2962 = vsel %vm2942, %v2897, %v1189
  %v2963 = vsel %vm2942, %v2898, %v1191
  %v2964 = vsel %vm2942, %v2899, %v1193
  %v2965 = vsel %vm2942, %v2900, %v1195
  %v2966 = vsel %vm2942, %v2901, %v1197
  %v2967 = vsel %vm2942, %v2902, %v1199
  %v2968 = vsel %vm2942, %v2903, %v1201
  %v2969 = vsel %vm2942, %v2904, %v1203
  %v2970 = vsel %vm2942, %v2905, %v1205
  %v2971 = vsel %vm2942, %v2906, %v1207
  %v2972 = vsel %vm2942, %v2907, %v1209
  %v2973 = vsel %vm2942, %v2908, %v1211
  %v2974 = vsel %vm2942, %v2909, %v1213
  %v2975 = vsel %vm2942, %v2910, %v1215
  %v2976 = vsel %vm2942, %v2911, %v1217
  %v2977 = vsel %vm2942, %v2912, %v1219
  %v2978 = vsel %vm2942, %v2913, %v1221
  %v2979 = vsel %vm2942, %v2914, %v1223
  %v2980 = vsel %vm2942, %v2915, %v1225
  %v2981 = vsel %vm2942, %v2916, %v1227
  %v2982 = vsel %vm2942, %v2917, %v1229
  %v2983 = vsel %vm2942, %v2918, %v1231
  %v2984 = vsel %vm2942, %v2919, %v1233
  %v2985 = vsel %vm2942, %v2920, %v1235
  %v2986 = vsel %vm2942, %v2921, %v1237
  %v2987 = vsel %vm2942, %v2922, %v1239
  %v2988 = vsel %vm2942, %v2923, %v1241
  %v2989 = vsel %vm2942, %v2924, %v1243
  %v2990 = vsel %vm2942, %v2925, %v1245
  %v2991 = vsel %vm2942, %v2926, %v1247
  %v2992 = vsel %vm2942, %v2927, %v1249
  %v2993 = vsel %vm2942, %v2928, %v1251
  %v2994 = vsel %vm2942, %v2929, %v1253
  %v2995 = vsel %vm2942, %v2930, %v1255
  %v2996 = vsel %vm2942, %v2931, %v1257
  %v2997 = vsel %vm2942, %v2932, %v1259
  %v2998 = vsel %vm2942, %v2933, %v1261
  %v2999 = vsel %vm2942, %v2934, %v1263
  %v3000 = vsel %vm2942, %v2935, %v1265
  %v3001 = vsel %vm2942, %v2936, %v1267
  %v3002 = vsel %vm2942, %v2937, %v1269
  %v3003 = vsel %vm2942, %v2938, %v1271
  %v3004 = vsel %vm2942, %v2939, %v1273
  %v3005 = vsel %vm2942, %v2940, %v1275
  %v3006 = vsel %vm2942, %v2941, %v1277
  %vm3007 = vcmask 97280
  %v3008 = vsel %vm3007, %v2943, %v1407
  %v3009 = vsel %vm3007, %v2944, %v1409
  %v3010 = vsel %vm3007, %v2945, %v1411
  %v3011 = vsel %vm3007, %v2946, %v1413
  %v3012 = vsel %vm3007, %v2947, %v1415
  %v3013 = vsel %vm3007, %v2948, %v1417
  %v3014 = vsel %vm3007, %v2949, %v1419
  %v3015 = vsel %vm3007, %v2950, %v1421
  %v3016 = vsel %vm3007, %v2951, %v1423
  %v3017 = vsel %vm3007, %v2952, %v1425
  %v3018 = vsel %vm3007, %v2953, %v1427
  %v3019 = vsel %vm3007, %v2954, %v1429
  %v3020 = vsel %vm3007, %v2955, %v1431
  %v3021 = vsel %vm3007, %v2956, %v1433
  %v3022 = vsel %vm3007, %v2957, %v1435
  %v3023 = vsel %vm3007, %v2958, %v1437
  %v3024 = vsel %vm3007, %v2959, %v1439
  %v3025 = vsel %vm3007, %v2960, %v1441
  %v3026 = vsel %vm3007, %v2961, %v1443
  %v3027 = vsel %vm3007, %v2962, %v1445
  %v3028 = vsel %vm3007, %v2963, %v1447
  %v3029 = vsel %vm3007, %v2964, %v1449
  %v3030 = vsel %vm3007, %v2965, %v1451
  %v3031 = vsel %vm3007, %v2966, %v1453
  %v3032 = vsel %vm3007, %v2967, %v1455
  %v3033 = vsel %vm3007, %v2968, %v1457
  %v3034 = vsel %vm3007, %v2969, %v1459
  %v3035 = vsel %vm3007, %v2970, %v1461
  %v3036 = vsel %vm3007, %v2971, %v1463
  %v3037 = vsel %vm3007, %v2972, %v1465
  %v3038 = vsel %vm3007, %v2973, %v1467
  %v3039 = vsel %vm3007, %v2974, %v1469
  %v3040 = vsel %vm3007, %v2975, %v1471
  %v3041 = vsel %vm3007, %v2976, %v1473
  %v3042 = vsel %vm3007, %v2977, %v1475
  %v3043 = vsel %vm3007, %v2978, %v1477
  %v3044 = vsel %vm3007, %v2979, %v1479
  %v3045 = vsel %vm3007, %v2980, %v1481
  %v3046 = vsel %vm3007, %v2981, %v1483
  %v3047 = vsel %vm3007, %v2982, %v1485
  %v3048 = vsel %vm3007, %v2983, %v1487
  %v3049 = vsel %vm3007, %v2984, %v1489
  %v3050 = vsel %vm3007, %v2985, %v1491
  %v3051 = vsel %vm3007, %v2986, %v1493
  %v3052 = vsel %vm3007, %v2987, %v1495
  %v3053 = vsel %vm3007, %v2988, %v1497
  %v3054 = vsel %vm3007, %v2989, %v1499
  %v3055 = vsel %vm3007, %v2990, %v1501
  %v3056 = vsel %vm3007, %v2991, %v1503
  %v3057 = vsel %vm3007, %v2992, %v1505
  %v3058 = vsel %vm3007, %v2993, %v1507
  %v3059 = vsel %vm3007, %v2994, %v1509
  %v3060 = vsel %vm3007, %v2995, %v1511
  %v3061 = vsel %vm3007, %v2996, %v1513
  %v3062 = vsel %vm3007, %v2997, %v1515
  %v3063 = vsel %vm3007, %v2998, %v1517
  %v3064 = vsel %vm3007, %v2999, %v1519
  %v3065 = vsel %vm3007, %v3000, %v1521
  %v3066 = vsel %vm3007, %v3001, %v1523
  %v3067 = vsel %vm3007, %v3002, %v1525
  %v3068 = vsel %vm3007, %v3003, %v1527
  %v3069 = vsel %vm3007, %v3004, %v1529
  %v3070 = vsel %vm3007, %v3005, %v1531
  %v3071 = vsel %vm3007, %v3006, %v1533
  %vm3072 = vcmask 130048
  %v3073 = vsel %vm3072, %v3008, %v1663
  %v3074 = vsel %vm3072, %v3009, %v1665
  %v3075 = vsel %vm3072, %v3010, %v1667
  %v3076 = vsel %vm3072, %v3011, %v1669
  %v3077 = vsel %vm3072, %v3012, %v1671
  %v3078 = vsel %vm3072, %v3013, %v1673
  %v3079 = vsel %vm3072, %v3014, %v1675
  %v3080 = vsel %vm3072, %v3015, %v1677
  %v3081 = vsel %vm3072, %v3016, %v1679
  %v3082 = vsel %vm3072, %v3017, %v1681
  %v3083 = vsel %vm3072, %v3018, %v1683
  %v3084 = vsel %vm3072, %v3019, %v1685
  %v3085 = vsel %vm3072, %v3020, %v1687
  %v3086 = vsel %vm3072, %v3021, %v1689
  %v3087 = vsel %vm3072, %v3022, %v1691
  %v3088 = vsel %vm3072, %v3023, %v1693
  %v3089 = vsel %vm3072, %v3024, %v1695
  %v3090 = vsel %vm3072, %v3025, %v1697
  %v3091 = vsel %vm3072, %v3026, %v1699
  %v3092 = vsel %vm3072, %v3027, %v1701
  %v3093 = vsel %vm3072, %v3028, %v1703
  %v3094 = vsel %vm3072, %v3029, %v1705
  %v3095 = vsel %vm3072, %v3030, %v1707
  %v3096 = vsel %vm3072, %v3031, %v1709
  %v3097 = vsel %vm3072, %v3032, %v1711
  %v3098 = vsel %vm3072, %v3033, %v1713
  %v3099 = vsel %vm3072, %v3034, %v1715
  %v3100 = vsel %vm3072, %v3035, %v1717
  %v3101 = vsel %vm3072, %v3036, %v1719
  %v3102 = vsel %vm3072, %v3037, %v1721
  %v3103 = vsel %vm3072, %v3038, %v1723
  %v3104 = vsel %vm3072, %v3039, %v1725
  %v3105 = vsel %vm3072, %v3040, %v1727
  %v3106 = vsel %vm3072, %v3041, %v1729
  %v3107 = vsel %vm3072, %v3042, %v1731
  %v3108 = vsel %vm3072, %v3043, %v1733
  %v3109 = vsel %vm3072, %v3044, %v1735
  %v3110 = vsel %vm3072, %v3045, %v1737
  %v3111 = vsel %vm3072, %v3046, %v1739
  %v3112 = vsel %vm3072, %v3047, %v1741
  %v3113 = vsel %vm3072, %v3048, %v1743
  %v3114 = vsel %vm3072, %v3049, %v1745
  %v3115 = vsel %vm3072, %v3050, %v1747
  %v3116 = vsel %vm3072, %v3051, %v1749
  %v3117 = vsel %vm3072, %v3052, %v1751
  %v3118 = vsel %vm3072, %v3053, %v1753
  %v3119 = vsel %vm3072, %v3054, %v1755
  %v3120 = vsel %vm3072, %v3055, %v1757
  %v3121 = vsel %vm3072, %v3056, %v1759
  %v3122 = vsel %vm3072, %v3057, %v1761
  %v3123 = vsel %vm3072, %v3058, %v1763
  %v3124 = vsel %vm3072, %v3059, %v1765
  %v3125 = vsel %vm3072, %v3060, %v1767
  %v3126 = vsel %vm3072, %v3061, %v1769
  %v3127 = vsel %vm3072, %v3062, %v1771
  %v3128 = vsel %vm3072, %v3063, %v1773
  %v3129 = vsel %vm3072, %v3064, %v1775
  %v3130 = vsel %vm3072, %v3065, %v1777
  %v3131 = vsel %vm3072, %v3066, %v1779
  %v3132 = vsel %vm3072, %v3067, %v1781
  %v3133 = vsel %vm3072, %v3068, %v1783
  %v3134 = vsel %vm3072, %v3069, %v1785
  %v3135 = vsel %vm3072, %v3070, %v1787
  %v3136 = vsel %vm3072, %v3071, %v1789
  %vm3137 = vcmask 162816
  %v3138 = vsel %vm3137, %v3073, %v1919
  %v3139 = vsel %vm3137, %v3074, %v1921
  %v3140 = vsel %vm3137, %v3075, %v1923
  %v3141 = vsel %vm3137, %v3076, %v1925
  %v3142 = vsel %vm3137, %v3077, %v1927
  %v3143 = vsel %vm3137, %v3078, %v1929
  %v3144 = vsel %vm3137, %v3079, %v1931
  %v3145 = vsel %vm3137, %v3080, %v1933
  %v3146 = vsel %vm3137, %v3081, %v1935
  %v3147 = vsel %vm3137, %v3082, %v1937
  %v3148 = vsel %vm3137, %v3083, %v1939
  %v3149 = vsel %vm3137, %v3084, %v1941
  %v3150 = vsel %vm3137, %v3085, %v1943
  %v3151 = vsel %vm3137, %v3086, %v1945
  %v3152 = vsel %vm3137, %v3087, %v1947
  %v3153 = vsel %vm3137, %v3088, %v1949
  %v3154 = vsel %vm3137, %v3089, %v1951
  %v3155 = vsel %vm3137, %v3090, %v1953
  %v3156 = vsel %vm3137, %v3091, %v1955
  %v3157 = vsel %vm3137, %v3092, %v1957
  %v3158 = vsel %vm3137, %v3093, %v1959
  %v3159 = vsel %vm3137, %v3094, %v1961
  %v3160 = vsel %vm3137, %v3095, %v1963
  %v3161 = vsel %vm3137, %v3096, %v1965
  %v3162 = vsel %vm3137, %v3097, %v1967
  %v3163 = vsel %vm3137, %v3098, %v1969
  %v3164 = vsel %vm3137, %v3099, %v1971
  %v3165 = vsel %vm3137, %v3100, %v1973
  %v3166 = vsel %vm3137, %v3101, %v1975
  %v3167 = vsel %vm3137, %v3102, %v1977
  %v3168 = vsel %vm3137, %v3103, %v1979
  %v3169 = vsel %vm3137, %v3104, %v1981
  %v3170 = vsel %vm3137, %v3105, %v1983
  %v3171 = vsel %vm3137, %v3106, %v1985
  %v3172 = vsel %vm3137, %v3107, %v1987
  %v3173 = vsel %vm3137, %v3108, %v1989
  %v3174 = vsel %vm3137, %v3109, %v1991
  %v3175 = vsel %vm3137, %v3110, %v1993
  %v3176 = vsel %vm3137, %v3111, %v1995
  %v3177 = vsel %vm3137, %v3112, %v1997
  %v3178 = vsel %vm3137, %v3113, %v1999
  %v3179 = vsel %vm3137, %v3114, %v2001
  %v3180 = vsel %vm3137, %v3115, %v2003
  %v3181 = vsel %vm3137, %v3116, %v2005
  %v3182 = vsel %vm3137, %v3117, %v2007
  %v3183 = vsel %vm3137, %v3118, %v2009
  %v3184 = vsel %vm3137, %v3119, %v2011
  %v3185 = vsel %vm3137, %v3120, %v2013
  %v3186 = vsel %vm3137, %v3121, %v2015
  %v3187 = vsel %vm3137, %v3122, %v2017
  %v3188 = vsel %vm3137, %v3123, %v2019
  %v3189 = vsel %vm3137, %v3124, %v2021
  %v3190 = vsel %vm3137, %v3125, %v2023
  %v3191 = vsel %vm3137, %v3126, %v2025
  %v3192 = vsel %vm3137, %v3127, %v2027
  %v3193 = vsel %vm3137, %v3128, %v2029
  %v3194 = vsel %vm3137, %v3129, %v2031
  %v3195 = vsel %vm3137, %v3130, %v2033
  %v3196 = vsel %vm3137, %v3131, %v2035
  %v3197 = vsel %vm3137, %v3132, %v2037
  %v3198 = vsel %vm3137, %v3133, %v2039
  %v3199 = vsel %vm3137, %v3134, %v2041
  %v3200 = vsel %vm3137, %v3135, %v2043
  %v3201 = vsel %vm3137, %v3136, %v2045
  %vm3202 = vcmask 195584
  %v3203 = vsel %vm3202, %v3138, %v2175
  %v3204 = vsel %vm3202, %v3139, %v2177
  %v3205 = vsel %vm3202, %v3140, %v2179
  %v3206 = vsel %vm3202, %v3141, %v2181
  %v3207 = vsel %vm3202, %v3142, %v2183
  %v3208 = vsel %vm3202, %v3143, %v2185
  %v3209 = vsel %vm3202, %v3144, %v2187
  %v3210 = vsel %vm3202, %v3145, %v2189
  %v3211 = vsel %vm3202, %v3146, %v2191
  %v3212 = vsel %vm3202, %v3147, %v2193
  %v3213 = vsel %vm3202, %v3148, %v2195
  %v3214 = vsel %vm3202, %v3149, %v2197
  %v3215 = vsel %vm3202, %v3150, %v2199
  %v3216 = vsel %vm3202, %v3151, %v2201
  %v3217 = vsel %vm3202, %v3152, %v2203
  %v3218 = vsel %vm3202, %v3153, %v2205
  %v3219 = vsel %vm3202, %v3154, %v2207
  %v3220 = vsel %vm3202, %v3155, %v2209
  %v3221 = vsel %vm3202, %v3156, %v2211
  %v3222 = vsel %vm3202, %v3157, %v2213
  %v3223 = vsel %vm3202, %v3158, %v2215
  %v3224 = vsel %vm3202, %v3159, %v2217
  %v3225 = vsel %vm3202, %v3160, %v2219
  %v3226 = vsel %vm3202, %v3161, %v2221
  %v3227 = vsel %vm3202, %v3162, %v2223
  %v3228 = vsel %vm3202, %v3163, %v2225
  %v3229 = vsel %vm3202, %v3164, %v2227
  %v3230 = vsel %vm3202, %v3165, %v2229
  %v3231 = vsel %vm3202, %v3166, %v2231
  %v3232 = vsel %vm3202, %v3167, %v2233
  %v3233 = vsel %vm3202, %v3168, %v2235
  %v3234 = vsel %vm3202, %v3169, %v2237
  %v3235 = vsel %vm3202, %v3170, %v2239
  %v3236 = vsel %vm3202, %v3171, %v2241
  %v3237 = vsel %vm3202, %v3172, %v2243
  %v3238 = vsel %vm3202, %v3173, %v2245
  %v3239 = vsel %vm3202, %v3174, %v2247
  %v3240 = vsel %vm3202, %v3175, %v2249
  %v3241 = vsel %vm3202, %v3176, %v2251
  %v3242 = vsel %vm3202, %v3177, %v2253
  %v3243 = vsel %vm3202, %v3178, %v2255
  %v3244 = vsel %vm3202, %v3179, %v2257
  %v3245 = vsel %vm3202, %v3180, %v2259
  %v3246 = vsel %vm3202, %v3181, %v2261
  %v3247 = vsel %vm3202, %v3182, %v2263
  %v3248 = vsel %vm3202, %v3183, %v2265
  %v3249 = vsel %vm3202, %v3184, %v2267
  %v3250 = vsel %vm3202, %v3185, %v2269
  %v3251 = vsel %vm3202, %v3186, %v2271
  %v3252 = vsel %vm3202, %v3187, %v2273
  %v3253 = vsel %vm3202, %v3188, %v2275
  %v3254 = vsel %vm3202, %v3189, %v2277
  %v3255 = vsel %vm3202, %v3190, %v2279
  %v3256 = vsel %vm3202, %v3191, %v2281
  %v3257 = vsel %vm3202, %v3192, %v2283
  %v3258 = vsel %vm3202, %v3193, %v2285
  %v3259 = vsel %vm3202, %v3194, %v2287
  %v3260 = vsel %vm3202, %v3195, %v2289
  %v3261 = vsel %vm3202, %v3196, %v2291
  %v3262 = vsel %vm3202, %v3197, %v2293
  %v3263 = vsel %vm3202, %v3198, %v2295
  %v3264 = vsel %vm3202, %v3199, %v2297
  %v3265 = vsel %vm3202, %v3200, %v2299
  %v3266 = vsel %vm3202, %v3201, %v2301
  %vm3267 = vcmask 228352
  %v3268 = vsel %vm3267, %v3203, %v2431
  %v3269 = vsel %vm3267, %v3204, %v2433
  %v3270 = vsel %vm3267, %v3205, %v2435
  %v3271 = vsel %vm3267, %v3206, %v2437
  %v3272 = vsel %vm3267, %v3207, %v2439
  %v3273 = vsel %vm3267, %v3208, %v2441
  %v3274 = vsel %vm3267, %v3209, %v2443
  %v3275 = vsel %vm3267, %v3210, %v2445
  %v3276 = vsel %vm3267, %v3211, %v2447
  %v3277 = vsel %vm3267, %v3212, %v2449
  %v3278 = vsel %vm3267, %v3213, %v2451
  %v3279 = vsel %vm3267, %v3214, %v2453
  %v3280 = vsel %vm3267, %v3215, %v2455
  %v3281 = vsel %vm3267, %v3216, %v2457
  %v3282 = vsel %vm3267, %v3217, %v2459
  %v3283 = vsel %vm3267, %v3218, %v2461
  %v3284 = vsel %vm3267, %v3219, %v2463
  %v3285 = vsel %vm3267, %v3220, %v2465
  %v3286 = vsel %vm3267, %v3221, %v2467
  %v3287 = vsel %vm3267, %v3222, %v2469
  %v3288 = vsel %vm3267, %v3223, %v2471
  %v3289 = vsel %vm3267, %v3224, %v2473
  %v3290 = vsel %vm3267, %v3225, %v2475
  %v3291 = vsel %vm3267, %v3226, %v2477
  %v3292 = vsel %vm3267, %v3227, %v2479
  %v3293 = vsel %vm3267, %v3228, %v2481
  %v3294 = vsel %vm3267, %v3229, %v2483
  %v3295 = vsel %vm3267, %v3230, %v2485
  %v3296 = vsel %vm3267, %v3231, %v2487
  %v3297 = vsel %vm3267, %v3232, %v2489
  %v3298 = vsel %vm3267, %v3233, %v2491
  %v3299 = vsel %vm3267, %v3234, %v2493
  %v3300 = vsel %vm3267, %v3235, %v2495
  %v3301 = vsel %vm3267, %v3236, %v2497
  %v3302 = vsel %vm3267, %v3237, %v2499
  %v3303 = vsel %vm3267, %v3238, %v2501
  %v3304 = vsel %vm3267, %v3239, %v2503
  %v3305 = vsel %vm3267, %v3240, %v2505
  %v3306 = vsel %vm3267, %v3241, %v2507
  %v3307 = vsel %vm3267, %v3242, %v2509
  %v3308 = vsel %vm3267, %v3243, %v2511
  %v3309 = vsel %vm3267, %v3244, %v2513
  %v3310 = vsel %vm3267, %v3245, %v2515
  %v3311 = vsel %vm3267, %v3246, %v2517
  %v3312 = vsel %vm3267, %v3247, %v2519
  %v3313 = vsel %vm3267, %v3248, %v2521
  %v3314 = vsel %vm3267, %v3249, %v2523
  %v3315 = vsel %vm3267, %v3250, %v2525
  %v3316 = vsel %vm3267, %v3251, %v2527
  %v3317 = vsel %vm3267, %v3252, %v2529
  %v3318 = vsel %vm3267, %v3253, %v2531
  %v3319 = vsel %vm3267, %v3254, %v2533
  %v3320 = vsel %vm3267, %v3255, %v2535
  %v3321 = vsel %vm3267, %v3256, %v2537
  %v3322 = vsel %vm3267, %v3257, %v2539
  %v3323 = vsel %vm3267, %v3258, %v2541
  %v3324 = vsel %vm3267, %v3259, %v2543
  %v3325 = vsel %vm3267, %v3260, %v2545
  %v3326 = vsel %vm3267, %v3261, %v2547
  %v3327 = vsel %vm3267, %v3262, %v2549
  %v3328 = vsel %vm3267, %v3263, %v2551
  %v3329 = vsel %vm3267, %v3264, %v2553
  %v3330 = vsel %vm3267, %v3265, %v2555
  %v3331 = vsel %vm3267, %v3266, %v2557
  %vm3332 = vcmask 261120
  %v3333 = vsel %vm3332, %v3268, %v2687
  %v3334 = vsel %vm3332, %v3269, %v2689
  %v3335 = vsel %vm3332, %v3270, %v2691
  %v3336 = vsel %vm3332, %v3271, %v2693
  %v3337 = vsel %vm3332, %v3272, %v2695
  %v3338 = vsel %vm3332, %v3273, %v2697
  %v3339 = vsel %vm3332, %v3274, %v2699
  %v3340 = vsel %vm3332, %v3275, %v2701
  %v3341 = vsel %vm3332, %v3276, %v2703
  %v3342 = vsel %vm3332, %v3277, %v2705
  %v3343 = vsel %vm3332, %v3278, %v2707
  %v3344 = vsel %vm3332, %v3279, %v2709
  %v3345 = vsel %vm3332, %v3280, %v2711
  %v3346 = vsel %vm3332, %v3281, %v2713
  %v3347 = vsel %vm3332, %v3282, %v2715
  %v3348 = vsel %vm3332, %v3283, %v2717
  %v3349 = vsel %vm3332, %v3284, %v2719
  %v3350 = vsel %vm3332, %v3285, %v2721
  %v3351 = vsel %vm3332, %v3286, %v2723
  %v3352 = vsel %vm3332, %v3287, %v2725
  %v3353 = vsel %vm3332, %v3288, %v2727
  %v3354 = vsel %vm3332, %v3289, %v2729
  %v3355 = vsel %vm3332, %v3290, %v2731
  %v3356 = vsel %vm3332, %v3291, %v2733
  %v3357 = vsel %vm3332, %v3292, %v2735
  %v3358 = vsel %vm3332, %v3293, %v2737
  %v3359 = vsel %vm3332, %v3294, %v2739
  %v3360 = vsel %vm3332, %v3295, %v2741
  %v3361 = vsel %vm3332, %v3296, %v2743
  %v3362 = vsel %vm3332, %v3297, %v2745
  %v3363 = vsel %vm3332, %v3298, %v2747
  %v3364 = vsel %vm3332, %v3299, %v2749
  %v3365 = vsel %vm3332, %v3300, %v2751
  %v3366 = vsel %vm3332, %v3301, %v2753
  %v3367 = vsel %vm3332, %v3302, %v2755
  %v3368 = vsel %vm3332, %v3303, %v2757
  %v3369 = vsel %vm3332, %v3304, %v2759
  %v3370 = vsel %vm3332, %v3305, %v2761
  %v3371 = vsel %vm3332, %v3306, %v2763
  %v3372 = vsel %vm3332, %v3307, %v2765
  %v3373 = vsel %vm3332, %v3308, %v2767
  %v3374 = vsel %vm3332, %v3309, %v2769
  %v3375 = vsel %vm3332, %v3310, %v2771
  %v3376 = vsel %vm3332, %v3311, %v2773
  %v3377 = vsel %vm3332, %v3312, %v2775
  %v3378 = vsel %vm3332, %v3313, %v2777
  %v3379 = vsel %vm3332, %v3314, %v2779
  %v3380 = vsel %vm3332, %v3315, %v2781
  %v3381 = vsel %vm3332, %v3316, %v2783
  %v3382 = vsel %vm3332, %v3317, %v2785
  %v3383 = vsel %vm3332, %v3318, %v2787
  %v3384 = vsel %vm3332, %v3319, %v2789
  %v3385 = vsel %vm3332, %v3320, %v2791
  %v3386 = vsel %vm3332, %v3321, %v2793
  %v3387 = vsel %vm3332, %v3322, %v2795
  %v3388 = vsel %vm3332, %v3323, %v2797
  %v3389 = vsel %vm3332, %v3324, %v2799
  %v3390 = vsel %vm3332, %v3325, %v2801
  %v3391 = vsel %vm3332, %v3326, %v2803
  %v3392 = vsel %vm3332, %v3327, %v2805
  %v3393 = vsel %vm3332, %v3328, %v2807
  %v3394 = vsel %vm3332, %v3329, %v2809
  %v3395 = vsel %vm3332, %v3330, %v2811
  %v3396 = vsel %vm3332, %v3331, %v2813
  %v3397 = vpack.c.bf16 %v3334, %v3333
  %v3398 = vpack.c.bf16 %v3336, %v3335
  %v3399 = vpack.c.bf16 %v3338, %v3337
  %v3400 = vpack.c.bf16 %v3340, %v3339
  %v3401 = vpack.c.bf16 %v3342, %v3341
  %v3402 = vpack.c.bf16 %v3344, %v3343
  %v3403 = vpack.c.bf16 %v3346, %v3345
  %v3404 = vpack.c.bf16 %v3348, %v3347
  %v3405 = vpack.c.bf16 %v3350, %v3349
  %v3406 = vpack.c.bf16 %v3352, %v3351
  %v3407 = vpack.c.bf16 %v3354, %v3353
  %v3408 = vpack.c.bf16 %v3356, %v3355
  %v3409 = vpack.c.bf16 %v3358, %v3357
  %v3410 = vpack.c.bf16 %v3360, %v3359
  %v3411 = vpack.c.bf16 %v3362, %v3361
  %v3412 = vpack.c.bf16 %v3364, %v3363
  %v3413 = vpack.c.bf16 %v3366, %v3365
  %v3414 = vpack.c.bf16 %v3368, %v3367
  %v3415 = vpack.c.bf16 %v3370, %v3369
  %v3416 = vpack.c.bf16 %v3372, %v3371
  %v3417 = vpack.c.bf16 %v3374, %v3373
  %v3418 = vpack.c.bf16 %v3376, %v3375
  %v3419 = vpack.c.bf16 %v3378, %v3377
  %v3420 = vpack.c.bf16 %v3380, %v3379
  %v3421 = vpack.c.bf16 %v3382, %v3381
  %v3422 = vpack.c.bf16 %v3384, %v3383
  %v3423 = vpack.c.bf16 %v3386, %v3385
  %v3424 = vpack.c.bf16 %v3388, %v3387
  %v3425 = vpack.c.bf16 %v3390, %v3389
  %v3426 = vpack.c.bf16 %v3392, %v3391
  %v3427 = vpack.c.bf16 %v3394, %v3393
  %v3428 = vpack.c.bf16 %v3396, %v3395
  %v3429 = vld [vmem:[%s1] sm:$0xf]
  %v3430 = vld [vmem:[%s1 + $0x4] sm:$0xf]
  %v3431 = vld [vmem:[%s1 + $0x8] sm:$0xf]
  %v3432 = vld [vmem:[%s1 + $0xc] sm:$0xf]
  %v3433 = vld [vmem:[%s1 + $0x10] sm:$0x3]
  %v3439 = vunpack.c.l.b16 %v3429
  %v3440 = vunpack.c.l.b16 %v3430
  %v3441 = vunpack.c.l.b16 %v3431
  %v3442 = vunpack.c.l.b16 %v3432
  %v3443 = vunpack.c.l.b16 %v3433
  %v3444 = vpack.c.b16 %v3440, %v3439
  %v3445 = vpack.c.b16 %v3442, %v3441
  %v3446 = vpack.c.b16 %v3443, %v3443
  %vm3449 = vcmask 293888
  %v3451 = vsel %vm3449, %v3397, 0
  %v3454 = vsel %vm3449, %v3398, 0
  %v3457 = vsel %vm3449, %v3399, 0
  %v3460 = vsel %vm3449, %v3400, 0
  %v3463 = vsel %vm3449, %v3401, 0
  %v3466 = vsel %vm3449, %v3402, 0
  %v3469 = vsel %vm3449, %v3403, 0
  %v3472 = vsel %vm3449, %v3404, 0
  %v3475 = vsel %vm3449, %v3405, 0
  %v3478 = vsel %vm3449, %v3406, 0
  %v3481 = vsel %vm3449, %v3407, 0
  %v3484 = vsel %vm3449, %v3408, 0
  %v3487 = vsel %vm3449, %v3409, 0
  %v3490 = vsel %vm3449, %v3410, 0
  %v3493 = vsel %vm3449, %v3411, 0
  %v3496 = vsel %vm3449, %v3412, 0
  %v3499 = vsel %vm3449, %v3413, 0
  %v3502 = vsel %vm3449, %v3414, 0
  %v3505 = vsel %vm3449, %v3415, 0
  %v3508 = vsel %vm3449, %v3416, 0
  %v3511 = vsel %vm3449, %v3417, 0
  %v3514 = vsel %vm3449, %v3418, 0
  %v3517 = vsel %vm3449, %v3419, 0
  %v3520 = vsel %vm3449, %v3420, 0
  %v3523 = vsel %vm3449, %v3421, 0
  %v3526 = vsel %vm3449, %v3422, 0
  %v3529 = vsel %vm3449, %v3423, 0
  %v3532 = vsel %vm3449, %v3424, 0
  %v3535 = vsel %vm3449, %v3425, 0
  %v3538 = vsel %vm3449, %v3426, 0
  %v3541 = vsel %vm3449, %v3427, 0
  %v3544 = vsel %vm3449, %v3428, 0
  %vm3546 = vcmask 1041408
  %v3548 = vsel %vm3546, %v3446, 0
  %3550 = vmatprep.subr.bf16.mxu0 0
  %3551 = vmatpush1.bf16.msra.mxu0 %v3444
  %3552 = vmatprep.subr.bf16.mxu0 0
  %3553 = vmatpush1.bf16.msra.mxu0 %v3445
  %3554 = vmatprep.subr.bf16.mxu0 0
  %3555 = vmatpush1.bf16.msra.mxu0 %v3548
  %3556 = vmatprep.subr.bf16.mxu0 0
  %3557 = vmatpush1.bf16.msra.mxu0 0
  %3558 = vmatprep.subr.bf16.mxu0 0
  %3559 = vmatpush1.bf16.msra.mxu0 0
  %3560 = vmatprep.subr.bf16.mxu0 0
  %3561 = vmatpush1.bf16.msra.mxu0 0
  %3562 = vmatprep.subr.bf16.mxu0 0
  %3563 = vmatpush1.bf16.msra.mxu0 0
  %3564 = vmatprep.subr.bf16.mxu0 0
  %3565 = vmatpush1.bf16.msra.mxu0 0
  %3566 = vmatprep.subr.bf16.mxu0 0
  %3567 = vmatpush1.bf16.msra.mxu0 0
  %3568 = vmatprep.subr.bf16.mxu0 0
  %3569 = vmatpush1.bf16.msra.mxu0 0
  %3570 = vmatprep.subr.bf16.mxu0 0
  %3571 = vmatpush1.bf16.msra.mxu0 0
  %3572 = vmatprep.subr.bf16.mxu0 0
  %3573 = vmatpush1.bf16.msra.mxu0 0
  %3574 = vmatprep.subr.bf16.mxu0 0
  %3575 = vmatpush1.bf16.msra.mxu0 0
  %3576 = vmatprep.subr.bf16.mxu0 0
  %3577 = vmatpush1.bf16.msra.mxu0 0
  %3578 = vmatprep.subr.bf16.mxu0 0
  %3579 = vmatpush1.bf16.msra.mxu0 0
  %3580 = vmatprep.subr.bf16.mxu0 0
  %3581 = vmatpush1.bf16.msra.mxu0 0
  %3582 = vmatprep.mubr.bf16.mxu0 0
  %3583 = vmatmul.mubr.bf16.gmra.mrb[0].mxu0 %v3451
  %v3584 = vpop.f32.mrb[0].mxu0
  %v3585 = vadd.f32 0.0, %v3584
  %v3586 = vpop.f32.mrb[0].mxu0
  %v3587 = vpop.f32.mrb[0].mxu0
  %v3588 = vadd.f32 0.0, %v3587
  %v3589 = vpop.f32.mrb[0].mxu0
  %3590 = vmatprep.mubr.bf16.mxu0 0
  %3591 = vmatmul.mubr.bf16.gmra.mrb[0].mxu0 %v3454
  %v3592 = vpop.f32.mrb[0].mxu0
  %v3593 = vadd.f32 0.0, %v3592
  %v3594 = vpop.f32.mrb[0].mxu0
  %v3595 = vpop.f32.mrb[0].mxu0
  %v3596 = vadd.f32 0.0, %v3595
  %v3597 = vpop.f32.mrb[0].mxu0
  %3598 = vmatprep.mubr.bf16.mxu0 0
  %3599 = vmatmul.mubr.bf16.gmra.mrb[0].mxu0 %v3457
  %v3600 = vpop.f32.mrb[0].mxu0
  %v3601 = vadd.f32 0.0, %v3600
  %v3602 = vpop.f32.mrb[0].mxu0
  %v3603 = vpop.f32.mrb[0].mxu0
  %v3604 = vadd.f32 0.0, %v3603
  %v3605 = vpop.f32.mrb[0].mxu0
  %3606 = vmatprep.mubr.bf16.mxu0 0
  %3607 = vmatmul.mubr.bf16.gmra.mrb[0].mxu0 %v3460
  %v3608 = vpop.f32.mrb[0].mxu0
  %v3609 = vadd.f32 0.0, %v3608
  %v3610 = vpop.f32.mrb[0].mxu0
  %v3611 = vpop.f32.mrb[0].mxu0
  %v3612 = vadd.f32 0.0, %v3611
  %v3613 = vpop.f32.mrb[0].mxu0
  %3614 = vmatprep.mubr.bf16.mxu0 0
  %3615 = vmatmul.mubr.bf16.gmra.mrb[0].mxu0 %v3463
  %v3616 = vpop.f32.mrb[0].mxu0
  %v3617 = vadd.f32 0.0, %v3616
  %v3618 = vpop.f32.mrb[0].mxu0
  %v3619 = vpop.f32.mrb[0].mxu0
  %v3620 = vadd.f32 0.0, %v3619
  %v3621 = vpop.f32.mrb[0].mxu0
  %3622 = vmatprep.mubr.bf16.mxu0 0
  %3623 = vmatmul.mubr.bf16.gmra.mrb[0].mxu0 %v3466
  %v3624 = vpop.f32.mrb[0].mxu0
  %v3625 = vadd.f32 0.0, %v3624
  %v3626 = vpop.f32.mrb[0].mxu0
  %v3627 = vpop.f32.mrb[0].mxu0
  %v3628 = vadd.f32 0.0, %v3627
  %v3629 = vpop.f32.mrb[0].mxu0
  %3630 = vmatprep.mubr.bf16.mxu0 0
  %3631 = vmatmul.mubr.bf16.gmra.mrb[0].mxu0 %v3469
  %v3632 = vpop.f32.mrb[0].mxu0
  %v3633 = vadd.f32 0.0, %v3632
  %v3634 = vpop.f32.mrb[0].mxu0
  %v3635 = vpop.f32.mrb[0].mxu0
  %v3636 = vadd.f32 0.0, %v3635
  %v3637 = vpop.f32.mrb[0].mxu0
  %3638 = vmatprep.mubr.bf16.mxu0 0
  %3639 = vmatmul.mubr.bf16.gmra.mrb[0].mxu0 %v3472
  %v3640 = vpop.f32.mrb[0].mxu0
  %v3641 = vadd.f32 0.0, %v3640
  %v3642 = vpop.f32.mrb[0].mxu0
  %v3643 = vpop.f32.mrb[0].mxu0
  %v3644 = vadd.f32 0.0, %v3643
  %v3645 = vpop.f32.mrb[0].mxu0
  %3646 = vmatprep.mubr.bf16.mxu0 0
  %3647 = vmatmul.mubr.bf16.gmra.mrb[0].mxu0 %v3475
  %v3648 = vpop.f32.mrb[0].mxu0
  %v3649 = vadd.f32 0.0, %v3648
  %v3650 = vpop.f32.mrb[0].mxu0
  %v3651 = vpop.f32.mrb[0].mxu0
  %v3652 = vadd.f32 0.0, %v3651
  %v3653 = vpop.f32.mrb[0].mxu0
  %3654 = vmatprep.mubr.bf16.mxu0 0
  %3655 = vmatmul.mubr.bf16.gmra.mrb[0].mxu0 %v3478
  %v3656 = vpop.f32.mrb[0].mxu0
  %v3657 = vadd.f32 0.0, %v3656
  %v3658 = vpop.f32.mrb[0].mxu0
  %v3659 = vpop.f32.mrb[0].mxu0
  %v3660 = vadd.f32 0.0, %v3659
  %v3661 = vpop.f32.mrb[0].mxu0
  %3662 = vmatprep.mubr.bf16.mxu0 0
  %3663 = vmatmul.mubr.bf16.gmra.mrb[0].mxu0 %v3481
  %v3664 = vpop.f32.mrb[0].mxu0
  %v3665 = vadd.f32 0.0, %v3664
  %v3666 = vpop.f32.mrb[0].mxu0
  %v3667 = vpop.f32.mrb[0].mxu0
  %v3668 = vadd.f32 0.0, %v3667
  %v3669 = vpop.f32.mrb[0].mxu0
  %3670 = vmatprep.mubr.bf16.mxu0 0
  %3671 = vmatmul.mubr.bf16.gmra.mrb[0].mxu0 %v3484
  %v3672 = vpop.f32.mrb[0].mxu0
  %v3673 = vadd.f32 0.0, %v3672
  %v3674 = vpop.f32.mrb[0].mxu0
  %v3675 = vpop.f32.mrb[0].mxu0
  %v3676 = vadd.f32 0.0, %v3675
  %v3677 = vpop.f32.mrb[0].mxu0
  %3678 = vmatprep.mubr.bf16.mxu0 0
  %3679 = vmatmul.mubr.bf16.gmra.mrb[0].mxu0 %v3487
  %v3680 = vpop.f32.mrb[0].mxu0
  %v3681 = vadd.f32 0.0, %v3680
  %v3682 = vpop.f32.mrb[0].mxu0
  %v3683 = vpop.f32.mrb[0].mxu0
  %v3684 = vadd.f32 0.0, %v3683
  %v3685 = vpop.f32.mrb[0].mxu0
  %3686 = vmatprep.mubr.bf16.mxu0 0
  %3687 = vmatmul.mubr.bf16.gmra.mrb[0].mxu0 %v3490
  %v3688 = vpop.f32.mrb[0].mxu0
  %v3689 = vadd.f32 0.0, %v3688
  %v3690 = vpop.f32.mrb[0].mxu0
  %v3691 = vpop.f32.mrb[0].mxu0
  %v3692 = vadd.f32 0.0, %v3691
  %v3693 = vpop.f32.mrb[0].mxu0
  %3694 = vmatprep.mubr.bf16.mxu0 0
  %3695 = vmatmul.mubr.bf16.gmra.mrb[0].mxu0 %v3493
  %v3696 = vpop.f32.mrb[0].mxu0
  %v3697 = vadd.f32 0.0, %v3696
  %v3698 = vpop.f32.mrb[0].mxu0
  %v3699 = vpop.f32.mrb[0].mxu0
  %v3700 = vadd.f32 0.0, %v3699
  %v3701 = vpop.f32.mrb[0].mxu0
  %3702 = vmatprep.mubr.bf16.mxu0 0
  %3703 = vmatmul.mubr.bf16.gmra.mrb[0].mxu0 %v3496
  %v3704 = vpop.f32.mrb[0].mxu0
  %v3705 = vadd.f32 0.0, %v3704
  %v3706 = vpop.f32.mrb[0].mxu0
  %v3707 = vpop.f32.mrb[0].mxu0
  %v3708 = vadd.f32 0.0, %v3707
  %v3709 = vpop.f32.mrb[0].mxu0
  %3710 = vmatprep.mubr.bf16.mxu0 0
  %3711 = vmatmul.mubr.bf16.gmra.mrb[0].mxu0 %v3499
  %v3712 = vpop.f32.mrb[0].mxu0
  %v3713 = vadd.f32 0.0, %v3712
  %v3714 = vpop.f32.mrb[0].mxu0
  %v3715 = vpop.f32.mrb[0].mxu0
  %v3716 = vadd.f32 0.0, %v3715
  %v3717 = vpop.f32.mrb[0].mxu0
  %3718 = vmatprep.mubr.bf16.mxu0 0
  %3719 = vmatmul.mubr.bf16.gmra.mrb[0].mxu0 %v3502
  %v3720 = vpop.f32.mrb[0].mxu0
  %v3721 = vadd.f32 0.0, %v3720
  %v3722 = vpop.f32.mrb[0].mxu0
  %v3723 = vpop.f32.mrb[0].mxu0
  %v3724 = vadd.f32 0.0, %v3723
  %v3725 = vpop.f32.mrb[0].mxu0
  %3726 = vmatprep.mubr.bf16.mxu0 0
  %3727 = vmatmul.mubr.bf16.gmra.mrb[0].mxu0 %v3505
  %v3728 = vpop.f32.mrb[0].mxu0
  %v3729 = vadd.f32 0.0, %v3728
  %v3730 = vpop.f32.mrb[0].mxu0
  %v3731 = vpop.f32.mrb[0].mxu0
  %v3732 = vadd.f32 0.0, %v3731
  %v3733 = vpop.f32.mrb[0].mxu0
  %3734 = vmatprep.mubr.bf16.mxu0 0
  %3735 = vmatmul.mubr.bf16.gmra.mrb[0].mxu0 %v3508
  %v3736 = vpop.f32.mrb[0].mxu0
  %v3737 = vadd.f32 0.0, %v3736
  %v3738 = vpop.f32.mrb[0].mxu0
  %v3739 = vpop.f32.mrb[0].mxu0
  %v3740 = vadd.f32 0.0, %v3739
  %v3741 = vpop.f32.mrb[0].mxu0
  %3742 = vmatprep.mubr.bf16.mxu0 0
  %3743 = vmatmul.mubr.bf16.gmra.mrb[0].mxu0 %v3511
  %v3744 = vpop.f32.mrb[0].mxu0
  %v3745 = vadd.f32 0.0, %v3744
  %v3746 = vpop.f32.mrb[0].mxu0
  %v3747 = vpop.f32.mrb[0].mxu0
  %v3748 = vadd.f32 0.0, %v3747
  %v3749 = vpop.f32.mrb[0].mxu0
  %3750 = vmatprep.mubr.bf16.mxu0 0
  %3751 = vmatmul.mubr.bf16.gmra.mrb[0].mxu0 %v3514
  %v3752 = vpop.f32.mrb[0].mxu0
  %v3753 = vadd.f32 0.0, %v3752
  %v3754 = vpop.f32.mrb[0].mxu0
  %v3755 = vpop.f32.mrb[0].mxu0
  %v3756 = vadd.f32 0.0, %v3755
  %v3757 = vpop.f32.mrb[0].mxu0
  %3758 = vmatprep.mubr.bf16.mxu0 0
  %3759 = vmatmul.mubr.bf16.gmra.mrb[0].mxu0 %v3517
  %v3760 = vpop.f32.mrb[0].mxu0
  %v3761 = vadd.f32 0.0, %v3760
  %v3762 = vpop.f32.mrb[0].mxu0
  %v3763 = vpop.f32.mrb[0].mxu0
  %v3764 = vadd.f32 0.0, %v3763
  %v3765 = vpop.f32.mrb[0].mxu0
  %3766 = vmatprep.mubr.bf16.mxu0 0
  %3767 = vmatmul.mubr.bf16.gmra.mrb[0].mxu0 %v3520
  %v3768 = vpop.f32.mrb[0].mxu0
  %v3769 = vadd.f32 0.0, %v3768
  %v3770 = vpop.f32.mrb[0].mxu0
  %v3771 = vpop.f32.mrb[0].mxu0
  %v3772 = vadd.f32 0.0, %v3771
  %v3773 = vpop.f32.mrb[0].mxu0
  %3774 = vmatprep.mubr.bf16.mxu0 0
  %3775 = vmatmul.mubr.bf16.gmra.mrb[0].mxu0 %v3523
  %v3776 = vpop.f32.mrb[0].mxu0
  %v3777 = vadd.f32 0.0, %v3776
  %v3778 = vpop.f32.mrb[0].mxu0
  %v3779 = vpop.f32.mrb[0].mxu0
  %v3780 = vadd.f32 0.0, %v3779
  %v3781 = vpop.f32.mrb[0].mxu0
  %3782 = vmatprep.mubr.bf16.mxu0 0
  %3783 = vmatmul.mubr.bf16.gmra.mrb[0].mxu0 %v3526
  %v3784 = vpop.f32.mrb[0].mxu0
  %v3785 = vadd.f32 0.0, %v3784
  %v3786 = vpop.f32.mrb[0].mxu0
  %v3787 = vpop.f32.mrb[0].mxu0
  %v3788 = vadd.f32 0.0, %v3787
  %v3789 = vpop.f32.mrb[0].mxu0
  %3790 = vmatprep.mubr.bf16.mxu0 0
  %3791 = vmatmul.mubr.bf16.gmra.mrb[0].mxu0 %v3529
  %v3792 = vpop.f32.mrb[0].mxu0
  %v3793 = vadd.f32 0.0, %v3792
  %v3794 = vpop.f32.mrb[0].mxu0
  %v3795 = vpop.f32.mrb[0].mxu0
  %v3796 = vadd.f32 0.0, %v3795
  %v3797 = vpop.f32.mrb[0].mxu0
  %3798 = vmatprep.mubr.bf16.mxu0 0
  %3799 = vmatmul.mubr.bf16.gmra.mrb[0].mxu0 %v3532
  %v3800 = vpop.f32.mrb[0].mxu0
  %v3801 = vadd.f32 0.0, %v3800
  %v3802 = vpop.f32.mrb[0].mxu0
  %v3803 = vpop.f32.mrb[0].mxu0
  %v3804 = vadd.f32 0.0, %v3803
  %v3805 = vpop.f32.mrb[0].mxu0
  %3806 = vmatprep.mubr.bf16.mxu0 0
  %3807 = vmatmul.mubr.bf16.gmra.mrb[0].mxu0 %v3535
  %v3808 = vpop.f32.mrb[0].mxu0
  %v3809 = vadd.f32 0.0, %v3808
  %v3810 = vpop.f32.mrb[0].mxu0
  %v3811 = vpop.f32.mrb[0].mxu0
  %v3812 = vadd.f32 0.0, %v3811
  %v3813 = vpop.f32.mrb[0].mxu0
  %3814 = vmatprep.mubr.bf16.mxu0 0
  %3815 = vmatmul.mubr.bf16.gmra.mrb[0].mxu0 %v3538
  %v3816 = vpop.f32.mrb[0].mxu0
  %v3817 = vadd.f32 0.0, %v3816
  %v3818 = vpop.f32.mrb[0].mxu0
  %v3819 = vpop.f32.mrb[0].mxu0
  %v3820 = vadd.f32 0.0, %v3819
  %v3821 = vpop.f32.mrb[0].mxu0
  %3822 = vmatprep.mubr.bf16.mxu0 0
  %3823 = vmatmul.mubr.bf16.gmra.mrb[0].mxu0 %v3541
  %v3824 = vpop.f32.mrb[0].mxu0
  %v3825 = vadd.f32 0.0, %v3824
  %v3826 = vpop.f32.mrb[0].mxu0
  %v3827 = vpop.f32.mrb[0].mxu0
  %v3828 = vadd.f32 0.0, %v3827
  %v3829 = vpop.f32.mrb[0].mxu0
  %3830 = vmatprep.mubr.bf16.mxu0 0
  %3831 = vmatmul.mubr.bf16.gmra.mrb[0].mxu0 %v3544
  %v3832 = vpop.f32.mrb[0].mxu0
  %v3833 = vadd.f32 0.0, %v3832
  %v3834 = vpop.f32.mrb[0].mxu0
  %v3835 = vpop.f32.mrb[0].mxu0
  %v3836 = vadd.f32 0.0, %v3835
  %v3837 = vpop.f32.mrb[0].mxu0
  %3838 = vdwg.mxu0
  %v3839 = vld [vmem:[%s2] sm:$0x1]
  %v3840 = vld [vmem:[%s3] sm:$0x1]
  %v3841 = vlaneseq
  %v3842 = vshrl.u32 %v3841, 7
  %v3843 = vsub.s32 0, %v3842
  %v3844 = vrot.slane %v3585, %v3843
  %v3845 = vsub.f32 %v3585, %v3844
  %v3846 = vsub.f32 %v3588, %v3844
  %v3847 = vsub.f32 %v3593, %v3844
  %v3848 = vsub.f32 %v3596, %v3844
  %v3849 = vsub.f32 %v3601, %v3844
  %v3850 = vsub.f32 %v3604, %v3844
  %v3851 = vsub.f32 %v3609, %v3844
  %v3852 = vsub.f32 %v3612, %v3844
  %v3853 = vsub.f32 %v3617, %v3844
  %v3854 = vsub.f32 %v3620, %v3844
  %v3855 = vsub.f32 %v3625, %v3844
  %v3856 = vsub.f32 %v3628, %v3844
  %v3857 = vsub.f32 %v3633, %v3844
  %v3858 = vsub.f32 %v3636, %v3844
  %v3859 = vsub.f32 %v3641, %v3844
  %v3860 = vsub.f32 %v3644, %v3844
  %v3861 = vsub.f32 %v3649, %v3844
  %v3862 = vsub.f32 %v3652, %v3844
  %v3863 = vsub.f32 %v3657, %v3844
  %v3864 = vsub.f32 %v3660, %v3844
  %v3865 = vsub.f32 %v3665, %v3844
  %v3866 = vsub.f32 %v3668, %v3844
  %v3867 = vsub.f32 %v3673, %v3844
  %v3868 = vsub.f32 %v3676, %v3844
  %v3869 = vsub.f32 %v3681, %v3844
  %v3870 = vsub.f32 %v3684, %v3844
  %v3871 = vsub.f32 %v3689, %v3844
  %v3872 = vsub.f32 %v3692, %v3844
  %v3873 = vsub.f32 %v3697, %v3844
  %v3874 = vsub.f32 %v3700, %v3844
  %v3875 = vsub.f32 %v3705, %v3844
  %v3876 = vsub.f32 %v3708, %v3844
  %v3877 = vsub.f32 %v3713, %v3844
  %v3878 = vsub.f32 %v3716, %v3844
  %v3879 = vsub.f32 %v3721, %v3844
  %v3880 = vsub.f32 %v3724, %v3844
  %v3881 = vsub.f32 %v3729, %v3844
  %v3882 = vsub.f32 %v3732, %v3844
  %v3883 = vsub.f32 %v3737, %v3844
  %v3884 = vsub.f32 %v3740, %v3844
  %v3885 = vsub.f32 %v3745, %v3844
  %v3886 = vsub.f32 %v3748, %v3844
  %v3887 = vsub.f32 %v3753, %v3844
  %v3888 = vsub.f32 %v3756, %v3844
  %v3889 = vsub.f32 %v3761, %v3844
  %v3890 = vsub.f32 %v3764, %v3844
  %v3891 = vsub.f32 %v3769, %v3844
  %v3892 = vsub.f32 %v3772, %v3844
  %v3893 = vsub.f32 %v3777, %v3844
  %v3894 = vsub.f32 %v3780, %v3844
  %v3895 = vsub.f32 %v3785, %v3844
  %v3896 = vsub.f32 %v3788, %v3844
  %v3897 = vsub.f32 %v3793, %v3844
  %v3898 = vsub.f32 %v3796, %v3844
  %v3899 = vsub.f32 %v3801, %v3844
  %v3900 = vsub.f32 %v3804, %v3844
  %v3901 = vsub.f32 %v3809, %v3844
  %v3902 = vsub.f32 %v3812, %v3844
  %v3903 = vsub.f32 %v3817, %v3844
  %v3904 = vsub.f32 %v3820, %v3844
  %v3905 = vsub.f32 %v3825, %v3844
  %v3906 = vsub.f32 %v3828, %v3844
  %v3907 = vsub.f32 %v3833, %v3844
  %v3908 = vsub.f32 %v3836, %v3844
  %v3909 = vsel %vm2942, %v3845, 0.0
  %v3910 = vsel %vm2942, %v3846, 0.0
  %v3911 = vadd.f32 %v3909, %v3910
  %v3912 = vsel %vm2942, %v3847, 0.0
  %v3913 = vadd.f32 %v3911, %v3912
  %v3914 = vsel %vm2942, %v3848, 0.0
  %v3915 = vadd.f32 %v3913, %v3914
  %v3916 = vsel %vm2942, %v3849, 0.0
  %v3917 = vadd.f32 %v3915, %v3916
  %v3918 = vsel %vm2942, %v3850, 0.0
  %v3919 = vadd.f32 %v3917, %v3918
  %v3920 = vsel %vm2942, %v3851, 0.0
  %v3921 = vadd.f32 %v3919, %v3920
  %v3922 = vsel %vm2942, %v3852, 0.0
  %v3923 = vadd.f32 %v3921, %v3922
  %v3924 = vsel %vm2942, %v3853, 0.0
  %v3925 = vadd.f32 %v3923, %v3924
  %v3926 = vsel %vm2942, %v3854, 0.0
  %v3927 = vadd.f32 %v3925, %v3926
  %v3928 = vsel %vm2942, %v3855, 0.0
  %v3929 = vadd.f32 %v3927, %v3928
  %v3930 = vsel %vm2942, %v3856, 0.0
  %v3931 = vadd.f32 %v3929, %v3930
  %v3932 = vsel %vm2942, %v3857, 0.0
  %v3933 = vadd.f32 %v3931, %v3932
  %v3934 = vsel %vm2942, %v3858, 0.0
  %v3935 = vadd.f32 %v3933, %v3934
  %v3936 = vsel %vm2942, %v3859, 0.0
  %v3937 = vadd.f32 %v3935, %v3936
  %v3938 = vsel %vm2942, %v3860, 0.0
  %v3939 = vadd.f32 %v3937, %v3938
  %v3940 = vsel %vm2942, %v3861, 0.0
  %v3941 = vadd.f32 %v3939, %v3940
  %v3942 = vsel %vm2942, %v3862, 0.0
  %v3943 = vadd.f32 %v3941, %v3942
  %v3944 = vsel %vm2942, %v3863, 0.0
  %v3945 = vadd.f32 %v3943, %v3944
  %v3946 = vsel %vm2942, %v3864, 0.0
  %v3947 = vadd.f32 %v3945, %v3946
  %v3948 = vsel %vm2942, %v3865, 0.0
  %v3949 = vadd.f32 %v3947, %v3948
  %v3950 = vsel %vm2942, %v3866, 0.0
  %v3951 = vadd.f32 %v3949, %v3950
  %v3952 = vsel %vm2942, %v3867, 0.0
  %v3953 = vadd.f32 %v3951, %v3952
  %v3954 = vsel %vm2942, %v3868, 0.0
  %v3955 = vadd.f32 %v3953, %v3954
  %v3956 = vsel %vm2942, %v3869, 0.0
  %v3957 = vadd.f32 %v3955, %v3956
  %v3958 = vsel %vm2942, %v3870, 0.0
  %v3959 = vadd.f32 %v3957, %v3958
  %v3960 = vsel %vm2942, %v3871, 0.0
  %v3961 = vadd.f32 %v3959, %v3960
  %v3962 = vsel %vm2942, %v3872, 0.0
  %v3963 = vadd.f32 %v3961, %v3962
  %v3964 = vsel %vm2942, %v3873, 0.0
  %v3965 = vadd.f32 %v3963, %v3964
  %v3966 = vsel %vm2942, %v3874, 0.0
  %v3967 = vadd.f32 %v3965, %v3966
  %v3968 = vsel %vm2942, %v3875, 0.0
  %v3969 = vadd.f32 %v3967, %v3968
  %v3970 = vsel %vm2942, %v3876, 0.0
  %v3971 = vadd.f32 %v3969, %v3970
  %v3972 = vsel %vm2942, %v3877, 0.0
  %v3973 = vadd.f32 %v3971, %v3972
  %v3974 = vsel %vm2942, %v3878, 0.0
  %v3975 = vadd.f32 %v3973, %v3974
  %v3976 = vsel %vm2942, %v3879, 0.0
  %v3977 = vadd.f32 %v3975, %v3976
  %v3978 = vsel %vm2942, %v3880, 0.0
  %v3979 = vadd.f32 %v3977, %v3978
  %v3980 = vsel %vm2942, %v3881, 0.0
  %v3981 = vadd.f32 %v3979, %v3980
  %v3982 = vsel %vm2942, %v3882, 0.0
  %v3983 = vadd.f32 %v3981, %v3982
  %v3984 = vsel %vm2942, %v3883, 0.0
  %v3985 = vadd.f32 %v3983, %v3984
  %v3986 = vsel %vm2942, %v3884, 0.0
  %v3987 = vadd.f32 %v3985, %v3986
  %v3988 = vsel %vm2942, %v3885, 0.0
  %v3989 = vadd.f32 %v3987, %v3988
  %v3990 = vsel %vm2942, %v3886, 0.0
  %v3991 = vadd.f32 %v3989, %v3990
  %v3992 = vsel %vm2942, %v3887, 0.0
  %v3993 = vadd.f32 %v3991, %v3992
  %v3994 = vsel %vm2942, %v3888, 0.0
  %v3995 = vadd.f32 %v3993, %v3994
  %v3996 = vsel %vm2942, %v3889, 0.0
  %v3997 = vadd.f32 %v3995, %v3996
  %v3998 = vsel %vm2942, %v3890, 0.0
  %v3999 = vadd.f32 %v3997, %v3998
  %v4000 = vsel %vm2942, %v3891, 0.0
  %v4001 = vadd.f32 %v3999, %v4000
  %v4002 = vsel %vm2942, %v3892, 0.0
  %v4003 = vadd.f32 %v4001, %v4002
  %v4004 = vsel %vm2942, %v3893, 0.0
  %v4005 = vadd.f32 %v4003, %v4004
  %v4006 = vsel %vm2942, %v3894, 0.0
  %v4007 = vadd.f32 %v4005, %v4006
  %v4008 = vsel %vm2942, %v3895, 0.0
  %v4009 = vadd.f32 %v4007, %v4008
  %v4010 = vsel %vm2942, %v3896, 0.0
  %v4011 = vadd.f32 %v4009, %v4010
  %v4012 = vsel %vm2942, %v3897, 0.0
  %v4013 = vadd.f32 %v4011, %v4012
  %v4014 = vsel %vm2942, %v3898, 0.0
  %v4015 = vadd.f32 %v4013, %v4014
  %v4016 = vsel %vm2942, %v3899, 0.0
  %v4017 = vadd.f32 %v4015, %v4016
  %v4018 = vsel %vm2942, %v3900, 0.0
  %v4019 = vadd.f32 %v4017, %v4018
  %v4020 = vsel %vm2942, %v3901, 0.0
  %v4021 = vadd.f32 %v4019, %v4020
  %v4022 = vsel %vm2942, %v3902, 0.0
  %v4023 = vadd.f32 %v4021, %v4022
  %v4024 = vsel %vm2942, %v3903, 0.0
  %v4025 = vadd.f32 %v4023, %v4024
  %v4026 = vsel %vm2942, %v3904, 0.0
  %v4027 = vadd.f32 %v4025, %v4026
  %v4028 = vsel %vm2942, %v3905, 0.0
  %v4029 = vadd.f32 %v4027, %v4028
  %v4030 = vsel %vm2942, %v3906, 0.0
  %v4031 = vadd.f32 %v4029, %v4030
  %v4032 = vsel %vm2942, %v3907, 0.0
  %v4033 = vadd.f32 %v4031, %v4032
  %v4034 = vsel %vm2942, %v3908, 0.0
  %v4035 = vadd.f32 %v4033, %v4034
  %v4036 = vrot.slane %v4035, 4
  %v4037 = vadd.f32 %v4035, %v4036
  %v4038 = vrot.slane %v4037, 2
  %v4039 = vadd.f32 %v4037, %v4038
  %v4040 = vrot.slane %v4039, 1
  %v4041 = vadd.f32 %v4039, %v4040
  %v4042 = vmul.f32 %v3845, %v3845
  %v4043 = vmul.f32 %v3846, %v3846
  %v4044 = vmul.f32 %v3847, %v3847
  %v4045 = vmul.f32 %v3848, %v3848
  %v4046 = vmul.f32 %v3849, %v3849
  %v4047 = vmul.f32 %v3850, %v3850
  %v4048 = vmul.f32 %v3851, %v3851
  %v4049 = vmul.f32 %v3852, %v3852
  %v4050 = vmul.f32 %v3853, %v3853
  %v4051 = vmul.f32 %v3854, %v3854
  %v4052 = vmul.f32 %v3855, %v3855
  %v4053 = vmul.f32 %v3856, %v3856
  %v4054 = vmul.f32 %v3857, %v3857
  %v4055 = vmul.f32 %v3858, %v3858
  %v4056 = vmul.f32 %v3859, %v3859
  %v4057 = vmul.f32 %v3860, %v3860
  %v4058 = vmul.f32 %v3861, %v3861
  %v4059 = vmul.f32 %v3862, %v3862
  %v4060 = vmul.f32 %v3863, %v3863
  %v4061 = vmul.f32 %v3864, %v3864
  %v4062 = vmul.f32 %v3865, %v3865
  %v4063 = vmul.f32 %v3866, %v3866
  %v4064 = vmul.f32 %v3867, %v3867
  %v4065 = vmul.f32 %v3868, %v3868
  %v4066 = vmul.f32 %v3869, %v3869
  %v4067 = vmul.f32 %v3870, %v3870
  %v4068 = vmul.f32 %v3871, %v3871
  %v4069 = vmul.f32 %v3872, %v3872
  %v4070 = vmul.f32 %v3873, %v3873
  %v4071 = vmul.f32 %v3874, %v3874
  %v4072 = vmul.f32 %v3875, %v3875
  %v4073 = vmul.f32 %v3876, %v3876
  %v4074 = vmul.f32 %v3877, %v3877
  %v4075 = vmul.f32 %v3878, %v3878
  %v4076 = vmul.f32 %v3879, %v3879
  %v4077 = vmul.f32 %v3880, %v3880
  %v4078 = vmul.f32 %v3881, %v3881
  %v4079 = vmul.f32 %v3882, %v3882
  %v4080 = vmul.f32 %v3883, %v3883
  %v4081 = vmul.f32 %v3884, %v3884
  %v4082 = vmul.f32 %v3885, %v3885
  %v4083 = vmul.f32 %v3886, %v3886
  %v4084 = vmul.f32 %v3887, %v3887
  %v4085 = vmul.f32 %v3888, %v3888
  %v4086 = vmul.f32 %v3889, %v3889
  %v4087 = vmul.f32 %v3890, %v3890
  %v4088 = vmul.f32 %v3891, %v3891
  %v4089 = vmul.f32 %v3892, %v3892
  %v4090 = vmul.f32 %v3893, %v3893
  %v4091 = vmul.f32 %v3894, %v3894
  %v4092 = vmul.f32 %v3895, %v3895
  %v4093 = vmul.f32 %v3896, %v3896
  %v4094 = vmul.f32 %v3897, %v3897
  %v4095 = vmul.f32 %v3898, %v3898
  %v4096 = vmul.f32 %v3899, %v3899
  %v4097 = vmul.f32 %v3900, %v3900
  %v4098 = vmul.f32 %v3901, %v3901
  %v4099 = vmul.f32 %v3902, %v3902
  %v4100 = vmul.f32 %v3903, %v3903
  %v4101 = vmul.f32 %v3904, %v3904
  %v4102 = vmul.f32 %v3905, %v3905
  %v4103 = vmul.f32 %v3906, %v3906
  %v4104 = vmul.f32 %v3907, %v3907
  %v4105 = vmul.f32 %v3908, %v3908
  %v4106 = vsel %vm2942, %v4042, 0.0
  %v4107 = vsel %vm2942, %v4043, 0.0
  %v4108 = vadd.f32 %v4106, %v4107
  %v4109 = vsel %vm2942, %v4044, 0.0
  %v4110 = vadd.f32 %v4108, %v4109
  %v4111 = vsel %vm2942, %v4045, 0.0
  %v4112 = vadd.f32 %v4110, %v4111
  %v4113 = vsel %vm2942, %v4046, 0.0
  %v4114 = vadd.f32 %v4112, %v4113
  %v4115 = vsel %vm2942, %v4047, 0.0
  %v4116 = vadd.f32 %v4114, %v4115
  %v4117 = vsel %vm2942, %v4048, 0.0
  %v4118 = vadd.f32 %v4116, %v4117
  %v4119 = vsel %vm2942, %v4049, 0.0
  %v4120 = vadd.f32 %v4118, %v4119
  %v4121 = vsel %vm2942, %v4050, 0.0
  %v4122 = vadd.f32 %v4120, %v4121
  %v4123 = vsel %vm2942, %v4051, 0.0
  %v4124 = vadd.f32 %v4122, %v4123
  %v4125 = vsel %vm2942, %v4052, 0.0
  %v4126 = vadd.f32 %v4124, %v4125
  %v4127 = vsel %vm2942, %v4053, 0.0
  %v4128 = vadd.f32 %v4126, %v4127
  %v4129 = vsel %vm2942, %v4054, 0.0
  %v4130 = vadd.f32 %v4128, %v4129
  %v4131 = vsel %vm2942, %v4055, 0.0
  %v4132 = vadd.f32 %v4130, %v4131
  %v4133 = vsel %vm2942, %v4056, 0.0
  %v4134 = vadd.f32 %v4132, %v4133
  %v4135 = vsel %vm2942, %v4057, 0.0
  %v4136 = vadd.f32 %v4134, %v4135
  %v4137 = vsel %vm2942, %v4058, 0.0
  %v4138 = vadd.f32 %v4136, %v4137
  %v4139 = vsel %vm2942, %v4059, 0.0
  %v4140 = vadd.f32 %v4138, %v4139
  %v4141 = vsel %vm2942, %v4060, 0.0
  %v4142 = vadd.f32 %v4140, %v4141
  %v4143 = vsel %vm2942, %v4061, 0.0
  %v4144 = vadd.f32 %v4142, %v4143
  %v4145 = vsel %vm2942, %v4062, 0.0
  %v4146 = vadd.f32 %v4144, %v4145
  %v4147 = vsel %vm2942, %v4063, 0.0
  %v4148 = vadd.f32 %v4146, %v4147
  %v4149 = vsel %vm2942, %v4064, 0.0
  %v4150 = vadd.f32 %v4148, %v4149
  %v4151 = vsel %vm2942, %v4065, 0.0
  %v4152 = vadd.f32 %v4150, %v4151
  %v4153 = vsel %vm2942, %v4066, 0.0
  %v4154 = vadd.f32 %v4152, %v4153
  %v4155 = vsel %vm2942, %v4067, 0.0
  %v4156 = vadd.f32 %v4154, %v4155
  %v4157 = vsel %vm2942, %v4068, 0.0
  %v4158 = vadd.f32 %v4156, %v4157
  %v4159 = vsel %vm2942, %v4069, 0.0
  %v4160 = vadd.f32 %v4158, %v4159
  %v4161 = vsel %vm2942, %v4070, 0.0
  %v4162 = vadd.f32 %v4160, %v4161
  %v4163 = vsel %vm2942, %v4071, 0.0
  %v4164 = vadd.f32 %v4162, %v4163
  %v4165 = vsel %vm2942, %v4072, 0.0
  %v4166 = vadd.f32 %v4164, %v4165
  %v4167 = vsel %vm2942, %v4073, 0.0
  %v4168 = vadd.f32 %v4166, %v4167
  %v4169 = vsel %vm2942, %v4074, 0.0
  %v4170 = vadd.f32 %v4168, %v4169
  %v4171 = vsel %vm2942, %v4075, 0.0
  %v4172 = vadd.f32 %v4170, %v4171
  %v4173 = vsel %vm2942, %v4076, 0.0
  %v4174 = vadd.f32 %v4172, %v4173
  %v4175 = vsel %vm2942, %v4077, 0.0
  %v4176 = vadd.f32 %v4174, %v4175
  %v4177 = vsel %vm2942, %v4078, 0.0
  %v4178 = vadd.f32 %v4176, %v4177
  %v4179 = vsel %vm2942, %v4079, 0.0
  %v4180 = vadd.f32 %v4178, %v4179
  %v4181 = vsel %vm2942, %v4080, 0.0
  %v4182 = vadd.f32 %v4180, %v4181
  %v4183 = vsel %vm2942, %v4081, 0.0
  %v4184 = vadd.f32 %v4182, %v4183
  %v4185 = vsel %vm2942, %v4082, 0.0
  %v4186 = vadd.f32 %v4184, %v4185
  %v4187 = vsel %vm2942, %v4083, 0.0
  %v4188 = vadd.f32 %v4186, %v4187
  %v4189 = vsel %vm2942, %v4084, 0.0
  %v4190 = vadd.f32 %v4188, %v4189
  %v4191 = vsel %vm2942, %v4085, 0.0
  %v4192 = vadd.f32 %v4190, %v4191
  %v4193 = vsel %vm2942, %v4086, 0.0
  %v4194 = vadd.f32 %v4192, %v4193
  %v4195 = vsel %vm2942, %v4087, 0.0
  %v4196 = vadd.f32 %v4194, %v4195
  %v4197 = vsel %vm2942, %v4088, 0.0
  %v4198 = vadd.f32 %v4196, %v4197
  %v4199 = vsel %vm2942, %v4089, 0.0
  %v4200 = vadd.f32 %v4198, %v4199
  %v4201 = vsel %vm2942, %v4090, 0.0
  %v4202 = vadd.f32 %v4200, %v4201
  %v4203 = vsel %vm2942, %v4091, 0.0
  %v4204 = vadd.f32 %v4202, %v4203
  %v4205 = vsel %vm2942, %v4092, 0.0
  %v4206 = vadd.f32 %v4204, %v4205
  %v4207 = vsel %vm2942, %v4093, 0.0
  %v4208 = vadd.f32 %v4206, %v4207
  %v4209 = vsel %vm2942, %v4094, 0.0
  %v4210 = vadd.f32 %v4208, %v4209
  %v4211 = vsel %vm2942, %v4095, 0.0
  %v4212 = vadd.f32 %v4210, %v4211
  %v4213 = vsel %vm2942, %v4096, 0.0
  %v4214 = vadd.f32 %v4212, %v4213
  %v4215 = vsel %vm2942, %v4097, 0.0
  %v4216 = vadd.f32 %v4214, %v4215
  %v4217 = vsel %vm2942, %v4098, 0.0
  %v4218 = vadd.f32 %v4216, %v4217
  %v4219 = vsel %vm2942, %v4099, 0.0
  %v4220 = vadd.f32 %v4218, %v4219
  %v4221 = vsel %vm2942, %v4100, 0.0
  %v4222 = vadd.f32 %v4220, %v4221
  %v4223 = vsel %vm2942, %v4101, 0.0
  %v4224 = vadd.f32 %v4222, %v4223
  %v4225 = vsel %vm2942, %v4102, 0.0
  %v4226 = vadd.f32 %v4224, %v4225
  %v4227 = vsel %vm2942, %v4103, 0.0
  %v4228 = vadd.f32 %v4226, %v4227
  %v4229 = vsel %vm2942, %v4104, 0.0
  %v4230 = vadd.f32 %v4228, %v4229
  %v4231 = vsel %vm2942, %v4105, 0.0
  %v4232 = vadd.f32 %v4230, %v4231
  %v4233 = vrot.slane %v4232, 4
  %v4234 = vadd.f32 %v4232, %v4233
  %v4235 = vrot.slane %v4234, 2
  %v4236 = vadd.f32 %v4234, %v4235
  %v4237 = vrot.slane %v4236, 1
  %v4238 = vadd.f32 %v4236, %v4237
  %v4239 = vmul.f32 %v4041, 0.001953125
  %v4240 = vmul.f32 %v4238, 0.001953125
  %v4241 = vmul.f32 %v4239, %v4239
  %v4242 = vsub.f32 %v4240, %v4241
  %v4243 = vmax.f32 %v4242, 0.0
  %v4244 = vadd.f32 %v4239, %v3585
  %v4245 = vadd.f32 %v4243, 1e-05
  %v4246 = vrsqrt.pop %v4245
  %v4247 = vmul.f32 %v3839, %v4246
  %v4248 = vmul.f32 %v4244, %v4247
  %v4249 = vsub.f32 %v3840, %v4248
  %v4251 = vlaneseq
  %v4252 = vshrl.u32 %v4251, 7
  %v4253 = vsub.s32 0, %v4252
  %v4254 = vrot.slane %v4247, %v4253
  %v4256 = vmul.f32 %v3585, %v4254
  %v4257 = vmul.f32 %v3588, %v4254
  %v4258 = vmul.f32 %v3593, %v4254
  %v4259 = vmul.f32 %v3596, %v4254
  %v4260 = vmul.f32 %v3601, %v4254
  %v4261 = vmul.f32 %v3604, %v4254
  %v4262 = vmul.f32 %v3609, %v4254
  %v4263 = vmul.f32 %v3612, %v4254
  %v4264 = vmul.f32 %v3617, %v4254
  %v4265 = vmul.f32 %v3620, %v4254
  %v4266 = vmul.f32 %v3625, %v4254
  %v4267 = vmul.f32 %v3628, %v4254
  %v4268 = vmul.f32 %v3633, %v4254
  %v4269 = vmul.f32 %v3636, %v4254
  %v4270 = vmul.f32 %v3641, %v4254
  %v4271 = vmul.f32 %v3644, %v4254
  %v4272 = vmul.f32 %v3649, %v4254
  %v4273 = vmul.f32 %v3652, %v4254
  %v4274 = vmul.f32 %v3657, %v4254
  %v4275 = vmul.f32 %v3660, %v4254
  %v4276 = vmul.f32 %v3665, %v4254
  %v4277 = vmul.f32 %v3668, %v4254
  %v4278 = vmul.f32 %v3673, %v4254
  %v4279 = vmul.f32 %v3676, %v4254
  %v4280 = vmul.f32 %v3681, %v4254
  %v4281 = vmul.f32 %v3684, %v4254
  %v4282 = vmul.f32 %v3689, %v4254
  %v4283 = vmul.f32 %v3692, %v4254
  %v4284 = vmul.f32 %v3697, %v4254
  %v4285 = vmul.f32 %v3700, %v4254
  %v4286 = vmul.f32 %v3705, %v4254
  %v4287 = vmul.f32 %v3708, %v4254
  %v4288 = vmul.f32 %v3713, %v4254
  %v4289 = vmul.f32 %v3716, %v4254
  %v4290 = vmul.f32 %v3721, %v4254
  %v4291 = vmul.f32 %v3724, %v4254
  %v4292 = vmul.f32 %v3729, %v4254
  %v4293 = vmul.f32 %v3732, %v4254
  %v4294 = vmul.f32 %v3737, %v4254
  %v4295 = vmul.f32 %v3740, %v4254
  %v4296 = vmul.f32 %v3745, %v4254
  %v4297 = vmul.f32 %v3748, %v4254
  %v4298 = vmul.f32 %v3753, %v4254
  %v4299 = vmul.f32 %v3756, %v4254
  %v4300 = vmul.f32 %v3761, %v4254
  %v4301 = vmul.f32 %v3764, %v4254
  %v4302 = vmul.f32 %v3769, %v4254
  %v4303 = vmul.f32 %v3772, %v4254
  %v4304 = vmul.f32 %v3777, %v4254
  %v4305 = vmul.f32 %v3780, %v4254
  %v4306 = vmul.f32 %v3785, %v4254
  %v4307 = vmul.f32 %v3788, %v4254
  %v4308 = vmul.f32 %v3793, %v4254
  %v4309 = vmul.f32 %v3796, %v4254
  %v4310 = vmul.f32 %v3801, %v4254
  %v4311 = vmul.f32 %v3804, %v4254
  %v4312 = vmul.f32 %v3809, %v4254
  %v4313 = vmul.f32 %v3812, %v4254
  %v4314 = vmul.f32 %v3817, %v4254
  %v4315 = vmul.f32 %v3820, %v4254
  %v4316 = vmul.f32 %v3825, %v4254
  %v4317 = vmul.f32 %v3828, %v4254
  %v4318 = vmul.f32 %v3833, %v4254
  %v4319 = vmul.f32 %v3836, %v4254
  %v4321 = vlaneseq
  %v4322 = vshrl.u32 %v4321, 7
  %v4323 = vsub.s32 0, %v4322
  %v4324 = vrot.slane %v4249, %v4323
  %v4326 = vadd.f32 %v4256, %v4324
  %v4327 = vadd.f32 %v4257, %v4324
  %v4328 = vadd.f32 %v4258, %v4324
  %v4329 = vadd.f32 %v4259, %v4324
  %v4330 = vadd.f32 %v4260, %v4324
  %v4331 = vadd.f32 %v4261, %v4324
  %v4332 = vadd.f32 %v4262, %v4324
  %v4333 = vadd.f32 %v4263, %v4324
  %v4334 = vadd.f32 %v4264, %v4324
  %v4335 = vadd.f32 %v4265, %v4324
  %v4336 = vadd.f32 %v4266, %v4324
  %v4337 = vadd.f32 %v4267, %v4324
  %v4338 = vadd.f32 %v4268, %v4324
  %v4339 = vadd.f32 %v4269, %v4324
  %v4340 = vadd.f32 %v4270, %v4324
  %v4341 = vadd.f32 %v4271, %v4324
  %v4342 = vadd.f32 %v4272, %v4324
  %v4343 = vadd.f32 %v4273, %v4324
  %v4344 = vadd.f32 %v4274, %v4324
  %v4345 = vadd.f32 %v4275, %v4324
  %v4346 = vadd.f32 %v4276, %v4324
  %v4347 = vadd.f32 %v4277, %v4324
  %v4348 = vadd.f32 %v4278, %v4324
  %v4349 = vadd.f32 %v4279, %v4324
  %v4350 = vadd.f32 %v4280, %v4324
  %v4351 = vadd.f32 %v4281, %v4324
  %v4352 = vadd.f32 %v4282, %v4324
  %v4353 = vadd.f32 %v4283, %v4324
  %v4354 = vadd.f32 %v4284, %v4324
  %v4355 = vadd.f32 %v4285, %v4324
  %v4356 = vadd.f32 %v4286, %v4324
  %v4357 = vadd.f32 %v4287, %v4324
  %v4358 = vadd.f32 %v4288, %v4324
  %v4359 = vadd.f32 %v4289, %v4324
  %v4360 = vadd.f32 %v4290, %v4324
  %v4361 = vadd.f32 %v4291, %v4324
  %v4362 = vadd.f32 %v4292, %v4324
  %v4363 = vadd.f32 %v4293, %v4324
  %v4364 = vadd.f32 %v4294, %v4324
  %v4365 = vadd.f32 %v4295, %v4324
  %v4366 = vadd.f32 %v4296, %v4324
  %v4367 = vadd.f32 %v4297, %v4324
  %v4368 = vadd.f32 %v4298, %v4324
  %v4369 = vadd.f32 %v4299, %v4324
  %v4370 = vadd.f32 %v4300, %v4324
  %v4371 = vadd.f32 %v4301, %v4324
  %v4372 = vadd.f32 %v4302, %v4324
  %v4373 = vadd.f32 %v4303, %v4324
  %v4374 = vadd.f32 %v4304, %v4324
  %v4375 = vadd.f32 %v4305, %v4324
  %v4376 = vadd.f32 %v4306, %v4324
  %v4377 = vadd.f32 %v4307, %v4324
  %v4378 = vadd.f32 %v4308, %v4324
  %v4379 = vadd.f32 %v4309, %v4324
  %v4380 = vadd.f32 %v4310, %v4324
  %v4381 = vadd.f32 %v4311, %v4324
  %v4382 = vadd.f32 %v4312, %v4324
  %v4383 = vadd.f32 %v4313, %v4324
  %v4384 = vadd.f32 %v4314, %v4324
  %v4385 = vadd.f32 %v4315, %v4324
  %v4386 = vadd.f32 %v4316, %v4324
  %v4387 = vadd.f32 %v4317, %v4324
  %v4388 = vadd.f32 %v4318, %v4324
  %v4389 = vadd.f32 %v4319, %v4324
  %v4390 = vmax.f32 %v4326, 0.0
  %v4391 = vmax.f32 %v4327, 0.0
  %v4392 = vmax.f32 %v4328, 0.0
  %v4393 = vmax.f32 %v4329, 0.0
  %v4394 = vmax.f32 %v4330, 0.0
  %v4395 = vmax.f32 %v4331, 0.0
  %v4396 = vmax.f32 %v4332, 0.0
  %v4397 = vmax.f32 %v4333, 0.0
  %v4398 = vmax.f32 %v4334, 0.0
  %v4399 = vmax.f32 %v4335, 0.0
  %v4400 = vmax.f32 %v4336, 0.0
  %v4401 = vmax.f32 %v4337, 0.0
  %v4402 = vmax.f32 %v4338, 0.0
  %v4403 = vmax.f32 %v4339, 0.0
  %v4404 = vmax.f32 %v4340, 0.0
  %v4405 = vmax.f32 %v4341, 0.0
  %v4406 = vmax.f32 %v4342, 0.0
  %v4407 = vmax.f32 %v4343, 0.0
  %v4408 = vmax.f32 %v4344, 0.0
  %v4409 = vmax.f32 %v4345, 0.0
  %v4410 = vmax.f32 %v4346, 0.0
  %v4411 = vmax.f32 %v4347, 0.0
  %v4412 = vmax.f32 %v4348, 0.0
  %v4413 = vmax.f32 %v4349, 0.0
  %v4414 = vmax.f32 %v4350, 0.0
  %v4415 = vmax.f32 %v4351, 0.0
  %v4416 = vmax.f32 %v4352, 0.0
  %v4417 = vmax.f32 %v4353, 0.0
  %v4418 = vmax.f32 %v4354, 0.0
  %v4419 = vmax.f32 %v4355, 0.0
  %v4420 = vmax.f32 %v4356, 0.0
  %v4421 = vmax.f32 %v4357, 0.0
  %v4422 = vmax.f32 %v4358, 0.0
  %v4423 = vmax.f32 %v4359, 0.0
  %v4424 = vmax.f32 %v4360, 0.0
  %v4425 = vmax.f32 %v4361, 0.0
  %v4426 = vmax.f32 %v4362, 0.0
  %v4427 = vmax.f32 %v4363, 0.0
  %v4428 = vmax.f32 %v4364, 0.0
  %v4429 = vmax.f32 %v4365, 0.0
  %v4430 = vmax.f32 %v4366, 0.0
  %v4431 = vmax.f32 %v4367, 0.0
  %v4432 = vmax.f32 %v4368, 0.0
  %v4433 = vmax.f32 %v4369, 0.0
  %v4434 = vmax.f32 %v4370, 0.0
  %v4435 = vmax.f32 %v4371, 0.0
  %v4436 = vmax.f32 %v4372, 0.0
  %v4437 = vmax.f32 %v4373, 0.0
  %v4438 = vmax.f32 %v4374, 0.0
  %v4439 = vmax.f32 %v4375, 0.0
  %v4440 = vmax.f32 %v4376, 0.0
  %v4441 = vmax.f32 %v4377, 0.0
  %v4442 = vmax.f32 %v4378, 0.0
  %v4443 = vmax.f32 %v4379, 0.0
  %v4444 = vmax.f32 %v4380, 0.0
  %v4445 = vmax.f32 %v4381, 0.0
  %v4446 = vmax.f32 %v4382, 0.0
  %v4447 = vmax.f32 %v4383, 0.0
  %v4448 = vmax.f32 %v4384, 0.0
  %v4449 = vmax.f32 %v4385, 0.0
  %v4450 = vmax.f32 %v4386, 0.0
  %v4451 = vmax.f32 %v4387, 0.0
  %v4452 = vmax.f32 %v4388, 0.0
  %v4453 = vmax.f32 %v4389, 0.0
  %4454 = vst.msk [vmem:[#allocation3] sm:$0xff] %vm2942, 0.0
  %4455 = vst.msk [vmem:[#allocation3 + $0x8] sm:$0xff] %vm2942, 0.0
  %vm4456 = vcmask 58368
  %4457 = vst.msk [vmem:[#allocation3 + $0x10] sm:$0x3] %vm4456, 0.0
  %4458 = vst.msk [vmem:[#allocation3 + $0x1b0] sm:$0xff] %vm2942, 0.0
  %4459 = vst.msk [vmem:[#allocation3 + $0x1b8] sm:$0xff] %vm2942, 0.0
  %4460 = vst.msk [vmem:[#allocation3 + $0x1c0] sm:$0x3] %vm4456, 0.0
  %s4461 = scalar_lea.vmem [#allocation3], 408
  %4462 = vst.msk [vmem:[%s4461] sm:$0xff] %vm2942, 0.0
  %4463 = vst.msk [vmem:[%s4461 + $0x8] sm:$0xff] %vm2942, 0.0
  %4464 = vst.msk [vmem:[%s4461 + $0x10] sm:$0x3] %vm4456, 0.0
  %4465 = vst.msk [vmem:[%s4461 + $0x1b0] sm:$0xff] %vm2942, 0.0
  %4466 = vst.msk [vmem:[%s4461 + $0x1b8] sm:$0xff] %vm2942, 0.0
  %4467 = vst.msk [vmem:[%s4461 + $0x1c0] sm:$0x3] %vm4456, 0.0
  %vm4468 = vcmask 57344
  %4469 = vst.msk [vmem:[#allocation3] sm:$0x1] %vm4468, 0.0
  %4470 = vst.msk [vmem:[#allocation3 + $0x18] sm:$0x1] %vm4468, 0.0
  %4471 = vst.msk [vmem:[#allocation3 + $0x30] sm:$0x1] %vm4468, 0.0
  %4472 = vst.msk [vmem:[#allocation3 + $0x48] sm:$0x1] %vm4468, 0.0
  %4473 = vst.msk [vmem:[#allocation3 + $0x60] sm:$0x1] %vm4468, 0.0
  %4474 = vst.msk [vmem:[#allocation3 + $0x78] sm:$0x1] %vm4468, 0.0
  %4475 = vst.msk [vmem:[#allocation3 + $0x90] sm:$0x1] %vm4468, 0.0
  %4476 = vst.msk [vmem:[#allocation3 + $0xa8] sm:$0x1] %vm4468, 0.0
  %4477 = vst.msk [vmem:[#allocation3 + $0xc0] sm:$0x1] %vm4468, 0.0
  %4478 = vst.msk [vmem:[#allocation3 + $0xd8] sm:$0x1] %vm4468, 0.0
  %4479 = vst.msk [vmem:[#allocation3 + $0xf0] sm:$0x1] %vm4468, 0.0
  %4480 = vst.msk [vmem:[#allocation3 + $0x108] sm:$0x1] %vm4468, 0.0
  %4481 = vst.msk [vmem:[#allocation3 + $0x120] sm:$0x1] %vm4468, 0.0
  %4482 = vst.msk [vmem:[#allocation3 + $0x138] sm:$0x1] %vm4468, 0.0
  %4483 = vst.msk [vmem:[#allocation3 + $0x150] sm:$0x1] %vm4468, 0.0
  %4484 = vst.msk [vmem:[#allocation3 + $0x168] sm:$0x1] %vm4468, 0.0
  %4485 = vst.msk [vmem:[#allocation3 + $0x180] sm:$0x1] %vm4468, 0.0
  %4486 = vst.msk [vmem:[#allocation3 + $0x198] sm:$0x1] %vm4468, 0.0
  %4487 = vst.msk [vmem:[#allocation3 + $0x1b0] sm:$0x1] %vm4468, 0.0
  %4488 = vst.msk [vmem:[#allocation3 + $0x1c8] sm:$0x1] %vm4468, 0.0
  %4489 = vst.msk [vmem:[#allocation3 + $0x1e0] sm:$0x1] %vm4468, 0.0
  %4490 = vst.msk [vmem:[#allocation3 + $0x1f8] sm:$0x1] %vm4468, 0.0
  %4491 = vst.msk [vmem:[#allocation3 + $0x210] sm:$0x1] %vm4468, 0.0
  %4492 = vst.msk [vmem:[#allocation3 + $0x228] sm:$0x1] %vm4468, 0.0
  %4493 = vst.msk [vmem:[#allocation3 + $0x240] sm:$0x1] %vm4468, 0.0
  %4494 = vst.msk [vmem:[#allocation3 + $0x258] sm:$0x1] %vm4468, 0.0
  %4495 = vst.msk [vmem:[#allocation3 + $0x270] sm:$0x1] %vm4468, 0.0
  %4496 = vst.msk [vmem:[#allocation3 + $0x288] sm:$0x1] %vm4468, 0.0
  %4497 = vst.msk [vmem:[#allocation3 + $0x2a0] sm:$0x1] %vm4468, 0.0
  %4498 = vst.msk [vmem:[#allocation3 + $0x2b8] sm:$0x1] %vm4468, 0.0
  %4499 = vst.msk [vmem:[#allocation3 + $0x2d0] sm:$0x1] %vm4468, 0.0
  %4500 = vst.msk [vmem:[#allocation3 + $0x2e8] sm:$0x1] %vm4468, 0.0
  %4501 = vst.msk [vmem:[#allocation3 + $0x300] sm:$0x1] %vm4468, 0.0
  %4502 = vst.msk [vmem:[#allocation3 + $0x318] sm:$0x1] %vm4468, 0.0
  %4503 = vst.msk [vmem:[#allocation3 + $0x330] sm:$0x1] %vm4468, 0.0
  %4504 = vst.msk [vmem:[#allocation3 + $0x348] sm:$0x1] %vm4468, 0.0
  %4505 = vst.msk [vmem:[#allocation3 + $0x11] sm:$0x1] %vm4468, 0.0
  %4506 = vst.msk [vmem:[#allocation3 + $0x29] sm:$0x1] %vm4468, 0.0
  %4507 = vst.msk [vmem:[#allocation3 + $0x41] sm:$0x1] %vm4468, 0.0
  %4508 = vst.msk [vmem:[#allocation3 + $0x59] sm:$0x1] %vm4468, 0.0
  %4509 = vst.msk [vmem:[#allocation3 + $0x71] sm:$0x1] %vm4468, 0.0
  %4510 = vst.msk [vmem:[#allocation3 + $0x89] sm:$0x1] %vm4468, 0.0
  %4511 = vst.msk [vmem:[#allocation3 + $0xa1] sm:$0x1] %vm4468, 0.0
  %4512 = vst.msk [vmem:[#allocation3 + $0xb9] sm:$0x1] %vm4468, 0.0
  %4513 = vst.msk [vmem:[#allocation3 + $0xd1] sm:$0x1] %vm4468, 0.0
  %4514 = vst.msk [vmem:[#allocation3 + $0xe9] sm:$0x1] %vm4468, 0.0
  %4515 = vst.msk [vmem:[#allocation3 + $0x101] sm:$0x1] %vm4468, 0.0
  %4516 = vst.msk [vmem:[#allocation3 + $0x119] sm:$0x1] %vm4468, 0.0
  %4517 = vst.msk [vmem:[#allocation3 + $0x131] sm:$0x1] %vm4468, 0.0
  %4518 = vst.msk [vmem:[#allocation3 + $0x149] sm:$0x1] %vm4468, 0.0
  %4519 = vst.msk [vmem:[#allocation3 + $0x161] sm:$0x1] %vm4468, 0.0
  %4520 = vst.msk [vmem:[#allocation3 + $0x179] sm:$0x1] %vm4468, 0.0
  %4521 = vst.msk [vmem:[#allocation3 + $0x191] sm:$0x1] %vm4468, 0.0
  %4522 = vst.msk [vmem:[#allocation3 + $0x1a9] sm:$0x1] %vm4468, 0.0
  %4523 = vst.msk [vmem:[#allocation3 + $0x1c1] sm:$0x1] %vm4468, 0.0
  %4524 = vst.msk [vmem:[#allocation3 + $0x1d9] sm:$0x1] %vm4468, 0.0
  %4525 = vst.msk [vmem:[#allocation3 + $0x1f1] sm:$0x1] %vm4468, 0.0
  %4526 = vst.msk [vmem:[#allocation3 + $0x209] sm:$0x1] %vm4468, 0.0
  %4527 = vst.msk [vmem:[#allocation3 + $0x221] sm:$0x1] %vm4468, 0.0
  %4528 = vst.msk [vmem:[#allocation3 + $0x239] sm:$0x1] %vm4468, 0.0
  %4529 = vst.msk [vmem:[#allocation3 + $0x251] sm:$0x1] %vm4468, 0.0
  %4530 = vst.msk [vmem:[#allocation3 + $0x269] sm:$0x1] %vm4468, 0.0
  %4531 = vst.msk [vmem:[#allocation3 + $0x281] sm:$0x1] %vm4468, 0.0
  %4532 = vst.msk [vmem:[#allocation3 + $0x299] sm:$0x1] %vm4468, 0.0
  %4533 = vst.msk [vmem:[#allocation3 + $0x2b1] sm:$0x1] %vm4468, 0.0
  %4534 = vst.msk [vmem:[#allocation3 + $0x2c9] sm:$0x1] %vm4468, 0.0
  %4535 = vst.msk [vmem:[#allocation3 + $0x2e1] sm:$0x1] %vm4468, 0.0
  %4536 = vst.msk [vmem:[#allocation3 + $0x2f9] sm:$0x1] %vm4468, 0.0
  %4537 = vst.msk [vmem:[#allocation3 + $0x311] sm:$0x1] %vm4468, 0.0
  %4538 = vst.msk [vmem:[#allocation3 + $0x329] sm:$0x1] %vm4468, 0.0
  %4539 = vst.msk [vmem:[#allocation3 + $0x341] sm:$0x1] %vm4468, 0.0
  %4540 = vst.msk [vmem:[#allocation3 + $0x359] sm:$0x1] %vm4468, 0.0
  %s4541 = scalar_lea.vmem [#allocation3], 24
  %4542 = vst.msk [vmem:[%s4541 + $0x1] sm:$0xff] %vm2942, %v4390
  %4543 = vst.msk [vmem:[%s4541 + $0x9] sm:$0xff] %vm2942, %v4391
  %4544 = vst.msk [vmem:[%s4541 + $0x19] sm:$0xff] %vm2942, %v4392
  %4545 = vst.msk [vmem:[%s4541 + $0x21] sm:$0xff] %vm2942, %v4393
  %4546 = vst.msk [vmem:[%s4541 + $0x31] sm:$0xff] %vm2942, %v4394
  %4547 = vst.msk [vmem:[%s4541 + $0x39] sm:$0xff] %vm2942, %v4395
  %4548 = vst.msk [vmem:[%s4541 + $0x49] sm:$0xff] %vm2942, %v4396
  %4549 = vst.msk [vmem:[%s4541 + $0x51] sm:$0xff] %vm2942, %v4397
  %4550 = vst.msk [vmem:[%s4541 + $0x61] sm:$0xff] %vm2942, %v4398
  %4551 = vst.msk [vmem:[%s4541 + $0x69] sm:$0xff] %vm2942, %v4399
  %4552 = vst.msk [vmem:[%s4541 + $0x79] sm:$0xff] %vm2942, %v4400
  %4553 = vst.msk [vmem:[%s4541 + $0x81] sm:$0xff] %vm2942, %v4401
  %4554 = vst.msk [vmem:[%s4541 + $0x91] sm:$0xff] %vm2942, %v4402
  %4555 = vst.msk [vmem:[%s4541 + $0x99] sm:$0xff] %vm2942, %v4403
  %4556 = vst.msk [vmem:[%s4541 + $0xa9] sm:$0xff] %vm2942, %v4404
  %4557 = vst.msk [vmem:[%s4541 + $0xb1] sm:$0xff] %vm2942, %v4405
  %4558 = vst.msk [vmem:[%s4541 + $0xc1] sm:$0xff] %vm2942, %v4406
  %4559 = vst.msk [vmem:[%s4541 + $0xc9] sm:$0xff] %vm2942, %v4407
  %4560 = vst.msk [vmem:[%s4541 + $0xd9] sm:$0xff] %vm2942, %v4408
  %4561 = vst.msk [vmem:[%s4541 + $0xe1] sm:$0xff] %vm2942, %v4409
  %4562 = vst.msk [vmem:[%s4541 + $0xf1] sm:$0xff] %vm2942, %v4410
  %4563 = vst.msk [vmem:[%s4541 + $0xf9] sm:$0xff] %vm2942, %v4411
  %4564 = vst.msk [vmem:[%s4541 + $0x109] sm:$0xff] %vm2942, %v4412
  %4565 = vst.msk [vmem:[%s4541 + $0x111] sm:$0xff] %vm2942, %v4413
  %4566 = vst.msk [vmem:[%s4541 + $0x121] sm:$0xff] %vm2942, %v4414
  %4567 = vst.msk [vmem:[%s4541 + $0x129] sm:$0xff] %vm2942, %v4415
  %4568 = vst.msk [vmem:[%s4541 + $0x139] sm:$0xff] %vm2942, %v4416
  %4569 = vst.msk [vmem:[%s4541 + $0x141] sm:$0xff] %vm2942, %v4417
  %4570 = vst.msk [vmem:[%s4541 + $0x151] sm:$0xff] %vm2942, %v4418
  %4571 = vst.msk [vmem:[%s4541 + $0x159] sm:$0xff] %vm2942, %v4419
  %4572 = vst.msk [vmem:[%s4541 + $0x169] sm:$0xff] %vm2942, %v4420
  %4573 = vst.msk [vmem:[%s4541 + $0x171] sm:$0xff] %vm2942, %v4421
  %4574 = vst.msk [vmem:[%s4541 + $0x1b1] sm:$0xff] %vm2942, %v4422
  %4575 = vst.msk [vmem:[%s4541 + $0x1b9] sm:$0xff] %vm2942, %v4423
  %4576 = vst.msk [vmem:[%s4541 + $0x1c9] sm:$0xff] %vm2942, %v4424
  %4577 = vst.msk [vmem:[%s4541 + $0x1d1] sm:$0xff] %vm2942, %v4425
  %4578 = vst.msk [vmem:[%s4541 + $0x1e1] sm:$0xff] %vm2942, %v4426
  %4579 = vst.msk [vmem:[%s4541 + $0x1e9] sm:$0xff] %vm2942, %v4427
  %4580 = vst.msk [vmem:[%s4541 + $0x1f9] sm:$0xff] %vm2942, %v4428
  %4581 = vst.msk [vmem:[%s4541 + $0x201] sm:$0xff] %vm2942, %v4429
  %4582 = vst.msk [vmem:[%s4541 + $0x211] sm:$0xff] %vm2942, %v4430
  %4583 = vst.msk [vmem:[%s4541 + $0x219] sm:$0xff] %vm2942, %v4431
  %4584 = vst.msk [vmem:[%s4541 + $0x229] sm:$0xff] %vm2942, %v4432
  %4585 = vst.msk [vmem:[%s4541 + $0x231] sm:$0xff] %vm2942, %v4433
  %4586 = vst.msk [vmem:[%s4541 + $0x241] sm:$0xff] %vm2942, %v4434
  %4587 = vst.msk [vmem:[%s4541 + $0x249] sm:$0xff] %vm2942, %v4435
  %4588 = vst.msk [vmem:[%s4541 + $0x259] sm:$0xff] %vm2942, %v4436
  %4589 = vst.msk [vmem:[%s4541 + $0x261] sm:$0xff] %vm2942, %v4437
  %4590 = vst.msk [vmem:[%s4541 + $0x271] sm:$0xff] %vm2942, %v4438
  %4591 = vst.msk [vmem:[%s4541 + $0x279] sm:$0xff] %vm2942, %v4439
  %4592 = vst.msk [vmem:[%s4541 + $0x289] sm:$0xff] %vm2942, %v4440
  %4593 = vst.msk [vmem:[%s4541 + $0x291] sm:$0xff] %vm2942, %v4441
  %4594 = vst.msk [vmem:[%s4541 + $0x2a1] sm:$0xff] %vm2942, %v4442
  %4595 = vst.msk [vmem:[%s4541 + $0x2a9] sm:$0xff] %vm2942, %v4443
  %4596 = vst.msk [vmem:[%s4541 + $0x2b9] sm:$0xff] %vm2942, %v4444
  %4597 = vst.msk [vmem:[%s4541 + $0x2c1] sm:$0xff] %vm2942, %v4445
  %4598 = vst.msk [vmem:[%s4541 + $0x2d1] sm:$0xff] %vm2942, %v4446
  %4599 = vst.msk [vmem:[%s4541 + $0x2d9] sm:$0xff] %vm2942, %v4447
  %4600 = vst.msk [vmem:[%s4541 + $0x2e9] sm:$0xff] %vm2942, %v4448
  %4601 = vst.msk [vmem:[%s4541 + $0x2f1] sm:$0xff] %vm2942, %v4449
  %4602 = vst.msk [vmem:[%s4541 + $0x301] sm:$0xff] %vm2942, %v4450
  %4603 = vst.msk [vmem:[%s4541 + $0x309] sm:$0xff] %vm2942, %v4451
  %4604 = vst.msk [vmem:[%s4541 + $0x319] sm:$0xff] %vm2942, %v4452
  %4605 = vst.msk [vmem:[%s4541 + $0x321] sm:$0xff] %vm2942, %v4453
  %v4606 = vld [vmem:[#allocation3] sm:$0xff]
  %v4607 = vld [vmem:[#allocation3 + $0x8] sm:$0xff]
  %v4608 = vld [vmem:[#allocation3 + $0x18] sm:$0xff]
  %v4609 = vld [vmem:[#allocation3 + $0x20] sm:$0xff]
  %v4610 = vld [vmem:[#allocation3 + $0x30] sm:$0xff]
  %v4611 = vld [vmem:[#allocation3 + $0x38] sm:$0xff]
  %v4612 = vld [vmem:[#allocation3 + $0x48] sm:$0xff]
  %v4613 = vld [vmem:[#allocation3 + $0x50] sm:$0xff]
  %v4614 = vld [vmem:[#allocation3 + $0x60] sm:$0xff]
  %v4615 = vld [vmem:[#allocation3 + $0x68] sm:$0xff]
  %v4616 = vld [vmem:[#allocation3 + $0x78] sm:$0xff]
  %v4617 = vld [vmem:[#allocation3 + $0x80] sm:$0xff]
  %v4618 = vld [vmem:[#allocation3 + $0x90] sm:$0xff]
  %v4619 = vld [vmem:[#allocation3 + $0x98] sm:$0xff]
  %v4620 = vld [vmem:[#allocation3 + $0xa8] sm:$0xff]
  %v4621 = vld [vmem:[#allocation3 + $0xb0] sm:$0xff]
  %v4622 = vld [vmem:[#allocation3 + $0xc0] sm:$0xff]
  %v4623 = vld [vmem:[#allocation3 + $0xc8] sm:$0xff]
  %v4624 = vld [vmem:[#allocation3 + $0xd8] sm:$0xff]
  %v4625 = vld [vmem:[#allocation3 + $0xe0] sm:$0xff]
  %v4626 = vld [vmem:[#allocation3 + $0xf0] sm:$0xff]
  %v4627 = vld [vmem:[#allocation3 + $0xf8] sm:$0xff]
  %v4628 = vld [vmem:[#allocation3 + $0x108] sm:$0xff]
  %v4629 = vld [vmem:[#allocation3 + $0x110] sm:$0xff]
  %v4630 = vld [vmem:[#allocation3 + $0x120] sm:$0xff]
  %v4631 = vld [vmem:[#allocation3 + $0x128] sm:$0xff]
  %v4632 = vld [vmem:[#allocation3 + $0x138] sm:$0xff]
  %v4633 = vld [vmem:[#allocation3 + $0x140] sm:$0xff]
  %v4634 = vld [vmem:[#allocation3 + $0x150] sm:$0xff]
  %v4635 = vld [vmem:[#allocation3 + $0x158] sm:$0xff]
  %v4636 = vld [vmem:[#allocation3 + $0x168] sm:$0xff]
  %v4637 = vld [vmem:[#allocation3 + $0x170] sm:$0xff]
  %v4638 = vld [vmem:[#allocation3 + $0x1b0] sm:$0xff]
  %v4639 = vld [vmem:[#allocation3 + $0x1b8] sm:$0xff]
  %v4640 = vld [vmem:[#allocation3 + $0x1c8] sm:$0xff]
  %v4641 = vld [vmem:[#allocation3 + $0x1d0] sm:$0xff]
  %v4642 = vld [vmem:[#allocation3 + $0x1e0] sm:$0xff]
  %v4643 = vld [vmem:[#allocation3 + $0x1e8] sm:$0xff]
  %v4644 = vld [vmem:[#allocation3 + $0x1f8] sm:$0xff]
  %v4645 = vld [vmem:[#allocation3 + $0x200] sm:$0xff]
  %v4646 = vld [vmem:[#allocation3 + $0x210] sm:$0xff]
  %v4647 = vld [vmem:[#allocation3 + $0x218] sm:$0xff]
  %v4648 = vld [vmem:[#allocation3 + $0x228] sm:$0xff]
  %v4649 = vld [vmem:[#allocation3 + $0x230] sm:$0xff]
  %v4650 = vld [vmem:[#allocation3 + $0x240] sm:$0xff]
  %v4651 = vld [vmem:[#allocation3 + $0x248] sm:$0xff]
  %v4652 = vld [vmem:[#allocation3 + $0x258] sm:$0xff]
  %v4653 = vld [vmem:[#allocation3 + $0x260] sm:$0xff]
  %v4654 = vld [vmem:[#allocation3 + $0x270] sm:$0xff]
  %v4655 = vld [vmem:[#allocation3 + $0x278] sm:$0xff]
  %v4656 = vld [vmem:[#allocation3 + $0x288] sm:$0xff]
  %v4657 = vld [vmem:[#allocation3 + $0x290] sm:$0xff]
  %v4658 = vld [vmem:[#allocation3 + $0x2a0] sm:$0xff]
  %v4659 = vld [vmem:[#allocation3 + $0x2a8] sm:$0xff]
  %v4660 = vld [vmem:[#allocation3 + $0x2b8] sm:$0xff]
  %v4661 = vld [vmem:[#allocation3 + $0x2c0] sm:$0xff]
  %v4662 = vld [vmem:[#allocation3 + $0x2d0] sm:$0xff]
  %v4663 = vld [vmem:[#allocation3 + $0x2d8] sm:$0xff]
  %v4664 = vld [vmem:[#allocation3 + $0x2e8] sm:$0xff]
  %v4665 = vld [vmem:[#allocation3 + $0x2f0] sm:$0xff]
  %v4666 = vld [vmem:[#allocation3 + $0x300] sm:$0xff]
  %v4667 = vld [vmem:[#allocation3 + $0x308] sm:$0xff]
  %v4668 = vld [vmem:[#allocation3 + $0x318] sm:$0xff]
  %v4669 = vld [vmem:[#allocation3 + $0x320] sm:$0xff]
  %v4670 = vld [vmem:[#allocation3 + $0x1] sm:$0xff]
  %v4671 = vld [vmem:[#allocation3 + $0x9] sm:$0xff]
  %v4672 = vld [vmem:[#allocation3 + $0x19] sm:$0xff]
  %v4673 = vld [vmem:[#allocation3 + $0x21] sm:$0xff]
  %v4674 = vld [vmem:[#allocation3 + $0x31] sm:$0xff]
  %v4675 = vld [vmem:[#allocation3 + $0x39] sm:$0xff]
  %v4676 = vld [vmem:[#allocation3 + $0x49] sm:$0xff]
  %v4677 = vld [vmem:[#allocation3 + $0x51] sm:$0xff]
  %v4678 = vld [vmem:[#allocation3 + $0x61] sm:$0xff]
  %v4679 = vld [vmem:[#allocation3 + $0x69] sm:$0xff]
  %v4680 = vld [vmem:[#allocation3 + $0x79] sm:$0xff]
  %v4681 = vld [vmem:[#allocation3 + $0x81] sm:$0xff]
  %v4682 = vld [vmem:[#allocation3 + $0x91] sm:$0xff]
  %v4683 = vld [vmem:[#allocation3 + $0x99] sm:$0xff]
  %v4684 = vld [vmem:[#allocation3 + $0xa9] sm:$0xff]
  %v4685 = vld [vmem:[#allocation3 + $0xb1] sm:$0xff]
  %v4686 = vld [vmem:[#allocation3 + $0xc1] sm:$0xff]
  %v4687 = vld [vmem:[#allocation3 + $0xc9] sm:$0xff]
  %v4688 = vld [vmem:[#allocation3 + $0xd9] sm:$0xff]
  %v4689 = vld [vmem:[#allocation3 + $0xe1] sm:$0xff]
  %v4690 = vld [vmem:[#allocation3 + $0xf1] sm:$0xff]
  %v4691 = vld [vmem:[#allocation3 + $0xf9] sm:$0xff]
  %v4692 = vld [vmem:[#allocation3 + $0x109] sm:$0xff]
  %v4693 = vld [vmem:[#allocation3 + $0x111] sm:$0xff]
  %v4694 = vld [vmem:[#allocation3 + $0x121] sm:$0xff]
  %v4695 = vld [vmem:[#allocation3 + $0x129] sm:$0xff]
  %v4696 = vld [vmem:[#allocation3 + $0x139] sm:$0xff]
  %v4697 = vld [vmem:[#allocation3 + $0x141] sm:$0xff]
  %v4698 = vld [vmem:[#allocation3 + $0x151] sm:$0xff]
  %v4699 = vld [vmem:[#allocation3 + $0x159] sm:$0xff]
  %v4700 = vld [vmem:[#allocation3 + $0x169] sm:$0xff]
  %v4701 = vld [vmem:[#allocation3 + $0x171] sm:$0xff]
  %v4702 = vld [vmem:[#allocation3 + $0x1b1] sm:$0xff]
  %v4703 = vld [vmem:[#allocation3 + $0x1b9] sm:$0xff]
  %v4704 = vld [vmem:[#allocation3 + $0x1c9] sm:$0xff]
  %v4705 = vld [vmem:[#allocation3 + $0x1d1] sm:$0xff]
  %v4706 = vld [vmem:[#allocation3 + $0x1e1] sm:$0xff]
  %v4707 = vld [vmem:[#allocation3 + $0x1e9] sm:$0xff]
  %v4708 = vld [vmem:[#allocation3 + $0x1f9] sm:$0xff]
  %v4709 = vld [vmem:[#allocation3 + $0x201] sm:$0xff]
  %v4710 = vld [vmem:[#allocation3 + $0x211] sm:$0xff]
  %v4711 = vld [vmem:[#allocation3 + $0x219] sm:$0xff]
  %v4712 = vld [vmem:[#allocation3 + $0x229] sm:$0xff]
  %v4713 = vld [vmem:[#allocation3 + $0x231] sm:$0xff]
  %v4714 = vld [vmem:[#allocation3 + $0x241] sm:$0xff]
  %v4715 = vld [vmem:[#allocation3 + $0x249] sm:$0xff]
  %v4716 = vld [vmem:[#allocation3 + $0x259] sm:$0xff]
  %v4717 = vld [vmem:[#allocation3 + $0x261] sm:$0xff]
  %v4718 = vld [vmem:[#allocation3 + $0x271] sm:$0xff]
  %v4719 = vld [vmem:[#allocation3 + $0x279] sm:$0xff]
  %v4720 = vld [vmem:[#allocation3 + $0x289] sm:$0xff]
  %v4721 = vld [vmem:[#allocation3 + $0x291] sm:$0xff]
  %v4722 = vld [vmem:[#allocation3 + $0x2a1] sm:$0xff]
  %v4723 = vld [vmem:[#allocation3 + $0x2a9] sm:$0xff]
  %v4724 = vld [vmem:[#allocation3 + $0x2b9] sm:$0xff]
  %v4725 = vld [vmem:[#allocation3 + $0x2c1] sm:$0xff]
  %v4726 = vld [vmem:[#allocation3 + $0x2d1] sm:$0xff]
  %v4727 = vld [vmem:[#allocation3 + $0x2d9] sm:$0xff]
  %v4728 = vld [vmem:[#allocation3 + $0x2e9] sm:$0xff]
  %v4729 = vld [vmem:[#allocation3 + $0x2f1] sm:$0xff]
  %v4730 = vld [vmem:[#allocation3 + $0x301] sm:$0xff]
  %v4731 = vld [vmem:[#allocation3 + $0x309] sm:$0xff]
  %v4732 = vld [vmem:[#allocation3 + $0x319] sm:$0xff]
  %v4733 = vld [vmem:[#allocation3 + $0x321] sm:$0xff]
  %v4734 = vld [vmem:[#allocation3 + $0x2] sm:$0xff]
  %v4735 = vld [vmem:[#allocation3 + $0xa] sm:$0xff]
  %v4736 = vld [vmem:[#allocation3 + $0x1a] sm:$0xff]
  %v4737 = vld [vmem:[#allocation3 + $0x22] sm:$0xff]
  %v4738 = vld [vmem:[#allocation3 + $0x32] sm:$0xff]
  %v4739 = vld [vmem:[#allocation3 + $0x3a] sm:$0xff]
  %v4740 = vld [vmem:[#allocation3 + $0x4a] sm:$0xff]
  %v4741 = vld [vmem:[#allocation3 + $0x52] sm:$0xff]
  %v4742 = vld [vmem:[#allocation3 + $0x62] sm:$0xff]
  %v4743 = vld [vmem:[#allocation3 + $0x6a] sm:$0xff]
  %v4744 = vld [vmem:[#allocation3 + $0x7a] sm:$0xff]
  %v4745 = vld [vmem:[#allocation3 + $0x82] sm:$0xff]
  %v4746 = vld [vmem:[#allocation3 + $0x92] sm:$0xff]
  %v4747 = vld [vmem:[#allocation3 + $0x9a] sm:$0xff]
  %v4748 = vld [vmem:[#allocation3 + $0xaa] sm:$0xff]
  %v4749 = vld [vmem:[#allocation3 + $0xb2] sm:$0xff]
  %v4750 = vld [vmem:[#allocation3 + $0xc2] sm:$0xff]
  %v4751 = vld [vmem:[#allocation3 + $0xca] sm:$0xff]
  %v4752 = vld [vmem:[#allocation3 + $0xda] sm:$0xff]
  %v4753 = vld [vmem:[#allocation3 + $0xe2] sm:$0xff]
  %v4754 = vld [vmem:[#allocation3 + $0xf2] sm:$0xff]
  %v4755 = vld [vmem:[#allocation3 + $0xfa] sm:$0xff]
  %v4756 = vld [vmem:[#allocation3 + $0x10a] sm:$0xff]
  %v4757 = vld [vmem:[#allocation3 + $0x112] sm:$0xff]
  %v4758 = vld [vmem:[#allocation3 + $0x122] sm:$0xff]
  %v4759 = vld [vmem:[#allocation3 + $0x12a] sm:$0xff]
  %v4760 = vld [vmem:[#allocation3 + $0x13a] sm:$0xff]
  %v4761 = vld [vmem:[#allocation3 + $0x142] sm:$0xff]
  %v4762 = vld [vmem:[#allocation3 + $0x152] sm:$0xff]
  %v4763 = vld [vmem:[#allocation3 + $0x15a] sm:$0xff]
  %v4764 = vld [vmem:[#allocation3 + $0x16a] sm:$0xff]
  %v4765 = vld [vmem:[#allocation3 + $0x172] sm:$0xff]
  %v4766 = vld [vmem:[#allocation3 + $0x1b2] sm:$0xff]
  %v4767 = vld [vmem:[#allocation3 + $0x1ba] sm:$0xff]
  %v4768 = vld [vmem:[#allocation3 + $0x1ca] sm:$0xff]
  %v4769 = vld [vmem:[#allocation3 + $0x1d2] sm:$0xff]
  %v4770 = vld [vmem:[#allocation3 + $0x1e2] sm:$0xff]
  %v4771 = vld [vmem:[#allocation3 + $0x1ea] sm:$0xff]
  %v4772 = vld [vmem:[#allocation3 + $0x1fa] sm:$0xff]
  %v4773 = vld [vmem:[#allocation3 + $0x202] sm:$0xff]
  %v4774 = vld [vmem:[#allocation3 + $0x212] sm:$0xff]
  %v4775 = vld [vmem:[#allocation3 + $0x21a] sm:$0xff]
  %v4776 = vld [vmem:[#allocation3 + $0x22a] sm:$0xff]
  %v4777 = vld [vmem:[#allocation3 + $0x232] sm:$0xff]
  %v4778 = vld [vmem:[#allocation3 + $0x242] sm:$0xff]
  %v4779 = vld [vmem:[#allocation3 + $0x24a] sm:$0xff]
  %v4780 = vld [vmem:[#allocation3 + $0x25a] sm:$0xff]
  %v4781 = vld [vmem:[#allocation3 + $0x262] sm:$0xff]
  %v4782 = vld [vmem:[#allocation3 + $0x272] sm:$0xff]
  %v4783 = vld [vmem:[#allocation3 + $0x27a] sm:$0xff]
  %v4784 = vld [vmem:[#allocation3 + $0x28a] sm:$0xff]
  %v4785 = vld [vmem:[#allocation3 + $0x292] sm:$0xff]
  %v4786 = vld [vmem:[#allocation3 + $0x2a2] sm:$0xff]
  %v4787 = vld [vmem:[#allocation3 + $0x2aa] sm:$0xff]
  %v4788 = vld [vmem:[#allocation3 + $0x2ba] sm:$0xff]
  %v4789 = vld [vmem:[#allocation3 + $0x2c2] sm:$0xff]
  %v4790 = vld [vmem:[#allocation3 + $0x2d2] sm:$0xff]
  %v4791 = vld [vmem:[#allocation3 + $0x2da] sm:$0xff]
  %v4792 = vld [vmem:[#allocation3 + $0x2ea] sm:$0xff]
  %v4793 = vld [vmem:[#allocation3 + $0x2f2] sm:$0xff]
  %v4794 = vld [vmem:[#allocation3 + $0x302] sm:$0xff]
  %v4795 = vld [vmem:[#allocation3 + $0x30a] sm:$0xff]
  %v4796 = vld [vmem:[#allocation3 + $0x31a] sm:$0xff]
  %v4797 = vld [vmem:[#allocation3 + $0x322] sm:$0xff]
  %v4798 = vld [vmem:[%s4541] sm:$0xff]
  %v4799 = vld [vmem:[%s4541 + $0x8] sm:$0xff]
  %v4800 = vld [vmem:[%s4541 + $0x18] sm:$0xff]
  %v4801 = vld [vmem:[%s4541 + $0x20] sm:$0xff]
  %v4802 = vld [vmem:[%s4541 + $0x30] sm:$0xff]
  %v4803 = vld [vmem:[%s4541 + $0x38] sm:$0xff]
  %v4804 = vld [vmem:[%s4541 + $0x48] sm:$0xff]
  %v4805 = vld [vmem:[%s4541 + $0x50] sm:$0xff]
  %v4806 = vld [vmem:[%s4541 + $0x60] sm:$0xff]
  %v4807 = vld [vmem:[%s4541 + $0x68] sm:$0xff]
  %v4808 = vld [vmem:[%s4541 + $0x78] sm:$0xff]
  %v4809 = vld [vmem:[%s4541 + $0x80] sm:$0xff]
  %v4810 = vld [vmem:[%s4541 + $0x90] sm:$0xff]
  %v4811 = vld [vmem:[%s4541 + $0x98] sm:$0xff]
  %v4812 = vld [vmem:[%s4541 + $0xa8] sm:$0xff]
  %v4813 = vld [vmem:[%s4541 + $0xb0] sm:$0xff]
  %v4814 = vld [vmem:[%s4541 + $0xc0] sm:$0xff]
  %v4815 = vld [vmem:[%s4541 + $0xc8] sm:$0xff]
  %v4816 = vld [vmem:[%s4541 + $0xd8] sm:$0xff]
  %v4817 = vld [vmem:[%s4541 + $0xe0] sm:$0xff]
  %v4818 = vld [vmem:[%s4541 + $0xf0] sm:$0xff]
  %v4819 = vld [vmem:[%s4541 + $0xf8] sm:$0xff]
  %v4820 = vld [vmem:[%s4541 + $0x108] sm:$0xff]
  %v4821 = vld [vmem:[%s4541 + $0x110] sm:$0xff]
  %v4822 = vld [vmem:[%s4541 + $0x120] sm:$0xff]
  %v4823 = vld [vmem:[%s4541 + $0x128] sm:$0xff]
  %v4824 = vld [vmem:[%s4541 + $0x138] sm:$0xff]
  %v4825 = vld [vmem:[%s4541 + $0x140] sm:$0xff]
  %v4826 = vld [vmem:[%s4541 + $0x150] sm:$0xff]
  %v4827 = vld [vmem:[%s4541 + $0x158] sm:$0xff]
  %v4828 = vld [vmem:[%s4541 + $0x168] sm:$0xff]
  %v4829 = vld [vmem:[%s4541 + $0x170] sm:$0xff]
  %v4830 = vld [vmem:[%s4541 + $0x1b0] sm:$0xff]
  %v4831 = vld [vmem:[%s4541 + $0x1b8] sm:$0xff]
  %v4832 = vld [vmem:[%s4541 + $0x1c8] sm:$0xff]
  %v4833 = vld [vmem:[%s4541 + $0x1d0] sm:$0xff]
  %v4834 = vld [vmem:[%s4541 + $0x1e0] sm:$0xff]
  %v4835 = vld [vmem:[%s4541 + $0x1e8] sm:$0xff]
  %v4836 = vld [vmem:[%s4541 + $0x1f8] sm:$0xff]
  %v4837 = vld [vmem:[%s4541 + $0x200] sm:$0xff]
  %v4838 = vld [vmem:[%s4541 + $0x210] sm:$0xff]
  %v4839 = vld [vmem:[%s4541 + $0x218] sm:$0xff]
  %v4840 = vld [vmem:[%s4541 + $0x228] sm:$0xff]
  %v4841 = vld [vmem:[%s4541 + $0x230] sm:$0xff]
  %v4842 = vld [vmem:[%s4541 + $0x240] sm:$0xff]
  %v4843 = vld [vmem:[%s4541 + $0x248] sm:$0xff]
  %v4844 = vld [vmem:[%s4541 + $0x258] sm:$0xff]
  %v4845 = vld [vmem:[%s4541 + $0x260] sm:$0xff]
  %v4846 = vld [vmem:[%s4541 + $0x270] sm:$0xff]
  %v4847 = vld [vmem:[%s4541 + $0x278] sm:$0xff]
  %v4848 = vld [vmem:[%s4541 + $0x288] sm:$0xff]
  %v4849 = vld [vmem:[%s4541 + $0x290] sm:$0xff]
  %v4850 = vld [vmem:[%s4541 + $0x2a0] sm:$0xff]
  %v4851 = vld [vmem:[%s4541 + $0x2a8] sm:$0xff]
  %v4852 = vld [vmem:[%s4541 + $0x2b8] sm:$0xff]
  %v4853 = vld [vmem:[%s4541 + $0x2c0] sm:$0xff]
  %v4854 = vld [vmem:[%s4541 + $0x2d0] sm:$0xff]
  %v4855 = vld [vmem:[%s4541 + $0x2d8] sm:$0xff]
  %v4856 = vld [vmem:[%s4541 + $0x2e8] sm:$0xff]
  %v4857 = vld [vmem:[%s4541 + $0x2f0] sm:$0xff]
  %v4858 = vld [vmem:[%s4541 + $0x300] sm:$0xff]
  %v4859 = vld [vmem:[%s4541 + $0x308] sm:$0xff]
  %v4860 = vld [vmem:[%s4541 + $0x318] sm:$0xff]
  %v4861 = vld [vmem:[%s4541 + $0x320] sm:$0xff]
  %v4862 = vld [vmem:[%s4541 + $0x1] sm:$0xff]
  %v4863 = vld [vmem:[%s4541 + $0x9] sm:$0xff]
  %v4864 = vld [vmem:[%s4541 + $0x19] sm:$0xff]
  %v4865 = vld [vmem:[%s4541 + $0x21] sm:$0xff]
  %v4866 = vld [vmem:[%s4541 + $0x31] sm:$0xff]
  %v4867 = vld [vmem:[%s4541 + $0x39] sm:$0xff]
  %v4868 = vld [vmem:[%s4541 + $0x49] sm:$0xff]
  %v4869 = vld [vmem:[%s4541 + $0x51] sm:$0xff]
  %v4870 = vld [vmem:[%s4541 + $0x61] sm:$0xff]
  %v4871 = vld [vmem:[%s4541 + $0x69] sm:$0xff]
  %v4872 = vld [vmem:[%s4541 + $0x79] sm:$0xff]
  %v4873 = vld [vmem:[%s4541 + $0x81] sm:$0xff]
  %v4874 = vld [vmem:[%s4541 + $0x91] sm:$0xff]
  %v4875 = vld [vmem:[%s4541 + $0x99] sm:$0xff]
  %v4876 = vld [vmem:[%s4541 + $0xa9] sm:$0xff]
  %v4877 = vld [vmem:[%s4541 + $0xb1] sm:$0xff]
  %v4878 = vld [vmem:[%s4541 + $0xc1] sm:$0xff]
  %v4879 = vld [vmem:[%s4541 + $0xc9] sm:$0xff]
  %v4880 = vld [vmem:[%s4541 + $0xd9] sm:$0xff]
  %v4881 = vld [vmem:[%s4541 + $0xe1] sm:$0xff]
  %v4882 = vld [vmem:[%s4541 + $0xf1] sm:$0xff]
  %v4883 = vld [vmem:[%s4541 + $0xf9] sm:$0xff]
  %v4884 = vld [vmem:[%s4541 + $0x109] sm:$0xff]
  %v4885 = vld [vmem:[%s4541 + $0x111] sm:$0xff]
  %v4886 = vld [vmem:[%s4541 + $0x121] sm:$0xff]
  %v4887 = vld [vmem:[%s4541 + $0x129] sm:$0xff]
  %v4888 = vld [vmem:[%s4541 + $0x139] sm:$0xff]
  %v4889 = vld [vmem:[%s4541 + $0x141] sm:$0xff]
  %v4890 = vld [vmem:[%s4541 + $0x151] sm:$0xff]
  %v4891 = vld [vmem:[%s4541 + $0x159] sm:$0xff]
  %v4892 = vld [vmem:[%s4541 + $0x169] sm:$0xff]
  %v4893 = vld [vmem:[%s4541 + $0x171] sm:$0xff]
  %v4894 = vld [vmem:[%s4541 + $0x1b1] sm:$0xff]
  %v4895 = vld [vmem:[%s4541 + $0x1b9] sm:$0xff]
  %v4896 = vld [vmem:[%s4541 + $0x1c9] sm:$0xff]
  %v4897 = vld [vmem:[%s4541 + $0x1d1] sm:$0xff]
  %v4898 = vld [vmem:[%s4541 + $0x1e1] sm:$0xff]
  %v4899 = vld [vmem:[%s4541 + $0x1e9] sm:$0xff]
  %v4900 = vld [vmem:[%s4541 + $0x1f9] sm:$0xff]
  %v4901 = vld [vmem:[%s4541 + $0x201] sm:$0xff]
  %v4902 = vld [vmem:[%s4541 + $0x211] sm:$0xff]
  %v4903 = vld [vmem:[%s4541 + $0x219] sm:$0xff]
  %v4904 = vld [vmem:[%s4541 + $0x229] sm:$0xff]
  %v4905 = vld [vmem:[%s4541 + $0x231] sm:$0xff]
  %v4906 = vld [vmem:[%s4541 + $0x241] sm:$0xff]
  %v4907 = vld [vmem:[%s4541 + $0x249] sm:$0xff]
  %v4908 = vld [vmem:[%s4541 + $0x259] sm:$0xff]
  %v4909 = vld [vmem:[%s4541 + $0x261] sm:$0xff]
  %v4910 = vld [vmem:[%s4541 + $0x271] sm:$0xff]
  %v4911 = vld [vmem:[%s4541 + $0x279] sm:$0xff]
  %v4912 = vld [vmem:[%s4541 + $0x289] sm:$0xff]
  %v4913 = vld [vmem:[%s4541 + $0x291] sm:$0xff]
  %v4914 = vld [vmem:[%s4541 + $0x2a1] sm:$0xff]
  %v4915 = vld [vmem:[%s4541 + $0x2a9] sm:$0xff]
  %v4916 = vld [vmem:[%s4541 + $0x2b9] sm:$0xff]
  %v4917 = vld [vmem:[%s4541 + $0x2c1] sm:$0xff]
  %v4918 = vld [vmem:[%s4541 + $0x2d1] sm:$0xff]
  %v4919 = vld [vmem:[%s4541 + $0x2d9] sm:$0xff]
  %v4920 = vld [vmem:[%s4541 + $0x2e9] sm:$0xff]
  %v4921 = vld [vmem:[%s4541 + $0x2f1] sm:$0xff]
  %v4922 = vld [vmem:[%s4541 + $0x301] sm:$0xff]
  %v4923 = vld [vmem:[%s4541 + $0x309] sm:$0xff]
  %v4924 = vld [vmem:[%s4541 + $0x319] sm:$0xff]
  %v4925 = vld [vmem:[%s4541 + $0x321] sm:$0xff]
  %v4926 = vld [vmem:[%s4541 + $0x2] sm:$0xff]
  %v4927 = vld [vmem:[%s4541 + $0xa] sm:$0xff]
  %v4928 = vld [vmem:[%s4541 + $0x1a] sm:$0xff]
  %v4929 = vld [vmem:[%s4541 + $0x22] sm:$0xff]
  %v4930 = vld [vmem:[%s4541 + $0x32] sm:$0xff]
  %v4931 = vld [vmem:[%s4541 + $0x3a] sm:$0xff]
  %v4932 = vld [vmem:[%s4541 + $0x4a] sm:$0xff]
  %v4933 = vld [vmem:[%s4541 + $0x52] sm:$0xff]
  %v4934 = vld [vmem:[%s4541 + $0x62] sm:$0xff]
  %v4935 = vld [vmem:[%s4541 + $0x6a] sm:$0xff]
  %v4936 = vld [vmem:[%s4541 + $0x7a] sm:$0xff]
  %v4937 = vld [vmem:[%s4541 + $0x82] sm:$0xff]
  %v4938 = vld [vmem:[%s4541 + $0x92] sm:$0xff]
  %v4939 = vld [vmem:[%s4541 + $0x9a] sm:$0xff]
  %v4940 = vld [vmem:[%s4541 + $0xaa] sm:$0xff]
  %v4941 = vld [vmem:[%s4541 + $0xb2] sm:$0xff]
  %v4942 = vld [vmem:[%s4541 + $0xc2] sm:$0xff]
  %v4943 = vld [vmem:[%s4541 + $0xca] sm:$0xff]
  %v4944 = vld [vmem:[%s4541 + $0xda] sm:$0xff]
  %v4945 = vld [vmem:[%s4541 + $0xe2] sm:$0xff]
  %v4946 = vld [vmem:[%s4541 + $0xf2] sm:$0xff]
  %v4947 = vld [vmem:[%s4541 + $0xfa] sm:$0xff]
  %v4948 = vld [vmem:[%s4541 + $0x10a] sm:$0xff]
  %v4949 = vld [vmem:[%s4541 + $0x112] sm:$0xff]
  %v4950 = vld [vmem:[%s4541 + $0x122] sm:$0xff]
  %v4951 = vld [vmem:[%s4541 + $0x12a] sm:$0xff]
  %v4952 = vld [vmem:[%s4541 + $0x13a] sm:$0xff]
  %v4953 = vld [vmem:[%s4541 + $0x142] sm:$0xff]
  %v4954 = vld [vmem:[%s4541 + $0x152] sm:$0xff]
  %v4955 = vld [vmem:[%s4541 + $0x15a] sm:$0xff]
  %v4956 = vld [vmem:[%s4541 + $0x16a] sm:$0xff]
  %v4957 = vld [vmem:[%s4541 + $0x172] sm:$0xff]
  %v4958 = vld [vmem:[%s4541 + $0x1b2] sm:$0xff]
  %v4959 = vld [vmem:[%s4541 + $0x1ba] sm:$0xff]
  %v4960 = vld [vmem:[%s4541 + $0x1ca] sm:$0xff]
  %v4961 = vld [vmem:[%s4541 + $0x1d2] sm:$0xff]
  %v4962 = vld [vmem:[%s4541 + $0x1e2] sm:$0xff]
  %v4963 = vld [vmem:[%s4541 + $0x1ea] sm:$0xff]
  %v4964 = vld [vmem:[%s4541 + $0x1fa] sm:$0xff]
  %v4965 = vld [vmem:[%s4541 + $0x202] sm:$0xff]
  %v4966 = vld [vmem:[%s4541 + $0x212] sm:$0xff]
  %v4967 = vld [vmem:[%s4541 + $0x21a] sm:$0xff]
  %v4968 = vld [vmem:[%s4541 + $0x22a] sm:$0xff]
  %v4969 = vld [vmem:[%s4541 + $0x232] sm:$0xff]
  %v4970 = vld [vmem:[%s4541 + $0x242] sm:$0xff]
  %v4971 = vld [vmem:[%s4541 + $0x24a] sm:$0xff]
  %v4972 = vld [vmem:[%s4541 + $0x25a] sm:$0xff]
  %v4973 = vld [vmem:[%s4541 + $0x262] sm:$0xff]
  %v4974 = vld [vmem:[%s4541 + $0x272] sm:$0xff]
  %v4975 = vld [vmem:[%s4541 + $0x27a] sm:$0xff]
  %v4976 = vld [vmem:[%s4541 + $0x28a] sm:$0xff]
  %v4977 = vld [vmem:[%s4541 + $0x292] sm:$0xff]
  %v4978 = vld [vmem:[%s4541 + $0x2a2] sm:$0xff]
  %v4979 = vld [vmem:[%s4541 + $0x2aa] sm:$0xff]
  %v4980 = vld [vmem:[%s4541 + $0x2ba] sm:$0xff]
  %v4981 = vld [vmem:[%s4541 + $0x2c2] sm:$0xff]
  %v4982 = vld [vmem:[%s4541 + $0x2d2] sm:$0xff]
  %v4983 = vld [vmem:[%s4541 + $0x2da] sm:$0xff]
  %v4984 = vld [vmem:[%s4541 + $0x2ea] sm:$0xff]
  %v4985 = vld [vmem:[%s4541 + $0x2f2] sm:$0xff]
  %v4986 = vld [vmem:[%s4541 + $0x302] sm:$0xff]
  %v4987 = vld [vmem:[%s4541 + $0x30a] sm:$0xff]
  %v4988 = vld [vmem:[%s4541 + $0x31a] sm:$0xff]
  %v4989 = vld [vmem:[%s4541 + $0x322] sm:$0xff]
  %s4990 = scalar_lea.vmem [#allocation3], 48
  %v4991 = vld [vmem:[%s4990] sm:$0xff]
  %v4992 = vld [vmem:[%s4990 + $0x8] sm:$0xff]
  %v4993 = vld [vmem:[%s4990 + $0x18] sm:$0xff]
  %v4994 = vld [vmem:[%s4990 + $0x20] sm:$0xff]
  %v4995 = vld [vmem:[%s4990 + $0x30] sm:$0xff]
  %v4996 = vld [vmem:[%s4990 + $0x38] sm:$0xff]
  %v4997 = vld [vmem:[%s4990 + $0x48] sm:$0xff]
  %v4998 = vld [vmem:[%s4990 + $0x50] sm:$0xff]
  %v4999 = vld [vmem:[%s4990 + $0x60] sm:$0xff]
  %v5000 = vld [vmem:[%s4990 + $0x68] sm:$0xff]
  %v5001 = vld [vmem:[%s4990 + $0x78] sm:$0xff]
  %v5002 = vld [vmem:[%s4990 + $0x80] sm:$0xff]
  %v5003 = vld [vmem:[%s4990 + $0x90] sm:$0xff]
  %v5004 = vld [vmem:[%s4990 + $0x98] sm:$0xff]
  %v5005 = vld [vmem:[%s4990 + $0xa8] sm:$0xff]
  %v5006 = vld [vmem:[%s4990 + $0xb0] sm:$0xff]
  %v5007 = vld [vmem:[%s4990 + $0xc0] sm:$0xff]
  %v5008 = vld [vmem:[%s4990 + $0xc8] sm:$0xff]
  %v5009 = vld [vmem:[%s4990 + $0xd8] sm:$0xff]
  %v5010 = vld [vmem:[%s4990 + $0xe0] sm:$0xff]
  %v5011 = vld [vmem:[%s4990 + $0xf0] sm:$0xff]
  %v5012 = vld [vmem:[%s4990 + $0xf8] sm:$0xff]
  %v5013 = vld [vmem:[%s4990 + $0x108] sm:$0xff]
  %v5014 = vld [vmem:[%s4990 + $0x110] sm:$0xff]
  %v5015 = vld [vmem:[%s4990 + $0x120] sm:$0xff]
  %v5016 = vld [vmem:[%s4990 + $0x128] sm:$0xff]
  %v5017 = vld [vmem:[%s4990 + $0x138] sm:$0xff]
  %v5018 = vld [vmem:[%s4990 + $0x140] sm:$0xff]
  %v5019 = vld [vmem:[%s4990 + $0x150] sm:$0xff]
  %v5020 = vld [vmem:[%s4990 + $0x158] sm:$0xff]
  %v5021 = vld [vmem:[%s4990 + $0x168] sm:$0xff]
  %v5022 = vld [vmem:[%s4990 + $0x170] sm:$0xff]
  %v5023 = vld [vmem:[%s4990 + $0x1b0] sm:$0xff]
  %v5024 = vld [vmem:[%s4990 + $0x1b8] sm:$0xff]
  %v5025 = vld [vmem:[%s4990 + $0x1c8] sm:$0xff]
  %v5026 = vld [vmem:[%s4990 + $0x1d0] sm:$0xff]
  %v5027 = vld [vmem:[%s4990 + $0x1e0] sm:$0xff]
  %v5028 = vld [vmem:[%s4990 + $0x1e8] sm:$0xff]
  %v5029 = vld [vmem:[%s4990 + $0x1f8] sm:$0xff]
  %v5030 = vld [vmem:[%s4990 + $0x200] sm:$0xff]
  %v5031 = vld [vmem:[%s4990 + $0x210] sm:$0xff]
  %v5032 = vld [vmem:[%s4990 + $0x218] sm:$0xff]
  %v5033 = vld [vmem:[%s4990 + $0x228] sm:$0xff]
  %v5034 = vld [vmem:[%s4990 + $0x230] sm:$0xff]
  %v5035 = vld [vmem:[%s4990 + $0x240] sm:$0xff]
  %v5036 = vld [vmem:[%s4990 + $0x248] sm:$0xff]
  %v5037 = vld [vmem:[%s4990 + $0x258] sm:$0xff]
  %v5038 = vld [vmem:[%s4990 + $0x260] sm:$0xff]
  %v5039 = vld [vmem:[%s4990 + $0x270] sm:$0xff]
  %v5040 = vld [vmem:[%s4990 + $0x278] sm:$0xff]
  %v5041 = vld [vmem:[%s4990 + $0x288] sm:$0xff]
  %v5042 = vld [vmem:[%s4990 + $0x290] sm:$0xff]
  %v5043 = vld [vmem:[%s4990 + $0x2a0] sm:$0xff]
  %v5044 = vld [vmem:[%s4990 + $0x2a8] sm:$0xff]
  %v5045 = vld [vmem:[%s4990 + $0x2b8] sm:$0xff]
  %v5046 = vld [vmem:[%s4990 + $0x2c0] sm:$0xff]
  %v5047 = vld [vmem:[%s4990 + $0x2d0] sm:$0xff]
  %v5048 = vld [vmem:[%s4990 + $0x2d8] sm:$0xff]
  %v5049 = vld [vmem:[%s4990 + $0x2e8] sm:$0xff]
  %v5050 = vld [vmem:[%s4990 + $0x2f0] sm:$0xff]
  %v5051 = vld [vmem:[%s4990 + $0x300] sm:$0xff]
  %v5052 = vld [vmem:[%s4990 + $0x308] sm:$0xff]
  %v5053 = vld [vmem:[%s4990 + $0x318] sm:$0xff]
  %v5054 = vld [vmem:[%s4990 + $0x320] sm:$0xff]
  %v5055 = vld [vmem:[%s4990 + $0x1] sm:$0xff]
  %v5056 = vld [vmem:[%s4990 + $0x9] sm:$0xff]
  %v5057 = vld [vmem:[%s4990 + $0x19] sm:$0xff]
  %v5058 = vld [vmem:[%s4990 + $0x21] sm:$0xff]
  %v5059 = vld [vmem:[%s4990 + $0x31] sm:$0xff]
  %v5060 = vld [vmem:[%s4990 + $0x39] sm:$0xff]
  %v5061 = vld [vmem:[%s4990 + $0x49] sm:$0xff]
  %v5062 = vld [vmem:[%s4990 + $0x51] sm:$0xff]
  %v5063 = vld [vmem:[%s4990 + $0x61] sm:$0xff]
  %v5064 = vld [vmem:[%s4990 + $0x69] sm:$0xff]
  %v5065 = vld [vmem:[%s4990 + $0x79] sm:$0xff]
  %v5066 = vld [vmem:[%s4990 + $0x81] sm:$0xff]
  %v5067 = vld [vmem:[%s4990 + $0x91] sm:$0xff]
  %v5068 = vld [vmem:[%s4990 + $0x99] sm:$0xff]
  %v5069 = vld [vmem:[%s4990 + $0xa9] sm:$0xff]
  %v5070 = vld [vmem:[%s4990 + $0xb1] sm:$0xff]
  %v5071 = vld [vmem:[%s4990 + $0xc1] sm:$0xff]
  %v5072 = vld [vmem:[%s4990 + $0xc9] sm:$0xff]
  %v5073 = vld [vmem:[%s4990 + $0xd9] sm:$0xff]
  %v5074 = vld [vmem:[%s4990 + $0xe1] sm:$0xff]
  %v5075 = vld [vmem:[%s4990 + $0xf1] sm:$0xff]
  %v5076 = vld [vmem:[%s4990 + $0xf9] sm:$0xff]
  %v5077 = vld [vmem:[%s4990 + $0x109] sm:$0xff]
  %v5078 = vld [vmem:[%s4990 + $0x111] sm:$0xff]
  %v5079 = vld [vmem:[%s4990 + $0x121] sm:$0xff]
  %v5080 = vld [vmem:[%s4990 + $0x129] sm:$0xff]
  %v5081 = vld [vmem:[%s4990 + $0x139] sm:$0xff]
  %v5082 = vld [vmem:[%s4990 + $0x141] sm:$0xff]
  %v5083 = vld [vmem:[%s4990 + $0x151] sm:$0xff]
  %v5084 = vld [vmem:[%s4990 + $0x159] sm:$0xff]
  %v5085 = vld [vmem:[%s4990 + $0x169] sm:$0xff]
  %v5086 = vld [vmem:[%s4990 + $0x171] sm:$0xff]
  %v5087 = vld [vmem:[%s4990 + $0x1b1] sm:$0xff]
  %v5088 = vld [vmem:[%s4990 + $0x1b9] sm:$0xff]
  %v5089 = vld [vmem:[%s4990 + $0x1c9] sm:$0xff]
  %v5090 = vld [vmem:[%s4990 + $0x1d1] sm:$0xff]
  %v5091 = vld [vmem:[%s4990 + $0x1e1] sm:$0xff]
  %v5092 = vld [vmem:[%s4990 + $0x1e9] sm:$0xff]
  %v5093 = vld [vmem:[%s4990 + $0x1f9] sm:$0xff]
  %v5094 = vld [vmem:[%s4990 + $0x201] sm:$0xff]
  %v5095 = vld [vmem:[%s4990 + $0x211] sm:$0xff]
  %v5096 = vld [vmem:[%s4990 + $0x219] sm:$0xff]
  %v5097 = vld [vmem:[%s4990 + $0x229] sm:$0xff]
  %v5098 = vld [vmem:[%s4990 + $0x231] sm:$0xff]
  %v5099 = vld [vmem:[%s4990 + $0x241] sm:$0xff]
  %v5100 = vld [vmem:[%s4990 + $0x249] sm:$0xff]
  %v5101 = vld [vmem:[%s4990 + $0x259] sm:$0xff]
  %v5102 = vld [vmem:[%s4990 + $0x261] sm:$0xff]
  %v5103 = vld [vmem:[%s4990 + $0x271] sm:$0xff]
  %v5104 = vld [vmem:[%s4990 + $0x279] sm:$0xff]
  %v5105 = vld [vmem:[%s4990 + $0x289] sm:$0xff]
  %v5106 = vld [vmem:[%s4990 + $0x291] sm:$0xff]
  %v5107 = vld [vmem:[%s4990 + $0x2a1] sm:$0xff]
  %v5108 = vld [vmem:[%s4990 + $0x2a9] sm:$0xff]
  %v5109 = vld [vmem:[%s4990 + $0x2b9] sm:$0xff]
  %v5110 = vld [vmem:[%s4990 + $0x2c1] sm:$0xff]
  %v5111 = vld [vmem:[%s4990 + $0x2d1] sm:$0xff]
  %v5112 = vld [vmem:[%s4990 + $0x2d9] sm:$0xff]
  %v5113 = vld [vmem:[%s4990 + $0x2e9] sm:$0xff]
  %v5114 = vld [vmem:[%s4990 + $0x2f1] sm:$0xff]
  %v5115 = vld [vmem:[%s4990 + $0x301] sm:$0xff]
  %v5116 = vld [vmem:[%s4990 + $0x309] sm:$0xff]
  %v5117 = vld [vmem:[%s4990 + $0x319] sm:$0xff]
  %v5118 = vld [vmem:[%s4990 + $0x321] sm:$0xff]
  %v5119 = vld [vmem:[%s4990 + $0x2] sm:$0xff]
  %v5120 = vld [vmem:[%s4990 + $0xa] sm:$0xff]
  %v5121 = vld [vmem:[%s4990 + $0x1a] sm:$0xff]
  %v5122 = vld [vmem:[%s4990 + $0x22] sm:$0xff]
  %v5123 = vld [vmem:[%s4990 + $0x32] sm:$0xff]
  %v5124 = vld [vmem:[%s4990 + $0x3a] sm:$0xff]
  %v5125 = vld [vmem:[%s4990 + $0x4a] sm:$0xff]
  %v5126 = vld [vmem:[%s4990 + $0x52] sm:$0xff]
  %v5127 = vld [vmem:[%s4990 + $0x62] sm:$0xff]
  %v5128 = vld [vmem:[%s4990 + $0x6a] sm:$0xff]
  %v5129 = vld [vmem:[%s4990 + $0x7a] sm:$0xff]
  %v5130 = vld [vmem:[%s4990 + $0x82] sm:$0xff]
  %v5131 = vld [vmem:[%s4990 + $0x92] sm:$0xff]
  %v5132 = vld [vmem:[%s4990 + $0x9a] sm:$0xff]
  %v5133 = vld [vmem:[%s4990 + $0xaa] sm:$0xff]
  %v5134 = vld [vmem:[%s4990 + $0xb2] sm:$0xff]
  %v5135 = vld [vmem:[%s4990 + $0xc2] sm:$0xff]
  %v5136 = vld [vmem:[%s4990 + $0xca] sm:$0xff]
  %v5137 = vld [vmem:[%s4990 + $0xda] sm:$0xff]
  %v5138 = vld [vmem:[%s4990 + $0xe2] sm:$0xff]
  %v5139 = vld [vmem:[%s4990 + $0xf2] sm:$0xff]
  %v5140 = vld [vmem:[%s4990 + $0xfa] sm:$0xff]
  %v5141 = vld [vmem:[%s4990 + $0x10a] sm:$0xff]
  %v5142 = vld [vmem:[%s4990 + $0x112] sm:$0xff]
  %v5143 = vld [vmem:[%s4990 + $0x122] sm:$0xff]
  %v5144 = vld [vmem:[%s4990 + $0x12a] sm:$0xff]
  %v5145 = vld [vmem:[%s4990 + $0x13a] sm:$0xff]
  %v5146 = vld [vmem:[%s4990 + $0x142] sm:$0xff]
  %v5147 = vld [vmem:[%s4990 + $0x152] sm:$0xff]
  %v5148 = vld [vmem:[%s4990 + $0x15a] sm:$0xff]
  %v5149 = vld [vmem:[%s4990 + $0x16a] sm:$0xff]
  %v5150 = vld [vmem:[%s4990 + $0x172] sm:$0xff]
  %v5151 = vld [vmem:[%s4990 + $0x1b2] sm:$0xff]
  %v5152 = vld [vmem:[%s4990 + $0x1ba] sm:$0xff]
  %v5153 = vld [vmem:[%s4990 + $0x1ca] sm:$0xff]
  %v5154 = vld [vmem:[%s4990 + $0x1d2] sm:$0xff]
  %v5155 = vld [vmem:[%s4990 + $0x1e2] sm:$0xff]
  %v5156 = vld [vmem:[%s4990 + $0x1ea] sm:$0xff]
  %v5157 = vld [vmem:[%s4990 + $0x1fa] sm:$0xff]
  %v5158 = vld [vmem:[%s4990 + $0x202] sm:$0xff]
  %v5159 = vld [vmem:[%s4990 + $0x212] sm:$0xff]
  %v5160 = vld [vmem:[%s4990 + $0x21a] sm:$0xff]
  %v5161 = vld [vmem:[%s4990 + $0x22a] sm:$0xff]
  %v5162 = vld [vmem:[%s4990 + $0x232] sm:$0xff]
  %v5163 = vld [vmem:[%s4990 + $0x242] sm:$0xff]
  %v5164 = vld [vmem:[%s4990 + $0x24a] sm:$0xff]
  %v5165 = vld [vmem:[%s4990 + $0x25a] sm:$0xff]
  %v5166 = vld [vmem:[%s4990 + $0x262] sm:$0xff]
  %v5167 = vld [vmem:[%s4990 + $0x272] sm:$0xff]
  %v5168 = vld [vmem:[%s4990 + $0x27a] sm:$0xff]
  %v5169 = vld [vmem:[%s4990 + $0x28a] sm:$0xff]
  %v5170 = vld [vmem:[%s4990 + $0x292] sm:$0xff]
  %v5171 = vld [vmem:[%s4990 + $0x2a2] sm:$0xff]
  %v5172 = vld [vmem:[%s4990 + $0x2aa] sm:$0xff]
  %v5173 = vld [vmem:[%s4990 + $0x2ba] sm:$0xff]
  %v5174 = vld [vmem:[%s4990 + $0x2c2] sm:$0xff]
  %v5175 = vld [vmem:[%s4990 + $0x2d2] sm:$0xff]
  %v5176 = vld [vmem:[%s4990 + $0x2da] sm:$0xff]
  %v5177 = vld [vmem:[%s4990 + $0x2ea] sm:$0xff]
  %v5178 = vld [vmem:[%s4990 + $0x2f2] sm:$0xff]
  %v5179 = vld [vmem:[%s4990 + $0x302] sm:$0xff]
  %v5180 = vld [vmem:[%s4990 + $0x30a] sm:$0xff]
  %v5181 = vld [vmem:[%s4990 + $0x31a] sm:$0xff]
  %v5182 = vld [vmem:[%s4990 + $0x322] sm:$0xff]
  %5247 = vrot.lane.b32.xlu0 %v4670, 8
  %v5248 = vpop.permute.xlu0 %5247
  %5249 = vrot.lane.b32.xlu0 %v4671, 8
  %v5250 = vpop.permute.xlu0 %5249
  %5251 = vrot.lane.b32.xlu0 %v4672, 8
  %v5252 = vpop.permute.xlu0 %5251
  %5253 = vrot.lane.b32.xlu0 %v4673, 8
  %v5254 = vpop.permute.xlu0 %5253
  %5255 = vrot.lane.b32.xlu0 %v4674, 8
  %v5256 = vpop.permute.xlu0 %5255
  %5257 = vrot.lane.b32.xlu0 %v4675, 8
  %v5258 = vpop.permute.xlu0 %5257
  %5259 = vrot.lane.b32.xlu0 %v4676, 8
  %v5260 = vpop.permute.xlu0 %5259
  %5261 = vrot.lane.b32.xlu0 %v4677, 8
  %v5262 = vpop.permute.xlu0 %5261
  %5263 = vrot.lane.b32.xlu0 %v4678, 8
  %v5264 = vpop.permute.xlu0 %5263
  %5265 = vrot.lane.b32.xlu0 %v4679, 8
  %v5266 = vpop.permute.xlu0 %5265
  %5267 = vrot.lane.b32.xlu0 %v4680, 8
  %v5268 = vpop.permute.xlu0 %5267
  %5269 = vrot.lane.b32.xlu0 %v4681, 8
  %v5270 = vpop.permute.xlu0 %5269
  %5271 = vrot.lane.b32.xlu0 %v4682, 8
  %v5272 = vpop.permute.xlu0 %5271
  %5273 = vrot.lane.b32.xlu0 %v4683, 8
  %v5274 = vpop.permute.xlu0 %5273
  %5275 = vrot.lane.b32.xlu0 %v4684, 8
  %v5276 = vpop.permute.xlu0 %5275
  %5277 = vrot.lane.b32.xlu0 %v4685, 8
  %v5278 = vpop.permute.xlu0 %5277
  %5279 = vrot.lane.b32.xlu0 %v4686, 8
  %v5280 = vpop.permute.xlu0 %5279
  %5281 = vrot.lane.b32.xlu0 %v4687, 8
  %v5282 = vpop.permute.xlu0 %5281
  %5283 = vrot.lane.b32.xlu0 %v4688, 8
  %v5284 = vpop.permute.xlu0 %5283
  %5285 = vrot.lane.b32.xlu0 %v4689, 8
  %v5286 = vpop.permute.xlu0 %5285
  %5287 = vrot.lane.b32.xlu0 %v4690, 8
  %v5288 = vpop.permute.xlu0 %5287
  %5289 = vrot.lane.b32.xlu0 %v4691, 8
  %v5290 = vpop.permute.xlu0 %5289
  %5291 = vrot.lane.b32.xlu0 %v4692, 8
  %v5292 = vpop.permute.xlu0 %5291
  %5293 = vrot.lane.b32.xlu0 %v4693, 8
  %v5294 = vpop.permute.xlu0 %5293
  %5295 = vrot.lane.b32.xlu0 %v4694, 8
  %v5296 = vpop.permute.xlu0 %5295
  %5297 = vrot.lane.b32.xlu0 %v4695, 8
  %v5298 = vpop.permute.xlu0 %5297
  %5299 = vrot.lane.b32.xlu0 %v4696, 8
  %v5300 = vpop.permute.xlu0 %5299
  %5301 = vrot.lane.b32.xlu0 %v4697, 8
  %v5302 = vpop.permute.xlu0 %5301
  %5303 = vrot.lane.b32.xlu0 %v4698, 8
  %v5304 = vpop.permute.xlu0 %5303
  %5305 = vrot.lane.b32.xlu0 %v4699, 8
  %v5306 = vpop.permute.xlu0 %5305
  %5307 = vrot.lane.b32.xlu0 %v4700, 8
  %v5308 = vpop.permute.xlu0 %5307
  %5309 = vrot.lane.b32.xlu0 %v4701, 8
  %v5310 = vpop.permute.xlu0 %5309
  %5311 = vrot.lane.b32.xlu0 %v4702, 8
  %v5312 = vpop.permute.xlu0 %5311
  %5313 = vrot.lane.b32.xlu0 %v4703, 8
  %v5314 = vpop.permute.xlu0 %5313
  %5315 = vrot.lane.b32.xlu0 %v4704, 8
  %v5316 = vpop.permute.xlu0 %5315
  %5317 = vrot.lane.b32.xlu0 %v4705, 8
  %v5318 = vpop.permute.xlu0 %5317
  %5319 = vrot.lane.b32.xlu0 %v4706, 8
  %v5320 = vpop.permute.xlu0 %5319
  %5321 = vrot.lane.b32.xlu0 %v4707, 8
  %v5322 = vpop.permute.xlu0 %5321
  %5323 = vrot.lane.b32.xlu0 %v4708, 8
  %v5324 = vpop.permute.xlu0 %5323
  %5325 = vrot.lane.b32.xlu0 %v4709, 8
  %v5326 = vpop.permute.xlu0 %5325
  %5327 = vrot.lane.b32.xlu0 %v4710, 8
  %v5328 = vpop.permute.xlu0 %5327
  %5329 = vrot.lane.b32.xlu0 %v4711, 8
  %v5330 = vpop.permute.xlu0 %5329
  %5331 = vrot.lane.b32.xlu0 %v4712, 8
  %v5332 = vpop.permute.xlu0 %5331
  %5333 = vrot.lane.b32.xlu0 %v4713, 8
  %v5334 = vpop.permute.xlu0 %5333
  %5335 = vrot.lane.b32.xlu0 %v4714, 8
  %v5336 = vpop.permute.xlu0 %5335
  %5337 = vrot.lane.b32.xlu0 %v4715, 8
  %v5338 = vpop.permute.xlu0 %5337
  %5339 = vrot.lane.b32.xlu0 %v4716, 8
  %v5340 = vpop.permute.xlu0 %5339
  %5341 = vrot.lane.b32.xlu0 %v4717, 8
  %v5342 = vpop.permute.xlu0 %5341
  %5343 = vrot.lane.b32.xlu0 %v4718, 8
  %v5344 = vpop.permute.xlu0 %5343
  %5345 = vrot.lane.b32.xlu0 %v4719, 8
  %v5346 = vpop.permute.xlu0 %5345
  %5347 = vrot.lane.b32.xlu0 %v4720, 8
  %v5348 = vpop.permute.xlu0 %5347
  %5349 = vrot.lane.b32.xlu0 %v4721, 8
  %v5350 = vpop.permute.xlu0 %5349
  %5351 = vrot.lane.b32.xlu0 %v4722, 8
  %v5352 = vpop.permute.xlu0 %5351
  %5353 = vrot.lane.b32.xlu0 %v4723, 8
  %v5354 = vpop.permute.xlu0 %5353
  %5355 = vrot.lane.b32.xlu0 %v4724, 8
  %v5356 = vpop.permute.xlu0 %5355
  %5357 = vrot.lane.b32.xlu0 %v4725, 8
  %v5358 = vpop.permute.xlu0 %5357
  %5359 = vrot.lane.b32.xlu0 %v4726, 8
  %v5360 = vpop.permute.xlu0 %5359
  %5361 = vrot.lane.b32.xlu0 %v4727, 8
  %v5362 = vpop.permute.xlu0 %5361
  %5363 = vrot.lane.b32.xlu0 %v4728, 8
  %v5364 = vpop.permute.xlu0 %5363
  %5365 = vrot.lane.b32.xlu0 %v4729, 8
  %v5366 = vpop.permute.xlu0 %5365
  %5367 = vrot.lane.b32.xlu0 %v4730, 8
  %v5368 = vpop.permute.xlu0 %5367
  %5369 = vrot.lane.b32.xlu0 %v4731, 8
  %v5370 = vpop.permute.xlu0 %5369
  %5371 = vrot.lane.b32.xlu0 %v4732, 8
  %v5372 = vpop.permute.xlu0 %5371
  %5373 = vrot.lane.b32.xlu0 %v4733, 8
  %v5374 = vpop.permute.xlu0 %5373
  %5503 = vrot.lane.b32.xlu0 %v4734, 16
  %v5504 = vpop.permute.xlu0 %5503
  %5505 = vrot.lane.b32.xlu0 %v4735, 16
  %v5506 = vpop.permute.xlu0 %5505
  %5507 = vrot.lane.b32.xlu0 %v4736, 16
  %v5508 = vpop.permute.xlu0 %5507
  %5509 = vrot.lane.b32.xlu0 %v4737, 16
  %v5510 = vpop.permute.xlu0 %5509
  %5511 = vrot.lane.b32.xlu0 %v4738, 16
  %v5512 = vpop.permute.xlu0 %5511
  %5513 = vrot.lane.b32.xlu0 %v4739, 16
  %v5514 = vpop.permute.xlu0 %5513
  %5515 = vrot.lane.b32.xlu0 %v4740, 16
  %v5516 = vpop.permute.xlu0 %5515
  %5517 = vrot.lane.b32.xlu0 %v4741, 16
  %v5518 = vpop.permute.xlu0 %5517
  %5519 = vrot.lane.b32.xlu0 %v4742, 16
  %v5520 = vpop.permute.xlu0 %5519
  %5521 = vrot.lane.b32.xlu0 %v4743, 16
  %v5522 = vpop.permute.xlu0 %5521
  %5523 = vrot.lane.b32.xlu0 %v4744, 16
  %v5524 = vpop.permute.xlu0 %5523
  %5525 = vrot.lane.b32.xlu0 %v4745, 16
  %v5526 = vpop.permute.xlu0 %5525
  %5527 = vrot.lane.b32.xlu0 %v4746, 16
  %v5528 = vpop.permute.xlu0 %5527
  %5529 = vrot.lane.b32.xlu0 %v4747, 16
  %v5530 = vpop.permute.xlu0 %5529
  %5531 = vrot.lane.b32.xlu0 %v4748, 16
  %v5532 = vpop.permute.xlu0 %5531
  %5533 = vrot.lane.b32.xlu0 %v4749, 16
  %v5534 = vpop.permute.xlu0 %5533
  %5535 = vrot.lane.b32.xlu0 %v4750, 16
  %v5536 = vpop.permute.xlu0 %5535
  %5537 = vrot.lane.b32.xlu0 %v4751, 16
  %v5538 = vpop.permute.xlu0 %5537
  %5539 = vrot.lane.b32.xlu0 %v4752, 16
  %v5540 = vpop.permute.xlu0 %5539
  %5541 = vrot.lane.b32.xlu0 %v4753, 16
  %v5542 = vpop.permute.xlu0 %5541
  %5543 = vrot.lane.b32.xlu0 %v4754, 16
  %v5544 = vpop.permute.xlu0 %5543
  %5545 = vrot.lane.b32.xlu0 %v4755, 16
  %v5546 = vpop.permute.xlu0 %5545
  %5547 = vrot.lane.b32.xlu0 %v4756, 16
  %v5548 = vpop.permute.xlu0 %5547
  %5549 = vrot.lane.b32.xlu0 %v4757, 16
  %v5550 = vpop.permute.xlu0 %5549
  %5551 = vrot.lane.b32.xlu0 %v4758, 16
  %v5552 = vpop.permute.xlu0 %5551
  %5553 = vrot.lane.b32.xlu0 %v4759, 16
  %v5554 = vpop.permute.xlu0 %5553
  %5555 = vrot.lane.b32.xlu0 %v4760, 16
  %v5556 = vpop.permute.xlu0 %5555
  %5557 = vrot.lane.b32.xlu0 %v4761, 16
  %v5558 = vpop.permute.xlu0 %5557
  %5559 = vrot.lane.b32.xlu0 %v4762, 16
  %v5560 = vpop.permute.xlu0 %5559
  %5561 = vrot.lane.b32.xlu0 %v4763, 16
  %v5562 = vpop.permute.xlu0 %5561
  %5563 = vrot.lane.b32.xlu0 %v4764, 16
  %v5564 = vpop.permute.xlu0 %5563
  %5565 = vrot.lane.b32.xlu0 %v4765, 16
  %v5566 = vpop.permute.xlu0 %5565
  %5567 = vrot.lane.b32.xlu0 %v4766, 16
  %v5568 = vpop.permute.xlu0 %5567
  %5569 = vrot.lane.b32.xlu0 %v4767, 16
  %v5570 = vpop.permute.xlu0 %5569
  %5571 = vrot.lane.b32.xlu0 %v4768, 16
  %v5572 = vpop.permute.xlu0 %5571
  %5573 = vrot.lane.b32.xlu0 %v4769, 16
  %v5574 = vpop.permute.xlu0 %5573
  %5575 = vrot.lane.b32.xlu0 %v4770, 16
  %v5576 = vpop.permute.xlu0 %5575
  %5577 = vrot.lane.b32.xlu0 %v4771, 16
  %v5578 = vpop.permute.xlu0 %5577
  %5579 = vrot.lane.b32.xlu0 %v4772, 16
  %v5580 = vpop.permute.xlu0 %5579
  %5581 = vrot.lane.b32.xlu0 %v4773, 16
  %v5582 = vpop.permute.xlu0 %5581
  %5583 = vrot.lane.b32.xlu0 %v4774, 16
  %v5584 = vpop.permute.xlu0 %5583
  %5585 = vrot.lane.b32.xlu0 %v4775, 16
  %v5586 = vpop.permute.xlu0 %5585
  %5587 = vrot.lane.b32.xlu0 %v4776, 16
  %v5588 = vpop.permute.xlu0 %5587
  %5589 = vrot.lane.b32.xlu0 %v4777, 16
  %v5590 = vpop.permute.xlu0 %5589
  %5591 = vrot.lane.b32.xlu0 %v4778, 16
  %v5592 = vpop.permute.xlu0 %5591
  %5593 = vrot.lane.b32.xlu0 %v4779, 16
  %v5594 = vpop.permute.xlu0 %5593
  %5595 = vrot.lane.b32.xlu0 %v4780, 16
  %v5596 = vpop.permute.xlu0 %5595
  %5597 = vrot.lane.b32.xlu0 %v4781, 16
  %v5598 = vpop.permute.xlu0 %5597
  %5599 = vrot.lane.b32.xlu0 %v4782, 16
  %v5600 = vpop.permute.xlu0 %5599
  %5601 = vrot.lane.b32.xlu0 %v4783, 16
  %v5602 = vpop.permute.xlu0 %5601
  %5603 = vrot.lane.b32.xlu0 %v4784, 16
  %v5604 = vpop.permute.xlu0 %5603
  %5605 = vrot.lane.b32.xlu0 %v4785, 16
  %v5606 = vpop.permute.xlu0 %5605
  %5607 = vrot.lane.b32.xlu0 %v4786, 16
  %v5608 = vpop.permute.xlu0 %5607
  %5609 = vrot.lane.b32.xlu0 %v4787, 16
  %v5610 = vpop.permute.xlu0 %5609
  %5611 = vrot.lane.b32.xlu0 %v4788, 16
  %v5612 = vpop.permute.xlu0 %5611
  %5613 = vrot.lane.b32.xlu0 %v4789, 16
  %v5614 = vpop.permute.xlu0 %5613
  %5615 = vrot.lane.b32.xlu0 %v4790, 16
  %v5616 = vpop.permute.xlu0 %5615
  %5617 = vrot.lane.b32.xlu0 %v4791, 16
  %v5618 = vpop.permute.xlu0 %5617
  %5619 = vrot.lane.b32.xlu0 %v4792, 16
  %v5620 = vpop.permute.xlu0 %5619
  %5621 = vrot.lane.b32.xlu0 %v4793, 16
  %v5622 = vpop.permute.xlu0 %5621
  %5623 = vrot.lane.b32.xlu0 %v4794, 16
  %v5624 = vpop.permute.xlu0 %5623
  %5625 = vrot.lane.b32.xlu0 %v4795, 16
  %v5626 = vpop.permute.xlu0 %5625
  %5627 = vrot.lane.b32.xlu0 %v4796, 16
  %v5628 = vpop.permute.xlu0 %5627
  %5629 = vrot.lane.b32.xlu0 %v4797, 16
  %v5630 = vpop.permute.xlu0 %5629
  %5759 = vrot.lane.b32.xlu0 %v4798, 24
  %v5760 = vpop.permute.xlu0 %5759
  %5761 = vrot.lane.b32.xlu0 %v4799, 24
  %v5762 = vpop.permute.xlu0 %5761
  %5763 = vrot.lane.b32.xlu0 %v4800, 24
  %v5764 = vpop.permute.xlu0 %5763
  %5765 = vrot.lane.b32.xlu0 %v4801, 24
  %v5766 = vpop.permute.xlu0 %5765
  %5767 = vrot.lane.b32.xlu0 %v4802, 24
  %v5768 = vpop.permute.xlu0 %5767
  %5769 = vrot.lane.b32.xlu0 %v4803, 24
  %v5770 = vpop.permute.xlu0 %5769
  %5771 = vrot.lane.b32.xlu0 %v4804, 24
  %v5772 = vpop.permute.xlu0 %5771
  %5773 = vrot.lane.b32.xlu0 %v4805, 24
  %v5774 = vpop.permute.xlu0 %5773
  %5775 = vrot.lane.b32.xlu0 %v4806, 24
  %v5776 = vpop.permute.xlu0 %5775
  %5777 = vrot.lane.b32.xlu0 %v4807, 24
  %v5778 = vpop.permute.xlu0 %5777
  %5779 = vrot.lane.b32.xlu0 %v4808, 24
  %v5780 = vpop.permute.xlu0 %5779
  %5781 = vrot.lane.b32.xlu0 %v4809, 24
  %v5782 = vpop.permute.xlu0 %5781
  %5783 = vrot.lane.b32.xlu0 %v4810, 24
  %v5784 = vpop.permute.xlu0 %5783
  %5785 = vrot.lane.b32.xlu0 %v4811, 24
  %v5786 = vpop.permute.xlu0 %5785
  %5787 = vrot.lane.b32.xlu0 %v4812, 24
  %v5788 = vpop.permute.xlu0 %5787
  %5789 = vrot.lane.b32.xlu0 %v4813, 24
  %v5790 = vpop.permute.xlu0 %5789
  %5791 = vrot.lane.b32.xlu0 %v4814, 24
  %v5792 = vpop.permute.xlu0 %5791
  %5793 = vrot.lane.b32.xlu0 %v4815, 24
  %v5794 = vpop.permute.xlu0 %5793
  %5795 = vrot.lane.b32.xlu0 %v4816, 24
  %v5796 = vpop.permute.xlu0 %5795
  %5797 = vrot.lane.b32.xlu0 %v4817, 24
  %v5798 = vpop.permute.xlu0 %5797
  %5799 = vrot.lane.b32.xlu0 %v4818, 24
  %v5800 = vpop.permute.xlu0 %5799
  %5801 = vrot.lane.b32.xlu0 %v4819, 24
  %v5802 = vpop.permute.xlu0 %5801
  %5803 = vrot.lane.b32.xlu0 %v4820, 24
  %v5804 = vpop.permute.xlu0 %5803
  %5805 = vrot.lane.b32.xlu0 %v4821, 24
  %v5806 = vpop.permute.xlu0 %5805
  %5807 = vrot.lane.b32.xlu0 %v4822, 24
  %v5808 = vpop.permute.xlu0 %5807
  %5809 = vrot.lane.b32.xlu0 %v4823, 24
  %v5810 = vpop.permute.xlu0 %5809
  %5811 = vrot.lane.b32.xlu0 %v4824, 24
  %v5812 = vpop.permute.xlu0 %5811
  %5813 = vrot.lane.b32.xlu0 %v4825, 24
  %v5814 = vpop.permute.xlu0 %5813
  %5815 = vrot.lane.b32.xlu0 %v4826, 24
  %v5816 = vpop.permute.xlu0 %5815
  %5817 = vrot.lane.b32.xlu0 %v4827, 24
  %v5818 = vpop.permute.xlu0 %5817
  %5819 = vrot.lane.b32.xlu0 %v4828, 24
  %v5820 = vpop.permute.xlu0 %5819
  %5821 = vrot.lane.b32.xlu0 %v4829, 24
  %v5822 = vpop.permute.xlu0 %5821
  %5823 = vrot.lane.b32.xlu0 %v4830, 24
  %v5824 = vpop.permute.xlu0 %5823
  %5825 = vrot.lane.b32.xlu0 %v4831, 24
  %v5826 = vpop.permute.xlu0 %5825
  %5827 = vrot.lane.b32.xlu0 %v4832, 24
  %v5828 = vpop.permute.xlu0 %5827
  %5829 = vrot.lane.b32.xlu0 %v4833, 24
  %v5830 = vpop.permute.xlu0 %5829
  %5831 = vrot.lane.b32.xlu0 %v4834, 24
  %v5832 = vpop.permute.xlu0 %5831
  %5833 = vrot.lane.b32.xlu0 %v4835, 24
  %v5834 = vpop.permute.xlu0 %5833
  %5835 = vrot.lane.b32.xlu0 %v4836, 24
  %v5836 = vpop.permute.xlu0 %5835
  %5837 = vrot.lane.b32.xlu0 %v4837, 24
  %v5838 = vpop.permute.xlu0 %5837
  %5839 = vrot.lane.b32.xlu0 %v4838, 24
  %v5840 = vpop.permute.xlu0 %5839
  %5841 = vrot.lane.b32.xlu0 %v4839, 24
  %v5842 = vpop.permute.xlu0 %5841
  %5843 = vrot.lane.b32.xlu0 %v4840, 24
  %v5844 = vpop.permute.xlu0 %5843
  %5845 = vrot.lane.b32.xlu0 %v4841, 24
  %v5846 = vpop.permute.xlu0 %5845
  %5847 = vrot.lane.b32.xlu0 %v4842, 24
  %v5848 = vpop.permute.xlu0 %5847
  %5849 = vrot.lane.b32.xlu0 %v4843, 24
  %v5850 = vpop.permute.xlu0 %5849
  %5851 = vrot.lane.b32.xlu0 %v4844, 24
  %v5852 = vpop.permute.xlu0 %5851
  %5853 = vrot.lane.b32.xlu0 %v4845, 24
  %v5854 = vpop.permute.xlu0 %5853
  %5855 = vrot.lane.b32.xlu0 %v4846, 24
  %v5856 = vpop.permute.xlu0 %5855
  %5857 = vrot.lane.b32.xlu0 %v4847, 24
  %v5858 = vpop.permute.xlu0 %5857
  %5859 = vrot.lane.b32.xlu0 %v4848, 24
  %v5860 = vpop.permute.xlu0 %5859
  %5861 = vrot.lane.b32.xlu0 %v4849, 24
  %v5862 = vpop.permute.xlu0 %5861
  %5863 = vrot.lane.b32.xlu0 %v4850, 24
  %v5864 = vpop.permute.xlu0 %5863
  %5865 = vrot.lane.b32.xlu0 %v4851, 24
  %v5866 = vpop.permute.xlu0 %5865
  %5867 = vrot.lane.b32.xlu0 %v4852, 24
  %v5868 = vpop.permute.xlu0 %5867
  %5869 = vrot.lane.b32.xlu0 %v4853, 24
  %v5870 = vpop.permute.xlu0 %5869
  %5871 = vrot.lane.b32.xlu0 %v4854, 24
  %v5872 = vpop.permute.xlu0 %5871
  %5873 = vrot.lane.b32.xlu0 %v4855, 24
  %v5874 = vpop.permute.xlu0 %5873
  %5875 = vrot.lane.b32.xlu0 %v4856, 24
  %v5876 = vpop.permute.xlu0 %5875
  %5877 = vrot.lane.b32.xlu0 %v4857, 24
  %v5878 = vpop.permute.xlu0 %5877
  %5879 = vrot.lane.b32.xlu0 %v4858, 24
  %v5880 = vpop.permute.xlu0 %5879
  %5881 = vrot.lane.b32.xlu0 %v4859, 24
  %v5882 = vpop.permute.xlu0 %5881
  %5883 = vrot.lane.b32.xlu0 %v4860, 24
  %v5884 = vpop.permute.xlu0 %5883
  %5885 = vrot.lane.b32.xlu0 %v4861, 24
  %v5886 = vpop.permute.xlu0 %5885
  %6015 = vrot.lane.b32.xlu0 %v4862, 32
  %v6016 = vpop.permute.xlu0 %6015
  %6017 = vrot.lane.b32.xlu0 %v4863, 32
  %v6018 = vpop.permute.xlu0 %6017
  %6019 = vrot.lane.b32.xlu0 %v4864, 32
  %v6020 = vpop.permute.xlu0 %6019
  %6021 = vrot.lane.b32.xlu0 %v4865, 32
  %v6022 = vpop.permute.xlu0 %6021
  %6023 = vrot.lane.b32.xlu0 %v4866, 32
  %v6024 = vpop.permute.xlu0 %6023
  %6025 = vrot.lane.b32.xlu0 %v4867, 32
  %v6026 = vpop.permute.xlu0 %6025
  %6027 = vrot.lane.b32.xlu0 %v4868, 32
  %v6028 = vpop.permute.xlu0 %6027
  %6029 = vrot.lane.b32.xlu0 %v4869, 32
  %v6030 = vpop.permute.xlu0 %6029
  %6031 = vrot.lane.b32.xlu0 %v4870, 32
  %v6032 = vpop.permute.xlu0 %6031
  %6033 = vrot.lane.b32.xlu0 %v4871, 32
  %v6034 = vpop.permute.xlu0 %6033
  %6035 = vrot.lane.b32.xlu0 %v4872, 32
  %v6036 = vpop.permute.xlu0 %6035
  %6037 = vrot.lane.b32.xlu0 %v4873, 32
  %v6038 = vpop.permute.xlu0 %6037
  %6039 = vrot.lane.b32.xlu0 %v4874, 32
  %v6040 = vpop.permute.xlu0 %6039
  %6041 = vrot.lane.b32.xlu0 %v4875, 32
  %v6042 = vpop.permute.xlu0 %6041
  %6043 = vrot.lane.b32.xlu0 %v4876, 32
  %v6044 = vpop.permute.xlu0 %6043
  %6045 = vrot.lane.b32.xlu0 %v4877, 32
  %v6046 = vpop.permute.xlu0 %6045
  %6047 = vrot.lane.b32.xlu0 %v4878, 32
  %v6048 = vpop.permute.xlu0 %6047
  %6049 = vrot.lane.b32.xlu0 %v4879, 32
  %v6050 = vpop.permute.xlu0 %6049
  %6051 = vrot.lane.b32.xlu0 %v4880, 32
  %v6052 = vpop.permute.xlu0 %6051
  %6053 = vrot.lane.b32.xlu0 %v4881, 32
  %v6054 = vpop.permute.xlu0 %6053
  %6055 = vrot.lane.b32.xlu0 %v4882, 32
  %v6056 = vpop.permute.xlu0 %6055
  %6057 = vrot.lane.b32.xlu0 %v4883, 32
  %v6058 = vpop.permute.xlu0 %6057
  %6059 = vrot.lane.b32.xlu0 %v4884, 32
  %v6060 = vpop.permute.xlu0 %6059
  %6061 = vrot.lane.b32.xlu0 %v4885, 32
  %v6062 = vpop.permute.xlu0 %6061
  %6063 = vrot.lane.b32.xlu0 %v4886, 32
  %v6064 = vpop.permute.xlu0 %6063
  %6065 = vrot.lane.b32.xlu0 %v4887, 32
  %v6066 = vpop.permute.xlu0 %6065
  %6067 = vrot.lane.b32.xlu0 %v4888, 32
  %v6068 = vpop.permute.xlu0 %6067
  %6069 = vrot.lane.b32.xlu0 %v4889, 32
  %v6070 = vpop.permute.xlu0 %6069
  %6071 = vrot.lane.b32.xlu0 %v4890, 32
  %v6072 = vpop.permute.xlu0 %6071
  %6073 = vrot.lane.b32.xlu0 %v4891, 32
  %v6074 = vpop.permute.xlu0 %6073
  %6075 = vrot.lane.b32.xlu0 %v4892, 32
  %v6076 = vpop.permute.xlu0 %6075
  %6077 = vrot.lane.b32.xlu0 %v4893, 32
  %v6078 = vpop.permute.xlu0 %6077
  %6079 = vrot.lane.b32.xlu0 %v4894, 32
  %v6080 = vpop.permute.xlu0 %6079
  %6081 = vrot.lane.b32.xlu0 %v4895, 32
  %v6082 = vpop.permute.xlu0 %6081
  %6083 = vrot.lane.b32.xlu0 %v4896, 32
  %v6084 = vpop.permute.xlu0 %6083
  %6085 = vrot.lane.b32.xlu0 %v4897, 32
  %v6086 = vpop.permute.xlu0 %6085
  %6087 = vrot.lane.b32.xlu0 %v4898, 32
  %v6088 = vpop.permute.xlu0 %6087
  %6089 = vrot.lane.b32.xlu0 %v4899, 32
  %v6090 = vpop.permute.xlu0 %6089
  %6091 = vrot.lane.b32.xlu0 %v4900, 32
  %v6092 = vpop.permute.xlu0 %6091
  %6093 = vrot.lane.b32.xlu0 %v4901, 32
  %v6094 = vpop.permute.xlu0 %6093
  %6095 = vrot.lane.b32.xlu0 %v4902, 32
  %v6096 = vpop.permute.xlu0 %6095
  %6097 = vrot.lane.b32.xlu0 %v4903, 32
  %v6098 = vpop.permute.xlu0 %6097
  %6099 = vrot.lane.b32.xlu0 %v4904, 32
  %v6100 = vpop.permute.xlu0 %6099
  %6101 = vrot.lane.b32.xlu0 %v4905, 32
  %v6102 = vpop.permute.xlu0 %6101
  %6103 = vrot.lane.b32.xlu0 %v4906, 32
  %v6104 = vpop.permute.xlu0 %6103
  %6105 = vrot.lane.b32.xlu0 %v4907, 32
  %v6106 = vpop.permute.xlu0 %6105
  %6107 = vrot.lane.b32.xlu0 %v4908, 32
  %v6108 = vpop.permute.xlu0 %6107
  %6109 = vrot.lane.b32.xlu0 %v4909, 32
  %v6110 = vpop.permute.xlu0 %6109
  %6111 = vrot.lane.b32.xlu0 %v4910, 32
  %v6112 = vpop.permute.xlu0 %6111
  %6113 = vrot.lane.b32.xlu0 %v4911, 32
  %v6114 = vpop.permute.xlu0 %6113
  %6115 = vrot.lane.b32.xlu0 %v4912, 32
  %v6116 = vpop.permute.xlu0 %6115
  %6117 = vrot.lane.b32.xlu0 %v4913, 32
  %v6118 = vpop.permute.xlu0 %6117
  %6119 = vrot.lane.b32.xlu0 %v4914, 32
  %v6120 = vpop.permute.xlu0 %6119
  %6121 = vrot.lane.b32.xlu0 %v4915, 32
  %v6122 = vpop.permute.xlu0 %6121
  %6123 = vrot.lane.b32.xlu0 %v4916, 32
  %v6124 = vpop.permute.xlu0 %6123
  %6125 = vrot.lane.b32.xlu0 %v4917, 32
  %v6126 = vpop.permute.xlu0 %6125
  %6127 = vrot.lane.b32.xlu0 %v4918, 32
  %v6128 = vpop.permute.xlu0 %6127
  %6129 = vrot.lane.b32.xlu0 %v4919, 32
  %v6130 = vpop.permute.xlu0 %6129
  %6131 = vrot.lane.b32.xlu0 %v4920, 32
  %v6132 = vpop.permute.xlu0 %6131
  %6133 = vrot.lane.b32.xlu0 %v4921, 32
  %v6134 = vpop.permute.xlu0 %6133
  %6135 = vrot.lane.b32.xlu0 %v4922, 32
  %v6136 = vpop.permute.xlu0 %6135
  %6137 = vrot.lane.b32.xlu0 %v4923, 32
  %v6138 = vpop.permute.xlu0 %6137
  %6139 = vrot.lane.b32.xlu0 %v4924, 32
  %v6140 = vpop.permute.xlu0 %6139
  %6141 = vrot.lane.b32.xlu0 %v4925, 32
  %v6142 = vpop.permute.xlu0 %6141
  %6271 = vrot.lane.b32.xlu0 %v4926, 40
  %v6272 = vpop.permute.xlu0 %6271
  %6273 = vrot.lane.b32.xlu0 %v4927, 40
  %v6274 = vpop.permute.xlu0 %6273
  %6275 = vrot.lane.b32.xlu0 %v4928, 40
  %v6276 = vpop.permute.xlu0 %6275
  %6277 = vrot.lane.b32.xlu0 %v4929, 40
  %v6278 = vpop.permute.xlu0 %6277
  %6279 = vrot.lane.b32.xlu0 %v4930, 40
  %v6280 = vpop.permute.xlu0 %6279
  %6281 = vrot.lane.b32.xlu0 %v4931, 40
  %v6282 = vpop.permute.xlu0 %6281
  %6283 = vrot.lane.b32.xlu0 %v4932, 40
  %v6284 = vpop.permute.xlu0 %6283
  %6285 = vrot.lane.b32.xlu0 %v4933, 40
  %v6286 = vpop.permute.xlu0 %6285
  %6287 = vrot.lane.b32.xlu0 %v4934, 40
  %v6288 = vpop.permute.xlu0 %6287
  %6289 = vrot.lane.b32.xlu0 %v4935, 40
  %v6290 = vpop.permute.xlu0 %6289
  %6291 = vrot.lane.b32.xlu0 %v4936, 40
  %v6292 = vpop.permute.xlu0 %6291
  %6293 = vrot.lane.b32.xlu0 %v4937, 40
  %v6294 = vpop.permute.xlu0 %6293
  %6295 = vrot.lane.b32.xlu0 %v4938, 40
  %v6296 = vpop.permute.xlu0 %6295
  %6297 = vrot.lane.b32.xlu0 %v4939, 40
  %v6298 = vpop.permute.xlu0 %6297
  %6299 = vrot.lane.b32.xlu0 %v4940, 40
  %v6300 = vpop.permute.xlu0 %6299
  %6301 = vrot.lane.b32.xlu0 %v4941, 40
  %v6302 = vpop.permute.xlu0 %6301
  %6303 = vrot.lane.b32.xlu0 %v4942, 40
  %v6304 = vpop.permute.xlu0 %6303
  %6305 = vrot.lane.b32.xlu0 %v4943, 40
  %v6306 = vpop.permute.xlu0 %6305
  %6307 = vrot.lane.b32.xlu0 %v4944, 40
  %v6308 = vpop.permute.xlu0 %6307
  %6309 = vrot.lane.b32.xlu0 %v4945, 40
  %v6310 = vpop.permute.xlu0 %6309
  %6311 = vrot.lane.b32.xlu0 %v4946, 40
  %v6312 = vpop.permute.xlu0 %6311
  %6313 = vrot.lane.b32.xlu0 %v4947, 40
  %v6314 = vpop.permute.xlu0 %6313
  %6315 = vrot.lane.b32.xlu0 %v4948, 40
  %v6316 = vpop.permute.xlu0 %6315
  %6317 = vrot.lane.b32.xlu0 %v4949, 40
  %v6318 = vpop.permute.xlu0 %6317
  %6319 = vrot.lane.b32.xlu0 %v4950, 40
  %v6320 = vpop.permute.xlu0 %6319
  %6321 = vrot.lane.b32.xlu0 %v4951, 40
  %v6322 = vpop.permute.xlu0 %6321
  %6323 = vrot.lane.b32.xlu0 %v4952, 40
  %v6324 = vpop.permute.xlu0 %6323
  %6325 = vrot.lane.b32.xlu0 %v4953, 40
  %v6326 = vpop.permute.xlu0 %6325
  %6327 = vrot.lane.b32.xlu0 %v4954, 40
  %v6328 = vpop.permute.xlu0 %6327
  %6329 = vrot.lane.b32.xlu0 %v4955, 40
  %v6330 = vpop.permute.xlu0 %6329
  %6331 = vrot.lane.b32.xlu0 %v4956, 40
  %v6332 = vpop.permute.xlu0 %6331
  %6333 = vrot.lane.b32.xlu0 %v4957, 40
  %v6334 = vpop.permute.xlu0 %6333
  %6335 = vrot.lane.b32.xlu0 %v4958, 40
  %v6336 = vpop.permute.xlu0 %6335
  %6337 = vrot.lane.b32.xlu0 %v4959, 40
  %v6338 = vpop.permute.xlu0 %6337
  %6339 = vrot.lane.b32.xlu0 %v4960, 40
  %v6340 = vpop.permute.xlu0 %6339
  %6341 = vrot.lane.b32.xlu0 %v4961, 40
  %v6342 = vpop.permute.xlu0 %6341
  %6343 = vrot.lane.b32.xlu0 %v4962, 40
  %v6344 = vpop.permute.xlu0 %6343
  %6345 = vrot.lane.b32.xlu0 %v4963, 40
  %v6346 = vpop.permute.xlu0 %6345
  %6347 = vrot.lane.b32.xlu0 %v4964, 40
  %v6348 = vpop.permute.xlu0 %6347
  %6349 = vrot.lane.b32.xlu0 %v4965, 40
  %v6350 = vpop.permute.xlu0 %6349
  %6351 = vrot.lane.b32.xlu0 %v4966, 40
  %v6352 = vpop.permute.xlu0 %6351
  %6353 = vrot.lane.b32.xlu0 %v4967, 40
  %v6354 = vpop.permute.xlu0 %6353
  %6355 = vrot.lane.b32.xlu0 %v4968, 40
  %v6356 = vpop.permute.xlu0 %6355
  %6357 = vrot.lane.b32.xlu0 %v4969, 40
  %v6358 = vpop.permute.xlu0 %6357
  %6359 = vrot.lane.b32.xlu0 %v4970, 40
  %v6360 = vpop.permute.xlu0 %6359
  %6361 = vrot.lane.b32.xlu0 %v4971, 40
  %v6362 = vpop.permute.xlu0 %6361
  %6363 = vrot.lane.b32.xlu0 %v4972, 40
  %v6364 = vpop.permute.xlu0 %6363
  %6365 = vrot.lane.b32.xlu0 %v4973, 40
  %v6366 = vpop.permute.xlu0 %6365
  %6367 = vrot.lane.b32.xlu0 %v4974, 40
  %v6368 = vpop.permute.xlu0 %6367
  %6369 = vrot.lane.b32.xlu0 %v4975, 40
  %v6370 = vpop.permute.xlu0 %6369
  %6371 = vrot.lane.b32.xlu0 %v4976, 40
  %v6372 = vpop.permute.xlu0 %6371
  %6373 = vrot.lane.b32.xlu0 %v4977, 40
  %v6374 = vpop.permute.xlu0 %6373
  %6375 = vrot.lane.b32.xlu0 %v4978, 40
  %v6376 = vpop.permute.xlu0 %6375
  %6377 = vrot.lane.b32.xlu0 %v4979, 40
  %v6378 = vpop.permute.xlu0 %6377
  %6379 = vrot.lane.b32.xlu0 %v4980, 40
  %v6380 = vpop.permute.xlu0 %6379
  %6381 = vrot.lane.b32.xlu0 %v4981, 40
  %v6382 = vpop.permute.xlu0 %6381
  %6383 = vrot.lane.b32.xlu0 %v4982, 40
  %v6384 = vpop.permute.xlu0 %6383
  %6385 = vrot.lane.b32.xlu0 %v4983, 40
  %v6386 = vpop.permute.xlu0 %6385
  %6387 = vrot.lane.b32.xlu0 %v4984, 40
  %v6388 = vpop.permute.xlu0 %6387
  %6389 = vrot.lane.b32.xlu0 %v4985, 40
  %v6390 = vpop.permute.xlu0 %6389
  %6391 = vrot.lane.b32.xlu0 %v4986, 40
  %v6392 = vpop.permute.xlu0 %6391
  %6393 = vrot.lane.b32.xlu0 %v4987, 40
  %v6394 = vpop.permute.xlu0 %6393
  %6395 = vrot.lane.b32.xlu0 %v4988, 40
  %v6396 = vpop.permute.xlu0 %6395
  %6397 = vrot.lane.b32.xlu0 %v4989, 40
  %v6398 = vpop.permute.xlu0 %6397
  %6527 = vrot.lane.b32.xlu0 %v4991, 48
  %v6528 = vpop.permute.xlu0 %6527
  %6529 = vrot.lane.b32.xlu0 %v4992, 48
  %v6530 = vpop.permute.xlu0 %6529
  %6531 = vrot.lane.b32.xlu0 %v4993, 48
  %v6532 = vpop.permute.xlu0 %6531
  %6533 = vrot.lane.b32.xlu0 %v4994, 48
  %v6534 = vpop.permute.xlu0 %6533
  %6535 = vrot.lane.b32.xlu0 %v4995, 48
  %v6536 = vpop.permute.xlu0 %6535
  %6537 = vrot.lane.b32.xlu0 %v4996, 48
  %v6538 = vpop.permute.xlu0 %6537
  %6539 = vrot.lane.b32.xlu0 %v4997, 48
  %v6540 = vpop.permute.xlu0 %6539
  %6541 = vrot.lane.b32.xlu0 %v4998, 48
  %v6542 = vpop.permute.xlu0 %6541
  %6543 = vrot.lane.b32.xlu0 %v4999, 48
  %v6544 = vpop.permute.xlu0 %6543
  %6545 = vrot.lane.b32.xlu0 %v5000, 48
  %v6546 = vpop.permute.xlu0 %6545
  %6547 = vrot.lane.b32.xlu0 %v5001, 48
  %v6548 = vpop.permute.xlu0 %6547
  %6549 = vrot.lane.b32.xlu0 %v5002, 48
  %v6550 = vpop.permute.xlu0 %6549
  %6551 = vrot.lane.b32.xlu0 %v5003, 48
  %v6552 = vpop.permute.xlu0 %6551
  %6553 = vrot.lane.b32.xlu0 %v5004, 48
  %v6554 = vpop.permute.xlu0 %6553
  %6555 = vrot.lane.b32.xlu0 %v5005, 48
  %v6556 = vpop.permute.xlu0 %6555
  %6557 = vrot.lane.b32.xlu0 %v5006, 48
  %v6558 = vpop.permute.xlu0 %6557
  %6559 = vrot.lane.b32.xlu0 %v5007, 48
  %v6560 = vpop.permute.xlu0 %6559
  %6561 = vrot.lane.b32.xlu0 %v5008, 48
  %v6562 = vpop.permute.xlu0 %6561
  %6563 = vrot.lane.b32.xlu0 %v5009, 48
  %v6564 = vpop.permute.xlu0 %6563
  %6565 = vrot.lane.b32.xlu0 %v5010, 48
  %v6566 = vpop.permute.xlu0 %6565
  %6567 = vrot.lane.b32.xlu0 %v5011, 48
  %v6568 = vpop.permute.xlu0 %6567
  %6569 = vrot.lane.b32.xlu0 %v5012, 48
  %v6570 = vpop.permute.xlu0 %6569
  %6571 = vrot.lane.b32.xlu0 %v5013, 48
  %v6572 = vpop.permute.xlu0 %6571
  %6573 = vrot.lane.b32.xlu0 %v5014, 48
  %v6574 = vpop.permute.xlu0 %6573
  %6575 = vrot.lane.b32.xlu0 %v5015, 48
  %v6576 = vpop.permute.xlu0 %6575
  %6577 = vrot.lane.b32.xlu0 %v5016, 48
  %v6578 = vpop.permute.xlu0 %6577
  %6579 = vrot.lane.b32.xlu0 %v5017, 48
  %v6580 = vpop.permute.xlu0 %6579
  %6581 = vrot.lane.b32.xlu0 %v5018, 48
  %v6582 = vpop.permute.xlu0 %6581
  %6583 = vrot.lane.b32.xlu0 %v5019, 48
  %v6584 = vpop.permute.xlu0 %6583
  %6585 = vrot.lane.b32.xlu0 %v5020, 48
  %v6586 = vpop.permute.xlu0 %6585
  %6587 = vrot.lane.b32.xlu0 %v5021, 48
  %v6588 = vpop.permute.xlu0 %6587
  %6589 = vrot.lane.b32.xlu0 %v5022, 48
  %v6590 = vpop.permute.xlu0 %6589
  %6591 = vrot.lane.b32.xlu0 %v5023, 48
  %v6592 = vpop.permute.xlu0 %6591
  %6593 = vrot.lane.b32.xlu0 %v5024, 48
  %v6594 = vpop.permute.xlu0 %6593
  %6595 = vrot.lane.b32.xlu0 %v5025, 48
  %v6596 = vpop.permute.xlu0 %6595
  %6597 = vrot.lane.b32.xlu0 %v5026, 48
  %v6598 = vpop.permute.xlu0 %6597
  %6599 = vrot.lane.b32.xlu0 %v5027, 48
  %v6600 = vpop.permute.xlu0 %6599
  %6601 = vrot.lane.b32.xlu0 %v5028, 48
  %v6602 = vpop.permute.xlu0 %6601
  %6603 = vrot.lane.b32.xlu0 %v5029, 48
  %v6604 = vpop.permute.xlu0 %6603
  %6605 = vrot.lane.b32.xlu0 %v5030, 48
  %v6606 = vpop.permute.xlu0 %6605
  %6607 = vrot.lane.b32.xlu0 %v5031, 48
  %v6608 = vpop.permute.xlu0 %6607
  %6609 = vrot.lane.b32.xlu0 %v5032, 48
  %v6610 = vpop.permute.xlu0 %6609
  %6611 = vrot.lane.b32.xlu0 %v5033, 48
  %v6612 = vpop.permute.xlu0 %6611
  %6613 = vrot.lane.b32.xlu0 %v5034, 48
  %v6614 = vpop.permute.xlu0 %6613
  %6615 = vrot.lane.b32.xlu0 %v5035, 48
  %v6616 = vpop.permute.xlu0 %6615
  %6617 = vrot.lane.b32.xlu0 %v5036, 48
  %v6618 = vpop.permute.xlu0 %6617
  %6619 = vrot.lane.b32.xlu0 %v5037, 48
  %v6620 = vpop.permute.xlu0 %6619
  %6621 = vrot.lane.b32.xlu0 %v5038, 48
  %v6622 = vpop.permute.xlu0 %6621
  %6623 = vrot.lane.b32.xlu0 %v5039, 48
  %v6624 = vpop.permute.xlu0 %6623
  %6625 = vrot.lane.b32.xlu0 %v5040, 48
  %v6626 = vpop.permute.xlu0 %6625
  %6627 = vrot.lane.b32.xlu0 %v5041, 48
  %v6628 = vpop.permute.xlu0 %6627
  %6629 = vrot.lane.b32.xlu0 %v5042, 48
  %v6630 = vpop.permute.xlu0 %6629
  %6631 = vrot.lane.b32.xlu0 %v5043, 48
  %v6632 = vpop.permute.xlu0 %6631
  %6633 = vrot.lane.b32.xlu0 %v5044, 48
  %v6634 = vpop.permute.xlu0 %6633
  %6635 = vrot.lane.b32.xlu0 %v5045, 48
  %v6636 = vpop.permute.xlu0 %6635
  %6637 = vrot.lane.b32.xlu0 %v5046, 48
  %v6638 = vpop.permute.xlu0 %6637
  %6639 = vrot.lane.b32.xlu0 %v5047, 48
  %v6640 = vpop.permute.xlu0 %6639
  %6641 = vrot.lane.b32.xlu0 %v5048, 48
  %v6642 = vpop.permute.xlu0 %6641
  %6643 = vrot.lane.b32.xlu0 %v5049, 48
  %v6644 = vpop.permute.xlu0 %6643
  %6645 = vrot.lane.b32.xlu0 %v5050, 48
  %v6646 = vpop.permute.xlu0 %6645
  %6647 = vrot.lane.b32.xlu0 %v5051, 48
  %v6648 = vpop.permute.xlu0 %6647
  %6649 = vrot.lane.b32.xlu0 %v5052, 48
  %v6650 = vpop.permute.xlu0 %6649
  %6651 = vrot.lane.b32.xlu0 %v5053, 48
  %v6652 = vpop.permute.xlu0 %6651
  %6653 = vrot.lane.b32.xlu0 %v5054, 48
  %v6654 = vpop.permute.xlu0 %6653
  %6783 = vrot.lane.b32.xlu0 %v5055, 56
  %v6784 = vpop.permute.xlu0 %6783
  %6785 = vrot.lane.b32.xlu0 %v5056, 56
  %v6786 = vpop.permute.xlu0 %6785
  %6787 = vrot.lane.b32.xlu0 %v5057, 56
  %v6788 = vpop.permute.xlu0 %6787
  %6789 = vrot.lane.b32.xlu0 %v5058, 56
  %v6790 = vpop.permute.xlu0 %6789
  %6791 = vrot.lane.b32.xlu0 %v5059, 56
  %v6792 = vpop.permute.xlu0 %6791
  %6793 = vrot.lane.b32.xlu0 %v5060, 56
  %v6794 = vpop.permute.xlu0 %6793
  %6795 = vrot.lane.b32.xlu0 %v5061, 56
  %v6796 = vpop.permute.xlu0 %6795
  %6797 = vrot.lane.b32.xlu0 %v5062, 56
  %v6798 = vpop.permute.xlu0 %6797
  %6799 = vrot.lane.b32.xlu0 %v5063, 56
  %v6800 = vpop.permute.xlu0 %6799
  %6801 = vrot.lane.b32.xlu0 %v5064, 56
  %v6802 = vpop.permute.xlu0 %6801
  %6803 = vrot.lane.b32.xlu0 %v5065, 56
  %v6804 = vpop.permute.xlu0 %6803
  %6805 = vrot.lane.b32.xlu0 %v5066, 56
  %v6806 = vpop.permute.xlu0 %6805
  %6807 = vrot.lane.b32.xlu0 %v5067, 56
  %v6808 = vpop.permute.xlu0 %6807
  %6809 = vrot.lane.b32.xlu0 %v5068, 56
  %v6810 = vpop.permute.xlu0 %6809
  %6811 = vrot.lane.b32.xlu0 %v5069, 56
  %v6812 = vpop.permute.xlu0 %6811
  %6813 = vrot.lane.b32.xlu0 %v5070, 56
  %v6814 = vpop.permute.xlu0 %6813
  %6815 = vrot.lane.b32.xlu0 %v5071, 56
  %v6816 = vpop.permute.xlu0 %6815
  %6817 = vrot.lane.b32.xlu0 %v5072, 56
  %v6818 = vpop.permute.xlu0 %6817
  %6819 = vrot.lane.b32.xlu0 %v5073, 56
  %v6820 = vpop.permute.xlu0 %6819
  %6821 = vrot.lane.b32.xlu0 %v5074, 56
  %v6822 = vpop.permute.xlu0 %6821
  %6823 = vrot.lane.b32.xlu0 %v5075, 56
  %v6824 = vpop.permute.xlu0 %6823
  %6825 = vrot.lane.b32.xlu0 %v5076, 56
  %v6826 = vpop.permute.xlu0 %6825
  %6827 = vrot.lane.b32.xlu0 %v5077, 56
  %v6828 = vpop.permute.xlu0 %6827
  %6829 = vrot.lane.b32.xlu0 %v5078, 56
  %v6830 = vpop.permute.xlu0 %6829
  %6831 = vrot.lane.b32.xlu0 %v5079, 56
  %v6832 = vpop.permute.xlu0 %6831
  %6833 = vrot.lane.b32.xlu0 %v5080, 56
  %v6834 = vpop.permute.xlu0 %6833
  %6835 = vrot.lane.b32.xlu0 %v5081, 56
  %v6836 = vpop.permute.xlu0 %6835
  %6837 = vrot.lane.b32.xlu0 %v5082, 56
  %v6838 = vpop.permute.xlu0 %6837
  %6839 = vrot.lane.b32.xlu0 %v5083, 56
  %v6840 = vpop.permute.xlu0 %6839
  %6841 = vrot.lane.b32.xlu0 %v5084, 56
  %v6842 = vpop.permute.xlu0 %6841
  %6843 = vrot.lane.b32.xlu0 %v5085, 56
  %v6844 = vpop.permute.xlu0 %6843
  %6845 = vrot.lane.b32.xlu0 %v5086, 56
  %v6846 = vpop.permute.xlu0 %6845
  %6847 = vrot.lane.b32.xlu0 %v5087, 56
  %v6848 = vpop.permute.xlu0 %6847
  %6849 = vrot.lane.b32.xlu0 %v5088, 56
  %v6850 = vpop.permute.xlu0 %6849
  %6851 = vrot.lane.b32.xlu0 %v5089, 56
  %v6852 = vpop.permute.xlu0 %6851
  %6853 = vrot.lane.b32.xlu0 %v5090, 56
  %v6854 = vpop.permute.xlu0 %6853
  %6855 = vrot.lane.b32.xlu0 %v5091, 56
  %v6856 = vpop.permute.xlu0 %6855
  %6857 = vrot.lane.b32.xlu0 %v5092, 56
  %v6858 = vpop.permute.xlu0 %6857
  %6859 = vrot.lane.b32.xlu0 %v5093, 56
  %v6860 = vpop.permute.xlu0 %6859
  %6861 = vrot.lane.b32.xlu0 %v5094, 56
  %v6862 = vpop.permute.xlu0 %6861
  %6863 = vrot.lane.b32.xlu0 %v5095, 56
  %v6864 = vpop.permute.xlu0 %6863
  %6865 = vrot.lane.b32.xlu0 %v5096, 56
  %v6866 = vpop.permute.xlu0 %6865
  %6867 = vrot.lane.b32.xlu0 %v5097, 56
  %v6868 = vpop.permute.xlu0 %6867
  %6869 = vrot.lane.b32.xlu0 %v5098, 56
  %v6870 = vpop.permute.xlu0 %6869
  %6871 = vrot.lane.b32.xlu0 %v5099, 56
  %v6872 = vpop.permute.xlu0 %6871
  %6873 = vrot.lane.b32.xlu0 %v5100, 56
  %v6874 = vpop.permute.xlu0 %6873
  %6875 = vrot.lane.b32.xlu0 %v5101, 56
  %v6876 = vpop.permute.xlu0 %6875
  %6877 = vrot.lane.b32.xlu0 %v5102, 56
  %v6878 = vpop.permute.xlu0 %6877
  %6879 = vrot.lane.b32.xlu0 %v5103, 56
  %v6880 = vpop.permute.xlu0 %6879
  %6881 = vrot.lane.b32.xlu0 %v5104, 56
  %v6882 = vpop.permute.xlu0 %6881
  %6883 = vrot.lane.b32.xlu0 %v5105, 56
  %v6884 = vpop.permute.xlu0 %6883
  %6885 = vrot.lane.b32.xlu0 %v5106, 56
  %v6886 = vpop.permute.xlu0 %6885
  %6887 = vrot.lane.b32.xlu0 %v5107, 56
  %v6888 = vpop.permute.xlu0 %6887
  %6889 = vrot.lane.b32.xlu0 %v5108, 56
  %v6890 = vpop.permute.xlu0 %6889
  %6891 = vrot.lane.b32.xlu0 %v5109, 56
  %v6892 = vpop.permute.xlu0 %6891
  %6893 = vrot.lane.b32.xlu0 %v5110, 56
  %v6894 = vpop.permute.xlu0 %6893
  %6895 = vrot.lane.b32.xlu0 %v5111, 56
  %v6896 = vpop.permute.xlu0 %6895
  %6897 = vrot.lane.b32.xlu0 %v5112, 56
  %v6898 = vpop.permute.xlu0 %6897
  %6899 = vrot.lane.b32.xlu0 %v5113, 56
  %v6900 = vpop.permute.xlu0 %6899
  %6901 = vrot.lane.b32.xlu0 %v5114, 56
  %v6902 = vpop.permute.xlu0 %6901
  %6903 = vrot.lane.b32.xlu0 %v5115, 56
  %v6904 = vpop.permute.xlu0 %6903
  %6905 = vrot.lane.b32.xlu0 %v5116, 56
  %v6906 = vpop.permute.xlu0 %6905
  %6907 = vrot.lane.b32.xlu0 %v5117, 56
  %v6908 = vpop.permute.xlu0 %6907
  %6909 = vrot.lane.b32.xlu0 %v5118, 56
  %v6910 = vpop.permute.xlu0 %6909
  %7039 = vrot.lane.b32.xlu0 %v5119, 64
  %v7040 = vpop.permute.xlu0 %7039
  %7041 = vrot.lane.b32.xlu0 %v5120, 64
  %v7042 = vpop.permute.xlu0 %7041
  %7043 = vrot.lane.b32.xlu0 %v5121, 64
  %v7044 = vpop.permute.xlu0 %7043
  %7045 = vrot.lane.b32.xlu0 %v5122, 64
  %v7046 = vpop.permute.xlu0 %7045
  %7047 = vrot.lane.b32.xlu0 %v5123, 64
  %v7048 = vpop.permute.xlu0 %7047
  %7049 = vrot.lane.b32.xlu0 %v5124, 64
  %v7050 = vpop.permute.xlu0 %7049
  %7051 = vrot.lane.b32.xlu0 %v5125, 64
  %v7052 = vpop.permute.xlu0 %7051
  %7053 = vrot.lane.b32.xlu0 %v5126, 64
  %v7054 = vpop.permute.xlu0 %7053
  %7055 = vrot.lane.b32.xlu0 %v5127, 64
  %v7056 = vpop.permute.xlu0 %7055
  %7057 = vrot.lane.b32.xlu0 %v5128, 64
  %v7058 = vpop.permute.xlu0 %7057
  %7059 = vrot.lane.b32.xlu0 %v5129, 64
  %v7060 = vpop.permute.xlu0 %7059
  %7061 = vrot.lane.b32.xlu0 %v5130, 64
  %v7062 = vpop.permute.xlu0 %7061
  %7063 = vrot.lane.b32.xlu0 %v5131, 64
  %v7064 = vpop.permute.xlu0 %7063
  %7065 = vrot.lane.b32.xlu0 %v5132, 64
  %v7066 = vpop.permute.xlu0 %7065
  %7067 = vrot.lane.b32.xlu0 %v5133, 64
  %v7068 = vpop.permute.xlu0 %7067
  %7069 = vrot.lane.b32.xlu0 %v5134, 64
  %v7070 = vpop.permute.xlu0 %7069
  %7071 = vrot.lane.b32.xlu0 %v5135, 64
  %v7072 = vpop.permute.xlu0 %7071
  %7073 = vrot.lane.b32.xlu0 %v5136, 64
  %v7074 = vpop.permute.xlu0 %7073
  %7075 = vrot.lane.b32.xlu0 %v5137, 64
  %v7076 = vpop.permute.xlu0 %7075
  %7077 = vrot.lane.b32.xlu0 %v5138, 64
  %v7078 = vpop.permute.xlu0 %7077
  %7079 = vrot.lane.b32.xlu0 %v5139, 64
  %v7080 = vpop.permute.xlu0 %7079
  %7081 = vrot.lane.b32.xlu0 %v5140, 64
  %v7082 = vpop.permute.xlu0 %7081
  %7083 = vrot.lane.b32.xlu0 %v5141, 64
  %v7084 = vpop.permute.xlu0 %7083
  %7085 = vrot.lane.b32.xlu0 %v5142, 64
  %v7086 = vpop.permute.xlu0 %7085
  %7087 = vrot.lane.b32.xlu0 %v5143, 64
  %v7088 = vpop.permute.xlu0 %7087
  %7089 = vrot.lane.b32.xlu0 %v5144, 64
  %v7090 = vpop.permute.xlu0 %7089
  %7091 = vrot.lane.b32.xlu0 %v5145, 64
  %v7092 = vpop.permute.xlu0 %7091
  %7093 = vrot.lane.b32.xlu0 %v5146, 64
  %v7094 = vpop.permute.xlu0 %7093
  %7095 = vrot.lane.b32.xlu0 %v5147, 64
  %v7096 = vpop.permute.xlu0 %7095
  %7097 = vrot.lane.b32.xlu0 %v5148, 64
  %v7098 = vpop.permute.xlu0 %7097
  %7099 = vrot.lane.b32.xlu0 %v5149, 64
  %v7100 = vpop.permute.xlu0 %7099
  %7101 = vrot.lane.b32.xlu0 %v5150, 64
  %v7102 = vpop.permute.xlu0 %7101
  %7103 = vrot.lane.b32.xlu0 %v5151, 64
  %v7104 = vpop.permute.xlu0 %7103
  %7105 = vrot.lane.b32.xlu0 %v5152, 64
  %v7106 = vpop.permute.xlu0 %7105
  %7107 = vrot.lane.b32.xlu0 %v5153, 64
  %v7108 = vpop.permute.xlu0 %7107
  %7109 = vrot.lane.b32.xlu0 %v5154, 64
  %v7110 = vpop.permute.xlu0 %7109
  %7111 = vrot.lane.b32.xlu0 %v5155, 64
  %v7112 = vpop.permute.xlu0 %7111
  %7113 = vrot.lane.b32.xlu0 %v5156, 64
  %v7114 = vpop.permute.xlu0 %7113
  %7115 = vrot.lane.b32.xlu0 %v5157, 64
  %v7116 = vpop.permute.xlu0 %7115
  %7117 = vrot.lane.b32.xlu0 %v5158, 64
  %v7118 = vpop.permute.xlu0 %7117
  %7119 = vrot.lane.b32.xlu0 %v5159, 64
  %v7120 = vpop.permute.xlu0 %7119
  %7121 = vrot.lane.b32.xlu0 %v5160, 64
  %v7122 = vpop.permute.xlu0 %7121
  %7123 = vrot.lane.b32.xlu0 %v5161, 64
  %v7124 = vpop.permute.xlu0 %7123
  %7125 = vrot.lane.b32.xlu0 %v5162, 64
  %v7126 = vpop.permute.xlu0 %7125
  %7127 = vrot.lane.b32.xlu0 %v5163, 64
  %v7128 = vpop.permute.xlu0 %7127
  %7129 = vrot.lane.b32.xlu0 %v5164, 64
  %v7130 = vpop.permute.xlu0 %7129
  %7131 = vrot.lane.b32.xlu0 %v5165, 64
  %v7132 = vpop.permute.xlu0 %7131
  %7133 = vrot.lane.b32.xlu0 %v5166, 64
  %v7134 = vpop.permute.xlu0 %7133
  %7135 = vrot.lane.b32.xlu0 %v5167, 64
  %v7136 = vpop.permute.xlu0 %7135
  %7137 = vrot.lane.b32.xlu0 %v5168, 64
  %v7138 = vpop.permute.xlu0 %7137
  %7139 = vrot.lane.b32.xlu0 %v5169, 64
  %v7140 = vpop.permute.xlu0 %7139
  %7141 = vrot.lane.b32.xlu0 %v5170, 64
  %v7142 = vpop.permute.xlu0 %7141
  %7143 = vrot.lane.b32.xlu0 %v5171, 64
  %v7144 = vpop.permute.xlu0 %7143
  %7145 = vrot.lane.b32.xlu0 %v5172, 64
  %v7146 = vpop.permute.xlu0 %7145
  %7147 = vrot.lane.b32.xlu0 %v5173, 64
  %v7148 = vpop.permute.xlu0 %7147
  %7149 = vrot.lane.b32.xlu0 %v5174, 64
  %v7150 = vpop.permute.xlu0 %7149
  %7151 = vrot.lane.b32.xlu0 %v5175, 64
  %v7152 = vpop.permute.xlu0 %7151
  %7153 = vrot.lane.b32.xlu0 %v5176, 64
  %v7154 = vpop.permute.xlu0 %7153
  %7155 = vrot.lane.b32.xlu0 %v5177, 64
  %v7156 = vpop.permute.xlu0 %7155
  %7157 = vrot.lane.b32.xlu0 %v5178, 64
  %v7158 = vpop.permute.xlu0 %7157
  %7159 = vrot.lane.b32.xlu0 %v5179, 64
  %v7160 = vpop.permute.xlu0 %7159
  %7161 = vrot.lane.b32.xlu0 %v5180, 64
  %v7162 = vpop.permute.xlu0 %7161
  %7163 = vrot.lane.b32.xlu0 %v5181, 64
  %v7164 = vpop.permute.xlu0 %7163
  %7165 = vrot.lane.b32.xlu0 %v5182, 64
  %v7166 = vpop.permute.xlu0 %7165
  %v7231 = vsel %vm2942, %v4606, %v5248
  %v7232 = vsel %vm2942, %v4607, %v5250
  %v7233 = vsel %vm2942, %v4608, %v5252
  %v7234 = vsel %vm2942, %v4609, %v5254
  %v7235 = vsel %vm2942, %v4610, %v5256
  %v7236 = vsel %vm2942, %v4611, %v5258
  %v7237 = vsel %vm2942, %v4612, %v5260
  %v7238 = vsel %vm2942, %v4613, %v5262
  %v7239 = vsel %vm2942, %v4614, %v5264
  %v7240 = vsel %vm2942, %v4615, %v5266
  %v7241 = vsel %vm2942, %v4616, %v5268
  %v7242 = vsel %vm2942, %v4617, %v5270
  %v7243 = vsel %vm2942, %v4618, %v5272
  %v7244 = vsel %vm2942, %v4619, %v5274
  %v7245 = vsel %vm2942, %v4620, %v5276
  %v7246 = vsel %vm2942, %v4621, %v5278
  %v7247 = vsel %vm2942, %v4622, %v5280
  %v7248 = vsel %vm2942, %v4623, %v5282
  %v7249 = vsel %vm2942, %v4624, %v5284
  %v7250 = vsel %vm2942, %v4625, %v5286
  %v7251 = vsel %vm2942, %v4626, %v5288
  %v7252 = vsel %vm2942, %v4627, %v5290
  %v7253 = vsel %vm2942, %v4628, %v5292
  %v7254 = vsel %vm2942, %v4629, %v5294
  %v7255 = vsel %vm2942, %v4630, %v5296
  %v7256 = vsel %vm2942, %v4631, %v5298
  %v7257 = vsel %vm2942, %v4632, %v5300
  %v7258 = vsel %vm2942, %v4633, %v5302
  %v7259 = vsel %vm2942, %v4634, %v5304
  %v7260 = vsel %vm2942, %v4635, %v5306
  %v7261 = vsel %vm2942, %v4636, %v5308
  %v7262 = vsel %vm2942, %v4637, %v5310
  %v7263 = vsel %vm2942, %v4638, %v5312
  %v7264 = vsel %vm2942, %v4639, %v5314
  %v7265 = vsel %vm2942, %v4640, %v5316
  %v7266 = vsel %vm2942, %v4641, %v5318
  %v7267 = vsel %vm2942, %v4642, %v5320
  %v7268 = vsel %vm2942, %v4643, %v5322
  %v7269 = vsel %vm2942, %v4644, %v5324
  %v7270 = vsel %vm2942, %v4645, %v5326
  %v7271 = vsel %vm2942, %v4646, %v5328
  %v7272 = vsel %vm2942, %v4647, %v5330
  %v7273 = vsel %vm2942, %v4648, %v5332
  %v7274 = vsel %vm2942, %v4649, %v5334
  %v7275 = vsel %vm2942, %v4650, %v5336
  %v7276 = vsel %vm2942, %v4651, %v5338
  %v7277 = vsel %vm2942, %v4652, %v5340
  %v7278 = vsel %vm2942, %v4653, %v5342
  %v7279 = vsel %vm2942, %v4654, %v5344
  %v7280 = vsel %vm2942, %v4655, %v5346
  %v7281 = vsel %vm2942, %v4656, %v5348
  %v7282 = vsel %vm2942, %v4657, %v5350
  %v7283 = vsel %vm2942, %v4658, %v5352
  %v7284 = vsel %vm2942, %v4659, %v5354
  %v7285 = vsel %vm2942, %v4660, %v5356
  %v7286 = vsel %vm2942, %v4661, %v5358
  %v7287 = vsel %vm2942, %v4662, %v5360
  %v7288 = vsel %vm2942, %v4663, %v5362
  %v7289 = vsel %vm2942, %v4664, %v5364
  %v7290 = vsel %vm2942, %v4665, %v5366
  %v7291 = vsel %vm2942, %v4666, %v5368
  %v7292 = vsel %vm2942, %v4667, %v5370
  %v7293 = vsel %vm2942, %v4668, %v5372
  %v7294 = vsel %vm2942, %v4669, %v5374
  %v7295 = vsel %vm3072, %v7231, %v5504
  %v7296 = vsel %vm3072, %v7232, %v5506
  %v7297 = vsel %vm3072, %v7233, %v5508
  %v7298 = vsel %vm3072, %v7234, %v5510
  %v7299 = vsel %vm3072, %v7235, %v5512
  %v7300 = vsel %vm3072, %v7236, %v5514
  %v7301 = vsel %vm3072, %v7237, %v5516
  %v7302 = vsel %vm3072, %v7238, %v5518
  %v7303 = vsel %vm3072, %v7239, %v5520
  %v7304 = vsel %vm3072, %v7240, %v5522
  %v7305 = vsel %vm3072, %v7241, %v5524
  %v7306 = vsel %vm3072, %v7242, %v5526
  %v7307 = vsel %vm3072, %v7243, %v5528
  %v7308 = vsel %vm3072, %v7244, %v5530
  %v7309 = vsel %vm3072, %v7245, %v5532
  %v7310 = vsel %vm3072, %v7246, %v5534
  %v7311 = vsel %vm3072, %v7247, %v5536
  %v7312 = vsel %vm3072, %v7248, %v5538
  %v7313 = vsel %vm3072, %v7249, %v5540
  %v7314 = vsel %vm3072, %v7250, %v5542
  %v7315 = vsel %vm3072, %v7251, %v5544
  %v7316 = vsel %vm3072, %v7252, %v5546
  %v7317 = vsel %vm3072, %v7253, %v5548
  %v7318 = vsel %vm3072, %v7254, %v5550
  %v7319 = vsel %vm3072, %v7255, %v5552
  %v7320 = vsel %vm3072, %v7256, %v5554
  %v7321 = vsel %vm3072, %v7257, %v5556
  %v7322 = vsel %vm3072, %v7258, %v5558
  %v7323 = vsel %vm3072, %v7259, %v5560
  %v7324 = vsel %vm3072, %v7260, %v5562
  %v7325 = vsel %vm3072, %v7261, %v5564
  %v7326 = vsel %vm3072, %v7262, %v5566
  %v7327 = vsel %vm3072, %v7263, %v5568
  %v7328 = vsel %vm3072, %v7264, %v5570
  %v7329 = vsel %vm3072, %v7265, %v5572
  %v7330 = vsel %vm3072, %v7266, %v5574
  %v7331 = vsel %vm3072, %v7267, %v5576
  %v7332 = vsel %vm3072, %v7268, %v5578
  %v7333 = vsel %vm3072, %v7269, %v5580
  %v7334 = vsel %vm3072, %v7270, %v5582
  %v7335 = vsel %vm3072, %v7271, %v5584
  %v7336 = vsel %vm3072, %v7272, %v5586
  %v7337 = vsel %vm3072, %v7273, %v5588
  %v7338 = vsel %vm3072, %v7274, %v5590
  %v7339 = vsel %vm3072, %v7275, %v5592
  %v7340 = vsel %vm3072, %v7276, %v5594
  %v7341 = vsel %vm3072, %v7277, %v5596
  %v7342 = vsel %vm3072, %v7278, %v5598
  %v7343 = vsel %vm3072, %v7279, %v5600
  %v7344 = vsel %vm3072, %v7280, %v5602
  %v7345 = vsel %vm3072, %v7281, %v5604
  %v7346 = vsel %vm3072, %v7282, %v5606
  %v7347 = vsel %vm3072, %v7283, %v5608
  %v7348 = vsel %vm3072, %v7284, %v5610
  %v7349 = vsel %vm3072, %v7285, %v5612
  %v7350 = vsel %vm3072, %v7286, %v5614
  %v7351 = vsel %vm3072, %v7287, %v5616
  %v7352 = vsel %vm3072, %v7288, %v5618
  %v7353 = vsel %vm3072, %v7289, %v5620
  %v7354 = vsel %vm3072, %v7290, %v5622
  %v7355 = vsel %vm3072, %v7291, %v5624
  %v7356 = vsel %vm3072, %v7292, %v5626
  %v7357 = vsel %vm3072, %v7293, %v5628
  %v7358 = vsel %vm3072, %v7294, %v5630
  %v7359 = vsel %vm3202, %v7295, %v5760
  %v7360 = vsel %vm3202, %v7296, %v5762
  %v7361 = vsel %vm3202, %v7297, %v5764
  %v7362 = vsel %vm3202, %v7298, %v5766
  %v7363 = vsel %vm3202, %v7299, %v5768
  %v7364 = vsel %vm3202, %v7300, %v5770
  %v7365 = vsel %vm3202, %v7301, %v5772
  %v7366 = vsel %vm3202, %v7302, %v5774
  %v7367 = vsel %vm3202, %v7303, %v5776
  %v7368 = vsel %vm3202, %v7304, %v5778
  %v7369 = vsel %vm3202, %v7305, %v5780
  %v7370 = vsel %vm3202, %v7306, %v5782
  %v7371 = vsel %vm3202, %v7307, %v5784
  %v7372 = vsel %vm3202, %v7308, %v5786
  %v7373 = vsel %vm3202, %v7309, %v5788
  %v7374 = vsel %vm3202, %v7310, %v5790
  %v7375 = vsel %vm3202, %v7311, %v5792
  %v7376 = vsel %vm3202, %v7312, %v5794
  %v7377 = vsel %vm3202, %v7313, %v5796
  %v7378 = vsel %vm3202, %v7314, %v5798
  %v7379 = vsel %vm3202, %v7315, %v5800
  %v7380 = vsel %vm3202, %v7316, %v5802
  %v7381 = vsel %vm3202, %v7317, %v5804
  %v7382 = vsel %vm3202, %v7318, %v5806
  %v7383 = vsel %vm3202, %v7319, %v5808
  %v7384 = vsel %vm3202, %v7320, %v5810
  %v7385 = vsel %vm3202, %v7321, %v5812
  %v7386 = vsel %vm3202, %v7322, %v5814
  %v7387 = vsel %vm3202, %v7323, %v5816
  %v7388 = vsel %vm3202, %v7324, %v5818
  %v7389 = vsel %vm3202, %v7325, %v5820
  %v7390 = vsel %vm3202, %v7326, %v5822
  %v7391 = vsel %vm3202, %v7327, %v5824
  %v7392 = vsel %vm3202, %v7328, %v5826
  %v7393 = vsel %vm3202, %v7329, %v5828
  %v7394 = vsel %vm3202, %v7330, %v5830
  %v7395 = vsel %vm3202, %v7331, %v5832
  %v7396 = vsel %vm3202, %v7332, %v5834
  %v7397 = vsel %vm3202, %v7333, %v5836
  %v7398 = vsel %vm3202, %v7334, %v5838
  %v7399 = vsel %vm3202, %v7335, %v5840
  %v7400 = vsel %vm3202, %v7336, %v5842
  %v7401 = vsel %vm3202, %v7337, %v5844
  %v7402 = vsel %vm3202, %v7338, %v5846
  %v7403 = vsel %vm3202, %v7339, %v5848
  %v7404 = vsel %vm3202, %v7340, %v5850
  %v7405 = vsel %vm3202, %v7341, %v5852
  %v7406 = vsel %vm3202, %v7342, %v5854
  %v7407 = vsel %vm3202, %v7343, %v5856
  %v7408 = vsel %vm3202, %v7344, %v5858
  %v7409 = vsel %vm3202, %v7345, %v5860
  %v7410 = vsel %vm3202, %v7346, %v5862
  %v7411 = vsel %vm3202, %v7347, %v5864
  %v7412 = vsel %vm3202, %v7348, %v5866
  %v7413 = vsel %vm3202, %v7349, %v5868
  %v7414 = vsel %vm3202, %v7350, %v5870
  %v7415 = vsel %vm3202, %v7351, %v5872
  %v7416 = vsel %vm3202, %v7352, %v5874
  %v7417 = vsel %vm3202, %v7353, %v5876
  %v7418 = vsel %vm3202, %v7354, %v5878
  %v7419 = vsel %vm3202, %v7355, %v5880
  %v7420 = vsel %vm3202, %v7356, %v5882
  %v7421 = vsel %vm3202, %v7357, %v5884
  %v7422 = vsel %vm3202, %v7358, %v5886
  %v7423 = vsel %vm3332, %v7359, %v6016
  %v7424 = vsel %vm3332, %v7360, %v6018
  %v7425 = vsel %vm3332, %v7361, %v6020
  %v7426 = vsel %vm3332, %v7362, %v6022
  %v7427 = vsel %vm3332, %v7363, %v6024
  %v7428 = vsel %vm3332, %v7364, %v6026
  %v7429 = vsel %vm3332, %v7365, %v6028
  %v7430 = vsel %vm3332, %v7366, %v6030
  %v7431 = vsel %vm3332, %v7367, %v6032
  %v7432 = vsel %vm3332, %v7368, %v6034
  %v7433 = vsel %vm3332, %v7369, %v6036
  %v7434 = vsel %vm3332, %v7370, %v6038
  %v7435 = vsel %vm3332, %v7371, %v6040
  %v7436 = vsel %vm3332, %v7372, %v6042
  %v7437 = vsel %vm3332, %v7373, %v6044
  %v7438 = vsel %vm3332, %v7374, %v6046
  %v7439 = vsel %vm3332, %v7375, %v6048
  %v7440 = vsel %vm3332, %v7376, %v6050
  %v7441 = vsel %vm3332, %v7377, %v6052
  %v7442 = vsel %vm3332, %v7378, %v6054
  %v7443 = vsel %vm3332, %v7379, %v6056
  %v7444 = vsel %vm3332, %v7380, %v6058
  %v7445 = vsel %vm3332, %v7381, %v6060
  %v7446 = vsel %vm3332, %v7382, %v6062
  %v7447 = vsel %vm3332, %v7383, %v6064
  %v7448 = vsel %vm3332, %v7384, %v6066
  %v7449 = vsel %vm3332, %v7385, %v6068
  %v7450 = vsel %vm3332, %v7386, %v6070
  %v7451 = vsel %vm3332, %v7387, %v6072
  %v7452 = vsel %vm3332, %v7388, %v6074
  %v7453 = vsel %vm3332, %v7389, %v6076
  %v7454 = vsel %vm3332, %v7390, %v6078
  %v7455 = vsel %vm3332, %v7391, %v6080
  %v7456 = vsel %vm3332, %v7392, %v6082
  %v7457 = vsel %vm3332, %v7393, %v6084
  %v7458 = vsel %vm3332, %v7394, %v6086
  %v7459 = vsel %vm3332, %v7395, %v6088
  %v7460 = vsel %vm3332, %v7396, %v6090
  %v7461 = vsel %vm3332, %v7397, %v6092
  %v7462 = vsel %vm3332, %v7398, %v6094
  %v7463 = vsel %vm3332, %v7399, %v6096
  %v7464 = vsel %vm3332, %v7400, %v6098
  %v7465 = vsel %vm3332, %v7401, %v6100
  %v7466 = vsel %vm3332, %v7402, %v6102
  %v7467 = vsel %vm3332, %v7403, %v6104
  %v7468 = vsel %vm3332, %v7404, %v6106
  %v7469 = vsel %vm3332, %v7405, %v6108
  %v7470 = vsel %vm3332, %v7406, %v6110
  %v7471 = vsel %vm3332, %v7407, %v6112
  %v7472 = vsel %vm3332, %v7408, %v6114
  %v7473 = vsel %vm3332, %v7409, %v6116
  %v7474 = vsel %vm3332, %v7410, %v6118
  %v7475 = vsel %vm3332, %v7411, %v6120
  %v7476 = vsel %vm3332, %v7412, %v6122
  %v7477 = vsel %vm3332, %v7413, %v6124
  %v7478 = vsel %vm3332, %v7414, %v6126
  %v7479 = vsel %vm3332, %v7415, %v6128
  %v7480 = vsel %vm3332, %v7416, %v6130
  %v7481 = vsel %vm3332, %v7417, %v6132
  %v7482 = vsel %vm3332, %v7418, %v6134
  %v7483 = vsel %vm3332, %v7419, %v6136
  %v7484 = vsel %vm3332, %v7420, %v6138
  %v7485 = vsel %vm3332, %v7421, %v6140
  %v7486 = vsel %vm3332, %v7422, %v6142
  %vm7487 = vcmask 326656
  %v7488 = vsel %vm7487, %v7423, %v6272
  %v7489 = vsel %vm7487, %v7424, %v6274
  %v7490 = vsel %vm7487, %v7425, %v6276
  %v7491 = vsel %vm7487, %v7426, %v6278
  %v7492 = vsel %vm7487, %v7427, %v6280
  %v7493 = vsel %vm7487, %v7428, %v6282
  %v7494 = vsel %vm7487, %v7429, %v6284
  %v7495 = vsel %vm7487, %v7430, %v6286
  %v7496 = vsel %vm7487, %v7431, %v6288
  %v7497 = vsel %vm7487, %v7432, %v6290
  %v7498 = vsel %vm7487, %v7433, %v6292
  %v7499 = vsel %vm7487, %v7434, %v6294
  %v7500 = vsel %vm7487, %v7435, %v6296
  %v7501 = vsel %vm7487, %v7436, %v6298
  %v7502 = vsel %vm7487, %v7437, %v6300
  %v7503 = vsel %vm7487, %v7438, %v6302
  %v7504 = vsel %vm7487, %v7439, %v6304
  %v7505 = vsel %vm7487, %v7440, %v6306
  %v7506 = vsel %vm7487, %v7441, %v6308
  %v7507 = vsel %vm7487, %v7442, %v6310
  %v7508 = vsel %vm7487, %v7443, %v6312
  %v7509 = vsel %vm7487, %v7444, %v6314
  %v7510 = vsel %vm7487, %v7445, %v6316
  %v7511 = vsel %vm7487, %v7446, %v6318
  %v7512 = vsel %vm7487, %v7447, %v6320
  %v7513 = vsel %vm7487, %v7448, %v6322
  %v7514 = vsel %vm7487, %v7449, %v6324
  %v7515 = vsel %vm7487, %v7450, %v6326
  %v7516 = vsel %vm7487, %v7451, %v6328
  %v7517 = vsel %vm7487, %v7452, %v6330
  %v7518 = vsel %vm7487, %v7453, %v6332
  %v7519 = vsel %vm7487, %v7454, %v6334
  %v7520 = vsel %vm7487, %v7455, %v6336
  %v7521 = vsel %vm7487, %v7456, %v6338
  %v7522 = vsel %vm7487, %v7457, %v6340
  %v7523 = vsel %vm7487, %v7458, %v6342
  %v7524 = vsel %vm7487, %v7459, %v6344
  %v7525 = vsel %vm7487, %v7460, %v6346
  %v7526 = vsel %vm7487, %v7461, %v6348
  %v7527 = vsel %vm7487, %v7462, %v6350
  %v7528 = vsel %vm7487, %v7463, %v6352
  %v7529 = vsel %vm7487, %v7464, %v6354
  %v7530 = vsel %vm7487, %v7465, %v6356
  %v7531 = vsel %vm7487, %v7466, %v6358
  %v7532 = vsel %vm7487, %v7467, %v6360
  %v7533 = vsel %vm7487, %v7468, %v6362
  %v7534 = vsel %vm7487, %v7469, %v6364
  %v7535 = vsel %vm7487, %v7470, %v6366
  %v7536 = vsel %vm7487, %v7471, %v6368
  %v7537 = vsel %vm7487, %v7472, %v6370
  %v7538 = vsel %vm7487, %v7473, %v6372
  %v7539 = vsel %vm7487, %v7474, %v6374
  %v7540 = vsel %vm7487, %v7475, %v6376
  %v7541 = vsel %vm7487, %v7476, %v6378
  %v7542 = vsel %vm7487, %v7477, %v6380
  %v7543 = vsel %vm7487, %v7478, %v6382
  %v7544 = vsel %vm7487, %v7479, %v6384
  %v7545 = vsel %vm7487, %v7480, %v6386
  %v7546 = vsel %vm7487, %v7481, %v6388
  %v7547 = vsel %vm7487, %v7482, %v6390
  %v7548 = vsel %vm7487, %v7483, %v6392
  %v7549 = vsel %vm7487, %v7484, %v6394
  %v7550 = vsel %vm7487, %v7485, %v6396
  %v7551 = vsel %vm7487, %v7486, %v6398
  %vm7552 = vcmask 392192
  %v7553 = vsel %vm7552, %v7488, %v6528
  %v7554 = vsel %vm7552, %v7489, %v6530
  %v7555 = vsel %vm7552, %v7490, %v6532
  %v7556 = vsel %vm7552, %v7491, %v6534
  %v7557 = vsel %vm7552, %v7492, %v6536
  %v7558 = vsel %vm7552, %v7493, %v6538
  %v7559 = vsel %vm7552, %v7494, %v6540
  %v7560 = vsel %vm7552, %v7495, %v6542
  %v7561 = vsel %vm7552, %v7496, %v6544
  %v7562 = vsel %vm7552, %v7497, %v6546
  %v7563 = vsel %vm7552, %v7498, %v6548
  %v7564 = vsel %vm7552, %v7499, %v6550
  %v7565 = vsel %vm7552, %v7500, %v6552
  %v7566 = vsel %vm7552, %v7501, %v6554
  %v7567 = vsel %vm7552, %v7502, %v6556
  %v7568 = vsel %vm7552, %v7503, %v6558
  %v7569 = vsel %vm7552, %v7504, %v6560
  %v7570 = vsel %vm7552, %v7505, %v6562
  %v7571 = vsel %vm7552, %v7506, %v6564
  %v7572 = vsel %vm7552, %v7507, %v6566
  %v7573 = vsel %vm7552, %v7508, %v6568
  %v7574 = vsel %vm7552, %v7509, %v6570
  %v7575 = vsel %vm7552, %v7510, %v6572
  %v7576 = vsel %vm7552, %v7511, %v6574
  %v7577 = vsel %vm7552, %v7512, %v6576
  %v7578 = vsel %vm7552, %v7513, %v6578
  %v7579 = vsel %vm7552, %v7514, %v6580
  %v7580 = vsel %vm7552, %v7515, %v6582
  %v7581 = vsel %vm7552, %v7516, %v6584
  %v7582 = vsel %vm7552, %v7517, %v6586
  %v7583 = vsel %vm7552, %v7518, %v6588
  %v7584 = vsel %vm7552, %v7519, %v6590
  %v7585 = vsel %vm7552, %v7520, %v6592
  %v7586 = vsel %vm7552, %v7521, %v6594
  %v7587 = vsel %vm7552, %v7522, %v6596
  %v7588 = vsel %vm7552, %v7523, %v6598
  %v7589 = vsel %vm7552, %v7524, %v6600
  %v7590 = vsel %vm7552, %v7525, %v6602
  %v7591 = vsel %vm7552, %v7526, %v6604
  %v7592 = vsel %vm7552, %v7527, %v6606
  %v7593 = vsel %vm7552, %v7528, %v6608
  %v7594 = vsel %vm7552, %v7529, %v6610
  %v7595 = vsel %vm7552, %v7530, %v6612
  %v7596 = vsel %vm7552, %v7531, %v6614
  %v7597 = vsel %vm7552, %v7532, %v6616
  %v7598 = vsel %vm7552, %v7533, %v6618
  %v7599 = vsel %vm7552, %v7534, %v6620
  %v7600 = vsel %vm7552, %v7535, %v6622
  %v7601 = vsel %vm7552, %v7536, %v6624
  %v7602 = vsel %vm7552, %v7537, %v6626
  %v7603 = vsel %vm7552, %v7538, %v6628
  %v7604 = vsel %vm7552, %v7539, %v6630
  %v7605 = vsel %vm7552, %v7540, %v6632
  %v7606 = vsel %vm7552, %v7541, %v6634
  %v7607 = vsel %vm7552, %v7542, %v6636
  %v7608 = vsel %vm7552, %v7543, %v6638
  %v7609 = vsel %vm7552, %v7544, %v6640
  %v7610 = vsel %vm7552, %v7545, %v6642
  %v7611 = vsel %vm7552, %v7546, %v6644
  %v7612 = vsel %vm7552, %v7547, %v6646
  %v7613 = vsel %vm7552, %v7548, %v6648
  %v7614 = vsel %vm7552, %v7549, %v6650
  %v7615 = vsel %vm7552, %v7550, %v6652
  %v7616 = vsel %vm7552, %v7551, %v6654
  %vm7617 = vcmask 457728
  %v7618 = vsel %vm7617, %v7553, %v6784
  %v7619 = vsel %vm7617, %v7554, %v6786
  %v7620 = vsel %vm7617, %v7555, %v6788
  %v7621 = vsel %vm7617, %v7556, %v6790
  %v7622 = vsel %vm7617, %v7557, %v6792
  %v7623 = vsel %vm7617, %v7558, %v6794
  %v7624 = vsel %vm7617, %v7559, %v6796
  %v7625 = vsel %vm7617, %v7560, %v6798
  %v7626 = vsel %vm7617, %v7561, %v6800
  %v7627 = vsel %vm7617, %v7562, %v6802
  %v7628 = vsel %vm7617, %v7563, %v6804
  %v7629 = vsel %vm7617, %v7564, %v6806
  %v7630 = vsel %vm7617, %v7565, %v6808
  %v7631 = vsel %vm7617, %v7566, %v6810
  %v7632 = vsel %vm7617, %v7567, %v6812
  %v7633 = vsel %vm7617, %v7568, %v6814
  %v7634 = vsel %vm7617, %v7569, %v6816
  %v7635 = vsel %vm7617, %v7570, %v6818
  %v7636 = vsel %vm7617, %v7571, %v6820
  %v7637 = vsel %vm7617, %v7572, %v6822
  %v7638 = vsel %vm7617, %v7573, %v6824
  %v7639 = vsel %vm7617, %v7574, %v6826
  %v7640 = vsel %vm7617, %v7575, %v6828
  %v7641 = vsel %vm7617, %v7576, %v6830
  %v7642 = vsel %vm7617, %v7577, %v6832
  %v7643 = vsel %vm7617, %v7578, %v6834
  %v7644 = vsel %vm7617, %v7579, %v6836
  %v7645 = vsel %vm7617, %v7580, %v6838
  %v7646 = vsel %vm7617, %v7581, %v6840
  %v7647 = vsel %vm7617, %v7582, %v6842
  %v7648 = vsel %vm7617, %v7583, %v6844
  %v7649 = vsel %vm7617, %v7584, %v6846
  %v7650 = vsel %vm7617, %v7585, %v6848
  %v7651 = vsel %vm7617, %v7586, %v6850
  %v7652 = vsel %vm7617, %v7587, %v6852
  %v7653 = vsel %vm7617, %v7588, %v6854
  %v7654 = vsel %vm7617, %v7589, %v6856
  %v7655 = vsel %vm7617, %v7590, %v6858
  %v7656 = vsel %vm7617, %v7591, %v6860
  %v7657 = vsel %vm7617, %v7592, %v6862
  %v7658 = vsel %vm7617, %v7593, %v6864
  %v7659 = vsel %vm7617, %v7594, %v6866
  %v7660 = vsel %vm7617, %v7595, %v6868
  %v7661 = vsel %vm7617, %v7596, %v6870
  %v7662 = vsel %vm7617, %v7597, %v6872
  %v7663 = vsel %vm7617, %v7598, %v6874
  %v7664 = vsel %vm7617, %v7599, %v6876
  %v7665 = vsel %vm7617, %v7600, %v6878
  %v7666 = vsel %vm7617, %v7601, %v6880
  %v7667 = vsel %vm7617, %v7602, %v6882
  %v7668 = vsel %vm7617, %v7603, %v6884
  %v7669 = vsel %vm7617, %v7604, %v6886
  %v7670 = vsel %vm7617, %v7605, %v6888
  %v7671 = vsel %vm7617, %v7606, %v6890
  %v7672 = vsel %vm7617, %v7607, %v6892
  %v7673 = vsel %vm7617, %v7608, %v6894
  %v7674 = vsel %vm7617, %v7609, %v6896
  %v7675 = vsel %vm7617, %v7610, %v6898
  %v7676 = vsel %vm7617, %v7611, %v6900
  %v7677 = vsel %vm7617, %v7612, %v6902
  %v7678 = vsel %vm7617, %v7613, %v6904
  %v7679 = vsel %vm7617, %v7614, %v6906
  %v7680 = vsel %vm7617, %v7615, %v6908
  %v7681 = vsel %vm7617, %v7616, %v6910
  %vm7682 = vcmask 523264
  %v7683 = vsel %vm7682, %v7618, %v7040
  %v7684 = vsel %vm7682, %v7619, %v7042
  %v7685 = vsel %vm7682, %v7620, %v7044
  %v7686 = vsel %vm7682, %v7621, %v7046
  %v7687 = vsel %vm7682, %v7622, %v7048
  %v7688 = vsel %vm7682, %v7623, %v7050
  %v7689 = vsel %vm7682, %v7624, %v7052
  %v7690 = vsel %vm7682, %v7625, %v7054
  %v7691 = vsel %vm7682, %v7626, %v7056
  %v7692 = vsel %vm7682, %v7627, %v7058
  %v7693 = vsel %vm7682, %v7628, %v7060
  %v7694 = vsel %vm7682, %v7629, %v7062
  %v7695 = vsel %vm7682, %v7630, %v7064
  %v7696 = vsel %vm7682, %v7631, %v7066
  %v7697 = vsel %vm7682, %v7632, %v7068
  %v7698 = vsel %vm7682, %v7633, %v7070
  %v7699 = vsel %vm7682, %v7634, %v7072
  %v7700 = vsel %vm7682, %v7635, %v7074
  %v7701 = vsel %vm7682, %v7636, %v7076
  %v7702 = vsel %vm7682, %v7637, %v7078
  %v7703 = vsel %vm7682, %v7638, %v7080
  %v7704 = vsel %vm7682, %v7639, %v7082
  %v7705 = vsel %vm7682, %v7640, %v7084
  %v7706 = vsel %vm7682, %v7641, %v7086
  %v7707 = vsel %vm7682, %v7642, %v7088
  %v7708 = vsel %vm7682, %v7643, %v7090
  %v7709 = vsel %vm7682, %v7644, %v7092
  %v7710 = vsel %vm7682, %v7645, %v7094
  %v7711 = vsel %vm7682, %v7646, %v7096
  %v7712 = vsel %vm7682, %v7647, %v7098
  %v7713 = vsel %vm7682, %v7648, %v7100
  %v7714 = vsel %vm7682, %v7649, %v7102
  %v7715 = vsel %vm7682, %v7650, %v7104
  %v7716 = vsel %vm7682, %v7651, %v7106
  %v7717 = vsel %vm7682, %v7652, %v7108
  %v7718 = vsel %vm7682, %v7653, %v7110
  %v7719 = vsel %vm7682, %v7654, %v7112
  %v7720 = vsel %vm7682, %v7655, %v7114
  %v7721 = vsel %vm7682, %v7656, %v7116
  %v7722 = vsel %vm7682, %v7657, %v7118
  %v7723 = vsel %vm7682, %v7658, %v7120
  %v7724 = vsel %vm7682, %v7659, %v7122
  %v7725 = vsel %vm7682, %v7660, %v7124
  %v7726 = vsel %vm7682, %v7661, %v7126
  %v7727 = vsel %vm7682, %v7662, %v7128
  %v7728 = vsel %vm7682, %v7663, %v7130
  %v7729 = vsel %vm7682, %v7664, %v7132
  %v7730 = vsel %vm7682, %v7665, %v7134
  %v7731 = vsel %vm7682, %v7666, %v7136
  %v7732 = vsel %vm7682, %v7667, %v7138
  %v7733 = vsel %vm7682, %v7668, %v7140
  %v7734 = vsel %vm7682, %v7669, %v7142
  %v7735 = vsel %vm7682, %v7670, %v7144
  %v7736 = vsel %vm7682, %v7671, %v7146
  %v7737 = vsel %vm7682, %v7672, %v7148
  %v7738 = vsel %vm7682, %v7673, %v7150
  %v7739 = vsel %vm7682, %v7674, %v7152
  %v7740 = vsel %vm7682, %v7675, %v7154
  %v7741 = vsel %vm7682, %v7676, %v7156
  %v7742 = vsel %vm7682, %v7677, %v7158
  %v7743 = vsel %vm7682, %v7678, %v7160
  %v7744 = vsel %vm7682, %v7679, %v7162
  %v7745 = vsel %vm7682, %v7680, %v7164
  %v7746 = vsel %vm7682, %v7681, %v7166
  %v7747 = vpack.c.bf16 %v7684, %v7683
  %v7748 = vpack.c.bf16 %v7686, %v7685
  %v7749 = vpack.c.bf16 %v7688, %v7687
  %v7750 = vpack.c.bf16 %v7690, %v7689
  %v7751 = vpack.c.bf16 %v7692, %v7691
  %v7752 = vpack.c.bf16 %v7694, %v7693
  %v7753 = vpack.c.bf16 %v7696, %v7695
  %v7754 = vpack.c.bf16 %v7698, %v7697
  %v7755 = vpack.c.bf16 %v7700, %v7699
  %v7756 = vpack.c.bf16 %v7702, %v7701
  %v7757 = vpack.c.bf16 %v7704, %v7703
  %v7758 = vpack.c.bf16 %v7706, %v7705
  %v7759 = vpack.c.bf16 %v7708, %v7707
  %v7760 = vpack.c.bf16 %v7710, %v7709
  %v7761 = vpack.c.bf16 %v7712, %v7711
  %v7762 = vpack.c.bf16 %v7714, %v7713
  %v7763 = vpack.c.bf16 %v7716, %v7715
  %v7764 = vpack.c.bf16 %v7718, %v7717
  %v7765 = vpack.c.bf16 %v7720, %v7719
  %v7766 = vpack.c.bf16 %v7722, %v7721
  %v7767 = vpack.c.bf16 %v7724, %v7723
  %v7768 = vpack.c.bf16 %v7726, %v7725
  %v7769 = vpack.c.bf16 %v7728, %v7727
  %v7770 = vpack.c.bf16 %v7730, %v7729
  %v7771 = vpack.c.bf16 %v7732, %v7731
  %v7772 = vpack.c.bf16 %v7734, %v7733
  %v7773 = vpack.c.bf16 %v7736, %v7735
  %v7774 = vpack.c.bf16 %v7738, %v7737
  %v7775 = vpack.c.bf16 %v7740, %v7739
  %v7776 = vpack.c.bf16 %v7742, %v7741
  %v7777 = vpack.c.bf16 %v7744, %v7743
  %v7778 = vpack.c.bf16 %v7746, %v7745
  %v7779 = vld [vmem:[%s4] sm:$0xf]
  %v7780 = vld [vmem:[%s4 + $0x4] sm:$0xf]
  %v7781 = vld [vmem:[%s4 + $0x8] sm:$0xf]
  %v7782 = vld [vmem:[%s4 + $0xc] sm:$0xf]
  %v7783 = vld [vmem:[%s4 + $0x10] sm:$0xf]
  %v7784 = vld [vmem:[%s4 + $0x14] sm:$0xf]
  %v7785 = vld [vmem:[%s4 + $0x18] sm:$0xf]
  %v7786 = vld [vmem:[%s4 + $0x1c] sm:$0xf]
  %v7787 = vld [vmem:[%s4 + $0x20] sm:$0xf]
  %v7797 = vunpack.c.l.b16 %v7779
  %v7798 = vunpack.c.l.b16 %v7780
  %v7799 = vunpack.c.l.b16 %v7781
  %v7800 = vunpack.c.l.b16 %v7782
  %v7801 = vunpack.c.l.b16 %v7783
  %v7802 = vunpack.c.l.b16 %v7784
  %v7803 = vunpack.c.l.b16 %v7785
  %v7804 = vunpack.c.l.b16 %v7786
  %v7805 = vunpack.c.l.b16 %v7787
  %v7806 = vpack.c.b16 %v7798, %v7797
  %v7807 = vpack.c.b16 %v7800, %v7799
  %v7808 = vpack.c.b16 %v7802, %v7801
  %v7809 = vpack.c.b16 %v7804, %v7803
  %v7810 = vpack.c.b16 %v7805, %v7805
  %vm7815 = vcmask 588800
  %v7817 = vsel %vm7815, %v7747, 0
  %v7820 = vsel %vm7815, %v7748, 0
  %v7823 = vsel %vm7815, %v7749, 0
  %v7826 = vsel %vm7815, %v7750, 0
  %v7829 = vsel %vm7815, %v7751, 0
  %v7832 = vsel %vm7815, %v7752, 0
  %v7835 = vsel %vm7815, %v7753, 0
  %v7838 = vsel %vm7815, %v7754, 0
  %v7841 = vsel %vm7815, %v7755, 0
  %v7844 = vsel %vm7815, %v7756, 0
  %v7847 = vsel %vm7815, %v7757, 0
  %v7850 = vsel %vm7815, %v7758, 0
  %v7853 = vsel %vm7815, %v7759, 0
  %v7856 = vsel %vm7815, %v7760, 0
  %v7859 = vsel %vm7815, %v7761, 0
  %v7862 = vsel %vm7815, %v7762, 0
  %v7865 = vsel %vm7815, %v7763, 0
  %v7868 = vsel %vm7815, %v7764, 0
  %v7871 = vsel %vm7815, %v7765, 0
  %v7874 = vsel %vm7815, %v7766, 0
  %v7877 = vsel %vm7815, %v7767, 0
  %v7880 = vsel %vm7815, %v7768, 0
  %v7883 = vsel %vm7815, %v7769, 0
  %v7886 = vsel %vm7815, %v7770, 0
  %v7889 = vsel %vm7815, %v7771, 0
  %v7892 = vsel %vm7815, %v7772, 0
  %v7895 = vsel %vm7815, %v7773, 0
  %v7898 = vsel %vm7815, %v7774, 0
  %v7901 = vsel %vm7815, %v7775, 0
  %v7904 = vsel %vm7815, %v7776, 0
  %v7907 = vsel %vm7815, %v7777, 0
  %v7910 = vsel %vm7815, %v7778, 0
  %vm7912 = vcmask 1043456
  %v7914 = vsel %vm7912, %v7810, 0
  %7916 = vmatprep.subr.bf16.mxu0 0
  %7917 = vmatpush1.bf16.msra.mxu0 %v7806
  %7918 = vmatprep.subr.bf16.mxu0 0
  %7919 = vmatpush1.bf16.msra.mxu0 %v7807
  %7920 = vmatprep.subr.bf16.mxu0 0
  %7921 = vmatpush1.bf16.msra.mxu0 %v7808
  %7922 = vmatprep.subr.bf16.mxu0 0
  %7923 = vmatpush1.bf16.msra.mxu0 %v7809
  %7924 = vmatprep.subr.bf16.mxu0 0
  %7925 = vmatpush1.bf16.msra.mxu0 %v7914
  %7926 = vmatprep.subr.bf16.mxu0 0
  %7927 = vmatpush1.bf16.msra.mxu0 0
  %7928 = vmatprep.subr.bf16.mxu0 0
  %7929 = vmatpush1.bf16.msra.mxu0 0
  %7930 = vmatprep.subr.bf16.mxu0 0
  %7931 = vmatpush1.bf16.msra.mxu0 0
  %7932 = vmatprep.subr.bf16.mxu0 0
  %7933 = vmatpush1.bf16.msra.mxu0 0
  %7934 = vmatprep.subr.bf16.mxu0 0
  %7935 = vmatpush1.bf16.msra.mxu0 0
  %7936 = vmatprep.subr.bf16.mxu0 0
  %7937 = vmatpush1.bf16.msra.mxu0 0
  %7938 = vmatprep.subr.bf16.mxu0 0
  %7939 = vmatpush1.bf16.msra.mxu0 0
  %7940 = vmatprep.subr.bf16.mxu0 0
  %7941 = vmatpush1.bf16.msra.mxu0 0
  %7942 = vmatprep.subr.bf16.mxu0 0
  %7943 = vmatpush1.bf16.msra.mxu0 0
  %7944 = vmatprep.subr.bf16.mxu0 0
  %7945 = vmatpush1.bf16.msra.mxu0 0
  %7946 = vmatprep.subr.bf16.mxu0 0
  %7947 = vmatpush1.bf16.msra.mxu0 0
  %7948 = vmatprep.mubr.bf16.mxu0 0
  %7949 = vmatmul.mubr.bf16.gmra.mrb[0].mxu0 %v7817
  %v7950 = vpop.f32.mrb[0].mxu0
  %v7951 = vadd.f32 0.0, %v7950
  %v7952 = vpop.f32.mrb[0].mxu0
  %v7953 = vpop.f32.mrb[0].mxu0
  %v7954 = vadd.f32 0.0, %v7953
  %v7955 = vpop.f32.mrb[0].mxu0
  %7956 = vmatprep.mubr.bf16.mxu0 0
  %7957 = vmatmul.mubr.bf16.gmra.mrb[0].mxu0 %v7820
  %v7958 = vpop.f32.mrb[0].mxu0
  %v7959 = vadd.f32 0.0, %v7958
  %v7960 = vpop.f32.mrb[0].mxu0
  %v7961 = vpop.f32.mrb[0].mxu0
  %v7962 = vadd.f32 0.0, %v7961
  %v7963 = vpop.f32.mrb[0].mxu0
  %7964 = vmatprep.mubr.bf16.mxu0 0
  %7965 = vmatmul.mubr.bf16.gmra.mrb[0].mxu0 %v7823
  %v7966 = vpop.f32.mrb[0].mxu0
  %v7967 = vadd.f32 0.0, %v7966
  %v7968 = vpop.f32.mrb[0].mxu0
  %v7969 = vpop.f32.mrb[0].mxu0
  %v7970 = vadd.f32 0.0, %v7969
  %v7971 = vpop.f32.mrb[0].mxu0
  %7972 = vmatprep.mubr.bf16.mxu0 0
  %7973 = vmatmul.mubr.bf16.gmra.mrb[0].mxu0 %v7826
  %v7974 = vpop.f32.mrb[0].mxu0
  %v7975 = vadd.f32 0.0, %v7974
  %v7976 = vpop.f32.mrb[0].mxu0
  %v7977 = vpop.f32.mrb[0].mxu0
  %v7978 = vadd.f32 0.0, %v7977
  %v7979 = vpop.f32.mrb[0].mxu0
  %7980 = vmatprep.mubr.bf16.mxu0 0
  %7981 = vmatmul.mubr.bf16.gmra.mrb[0].mxu0 %v7829
  %v7982 = vpop.f32.mrb[0].mxu0
  %v7983 = vadd.f32 0.0, %v7982
  %v7984 = vpop.f32.mrb[0].mxu0
  %v7985 = vpop.f32.mrb[0].mxu0
  %v7986 = vadd.f32 0.0, %v7985
  %v7987 = vpop.f32.mrb[0].mxu0
  %7988 = vmatprep.mubr.bf16.mxu0 0
  %7989 = vmatmul.mubr.bf16.gmra.mrb[0].mxu0 %v7832
  %v7990 = vpop.f32.mrb[0].mxu0
  %v7991 = vadd.f32 0.0, %v7990
  %v7992 = vpop.f32.mrb[0].mxu0
  %v7993 = vpop.f32.mrb[0].mxu0
  %v7994 = vadd.f32 0.0, %v7993
  %v7995 = vpop.f32.mrb[0].mxu0
  %7996 = vmatprep.mubr.bf16.mxu0 0
  %7997 = vmatmul.mubr.bf16.gmra.mrb[0].mxu0 %v7835
  %v7998 = vpop.f32.mrb[0].mxu0
  %v7999 = vadd.f32 0.0, %v7998
  %v8000 = vpop.f32.mrb[0].mxu0
  %v8001 = vpop.f32.mrb[0].mxu0
  %v8002 = vadd.f32 0.0, %v8001
  %v8003 = vpop.f32.mrb[0].mxu0
  %8004 = vmatprep.mubr.bf16.mxu0 0
  %8005 = vmatmul.mubr.bf16.gmra.mrb[0].mxu0 %v7838
  %v8006 = vpop.f32.mrb[0].mxu0
  %v8007 = vadd.f32 0.0, %v8006
  %v8008 = vpop.f32.mrb[0].mxu0
  %v8009 = vpop.f32.mrb[0].mxu0
  %v8010 = vadd.f32 0.0, %v8009
  %v8011 = vpop.f32.mrb[0].mxu0
  %8012 = vmatprep.mubr.bf16.mxu0 0
  %8013 = vmatmul.mubr.bf16.gmra.mrb[0].mxu0 %v7841
  %v8014 = vpop.f32.mrb[0].mxu0
  %v8015 = vadd.f32 0.0, %v8014
  %v8016 = vpop.f32.mrb[0].mxu0
  %v8017 = vpop.f32.mrb[0].mxu0
  %v8018 = vadd.f32 0.0, %v8017
  %v8019 = vpop.f32.mrb[0].mxu0
  %8020 = vmatprep.mubr.bf16.mxu0 0
  %8021 = vmatmul.mubr.bf16.gmra.mrb[0].mxu0 %v7844
  %v8022 = vpop.f32.mrb[0].mxu0
  %v8023 = vadd.f32 0.0, %v8022
  %v8024 = vpop.f32.mrb[0].mxu0
  %v8025 = vpop.f32.mrb[0].mxu0
  %v8026 = vadd.f32 0.0, %v8025
  %v8027 = vpop.f32.mrb[0].mxu0
  %8028 = vmatprep.mubr.bf16.mxu0 0
  %8029 = vmatmul.mubr.bf16.gmra.mrb[0].mxu0 %v7847
  %v8030 = vpop.f32.mrb[0].mxu0
  %v8031 = vadd.f32 0.0, %v8030
  %v8032 = vpop.f32.mrb[0].mxu0
  %v8033 = vpop.f32.mrb[0].mxu0
  %v8034 = vadd.f32 0.0, %v8033
  %v8035 = vpop.f32.mrb[0].mxu0
  %8036 = vmatprep.mubr.bf16.mxu0 0
  %8037 = vmatmul.mubr.bf16.gmra.mrb[0].mxu0 %v7850
  %v8038 = vpop.f32.mrb[0].mxu0
  %v8039 = vadd.f32 0.0, %v8038
  %v8040 = vpop.f32.mrb[0].mxu0
  %v8041 = vpop.f32.mrb[0].mxu0
  %v8042 = vadd.f32 0.0, %v8041
  %v8043 = vpop.f32.mrb[0].mxu0
  %8044 = vmatprep.mubr.bf16.mxu0 0
  %8045 = vmatmul.mubr.bf16.gmra.mrb[0].mxu0 %v7853
  %v8046 = vpop.f32.mrb[0].mxu0
  %v8047 = vadd.f32 0.0, %v8046
  %v8048 = vpop.f32.mrb[0].mxu0
  %v8049 = vpop.f32.mrb[0].mxu0
  %v8050 = vadd.f32 0.0, %v8049
  %v8051 = vpop.f32.mrb[0].mxu0
  %8052 = vmatprep.mubr.bf16.mxu0 0
  %8053 = vmatmul.mubr.bf16.gmra.mrb[0].mxu0 %v7856
  %v8054 = vpop.f32.mrb[0].mxu0
  %v8055 = vadd.f32 0.0, %v8054
  %v8056 = vpop.f32.mrb[0].mxu0
  %v8057 = vpop.f32.mrb[0].mxu0
  %v8058 = vadd.f32 0.0, %v8057
  %v8059 = vpop.f32.mrb[0].mxu0
  %8060 = vmatprep.mubr.bf16.mxu0 0
  %8061 = vmatmul.mubr.bf16.gmra.mrb[0].mxu0 %v7859
  %v8062 = vpop.f32.mrb[0].mxu0
  %v8063 = vadd.f32 0.0, %v8062
  %v8064 = vpop.f32.mrb[0].mxu0
  %v8065 = vpop.f32.mrb[0].mxu0
  %v8066 = vadd.f32 0.0, %v8065
  %v8067 = vpop.f32.mrb[0].mxu0
  %8068 = vmatprep.mubr.bf16.mxu0 0
  %8069 = vmatmul.mubr.bf16.gmra.mrb[0].mxu0 %v7862
  %v8070 = vpop.f32.mrb[0].mxu0
  %v8071 = vadd.f32 0.0, %v8070
  %v8072 = vpop.f32.mrb[0].mxu0
  %v8073 = vpop.f32.mrb[0].mxu0
  %v8074 = vadd.f32 0.0, %v8073
  %v8075 = vpop.f32.mrb[0].mxu0
  %8076 = vmatprep.mubr.bf16.mxu0 0
  %8077 = vmatmul.mubr.bf16.gmra.mrb[0].mxu0 %v7865
  %v8078 = vpop.f32.mrb[0].mxu0
  %v8079 = vadd.f32 0.0, %v8078
  %v8080 = vpop.f32.mrb[0].mxu0
  %v8081 = vpop.f32.mrb[0].mxu0
  %v8082 = vadd.f32 0.0, %v8081
  %v8083 = vpop.f32.mrb[0].mxu0
  %8084 = vmatprep.mubr.bf16.mxu0 0
  %8085 = vmatmul.mubr.bf16.gmra.mrb[0].mxu0 %v7868
  %v8086 = vpop.f32.mrb[0].mxu0
  %v8087 = vadd.f32 0.0, %v8086
  %v8088 = vpop.f32.mrb[0].mxu0
  %v8089 = vpop.f32.mrb[0].mxu0
  %v8090 = vadd.f32 0.0, %v8089
  %v8091 = vpop.f32.mrb[0].mxu0
  %8092 = vmatprep.mubr.bf16.mxu0 0
  %8093 = vmatmul.mubr.bf16.gmra.mrb[0].mxu0 %v7871
  %v8094 = vpop.f32.mrb[0].mxu0
  %v8095 = vadd.f32 0.0, %v8094
  %v8096 = vpop.f32.mrb[0].mxu0
  %v8097 = vpop.f32.mrb[0].mxu0
  %v8098 = vadd.f32 0.0, %v8097
  %v8099 = vpop.f32.mrb[0].mxu0
  %8100 = vmatprep.mubr.bf16.mxu0 0
  %8101 = vmatmul.mubr.bf16.gmra.mrb[0].mxu0 %v7874
  %v8102 = vpop.f32.mrb[0].mxu0
  %v8103 = vadd.f32 0.0, %v8102
  %v8104 = vpop.f32.mrb[0].mxu0
  %v8105 = vpop.f32.mrb[0].mxu0
  %v8106 = vadd.f32 0.0, %v8105
  %v8107 = vpop.f32.mrb[0].mxu0
  %8108 = vmatprep.mubr.bf16.mxu0 0
  %8109 = vmatmul.mubr.bf16.gmra.mrb[0].mxu0 %v7877
  %v8110 = vpop.f32.mrb[0].mxu0
  %v8111 = vadd.f32 0.0, %v8110
  %v8112 = vpop.f32.mrb[0].mxu0
  %v8113 = vpop.f32.mrb[0].mxu0
  %v8114 = vadd.f32 0.0, %v8113
  %v8115 = vpop.f32.mrb[0].mxu0
  %8116 = vmatprep.mubr.bf16.mxu0 0
  %8117 = vmatmul.mubr.bf16.gmra.mrb[0].mxu0 %v7880
  %v8118 = vpop.f32.mrb[0].mxu0
  %v8119 = vadd.f32 0.0, %v8118
  %v8120 = vpop.f32.mrb[0].mxu0
  %v8121 = vpop.f32.mrb[0].mxu0
  %v8122 = vadd.f32 0.0, %v8121
  %v8123 = vpop.f32.mrb[0].mxu0
  %8124 = vmatprep.mubr.bf16.mxu0 0
  %8125 = vmatmul.mubr.bf16.gmra.mrb[0].mxu0 %v7883
  %v8126 = vpop.f32.mrb[0].mxu0
  %v8127 = vadd.f32 0.0, %v8126
  %v8128 = vpop.f32.mrb[0].mxu0
  %v8129 = vpop.f32.mrb[0].mxu0
  %v8130 = vadd.f32 0.0, %v8129
  %v8131 = vpop.f32.mrb[0].mxu0
  %8132 = vmatprep.mubr.bf16.mxu0 0
  %8133 = vmatmul.mubr.bf16.gmra.mrb[0].mxu0 %v7886
  %v8134 = vpop.f32.mrb[0].mxu0
  %v8135 = vadd.f32 0.0, %v8134
  %v8136 = vpop.f32.mrb[0].mxu0
  %v8137 = vpop.f32.mrb[0].mxu0
  %v8138 = vadd.f32 0.0, %v8137
  %v8139 = vpop.f32.mrb[0].mxu0
  %8140 = vmatprep.mubr.bf16.mxu0 0
  %8141 = vmatmul.mubr.bf16.gmra.mrb[0].mxu0 %v7889
  %v8142 = vpop.f32.mrb[0].mxu0
  %v8143 = vadd.f32 0.0, %v8142
  %v8144 = vpop.f32.mrb[0].mxu0
  %v8145 = vpop.f32.mrb[0].mxu0
  %v8146 = vadd.f32 0.0, %v8145
  %v8147 = vpop.f32.mrb[0].mxu0
  %8148 = vmatprep.mubr.bf16.mxu0 0
  %8149 = vmatmul.mubr.bf16.gmra.mrb[0].mxu0 %v7892
  %v8150 = vpop.f32.mrb[0].mxu0
  %v8151 = vadd.f32 0.0, %v8150
  %v8152 = vpop.f32.mrb[0].mxu0
  %v8153 = vpop.f32.mrb[0].mxu0
  %v8154 = vadd.f32 0.0, %v8153
  %v8155 = vpop.f32.mrb[0].mxu0
  %8156 = vmatprep.mubr.bf16.mxu0 0
  %8157 = vmatmul.mubr.bf16.gmra.mrb[0].mxu0 %v7895
  %v8158 = vpop.f32.mrb[0].mxu0
  %v8159 = vadd.f32 0.0, %v8158
  %v8160 = vpop.f32.mrb[0].mxu0
  %v8161 = vpop.f32.mrb[0].mxu0
  %v8162 = vadd.f32 0.0, %v8161
  %v8163 = vpop.f32.mrb[0].mxu0
  %8164 = vmatprep.mubr.bf16.mxu0 0
  %8165 = vmatmul.mubr.bf16.gmra.mrb[0].mxu0 %v7898
  %v8166 = vpop.f32.mrb[0].mxu0
  %v8167 = vadd.f32 0.0, %v8166
  %v8168 = vpop.f32.mrb[0].mxu0
  %v8169 = vpop.f32.mrb[0].mxu0
  %v8170 = vadd.f32 0.0, %v8169
  %v8171 = vpop.f32.mrb[0].mxu0
  %8172 = vmatprep.mubr.bf16.mxu0 0
  %8173 = vmatmul.mubr.bf16.gmra.mrb[0].mxu0 %v7901
  %v8174 = vpop.f32.mrb[0].mxu0
  %v8175 = vadd.f32 0.0, %v8174
  %v8176 = vpop.f32.mrb[0].mxu0
  %v8177 = vpop.f32.mrb[0].mxu0
  %v8178 = vadd.f32 0.0, %v8177
  %v8179 = vpop.f32.mrb[0].mxu0
  %8180 = vmatprep.mubr.bf16.mxu0 0
  %8181 = vmatmul.mubr.bf16.gmra.mrb[0].mxu0 %v7904
  %v8182 = vpop.f32.mrb[0].mxu0
  %v8183 = vadd.f32 0.0, %v8182
  %v8184 = vpop.f32.mrb[0].mxu0
  %v8185 = vpop.f32.mrb[0].mxu0
  %v8186 = vadd.f32 0.0, %v8185
  %v8187 = vpop.f32.mrb[0].mxu0
  %8188 = vmatprep.mubr.bf16.mxu0 0
  %8189 = vmatmul.mubr.bf16.gmra.mrb[0].mxu0 %v7907
  %v8190 = vpop.f32.mrb[0].mxu0
  %v8191 = vadd.f32 0.0, %v8190
  %v8192 = vpop.f32.mrb[0].mxu0
  %v8193 = vpop.f32.mrb[0].mxu0
  %v8194 = vadd.f32 0.0, %v8193
  %v8195 = vpop.f32.mrb[0].mxu0
  %8196 = vmatprep.mubr.bf16.mxu0 0
  %8197 = vmatmul.mubr.bf16.gmra.mrb[0].mxu0 %v7910
  %v8198 = vpop.f32.mrb[0].mxu0
  %v8199 = vadd.f32 0.0, %v8198
  %v8200 = vpop.f32.mrb[0].mxu0
  %v8201 = vpop.f32.mrb[0].mxu0
  %v8202 = vadd.f32 0.0, %v8201
  %v8203 = vpop.f32.mrb[0].mxu0
  %8204 = vdwg.mxu0
  %v8205 = vld [vmem:[%s5] sm:$0x1]
  %v8206 = vld [vmem:[%s6] sm:$0x1]
  %v8207 = vlaneseq
  %v8208 = vshrl.u32 %v8207, 7
  %v8209 = vsub.s32 0, %v8208
  %v8210 = vrot.slane %v7951, %v8209
  %v8211 = vsub.f32 %v7951, %v8210
  %v8212 = vsub.f32 %v7954, %v8210
  %v8213 = vsub.f32 %v7959, %v8210
  %v8214 = vsub.f32 %v7962, %v8210
  %v8215 = vsub.f32 %v7967, %v8210
  %v8216 = vsub.f32 %v7970, %v8210
  %v8217 = vsub.f32 %v7975, %v8210
  %v8218 = vsub.f32 %v7978, %v8210
  %v8219 = vsub.f32 %v7983, %v8210
  %v8220 = vsub.f32 %v7986, %v8210
  %v8221 = vsub.f32 %v7991, %v8210
  %v8222 = vsub.f32 %v7994, %v8210
  %v8223 = vsub.f32 %v7999, %v8210
  %v8224 = vsub.f32 %v8002, %v8210
  %v8225 = vsub.f32 %v8007, %v8210
  %v8226 = vsub.f32 %v8010, %v8210
  %v8227 = vsub.f32 %v8015, %v8210
  %v8228 = vsub.f32 %v8018, %v8210
  %v8229 = vsub.f32 %v8023, %v8210
  %v8230 = vsub.f32 %v8026, %v8210
  %v8231 = vsub.f32 %v8031, %v8210
  %v8232 = vsub.f32 %v8034, %v8210
  %v8233 = vsub.f32 %v8039, %v8210
  %v8234 = vsub.f32 %v8042, %v8210
  %v8235 = vsub.f32 %v8047, %v8210
  %v8236 = vsub.f32 %v8050, %v8210
  %v8237 = vsub.f32 %v8055, %v8210
  %v8238 = vsub.f32 %v8058, %v8210
  %v8239 = vsub.f32 %v8063, %v8210
  %v8240 = vsub.f32 %v8066, %v8210
  %v8241 = vsub.f32 %v8071, %v8210
  %v8242 = vsub.f32 %v8074, %v8210
  %v8243 = vsub.f32 %v8079, %v8210
  %v8244 = vsub.f32 %v8082, %v8210
  %v8245 = vsub.f32 %v8087, %v8210
  %v8246 = vsub.f32 %v8090, %v8210
  %v8247 = vsub.f32 %v8095, %v8210
  %v8248 = vsub.f32 %v8098, %v8210
  %v8249 = vsub.f32 %v8103, %v8210
  %v8250 = vsub.f32 %v8106, %v8210
  %v8251 = vsub.f32 %v8111, %v8210
  %v8252 = vsub.f32 %v8114, %v8210
  %v8253 = vsub.f32 %v8119, %v8210
  %v8254 = vsub.f32 %v8122, %v8210
  %v8255 = vsub.f32 %v8127, %v8210
  %v8256 = vsub.f32 %v8130, %v8210
  %v8257 = vsub.f32 %v8135, %v8210
  %v8258 = vsub.f32 %v8138, %v8210
  %v8259 = vsub.f32 %v8143, %v8210
  %v8260 = vsub.f32 %v8146, %v8210
  %v8261 = vsub.f32 %v8151, %v8210
  %v8262 = vsub.f32 %v8154, %v8210
  %v8263 = vsub.f32 %v8159, %v8210
  %v8264 = vsub.f32 %v8162, %v8210
  %v8265 = vsub.f32 %v8167, %v8210
  %v8266 = vsub.f32 %v8170, %v8210
  %v8267 = vsub.f32 %v8175, %v8210
  %v8268 = vsub.f32 %v8178, %v8210
  %v8269 = vsub.f32 %v8183, %v8210
  %v8270 = vsub.f32 %v8186, %v8210
  %v8271 = vsub.f32 %v8191, %v8210
  %v8272 = vsub.f32 %v8194, %v8210
  %v8273 = vsub.f32 %v8199, %v8210
  %v8274 = vsub.f32 %v8202, %v8210
  %v8275 = vsel %vm2942, %v8211, 0.0
  %v8276 = vsel %vm2942, %v8212, 0.0
  %v8277 = vadd.f32 %v8275, %v8276
  %v8278 = vsel %vm2942, %v8213, 0.0
  %v8279 = vadd.f32 %v8277, %v8278
  %v8280 = vsel %vm2942, %v8214, 0.0
  %v8281 = vadd.f32 %v8279, %v8280
  %v8282 = vsel %vm2942, %v8215, 0.0
  %v8283 = vadd.f32 %v8281, %v8282
  %v8284 = vsel %vm2942, %v8216, 0.0
  %v8285 = vadd.f32 %v8283, %v8284
  %v8286 = vsel %vm2942, %v8217, 0.0
  %v8287 = vadd.f32 %v8285, %v8286
  %v8288 = vsel %vm2942, %v8218, 0.0
  %v8289 = vadd.f32 %v8287, %v8288
  %v8290 = vsel %vm2942, %v8219, 0.0
  %v8291 = vadd.f32 %v8289, %v8290
  %v8292 = vsel %vm2942, %v8220, 0.0
  %v8293 = vadd.f32 %v8291, %v8292
  %v8294 = vsel %vm2942, %v8221, 0.0
  %v8295 = vadd.f32 %v8293, %v8294
  %v8296 = vsel %vm2942, %v8222, 0.0
  %v8297 = vadd.f32 %v8295, %v8296
  %v8298 = vsel %vm2942, %v8223, 0.0
  %v8299 = vadd.f32 %v8297, %v8298
  %v8300 = vsel %vm2942, %v8224, 0.0
  %v8301 = vadd.f32 %v8299, %v8300
  %v8302 = vsel %vm2942, %v8225, 0.0
  %v8303 = vadd.f32 %v8301, %v8302
  %v8304 = vsel %vm2942, %v8226, 0.0
  %v8305 = vadd.f32 %v8303, %v8304
  %v8306 = vsel %vm2942, %v8227, 0.0
  %v8307 = vadd.f32 %v8305, %v8306
  %v8308 = vsel %vm2942, %v8228, 0.0
  %v8309 = vadd.f32 %v8307, %v8308
  %v8310 = vsel %vm2942, %v8229, 0.0
  %v8311 = vadd.f32 %v8309, %v8310
  %v8312 = vsel %vm2942, %v8230, 0.0
  %v8313 = vadd.f32 %v8311, %v8312
  %v8314 = vsel %vm2942, %v8231, 0.0
  %v8315 = vadd.f32 %v8313, %v8314
  %v8316 = vsel %vm2942, %v8232, 0.0
  %v8317 = vadd.f32 %v8315, %v8316
  %v8318 = vsel %vm2942, %v8233, 0.0
  %v8319 = vadd.f32 %v8317, %v8318
  %v8320 = vsel %vm2942, %v8234, 0.0
  %v8321 = vadd.f32 %v8319, %v8320
  %v8322 = vsel %vm2942, %v8235, 0.0
  %v8323 = vadd.f32 %v8321, %v8322
  %v8324 = vsel %vm2942, %v8236, 0.0
  %v8325 = vadd.f32 %v8323, %v8324
  %v8326 = vsel %vm2942, %v8237, 0.0
  %v8327 = vadd.f32 %v8325, %v8326
  %v8328 = vsel %vm2942, %v8238, 0.0
  %v8329 = vadd.f32 %v8327, %v8328
  %v8330 = vsel %vm2942, %v8239, 0.0
  %v8331 = vadd.f32 %v8329, %v8330
  %v8332 = vsel %vm2942, %v8240, 0.0
  %v8333 = vadd.f32 %v8331, %v8332
  %v8334 = vsel %vm2942, %v8241, 0.0
  %v8335 = vadd.f32 %v8333, %v8334
  %v8336 = vsel %vm2942, %v8242, 0.0
  %v8337 = vadd.f32 %v8335, %v8336
  %v8338 = vsel %vm2942, %v8243, 0.0
  %v8339 = vadd.f32 %v8337, %v8338
  %v8340 = vsel %vm2942, %v8244, 0.0
  %v8341 = vadd.f32 %v8339, %v8340
  %v8342 = vsel %vm2942, %v8245, 0.0
  %v8343 = vadd.f32 %v8341, %v8342
  %v8344 = vsel %vm2942, %v8246, 0.0
  %v8345 = vadd.f32 %v8343, %v8344
  %v8346 = vsel %vm2942, %v8247, 0.0
  %v8347 = vadd.f32 %v8345, %v8346
  %v8348 = vsel %vm2942, %v8248, 0.0
  %v8349 = vadd.f32 %v8347, %v8348
  %v8350 = vsel %vm2942, %v8249, 0.0
  %v8351 = vadd.f32 %v8349, %v8350
  %v8352 = vsel %vm2942, %v8250, 0.0
  %v8353 = vadd.f32 %v8351, %v8352
  %v8354 = vsel %vm2942, %v8251, 0.0
  %v8355 = vadd.f32 %v8353, %v8354
  %v8356 = vsel %vm2942, %v8252, 0.0
  %v8357 = vadd.f32 %v8355, %v8356
  %v8358 = vsel %vm2942, %v8253, 0.0
  %v8359 = vadd.f32 %v8357, %v8358
  %v8360 = vsel %vm2942, %v8254, 0.0
  %v8361 = vadd.f32 %v8359, %v8360
  %v8362 = vsel %vm2942, %v8255, 0.0
  %v8363 = vadd.f32 %v8361, %v8362
  %v8364 = vsel %vm2942, %v8256, 0.0
  %v8365 = vadd.f32 %v8363, %v8364
  %v8366 = vsel %vm2942, %v8257, 0.0
  %v8367 = vadd.f32 %v8365, %v8366
  %v8368 = vsel %vm2942, %v8258, 0.0
  %v8369 = vadd.f32 %v8367, %v8368
  %v8370 = vsel %vm2942, %v8259, 0.0
  %v8371 = vadd.f32 %v8369, %v8370
  %v8372 = vsel %vm2942, %v8260, 0.0
  %v8373 = vadd.f32 %v8371, %v8372
  %v8374 = vsel %vm2942, %v8261, 0.0
  %v8375 = vadd.f32 %v8373, %v8374
  %v8376 = vsel %vm2942, %v8262, 0.0
  %v8377 = vadd.f32 %v8375, %v8376
  %v8378 = vsel %vm2942, %v8263, 0.0
  %v8379 = vadd.f32 %v8377, %v8378
  %v8380 = vsel %vm2942, %v8264, 0.0
  %v8381 = vadd.f32 %v8379, %v8380
  %v8382 = vsel %vm2942, %v8265, 0.0
  %v8383 = vadd.f32 %v8381, %v8382
  %v8384 = vsel %vm2942, %v8266, 0.0
  %v8385 = vadd.f32 %v8383, %v8384
  %v8386 = vsel %vm2942, %v8267, 0.0
  %v8387 = vadd.f32 %v8385, %v8386
  %v8388 = vsel %vm2942, %v8268, 0.0
  %v8389 = vadd.f32 %v8387, %v8388
  %v8390 = vsel %vm2942, %v8269, 0.0
  %v8391 = vadd.f32 %v8389, %v8390
  %v8392 = vsel %vm2942, %v8270, 0.0
  %v8393 = vadd.f32 %v8391, %v8392
  %v8394 = vsel %vm2942, %v8271, 0.0
  %v8395 = vadd.f32 %v8393, %v8394
  %v8396 = vsel %vm2942, %v8272, 0.0
  %v8397 = vadd.f32 %v8395, %v8396
  %v8398 = vsel %vm2942, %v8273, 0.0
  %v8399 = vadd.f32 %v8397, %v8398
  %v8400 = vsel %vm2942, %v8274, 0.0
  %v8401 = vadd.f32 %v8399, %v8400
  %v8402 = vrot.slane %v8401, 4
  %v8403 = vadd.f32 %v8401, %v8402
  %v8404 = vrot.slane %v8403, 2
  %v8405 = vadd.f32 %v8403, %v8404
  %v8406 = vrot.slane %v8405, 1
  %v8407 = vadd.f32 %v8405, %v8406
  %v8408 = vmul.f32 %v8211, %v8211
  %v8409 = vmul.f32 %v8212, %v8212
  %v8410 = vmul.f32 %v8213, %v8213
  %v8411 = vmul.f32 %v8214, %v8214
  %v8412 = vmul.f32 %v8215, %v8215
  %v8413 = vmul.f32 %v8216, %v8216
  %v8414 = vmul.f32 %v8217, %v8217
  %v8415 = vmul.f32 %v8218, %v8218
  %v8416 = vmul.f32 %v8219, %v8219
  %v8417 = vmul.f32 %v8220, %v8220
  %v8418 = vmul.f32 %v8221, %v8221
  %v8419 = vmul.f32 %v8222, %v8222
  %v8420 = vmul.f32 %v8223, %v8223
  %v8421 = vmul.f32 %v8224, %v8224
  %v8422 = vmul.f32 %v8225, %v8225
  %v8423 = vmul.f32 %v8226, %v8226
  %v8424 = vmul.f32 %v8227, %v8227
  %v8425 = vmul.f32 %v8228, %v8228
  %v8426 = vmul.f32 %v8229, %v8229
  %v8427 = vmul.f32 %v8230, %v8230
  %v8428 = vmul.f32 %v8231, %v8231
  %v8429 = vmul.f32 %v8232, %v8232
  %v8430 = vmul.f32 %v8233, %v8233
  %v8431 = vmul.f32 %v8234, %v8234
  %v8432 = vmul.f32 %v8235, %v8235
  %v8433 = vmul.f32 %v8236, %v8236
  %v8434 = vmul.f32 %v8237, %v8237
  %v8435 = vmul.f32 %v8238, %v8238
  %v8436 = vmul.f32 %v8239, %v8239
  %v8437 = vmul.f32 %v8240, %v8240
  %v8438 = vmul.f32 %v8241, %v8241
  %v8439 = vmul.f32 %v8242, %v8242
  %v8440 = vmul.f32 %v8243, %v8243
  %v8441 = vmul.f32 %v8244, %v8244
  %v8442 = vmul.f32 %v8245, %v8245
  %v8443 = vmul.f32 %v8246, %v8246
  %v8444 = vmul.f32 %v8247, %v8247
  %v8445 = vmul.f32 %v8248, %v8248
  %v8446 = vmul.f32 %v8249, %v8249
  %v8447 = vmul.f32 %v8250, %v8250
  %v8448 = vmul.f32 %v8251, %v8251
  %v8449 = vmul.f32 %v8252, %v8252
  %v8450 = vmul.f32 %v8253, %v8253
  %v8451 = vmul.f32 %v8254, %v8254
  %v8452 = vmul.f32 %v8255, %v8255
  %v8453 = vmul.f32 %v8256, %v8256
  %v8454 = vmul.f32 %v8257, %v8257
  %v8455 = vmul.f32 %v8258, %v8258
  %v8456 = vmul.f32 %v8259, %v8259
  %v8457 = vmul.f32 %v8260, %v8260
  %v8458 = vmul.f32 %v8261, %v8261
  %v8459 = vmul.f32 %v8262, %v8262
  %v8460 = vmul.f32 %v8263, %v8263
  %v8461 = vmul.f32 %v8264, %v8264
  %v8462 = vmul.f32 %v8265, %v8265
  %v8463 = vmul.f32 %v8266, %v8266
  %v8464 = vmul.f32 %v8267, %v8267
  %v8465 = vmul.f32 %v8268, %v8268
  %v8466 = vmul.f32 %v8269, %v8269
  %v8467 = vmul.f32 %v8270, %v8270
  %v8468 = vmul.f32 %v8271, %v8271
  %v8469 = vmul.f32 %v8272, %v8272
  %v8470 = vmul.f32 %v8273, %v8273
  %v8471 = vmul.f32 %v8274, %v8274
  %v8472 = vsel %vm2942, %v8408, 0.0
  %v8473 = vsel %vm2942, %v8409, 0.0
  %v8474 = vadd.f32 %v8472, %v8473
  %v8475 = vsel %vm2942, %v8410, 0.0
  %v8476 = vadd.f32 %v8474, %v8475
  %v8477 = vsel %vm2942, %v8411, 0.0
  %v8478 = vadd.f32 %v8476, %v8477
  %v8479 = vsel %vm2942, %v8412, 0.0
  %v8480 = vadd.f32 %v8478, %v8479
  %v8481 = vsel %vm2942, %v8413, 0.0
  %v8482 = vadd.f32 %v8480, %v8481
  %v8483 = vsel %vm2942, %v8414, 0.0
  %v8484 = vadd.f32 %v8482, %v8483
  %v8485 = vsel %vm2942, %v8415, 0.0
  %v8486 = vadd.f32 %v8484, %v8485
  %v8487 = vsel %vm2942, %v8416, 0.0
  %v8488 = vadd.f32 %v8486, %v8487
  %v8489 = vsel %vm2942, %v8417, 0.0
  %v8490 = vadd.f32 %v8488, %v8489
  %v8491 = vsel %vm2942, %v8418, 0.0
  %v8492 = vadd.f32 %v8490, %v8491
  %v8493 = vsel %vm2942, %v8419, 0.0
  %v8494 = vadd.f32 %v8492, %v8493
  %v8495 = vsel %vm2942, %v8420, 0.0
  %v8496 = vadd.f32 %v8494, %v8495
  %v8497 = vsel %vm2942, %v8421, 0.0
  %v8498 = vadd.f32 %v8496, %v8497
  %v8499 = vsel %vm2942, %v8422, 0.0
  %v8500 = vadd.f32 %v8498, %v8499
  %v8501 = vsel %vm2942, %v8423, 0.0
  %v8502 = vadd.f32 %v8500, %v8501
  %v8503 = vsel %vm2942, %v8424, 0.0
  %v8504 = vadd.f32 %v8502, %v8503
  %v8505 = vsel %vm2942, %v8425, 0.0
  %v8506 = vadd.f32 %v8504, %v8505
  %v8507 = vsel %vm2942, %v8426, 0.0
  %v8508 = vadd.f32 %v8506, %v8507
  %v8509 = vsel %vm2942, %v8427, 0.0
  %v8510 = vadd.f32 %v8508, %v8509
  %v8511 = vsel %vm2942, %v8428, 0.0
  %v8512 = vadd.f32 %v8510, %v8511
  %v8513 = vsel %vm2942, %v8429, 0.0
  %v8514 = vadd.f32 %v8512, %v8513
  %v8515 = vsel %vm2942, %v8430, 0.0
  %v8516 = vadd.f32 %v8514, %v8515
  %v8517 = vsel %vm2942, %v8431, 0.0
  %v8518 = vadd.f32 %v8516, %v8517
  %v8519 = vsel %vm2942, %v8432, 0.0
  %v8520 = vadd.f32 %v8518, %v8519
  %v8521 = vsel %vm2942, %v8433, 0.0
  %v8522 = vadd.f32 %v8520, %v8521
  %v8523 = vsel %vm2942, %v8434, 0.0
  %v8524 = vadd.f32 %v8522, %v8523
  %v8525 = vsel %vm2942, %v8435, 0.0
  %v8526 = vadd.f32 %v8524, %v8525
  %v8527 = vsel %vm2942, %v8436, 0.0
  %v8528 = vadd.f32 %v8526, %v8527
  %v8529 = vsel %vm2942, %v8437, 0.0
  %v8530 = vadd.f32 %v8528, %v8529
  %v8531 = vsel %vm2942, %v8438, 0.0
  %v8532 = vadd.f32 %v8530, %v8531
  %v8533 = vsel %vm2942, %v8439, 0.0
  %v8534 = vadd.f32 %v8532, %v8533
  %v8535 = vsel %vm2942, %v8440, 0.0
  %v8536 = vadd.f32 %v8534, %v8535
  %v8537 = vsel %vm2942, %v8441, 0.0
  %v8538 = vadd.f32 %v8536, %v8537
  %v8539 = vsel %vm2942, %v8442, 0.0
  %v8540 = vadd.f32 %v8538, %v8539
  %v8541 = vsel %vm2942, %v8443, 0.0
  %v8542 = vadd.f32 %v8540, %v8541
  %v8543 = vsel %vm2942, %v8444, 0.0
  %v8544 = vadd.f32 %v8542, %v8543
  %v8545 = vsel %vm2942, %v8445, 0.0
  %v8546 = vadd.f32 %v8544, %v8545
  %v8547 = vsel %vm2942, %v8446, 0.0
  %v8548 = vadd.f32 %v8546, %v8547
  %v8549 = vsel %vm2942, %v8447, 0.0
  %v8550 = vadd.f32 %v8548, %v8549
  %v8551 = vsel %vm2942, %v8448, 0.0
  %v8552 = vadd.f32 %v8550, %v8551
  %v8553 = vsel %vm2942, %v8449, 0.0
  %v8554 = vadd.f32 %v8552, %v8553
  %v8555 = vsel %vm2942, %v8450, 0.0
  %v8556 = vadd.f32 %v8554, %v8555
  %v8557 = vsel %vm2942, %v8451, 0.0
  %v8558 = vadd.f32 %v8556, %v8557
  %v8559 = vsel %vm2942, %v8452, 0.0
  %v8560 = vadd.f32 %v8558, %v8559
  %v8561 = vsel %vm2942, %v8453, 0.0
  %v8562 = vadd.f32 %v8560, %v8561
  %v8563 = vsel %vm2942, %v8454, 0.0
  %v8564 = vadd.f32 %v8562, %v8563
  %v8565 = vsel %vm2942, %v8455, 0.0
  %v8566 = vadd.f32 %v8564, %v8565
  %v8567 = vsel %vm2942, %v8456, 0.0
  %v8568 = vadd.f32 %v8566, %v8567
  %v8569 = vsel %vm2942, %v8457, 0.0
  %v8570 = vadd.f32 %v8568, %v8569
  %v8571 = vsel %vm2942, %v8458, 0.0
  %v8572 = vadd.f32 %v8570, %v8571
  %v8573 = vsel %vm2942, %v8459, 0.0
  %v8574 = vadd.f32 %v8572, %v8573
  %v8575 = vsel %vm2942, %v8460, 0.0
  %v8576 = vadd.f32 %v8574, %v8575
  %v8577 = vsel %vm2942, %v8461, 0.0
  %v8578 = vadd.f32 %v8576, %v8577
  %v8579 = vsel %vm2942, %v8462, 0.0
  %v8580 = vadd.f32 %v8578, %v8579
  %v8581 = vsel %vm2942, %v8463, 0.0
  %v8582 = vadd.f32 %v8580, %v8581
  %v8583 = vsel %vm2942, %v8464, 0.0
  %v8584 = vadd.f32 %v8582, %v8583
  %v8585 = vsel %vm2942, %v8465, 0.0
  %v8586 = vadd.f32 %v8584, %v8585
  %v8587 = vsel %vm2942, %v8466, 0.0
  %v8588 = vadd.f32 %v8586, %v8587
  %v8589 = vsel %vm2942, %v8467, 0.0
  %v8590 = vadd.f32 %v8588, %v8589
  %v8591 = vsel %vm2942, %v8468, 0.0
  %v8592 = vadd.f32 %v8590, %v8591
  %v8593 = vsel %vm2942, %v8469, 0.0
  %v8594 = vadd.f32 %v8592, %v8593
  %v8595 = vsel %vm2942, %v8470, 0.0
  %v8596 = vadd.f32 %v8594, %v8595
  %v8597 = vsel %vm2942, %v8471, 0.0
  %v8598 = vadd.f32 %v8596, %v8597
  %v8599 = vrot.slane %v8598, 4
  %v8600 = vadd.f32 %v8598, %v8599
  %v8601 = vrot.slane %v8600, 2
  %v8602 = vadd.f32 %v8600, %v8601
  %v8603 = vrot.slane %v8602, 1
  %v8604 = vadd.f32 %v8602, %v8603
  %v8605 = vmul.f32 %v8407, 0.001953125
  %v8606 = vmul.f32 %v8604, 0.001953125
  %v8607 = vmul.f32 %v8605, %v8605
  %v8608 = vsub.f32 %v8606, %v8607
  %v8609 = vmax.f32 %v8608, 0.0
  %v8610 = vadd.f32 %v8605, %v7951
  %v8611 = vadd.f32 %v8609, 1e-05
  %v8612 = vrsqrt.pop %v8611
  %v8613 = vmul.f32 %v8205, %v8612
  %v8614 = vmul.f32 %v8610, %v8613
  %v8615 = vsub.f32 %v8206, %v8614
  %v8617 = vlaneseq
  %v8618 = vshrl.u32 %v8617, 7
  %v8619 = vsub.s32 0, %v8618
  %v8620 = vrot.slane %v8613, %v8619
  %v8622 = vmul.f32 %v7951, %v8620
  %v8623 = vmul.f32 %v7954, %v8620
  %v8624 = vmul.f32 %v7959, %v8620
  %v8625 = vmul.f32 %v7962, %v8620
  %v8626 = vmul.f32 %v7967, %v8620
  %v8627 = vmul.f32 %v7970, %v8620
  %v8628 = vmul.f32 %v7975, %v8620
  %v8629 = vmul.f32 %v7978, %v8620
  %v8630 = vmul.f32 %v7983, %v8620
  %v8631 = vmul.f32 %v7986, %v8620
  %v8632 = vmul.f32 %v7991, %v8620
  %v8633 = vmul.f32 %v7994, %v8620
  %v8634 = vmul.f32 %v7999, %v8620
  %v8635 = vmul.f32 %v8002, %v8620
  %v8636 = vmul.f32 %v8007, %v8620
  %v8637 = vmul.f32 %v8010, %v8620
  %v8638 = vmul.f32 %v8015, %v8620
  %v8639 = vmul.f32 %v8018, %v8620
  %v8640 = vmul.f32 %v8023, %v8620
  %v8641 = vmul.f32 %v8026, %v8620
  %v8642 = vmul.f32 %v8031, %v8620
  %v8643 = vmul.f32 %v8034, %v8620
  %v8644 = vmul.f32 %v8039, %v8620
  %v8645 = vmul.f32 %v8042, %v8620
  %v8646 = vmul.f32 %v8047, %v8620
  %v8647 = vmul.f32 %v8050, %v8620
  %v8648 = vmul.f32 %v8055, %v8620
  %v8649 = vmul.f32 %v8058, %v8620
  %v8650 = vmul.f32 %v8063, %v8620
  %v8651 = vmul.f32 %v8066, %v8620
  %v8652 = vmul.f32 %v8071, %v8620
  %v8653 = vmul.f32 %v8074, %v8620
  %v8654 = vmul.f32 %v8079, %v8620
  %v8655 = vmul.f32 %v8082, %v8620
  %v8656 = vmul.f32 %v8087, %v8620
  %v8657 = vmul.f32 %v8090, %v8620
  %v8658 = vmul.f32 %v8095, %v8620
  %v8659 = vmul.f32 %v8098, %v8620
  %v8660 = vmul.f32 %v8103, %v8620
  %v8661 = vmul.f32 %v8106, %v8620
  %v8662 = vmul.f32 %v8111, %v8620
  %v8663 = vmul.f32 %v8114, %v8620
  %v8664 = vmul.f32 %v8119, %v8620
  %v8665 = vmul.f32 %v8122, %v8620
  %v8666 = vmul.f32 %v8127, %v8620
  %v8667 = vmul.f32 %v8130, %v8620
  %v8668 = vmul.f32 %v8135, %v8620
  %v8669 = vmul.f32 %v8138, %v8620
  %v8670 = vmul.f32 %v8143, %v8620
  %v8671 = vmul.f32 %v8146, %v8620
  %v8672 = vmul.f32 %v8151, %v8620
  %v8673 = vmul.f32 %v8154, %v8620
  %v8674 = vmul.f32 %v8159, %v8620
  %v8675 = vmul.f32 %v8162, %v8620
  %v8676 = vmul.f32 %v8167, %v8620
  %v8677 = vmul.f32 %v8170, %v8620
  %v8678 = vmul.f32 %v8175, %v8620
  %v8679 = vmul.f32 %v8178, %v8620
  %v8680 = vmul.f32 %v8183, %v8620
  %v8681 = vmul.f32 %v8186, %v8620
  %v8682 = vmul.f32 %v8191, %v8620
  %v8683 = vmul.f32 %v8194, %v8620
  %v8684 = vmul.f32 %v8199, %v8620
  %v8685 = vmul.f32 %v8202, %v8620
  %v8687 = vlaneseq
  %v8688 = vshrl.u32 %v8687, 7
  %v8689 = vsub.s32 0, %v8688
  %v8690 = vrot.slane %v8615, %v8689
  %v8692 = vadd.f32 %v8622, %v8690
  %v8693 = vadd.f32 %v8623, %v8690
  %v8694 = vadd.f32 %v8624, %v8690
  %v8695 = vadd.f32 %v8625, %v8690
  %v8696 = vadd.f32 %v8626, %v8690
  %v8697 = vadd.f32 %v8627, %v8690
  %v8698 = vadd.f32 %v8628, %v8690
  %v8699 = vadd.f32 %v8629, %v8690
  %v8700 = vadd.f32 %v8630, %v8690
  %v8701 = vadd.f32 %v8631, %v8690
  %v8702 = vadd.f32 %v8632, %v8690
  %v8703 = vadd.f32 %v8633, %v8690
  %v8704 = vadd.f32 %v8634, %v8690
  %v8705 = vadd.f32 %v8635, %v8690
  %v8706 = vadd.f32 %v8636, %v8690
  %v8707 = vadd.f32 %v8637, %v8690
  %v8708 = vadd.f32 %v8638, %v8690
  %v8709 = vadd.f32 %v8639, %v8690
  %v8710 = vadd.f32 %v8640, %v8690
  %v8711 = vadd.f32 %v8641, %v8690
  %v8712 = vadd.f32 %v8642, %v8690
  %v8713 = vadd.f32 %v8643, %v8690
  %v8714 = vadd.f32 %v8644, %v8690
  %v8715 = vadd.f32 %v8645, %v8690
  %v8716 = vadd.f32 %v8646, %v8690
  %v8717 = vadd.f32 %v8647, %v8690
  %v8718 = vadd.f32 %v8648, %v8690
  %v8719 = vadd.f32 %v8649, %v8690
  %v8720 = vadd.f32 %v8650, %v8690
  %v8721 = vadd.f32 %v8651, %v8690
  %v8722 = vadd.f32 %v8652, %v8690
  %v8723 = vadd.f32 %v8653, %v8690
  %v8724 = vadd.f32 %v8654, %v8690
  %v8725 = vadd.f32 %v8655, %v8690
  %v8726 = vadd.f32 %v8656, %v8690
  %v8727 = vadd.f32 %v8657, %v8690
  %v8728 = vadd.f32 %v8658, %v8690
  %v8729 = vadd.f32 %v8659, %v8690
  %v8730 = vadd.f32 %v8660, %v8690
  %v8731 = vadd.f32 %v8661, %v8690
  %v8732 = vadd.f32 %v8662, %v8690
  %v8733 = vadd.f32 %v8663, %v8690
  %v8734 = vadd.f32 %v8664, %v8690
  %v8735 = vadd.f32 %v8665, %v8690
  %v8736 = vadd.f32 %v8666, %v8690
  %v8737 = vadd.f32 %v8667, %v8690
  %v8738 = vadd.f32 %v8668, %v8690
  %v8739 = vadd.f32 %v8669, %v8690
  %v8740 = vadd.f32 %v8670, %v8690
  %v8741 = vadd.f32 %v8671, %v8690
  %v8742 = vadd.f32 %v8672, %v8690
  %v8743 = vadd.f32 %v8673, %v8690
  %v8744 = vadd.f32 %v8674, %v8690
  %v8745 = vadd.f32 %v8675, %v8690
  %v8746 = vadd.f32 %v8676, %v8690
  %v8747 = vadd.f32 %v8677, %v8690
  %v8748 = vadd.f32 %v8678, %v8690
  %v8749 = vadd.f32 %v8679, %v8690
  %v8750 = vadd.f32 %v8680, %v8690
  %v8751 = vadd.f32 %v8681, %v8690
  %v8752 = vadd.f32 %v8682, %v8690
  %v8753 = vadd.f32 %v8683, %v8690
  %v8754 = vadd.f32 %v8684, %v8690
  %v8755 = vadd.f32 %v8685, %v8690
  %v8756 = vld [vmem:[%s7] sm:$0x3]
  %8789 = vrot.lane.b32.xlu0 %v3397, 112
  %v8790 = vpop.permute.xlu0 %8789
  %8791 = vrot.lane.b32.xlu0 %v3398, 112
  %v8792 = vpop.permute.xlu0 %8791
  %8793 = vrot.lane.b32.xlu0 %v3399, 112
  %v8794 = vpop.permute.xlu0 %8793
  %8795 = vrot.lane.b32.xlu0 %v3400, 112
  %v8796 = vpop.permute.xlu0 %8795
  %8797 = vrot.lane.b32.xlu0 %v3401, 112
  %v8798 = vpop.permute.xlu0 %8797
  %8799 = vrot.lane.b32.xlu0 %v3402, 112
  %v8800 = vpop.permute.xlu0 %8799
  %8801 = vrot.lane.b32.xlu0 %v3403, 112
  %v8802 = vpop.permute.xlu0 %8801
  %8803 = vrot.lane.b32.xlu0 %v3404, 112
  %v8804 = vpop.permute.xlu0 %8803
  %8805 = vrot.lane.b32.xlu0 %v3405, 112
  %v8806 = vpop.permute.xlu0 %8805
  %8807 = vrot.lane.b32.xlu0 %v3406, 112
  %v8808 = vpop.permute.xlu0 %8807
  %8809 = vrot.lane.b32.xlu0 %v3407, 112
  %v8810 = vpop.permute.xlu0 %8809
  %8811 = vrot.lane.b32.xlu0 %v3408, 112
  %v8812 = vpop.permute.xlu0 %8811
  %8813 = vrot.lane.b32.xlu0 %v3409, 112
  %v8814 = vpop.permute.xlu0 %8813
  %8815 = vrot.lane.b32.xlu0 %v3410, 112
  %v8816 = vpop.permute.xlu0 %8815
  %8817 = vrot.lane.b32.xlu0 %v3411, 112
  %v8818 = vpop.permute.xlu0 %8817
  %8819 = vrot.lane.b32.xlu0 %v3412, 112
  %v8820 = vpop.permute.xlu0 %8819
  %8821 = vrot.lane.b32.xlu0 %v3413, 112
  %v8822 = vpop.permute.xlu0 %8821
  %8823 = vrot.lane.b32.xlu0 %v3414, 112
  %v8824 = vpop.permute.xlu0 %8823
  %8825 = vrot.lane.b32.xlu0 %v3415, 112
  %v8826 = vpop.permute.xlu0 %8825
  %8827 = vrot.lane.b32.xlu0 %v3416, 112
  %v8828 = vpop.permute.xlu0 %8827
  %8829 = vrot.lane.b32.xlu0 %v3417, 112
  %v8830 = vpop.permute.xlu0 %8829
  %8831 = vrot.lane.b32.xlu0 %v3418, 112
  %v8832 = vpop.permute.xlu0 %8831
  %8833 = vrot.lane.b32.xlu0 %v3419, 112
  %v8834 = vpop.permute.xlu0 %8833
  %8835 = vrot.lane.b32.xlu0 %v3420, 112
  %v8836 = vpop.permute.xlu0 %8835
  %8837 = vrot.lane.b32.xlu0 %v3421, 112
  %v8838 = vpop.permute.xlu0 %8837
  %8839 = vrot.lane.b32.xlu0 %v3422, 112
  %v8840 = vpop.permute.xlu0 %8839
  %8841 = vrot.lane.b32.xlu0 %v3423, 112
  %v8842 = vpop.permute.xlu0 %8841
  %8843 = vrot.lane.b32.xlu0 %v3424, 112
  %v8844 = vpop.permute.xlu0 %8843
  %8845 = vrot.lane.b32.xlu0 %v3425, 112
  %v8846 = vpop.permute.xlu0 %8845
  %8847 = vrot.lane.b32.xlu0 %v3426, 112
  %v8848 = vpop.permute.xlu0 %8847
  %8849 = vrot.lane.b32.xlu0 %v3427, 112
  %v8850 = vpop.permute.xlu0 %8849
  %8851 = vrot.lane.b32.xlu0 %v3428, 112
  %v8852 = vpop.permute.xlu0 %8851
  %v8854 = vsel %vm100, %v8790, 0
  %v8857 = vsel %vm100, %v8792, 0
  %v8860 = vsel %vm100, %v8794, 0
  %v8863 = vsel %vm100, %v8796, 0
  %v8866 = vsel %vm100, %v8798, 0
  %v8869 = vsel %vm100, %v8800, 0
  %v8872 = vsel %vm100, %v8802, 0
  %v8875 = vsel %vm100, %v8804, 0
  %v8878 = vsel %vm100, %v8806, 0
  %v8881 = vsel %vm100, %v8808, 0
  %v8884 = vsel %vm100, %v8810, 0
  %v8887 = vsel %vm100, %v8812, 0
  %v8890 = vsel %vm100, %v8814, 0
  %v8893 = vsel %vm100, %v8816, 0
  %v8896 = vsel %vm100, %v8818, 0
  %v8899 = vsel %vm100, %v8820, 0
  %v8902 = vsel %vm100, %v8822, 0
  %v8905 = vsel %vm100, %v8824, 0
  %v8908 = vsel %vm100, %v8826, 0
  %v8911 = vsel %vm100, %v8828, 0
  %v8914 = vsel %vm100, %v8830, 0
  %v8917 = vsel %vm100, %v8832, 0
  %v8920 = vsel %vm100, %v8834, 0
  %v8923 = vsel %vm100, %v8836, 0
  %v8926 = vsel %vm100, %v8838, 0
  %v8929 = vsel %vm100, %v8840, 0
  %v8932 = vsel %vm100, %v8842, 0
  %v8935 = vsel %vm100, %v8844, 0
  %v8938 = vsel %vm100, %v8846, 0
  %v8941 = vsel %vm100, %v8848, 0
  %v8944 = vsel %vm100, %v8850, 0
  %v8947 = vsel %vm100, %v8852, 0
  %v8950 = vsel %vm3546, %v8756, 0
  %8952 = vmatprep.subr.bf16.mxu0 0
  %8953 = vmatpush1.bf16.msra.mxu0 %v8950
  %8954 = vmatprep.subr.bf16.mxu0 0
  %8955 = vmatpush1.bf16.msra.mxu0 0
  %8956 = vmatprep.subr.bf16.mxu0 0
  %8957 = vmatpush1.bf16.msra.mxu0 0
  %8958 = vmatprep.subr.bf16.mxu0 0
  %8959 = vmatpush1.bf16.msra.mxu0 0
  %8960 = vmatprep.subr.bf16.mxu0 0
  %8961 = vmatpush1.bf16.msra.mxu0 0
  %8962 = vmatprep.subr.bf16.mxu0 0
  %8963 = vmatpush1.bf16.msra.mxu0 0
  %8964 = vmatprep.subr.bf16.mxu0 0
  %8965 = vmatpush1.bf16.msra.mxu0 0
  %8966 = vmatprep.subr.bf16.mxu0 0
  %8967 = vmatpush1.bf16.msra.mxu0 0
  %8968 = vmatprep.subr.bf16.mxu0 0
  %8969 = vmatpush1.bf16.msra.mxu0 0
  %8970 = vmatprep.subr.bf16.mxu0 0
  %8971 = vmatpush1.bf16.msra.mxu0 0
  %8972 = vmatprep.subr.bf16.mxu0 0
  %8973 = vmatpush1.bf16.msra.mxu0 0
  %8974 = vmatprep.subr.bf16.mxu0 0
  %8975 = vmatpush1.bf16.msra.mxu0 0
  %8976 = vmatprep.subr.bf16.mxu0 0
  %8977 = vmatpush1.bf16.msra.mxu0 0
  %8978 = vmatprep.subr.bf16.mxu0 0
  %8979 = vmatpush1.bf16.msra.mxu0 0
  %8980 = vmatprep.subr.bf16.mxu0 0
  %8981 = vmatpush1.bf16.msra.mxu0 0
  %8982 = vmatprep.subr.bf16.mxu0 0
  %8983 = vmatpush1.bf16.msra.mxu0 0
  %8984 = vmatprep.mubr.bf16.mxu0 0
  %8985 = vmatmul.mubr.bf16.gmra.mrb[0].mxu0 %v8854
  %v8986 = vpop.f32.mrb[0].mxu0
  %v8987 = vadd.f32 0.0, %v8986
  %v8988 = vpop.f32.mrb[0].mxu0
  %v8989 = vpop.f32.mrb[0].mxu0
  %v8990 = vadd.f32 0.0, %v8989
  %v8991 = vpop.f32.mrb[0].mxu0
  %8992 = vmatprep.mubr.bf16.mxu0 0
  %8993 = vmatmul.mubr.bf16.gmra.mrb[0].mxu0 %v8857
  %v8994 = vpop.f32.mrb[0].mxu0
  %v8995 = vadd.f32 0.0, %v8994
  %v8996 = vpop.f32.mrb[0].mxu0
  %v8997 = vpop.f32.mrb[0].mxu0
  %v8998 = vadd.f32 0.0, %v8997
  %v8999 = vpop.f32.mrb[0].mxu0
  %9000 = vmatprep.mubr.bf16.mxu0 0
  %9001 = vmatmul.mubr.bf16.gmra.mrb[0].mxu0 %v8860
  %v9002 = vpop.f32.mrb[0].mxu0
  %v9003 = vadd.f32 0.0, %v9002
  %v9004 = vpop.f32.mrb[0].mxu0
  %v9005 = vpop.f32.mrb[0].mxu0
  %v9006 = vadd.f32 0.0, %v9005
  %v9007 = vpop.f32.mrb[0].mxu0
  %9008 = vmatprep.mubr.bf16.mxu0 0
  %9009 = vmatmul.mubr.bf16.gmra.mrb[0].mxu0 %v8863
  %v9010 = vpop.f32.mrb[0].mxu0
  %v9011 = vadd.f32 0.0, %v9010
  %v9012 = vpop.f32.mrb[0].mxu0
  %v9013 = vpop.f32.mrb[0].mxu0
  %v9014 = vadd.f32 0.0, %v9013
  %v9015 = vpop.f32.mrb[0].mxu0
  %9016 = vmatprep.mubr.bf16.mxu0 0
  %9017 = vmatmul.mubr.bf16.gmra.mrb[0].mxu0 %v8866
  %v9018 = vpop.f32.mrb[0].mxu0
  %v9019 = vadd.f32 0.0, %v9018
  %v9020 = vpop.f32.mrb[0].mxu0
  %v9021 = vpop.f32.mrb[0].mxu0
  %v9022 = vadd.f32 0.0, %v9021
  %v9023 = vpop.f32.mrb[0].mxu0
  %9024 = vmatprep.mubr.bf16.mxu0 0
  %9025 = vmatmul.mubr.bf16.gmra.mrb[0].mxu0 %v8869
  %v9026 = vpop.f32.mrb[0].mxu0
  %v9027 = vadd.f32 0.0, %v9026
  %v9028 = vpop.f32.mrb[0].mxu0
  %v9029 = vpop.f32.mrb[0].mxu0
  %v9030 = vadd.f32 0.0, %v9029
  %v9031 = vpop.f32.mrb[0].mxu0
  %9032 = vmatprep.mubr.bf16.mxu0 0
  %9033 = vmatmul.mubr.bf16.gmra.mrb[0].mxu0 %v8872
  %v9034 = vpop.f32.mrb[0].mxu0
  %v9035 = vadd.f32 0.0, %v9034
  %v9036 = vpop.f32.mrb[0].mxu0
  %v9037 = vpop.f32.mrb[0].mxu0
  %v9038 = vadd.f32 0.0, %v9037
  %v9039 = vpop.f32.mrb[0].mxu0
  %9040 = vmatprep.mubr.bf16.mxu0 0
  %9041 = vmatmul.mubr.bf16.gmra.mrb[0].mxu0 %v8875
  %v9042 = vpop.f32.mrb[0].mxu0
  %v9043 = vadd.f32 0.0, %v9042
  %v9044 = vpop.f32.mrb[0].mxu0
  %v9045 = vpop.f32.mrb[0].mxu0
  %v9046 = vadd.f32 0.0, %v9045
  %v9047 = vpop.f32.mrb[0].mxu0
  %9048 = vmatprep.mubr.bf16.mxu0 0
  %9049 = vmatmul.mubr.bf16.gmra.mrb[0].mxu0 %v8878
  %v9050 = vpop.f32.mrb[0].mxu0
  %v9051 = vadd.f32 0.0, %v9050
  %v9052 = vpop.f32.mrb[0].mxu0
  %v9053 = vpop.f32.mrb[0].mxu0
  %v9054 = vadd.f32 0.0, %v9053
  %v9055 = vpop.f32.mrb[0].mxu0
  %9056 = vmatprep.mubr.bf16.mxu0 0
  %9057 = vmatmul.mubr.bf16.gmra.mrb[0].mxu0 %v8881
  %v9058 = vpop.f32.mrb[0].mxu0
  %v9059 = vadd.f32 0.0, %v9058
  %v9060 = vpop.f32.mrb[0].mxu0
  %v9061 = vpop.f32.mrb[0].mxu0
  %v9062 = vadd.f32 0.0, %v9061
  %v9063 = vpop.f32.mrb[0].mxu0
  %9064 = vmatprep.mubr.bf16.mxu0 0
  %9065 = vmatmul.mubr.bf16.gmra.mrb[0].mxu0 %v8884
  %v9066 = vpop.f32.mrb[0].mxu0
  %v9067 = vadd.f32 0.0, %v9066
  %v9068 = vpop.f32.mrb[0].mxu0
  %v9069 = vpop.f32.mrb[0].mxu0
  %v9070 = vadd.f32 0.0, %v9069
  %v9071 = vpop.f32.mrb[0].mxu0
  %9072 = vmatprep.mubr.bf16.mxu0 0
  %9073 = vmatmul.mubr.bf16.gmra.mrb[0].mxu0 %v8887
  %v9074 = vpop.f32.mrb[0].mxu0
  %v9075 = vadd.f32 0.0, %v9074
  %v9076 = vpop.f32.mrb[0].mxu0
  %v9077 = vpop.f32.mrb[0].mxu0
  %v9078 = vadd.f32 0.0, %v9077
  %v9079 = vpop.f32.mrb[0].mxu0
  %9080 = vmatprep.mubr.bf16.mxu0 0
  %9081 = vmatmul.mubr.bf16.gmra.mrb[0].mxu0 %v8890
  %v9082 = vpop.f32.mrb[0].mxu0
  %v9083 = vadd.f32 0.0, %v9082
  %v9084 = vpop.f32.mrb[0].mxu0
  %v9085 = vpop.f32.mrb[0].mxu0
  %v9086 = vadd.f32 0.0, %v9085
  %v9087 = vpop.f32.mrb[0].mxu0
  %9088 = vmatprep.mubr.bf16.mxu0 0
  %9089 = vmatmul.mubr.bf16.gmra.mrb[0].mxu0 %v8893
  %v9090 = vpop.f32.mrb[0].mxu0
  %v9091 = vadd.f32 0.0, %v9090
  %v9092 = vpop.f32.mrb[0].mxu0
  %v9093 = vpop.f32.mrb[0].mxu0
  %v9094 = vadd.f32 0.0, %v9093
  %v9095 = vpop.f32.mrb[0].mxu0
  %9096 = vmatprep.mubr.bf16.mxu0 0
  %9097 = vmatmul.mubr.bf16.gmra.mrb[0].mxu0 %v8896
  %v9098 = vpop.f32.mrb[0].mxu0
  %v9099 = vadd.f32 0.0, %v9098
  %v9100 = vpop.f32.mrb[0].mxu0
  %v9101 = vpop.f32.mrb[0].mxu0
  %v9102 = vadd.f32 0.0, %v9101
  %v9103 = vpop.f32.mrb[0].mxu0
  %9104 = vmatprep.mubr.bf16.mxu0 0
  %9105 = vmatmul.mubr.bf16.gmra.mrb[0].mxu0 %v8899
  %v9106 = vpop.f32.mrb[0].mxu0
  %v9107 = vadd.f32 0.0, %v9106
  %v9108 = vpop.f32.mrb[0].mxu0
  %v9109 = vpop.f32.mrb[0].mxu0
  %v9110 = vadd.f32 0.0, %v9109
  %v9111 = vpop.f32.mrb[0].mxu0
  %9112 = vmatprep.mubr.bf16.mxu0 0
  %9113 = vmatmul.mubr.bf16.gmra.mrb[0].mxu0 %v8902
  %v9114 = vpop.f32.mrb[0].mxu0
  %v9115 = vadd.f32 0.0, %v9114
  %v9116 = vpop.f32.mrb[0].mxu0
  %v9117 = vpop.f32.mrb[0].mxu0
  %v9118 = vadd.f32 0.0, %v9117
  %v9119 = vpop.f32.mrb[0].mxu0
  %9120 = vmatprep.mubr.bf16.mxu0 0
  %9121 = vmatmul.mubr.bf16.gmra.mrb[0].mxu0 %v8905
  %v9122 = vpop.f32.mrb[0].mxu0
  %v9123 = vadd.f32 0.0, %v9122
  %v9124 = vpop.f32.mrb[0].mxu0
  %v9125 = vpop.f32.mrb[0].mxu0
  %v9126 = vadd.f32 0.0, %v9125
  %v9127 = vpop.f32.mrb[0].mxu0
  %9128 = vmatprep.mubr.bf16.mxu0 0
  %9129 = vmatmul.mubr.bf16.gmra.mrb[0].mxu0 %v8908
  %v9130 = vpop.f32.mrb[0].mxu0
  %v9131 = vadd.f32 0.0, %v9130
  %v9132 = vpop.f32.mrb[0].mxu0
  %v9133 = vpop.f32.mrb[0].mxu0
  %v9134 = vadd.f32 0.0, %v9133
  %v9135 = vpop.f32.mrb[0].mxu0
  %9136 = vmatprep.mubr.bf16.mxu0 0
  %9137 = vmatmul.mubr.bf16.gmra.mrb[0].mxu0 %v8911
  %v9138 = vpop.f32.mrb[0].mxu0
  %v9139 = vadd.f32 0.0, %v9138
  %v9140 = vpop.f32.mrb[0].mxu0
  %v9141 = vpop.f32.mrb[0].mxu0
  %v9142 = vadd.f32 0.0, %v9141
  %v9143 = vpop.f32.mrb[0].mxu0
  %9144 = vmatprep.mubr.bf16.mxu0 0
  %9145 = vmatmul.mubr.bf16.gmra.mrb[0].mxu0 %v8914
  %v9146 = vpop.f32.mrb[0].mxu0
  %v9147 = vadd.f32 0.0, %v9146
  %v9148 = vpop.f32.mrb[0].mxu0
  %v9149 = vpop.f32.mrb[0].mxu0
  %v9150 = vadd.f32 0.0, %v9149
  %v9151 = vpop.f32.mrb[0].mxu0
  %9152 = vmatprep.mubr.bf16.mxu0 0
  %9153 = vmatmul.mubr.bf16.gmra.mrb[0].mxu0 %v8917
  %v9154 = vpop.f32.mrb[0].mxu0
  %v9155 = vadd.f32 0.0, %v9154
  %v9156 = vpop.f32.mrb[0].mxu0
  %v9157 = vpop.f32.mrb[0].mxu0
  %v9158 = vadd.f32 0.0, %v9157
  %v9159 = vpop.f32.mrb[0].mxu0
  %9160 = vmatprep.mubr.bf16.mxu0 0
  %9161 = vmatmul.mubr.bf16.gmra.mrb[0].mxu0 %v8920
  %v9162 = vpop.f32.mrb[0].mxu0
  %v9163 = vadd.f32 0.0, %v9162
  %v9164 = vpop.f32.mrb[0].mxu0
  %v9165 = vpop.f32.mrb[0].mxu0
  %v9166 = vadd.f32 0.0, %v9165
  %v9167 = vpop.f32.mrb[0].mxu0
  %9168 = vmatprep.mubr.bf16.mxu0 0
  %9169 = vmatmul.mubr.bf16.gmra.mrb[0].mxu0 %v8923
  %v9170 = vpop.f32.mrb[0].mxu0
  %v9171 = vadd.f32 0.0, %v9170
  %v9172 = vpop.f32.mrb[0].mxu0
  %v9173 = vpop.f32.mrb[0].mxu0
  %v9174 = vadd.f32 0.0, %v9173
  %v9175 = vpop.f32.mrb[0].mxu0
  %9176 = vmatprep.mubr.bf16.mxu0 0
  %9177 = vmatmul.mubr.bf16.gmra.mrb[0].mxu0 %v8926
  %v9178 = vpop.f32.mrb[0].mxu0
  %v9179 = vadd.f32 0.0, %v9178
  %v9180 = vpop.f32.mrb[0].mxu0
  %v9181 = vpop.f32.mrb[0].mxu0
  %v9182 = vadd.f32 0.0, %v9181
  %v9183 = vpop.f32.mrb[0].mxu0
  %9184 = vmatprep.mubr.bf16.mxu0 0
  %9185 = vmatmul.mubr.bf16.gmra.mrb[0].mxu0 %v8929
  %v9186 = vpop.f32.mrb[0].mxu0
  %v9187 = vadd.f32 0.0, %v9186
  %v9188 = vpop.f32.mrb[0].mxu0
  %v9189 = vpop.f32.mrb[0].mxu0
  %v9190 = vadd.f32 0.0, %v9189
  %v9191 = vpop.f32.mrb[0].mxu0
  %9192 = vmatprep.mubr.bf16.mxu0 0
  %9193 = vmatmul.mubr.bf16.gmra.mrb[0].mxu0 %v8932
  %v9194 = vpop.f32.mrb[0].mxu0
  %v9195 = vadd.f32 0.0, %v9194
  %v9196 = vpop.f32.mrb[0].mxu0
  %v9197 = vpop.f32.mrb[0].mxu0
  %v9198 = vadd.f32 0.0, %v9197
  %v9199 = vpop.f32.mrb[0].mxu0
  %9200 = vmatprep.mubr.bf16.mxu0 0
  %9201 = vmatmul.mubr.bf16.gmra.mrb[0].mxu0 %v8935
  %v9202 = vpop.f32.mrb[0].mxu0
  %v9203 = vadd.f32 0.0, %v9202
  %v9204 = vpop.f32.mrb[0].mxu0
  %v9205 = vpop.f32.mrb[0].mxu0
  %v9206 = vadd.f32 0.0, %v9205
  %v9207 = vpop.f32.mrb[0].mxu0
  %9208 = vmatprep.mubr.bf16.mxu0 0
  %9209 = vmatmul.mubr.bf16.gmra.mrb[0].mxu0 %v8938
  %v9210 = vpop.f32.mrb[0].mxu0
  %v9211 = vadd.f32 0.0, %v9210
  %v9212 = vpop.f32.mrb[0].mxu0
  %v9213 = vpop.f32.mrb[0].mxu0
  %v9214 = vadd.f32 0.0, %v9213
  %v9215 = vpop.f32.mrb[0].mxu0
  %9216 = vmatprep.mubr.bf16.mxu0 0
  %9217 = vmatmul.mubr.bf16.gmra.mrb[0].mxu0 %v8941
  %v9218 = vpop.f32.mrb[0].mxu0
  %v9219 = vadd.f32 0.0, %v9218
  %v9220 = vpop.f32.mrb[0].mxu0
  %v9221 = vpop.f32.mrb[0].mxu0
  %v9222 = vadd.f32 0.0, %v9221
  %v9223 = vpop.f32.mrb[0].mxu0
  %9224 = vmatprep.mubr.bf16.mxu0 0
  %9225 = vmatmul.mubr.bf16.gmra.mrb[0].mxu0 %v8944
  %v9226 = vpop.f32.mrb[0].mxu0
  %v9227 = vadd.f32 0.0, %v9226
  %v9228 = vpop.f32.mrb[0].mxu0
  %v9229 = vpop.f32.mrb[0].mxu0
  %v9230 = vadd.f32 0.0, %v9229
  %v9231 = vpop.f32.mrb[0].mxu0
  %9232 = vmatprep.mubr.bf16.mxu0 0
  %9233 = vmatmul.mubr.bf16.gmra.mrb[0].mxu0 %v8947
  %v9234 = vpop.f32.mrb[0].mxu0
  %v9235 = vadd.f32 0.0, %v9234
  %v9236 = vpop.f32.mrb[0].mxu0
  %v9237 = vpop.f32.mrb[0].mxu0
  %v9238 = vadd.f32 0.0, %v9237
  %v9239 = vpop.f32.mrb[0].mxu0
  %9240 = vdwg.mxu0
  %v9241 = vld [vmem:[%s8] sm:$0x1]
  %v9242 = vld [vmem:[%s9] sm:$0x1]
  %v9243 = vlaneseq
  %v9244 = vshrl.u32 %v9243, 7
  %v9245 = vsub.s32 0, %v9244
  %v9246 = vrot.slane %v8987, %v9245
  %v9247 = vsub.f32 %v8987, %v9246
  %v9248 = vsub.f32 %v8990, %v9246
  %v9249 = vsub.f32 %v8995, %v9246
  %v9250 = vsub.f32 %v8998, %v9246
  %v9251 = vsub.f32 %v9003, %v9246
  %v9252 = vsub.f32 %v9006, %v9246
  %v9253 = vsub.f32 %v9011, %v9246
  %v9254 = vsub.f32 %v9014, %v9246
  %v9255 = vsub.f32 %v9019, %v9246
  %v9256 = vsub.f32 %v9022, %v9246
  %v9257 = vsub.f32 %v9027, %v9246
  %v9258 = vsub.f32 %v9030, %v9246
  %v9259 = vsub.f32 %v9035, %v9246
  %v9260 = vsub.f32 %v9038, %v9246
  %v9261 = vsub.f32 %v9043, %v9246
  %v9262 = vsub.f32 %v9046, %v9246
  %v9263 = vsub.f32 %v9051, %v9246
  %v9264 = vsub.f32 %v9054, %v9246
  %v9265 = vsub.f32 %v9059, %v9246
  %v9266 = vsub.f32 %v9062, %v9246
  %v9267 = vsub.f32 %v9067, %v9246
  %v9268 = vsub.f32 %v9070, %v9246
  %v9269 = vsub.f32 %v9075, %v9246
  %v9270 = vsub.f32 %v9078, %v9246
  %v9271 = vsub.f32 %v9083, %v9246
  %v9272 = vsub.f32 %v9086, %v9246
  %v9273 = vsub.f32 %v9091, %v9246
  %v9274 = vsub.f32 %v9094, %v9246
  %v9275 = vsub.f32 %v9099, %v9246
  %v9276 = vsub.f32 %v9102, %v9246
  %v9277 = vsub.f32 %v9107, %v9246
  %v9278 = vsub.f32 %v9110, %v9246
  %v9279 = vsub.f32 %v9115, %v9246
  %v9280 = vsub.f32 %v9118, %v9246
  %v9281 = vsub.f32 %v9123, %v9246
  %v9282 = vsub.f32 %v9126, %v9246
  %v9283 = vsub.f32 %v9131, %v9246
  %v9284 = vsub.f32 %v9134, %v9246
  %v9285 = vsub.f32 %v9139, %v9246
  %v9286 = vsub.f32 %v9142, %v9246
  %v9287 = vsub.f32 %v9147, %v9246
  %v9288 = vsub.f32 %v9150, %v9246
  %v9289 = vsub.f32 %v9155, %v9246
  %v9290 = vsub.f32 %v9158, %v9246
  %v9291 = vsub.f32 %v9163, %v9246
  %v9292 = vsub.f32 %v9166, %v9246
  %v9293 = vsub.f32 %v9171, %v9246
  %v9294 = vsub.f32 %v9174, %v9246
  %v9295 = vsub.f32 %v9179, %v9246
  %v9296 = vsub.f32 %v9182, %v9246
  %v9297 = vsub.f32 %v9187, %v9246
  %v9298 = vsub.f32 %v9190, %v9246
  %v9299 = vsub.f32 %v9195, %v9246
  %v9300 = vsub.f32 %v9198, %v9246
  %v9301 = vsub.f32 %v9203, %v9246
  %v9302 = vsub.f32 %v9206, %v9246
  %v9303 = vsub.f32 %v9211, %v9246
  %v9304 = vsub.f32 %v9214, %v9246
  %v9305 = vsub.f32 %v9219, %v9246
  %v9306 = vsub.f32 %v9222, %v9246
  %v9307 = vsub.f32 %v9227, %v9246
  %v9308 = vsub.f32 %v9230, %v9246
  %v9309 = vsub.f32 %v9235, %v9246
  %v9310 = vsub.f32 %v9238, %v9246
  %v9311 = vsel %vm2942, %v9247, 0.0
  %v9312 = vsel %vm2942, %v9248, 0.0
  %v9313 = vadd.f32 %v9311, %v9312
  %v9314 = vsel %vm2942, %v9249, 0.0
  %v9315 = vadd.f32 %v9313, %v9314
  %v9316 = vsel %vm2942, %v9250, 0.0
  %v9317 = vadd.f32 %v9315, %v9316
  %v9318 = vsel %vm2942, %v9251, 0.0
  %v9319 = vadd.f32 %v9317, %v9318
  %v9320 = vsel %vm2942, %v9252, 0.0
  %v9321 = vadd.f32 %v9319, %v9320
  %v9322 = vsel %vm2942, %v9253, 0.0
  %v9323 = vadd.f32 %v9321, %v9322
  %v9324 = vsel %vm2942, %v9254, 0.0
  %v9325 = vadd.f32 %v9323, %v9324
  %v9326 = vsel %vm2942, %v9255, 0.0
  %v9327 = vadd.f32 %v9325, %v9326
  %v9328 = vsel %vm2942, %v9256, 0.0
  %v9329 = vadd.f32 %v9327, %v9328
  %v9330 = vsel %vm2942, %v9257, 0.0
  %v9331 = vadd.f32 %v9329, %v9330
  %v9332 = vsel %vm2942, %v9258, 0.0
  %v9333 = vadd.f32 %v9331, %v9332
  %v9334 = vsel %vm2942, %v9259, 0.0
  %v9335 = vadd.f32 %v9333, %v9334
  %v9336 = vsel %vm2942, %v9260, 0.0
  %v9337 = vadd.f32 %v9335, %v9336
  %v9338 = vsel %vm2942, %v9261, 0.0
  %v9339 = vadd.f32 %v9337, %v9338
  %v9340 = vsel %vm2942, %v9262, 0.0
  %v9341 = vadd.f32 %v9339, %v9340
  %v9342 = vsel %vm2942, %v9263, 0.0
  %v9343 = vadd.f32 %v9341, %v9342
  %v9344 = vsel %vm2942, %v9264, 0.0
  %v9345 = vadd.f32 %v9343, %v9344
  %v9346 = vsel %vm2942, %v9265, 0.0
  %v9347 = vadd.f32 %v9345, %v9346
  %v9348 = vsel %vm2942, %v9266, 0.0
  %v9349 = vadd.f32 %v9347, %v9348
  %v9350 = vsel %vm2942, %v9267, 0.0
  %v9351 = vadd.f32 %v9349, %v9350
  %v9352 = vsel %vm2942, %v9268, 0.0
  %v9353 = vadd.f32 %v9351, %v9352
  %v9354 = vsel %vm2942, %v9269, 0.0
  %v9355 = vadd.f32 %v9353, %v9354
  %v9356 = vsel %vm2942, %v9270, 0.0
  %v9357 = vadd.f32 %v9355, %v9356
  %v9358 = vsel %vm2942, %v9271, 0.0
  %v9359 = vadd.f32 %v9357, %v9358
  %v9360 = vsel %vm2942, %v9272, 0.0
  %v9361 = vadd.f32 %v9359, %v9360
  %v9362 = vsel %vm2942, %v9273, 0.0
  %v9363 = vadd.f32 %v9361, %v9362
  %v9364 = vsel %vm2942, %v9274, 0.0
  %v9365 = vadd.f32 %v9363, %v9364
  %v9366 = vsel %vm2942, %v9275, 0.0
  %v9367 = vadd.f32 %v9365, %v9366
  %v9368 = vsel %vm2942, %v9276, 0.0
  %v9369 = vadd.f32 %v9367, %v9368
  %v9370 = vsel %vm2942, %v9277, 0.0
  %v9371 = vadd.f32 %v9369, %v9370
  %v9372 = vsel %vm2942, %v9278, 0.0
  %v9373 = vadd.f32 %v9371, %v9372
  %v9374 = vsel %vm2942, %v9279, 0.0
  %v9375 = vadd.f32 %v9373, %v9374
  %v9376 = vsel %vm2942, %v9280, 0.0
  %v9377 = vadd.f32 %v9375, %v9376
  %v9378 = vsel %vm2942, %v9281, 0.0
  %v9379 = vadd.f32 %v9377, %v9378
  %v9380 = vsel %vm2942, %v9282, 0.0
  %v9381 = vadd.f32 %v9379, %v9380
  %v9382 = vsel %vm2942, %v9283, 0.0
  %v9383 = vadd.f32 %v9381, %v9382
  %v9384 = vsel %vm2942, %v9284, 0.0
  %v9385 = vadd.f32 %v9383, %v9384
  %v9386 = vsel %vm2942, %v9285, 0.0
  %v9387 = vadd.f32 %v9385, %v9386
  %v9388 = vsel %vm2942, %v9286, 0.0
  %v9389 = vadd.f32 %v9387, %v9388
  %v9390 = vsel %vm2942, %v9287, 0.0
  %v9391 = vadd.f32 %v9389, %v9390
  %v9392 = vsel %vm2942, %v9288, 0.0
  %v9393 = vadd.f32 %v9391, %v9392
  %v9394 = vsel %vm2942, %v9289, 0.0
  %v9395 = vadd.f32 %v9393, %v9394
  %v9396 = vsel %vm2942, %v9290, 0.0
  %v9397 = vadd.f32 %v9395, %v9396
  %v9398 = vsel %vm2942, %v9291, 0.0
  %v9399 = vadd.f32 %v9397, %v9398
  %v9400 = vsel %vm2942, %v9292, 0.0
  %v9401 = vadd.f32 %v9399, %v9400
  %v9402 = vsel %vm2942, %v9293, 0.0
  %v9403 = vadd.f32 %v9401, %v9402
  %v9404 = vsel %vm2942, %v9294, 0.0
  %v9405 = vadd.f32 %v9403, %v9404
  %v9406 = vsel %vm2942, %v9295, 0.0
  %v9407 = vadd.f32 %v9405, %v9406
  %v9408 = vsel %vm2942, %v9296, 0.0
  %v9409 = vadd.f32 %v9407, %v9408
  %v9410 = vsel %vm2942, %v9297, 0.0
  %v9411 = vadd.f32 %v9409, %v9410
  %v9412 = vsel %vm2942, %v9298, 0.0
  %v9413 = vadd.f32 %v9411, %v9412
  %v9414 = vsel %vm2942, %v9299, 0.0
  %v9415 = vadd.f32 %v9413, %v9414
  %v9416 = vsel %vm2942, %v9300, 0.0
  %v9417 = vadd.f32 %v9415, %v9416
  %v9418 = vsel %vm2942, %v9301, 0.0
  %v9419 = vadd.f32 %v9417, %v9418
  %v9420 = vsel %vm2942, %v9302, 0.0
  %v9421 = vadd.f32 %v9419, %v9420
  %v9422 = vsel %vm2942, %v9303, 0.0
  %v9423 = vadd.f32 %v9421, %v9422
  %v9424 = vsel %vm2942, %v9304, 0.0
  %v9425 = vadd.f32 %v9423, %v9424
  %v9426 = vsel %vm2942, %v9305, 0.0
  %v9427 = vadd.f32 %v9425, %v9426
  %v9428 = vsel %vm2942, %v9306, 0.0
  %v9429 = vadd.f32 %v9427, %v9428
  %v9430 = vsel %vm2942, %v9307, 0.0
  %v9431 = vadd.f32 %v9429, %v9430
  %v9432 = vsel %vm2942, %v9308, 0.0
  %v9433 = vadd.f32 %v9431, %v9432
  %v9434 = vsel %vm2942, %v9309, 0.0
  %v9435 = vadd.f32 %v9433, %v9434
  %v9436 = vsel %vm2942, %v9310, 0.0
  %v9437 = vadd.f32 %v9435, %v9436
  %v9438 = vrot.slane %v9437, 4
  %v9439 = vadd.f32 %v9437, %v9438
  %v9440 = vrot.slane %v9439, 2
  %v9441 = vadd.f32 %v9439, %v9440
  %v9442 = vrot.slane %v9441, 1
  %v9443 = vadd.f32 %v9441, %v9442
  %v9444 = vmul.f32 %v9247, %v9247
  %v9445 = vmul.f32 %v9248, %v9248
  %v9446 = vmul.f32 %v9249, %v9249
  %v9447 = vmul.f32 %v9250, %v9250
  %v9448 = vmul.f32 %v9251, %v9251
  %v9449 = vmul.f32 %v9252, %v9252
  %v9450 = vmul.f32 %v9253, %v9253
  %v9451 = vmul.f32 %v9254, %v9254
  %v9452 = vmul.f32 %v9255, %v9255
  %v9453 = vmul.f32 %v9256, %v9256
  %v9454 = vmul.f32 %v9257, %v9257
  %v9455 = vmul.f32 %v9258, %v9258
  %v9456 = vmul.f32 %v9259, %v9259
  %v9457 = vmul.f32 %v9260, %v9260
  %v9458 = vmul.f32 %v9261, %v9261
  %v9459 = vmul.f32 %v9262, %v9262
  %v9460 = vmul.f32 %v9263, %v9263
  %v9461 = vmul.f32 %v9264, %v9264
  %v9462 = vmul.f32 %v9265, %v9265
  %v9463 = vmul.f32 %v9266, %v9266
  %v9464 = vmul.f32 %v9267, %v9267
  %v9465 = vmul.f32 %v9268, %v9268
  %v9466 = vmul.f32 %v9269, %v9269
  %v9467 = vmul.f32 %v9270, %v9270
  %v9468 = vmul.f32 %v9271, %v9271
  %v9469 = vmul.f32 %v9272, %v9272
  %v9470 = vmul.f32 %v9273, %v9273
  %v9471 = vmul.f32 %v9274, %v9274
  %v9472 = vmul.f32 %v9275, %v9275
  %v9473 = vmul.f32 %v9276, %v9276
  %v9474 = vmul.f32 %v9277, %v9277
  %v9475 = vmul.f32 %v9278, %v9278
  %v9476 = vmul.f32 %v9279, %v9279
  %v9477 = vmul.f32 %v9280, %v9280
  %v9478 = vmul.f32 %v9281, %v9281
  %v9479 = vmul.f32 %v9282, %v9282
  %v9480 = vmul.f32 %v9283, %v9283
  %v9481 = vmul.f32 %v9284, %v9284
  %v9482 = vmul.f32 %v9285, %v9285
  %v9483 = vmul.f32 %v9286, %v9286
  %v9484 = vmul.f32 %v9287, %v9287
  %v9485 = vmul.f32 %v9288, %v9288
  %v9486 = vmul.f32 %v9289, %v9289
  %v9487 = vmul.f32 %v9290, %v9290
  %v9488 = vmul.f32 %v9291, %v9291
  %v9489 = vmul.f32 %v9292, %v9292
  %v9490 = vmul.f32 %v9293, %v9293
  %v9491 = vmul.f32 %v9294, %v9294
  %v9492 = vmul.f32 %v9295, %v9295
  %v9493 = vmul.f32 %v9296, %v9296
  %v9494 = vmul.f32 %v9297, %v9297
  %v9495 = vmul.f32 %v9298, %v9298
  %v9496 = vmul.f32 %v9299, %v9299
  %v9497 = vmul.f32 %v9300, %v9300
  %v9498 = vmul.f32 %v9301, %v9301
  %v9499 = vmul.f32 %v9302, %v9302
  %v9500 = vmul.f32 %v9303, %v9303
  %v9501 = vmul.f32 %v9304, %v9304
  %v9502 = vmul.f32 %v9305, %v9305
  %v9503 = vmul.f32 %v9306, %v9306
  %v9504 = vmul.f32 %v9307, %v9307
  %v9505 = vmul.f32 %v9308, %v9308
  %v9506 = vmul.f32 %v9309, %v9309
  %v9507 = vmul.f32 %v9310, %v9310
  %v9508 = vsel %vm2942, %v9444, 0.0
  %v9509 = vsel %vm2942, %v9445, 0.0
  %v9510 = vadd.f32 %v9508, %v9509
  %v9511 = vsel %vm2942, %v9446, 0.0
  %v9512 = vadd.f32 %v9510, %v9511
  %v9513 = vsel %vm2942, %v9447, 0.0
  %v9514 = vadd.f32 %v9512, %v9513
  %v9515 = vsel %vm2942, %v9448, 0.0
  %v9516 = vadd.f32 %v9514, %v9515
  %v9517 = vsel %vm2942, %v9449, 0.0
  %v9518 = vadd.f32 %v9516, %v9517
  %v9519 = vsel %vm2942, %v9450, 0.0
  %v9520 = vadd.f32 %v9518, %v9519
  %v9521 = vsel %vm2942, %v9451, 0.0
  %v9522 = vadd.f32 %v9520, %v9521
  %v9523 = vsel %vm2942, %v9452, 0.0
  %v9524 = vadd.f32 %v9522, %v9523
  %v9525 = vsel %vm2942, %v9453, 0.0
  %v9526 = vadd.f32 %v9524, %v9525
  %v9527 = vsel %vm2942, %v9454, 0.0
  %v9528 = vadd.f32 %v9526, %v9527
  %v9529 = vsel %vm2942, %v9455, 0.0
  %v9530 = vadd.f32 %v9528, %v9529
  %v9531 = vsel %vm2942, %v9456, 0.0
  %v9532 = vadd.f32 %v9530, %v9531
  %v9533 = vsel %vm2942, %v9457, 0.0
  %v9534 = vadd.f32 %v9532, %v9533
  %v9535 = vsel %vm2942, %v9458, 0.0
  %v9536 = vadd.f32 %v9534, %v9535
  %v9537 = vsel %vm2942, %v9459, 0.0
  %v9538 = vadd.f32 %v9536, %v9537
  %v9539 = vsel %vm2942, %v9460, 0.0
  %v9540 = vadd.f32 %v9538, %v9539
  %v9541 = vsel %vm2942, %v9461, 0.0
  %v9542 = vadd.f32 %v9540, %v9541
  %v9543 = vsel %vm2942, %v9462, 0.0
  %v9544 = vadd.f32 %v9542, %v9543
  %v9545 = vsel %vm2942, %v9463, 0.0
  %v9546 = vadd.f32 %v9544, %v9545
  %v9547 = vsel %vm2942, %v9464, 0.0
  %v9548 = vadd.f32 %v9546, %v9547
  %v9549 = vsel %vm2942, %v9465, 0.0
  %v9550 = vadd.f32 %v9548, %v9549
  %v9551 = vsel %vm2942, %v9466, 0.0
  %v9552 = vadd.f32 %v9550, %v9551
  %v9553 = vsel %vm2942, %v9467, 0.0
  %v9554 = vadd.f32 %v9552, %v9553
  %v9555 = vsel %vm2942, %v9468, 0.0
  %v9556 = vadd.f32 %v9554, %v9555
  %v9557 = vsel %vm2942, %v9469, 0.0
  %v9558 = vadd.f32 %v9556, %v9557
  %v9559 = vsel %vm2942, %v9470, 0.0
  %v9560 = vadd.f32 %v9558, %v9559
  %v9561 = vsel %vm2942, %v9471, 0.0
  %v9562 = vadd.f32 %v9560, %v9561
  %v9563 = vsel %vm2942, %v9472, 0.0
  %v9564 = vadd.f32 %v9562, %v9563
  %v9565 = vsel %vm2942, %v9473, 0.0
  %v9566 = vadd.f32 %v9564, %v9565
  %v9567 = vsel %vm2942, %v9474, 0.0
  %v9568 = vadd.f32 %v9566, %v9567
  %v9569 = vsel %vm2942, %v9475, 0.0
  %v9570 = vadd.f32 %v9568, %v9569
  %v9571 = vsel %vm2942, %v9476, 0.0
  %v9572 = vadd.f32 %v9570, %v9571
  %v9573 = vsel %vm2942, %v9477, 0.0
  %v9574 = vadd.f32 %v9572, %v9573
  %v9575 = vsel %vm2942, %v9478, 0.0
  %v9576 = vadd.f32 %v9574, %v9575
  %v9577 = vsel %vm2942, %v9479, 0.0
  %v9578 = vadd.f32 %v9576, %v9577
  %v9579 = vsel %vm2942, %v9480, 0.0
  %v9580 = vadd.f32 %v9578, %v9579
  %v9581 = vsel %vm2942, %v9481, 0.0
  %v9582 = vadd.f32 %v9580, %v9581
  %v9583 = vsel %vm2942, %v9482, 0.0
  %v9584 = vadd.f32 %v9582, %v9583
  %v9585 = vsel %vm2942, %v9483, 0.0
  %v9586 = vadd.f32 %v9584, %v9585
  %v9587 = vsel %vm2942, %v9484, 0.0
  %v9588 = vadd.f32 %v9586, %v9587
  %v9589 = vsel %vm2942, %v9485, 0.0
  %v9590 = vadd.f32 %v9588, %v9589
  %v9591 = vsel %vm2942, %v9486, 0.0
  %v9592 = vadd.f32 %v9590, %v9591
  %v9593 = vsel %vm2942, %v9487, 0.0
  %v9594 = vadd.f32 %v9592, %v9593
  %v9595 = vsel %vm2942, %v9488, 0.0
  %v9596 = vadd.f32 %v9594, %v9595
  %v9597 = vsel %vm2942, %v9489, 0.0
  %v9598 = vadd.f32 %v9596, %v9597
  %v9599 = vsel %vm2942, %v9490, 0.0
  %v9600 = vadd.f32 %v9598, %v9599
  %v9601 = vsel %vm2942, %v9491, 0.0
  %v9602 = vadd.f32 %v9600, %v9601
  %v9603 = vsel %vm2942, %v9492, 0.0
  %v9604 = vadd.f32 %v9602, %v9603
  %v9605 = vsel %vm2942, %v9493, 0.0
  %v9606 = vadd.f32 %v9604, %v9605
  %v9607 = vsel %vm2942, %v9494, 0.0
  %v9608 = vadd.f32 %v9606, %v9607
  %v9609 = vsel %vm2942, %v9495, 0.0
  %v9610 = vadd.f32 %v9608, %v9609
  %v9611 = vsel %vm2942, %v9496, 0.0
  %v9612 = vadd.f32 %v9610, %v9611
  %v9613 = vsel %vm2942, %v9497, 0.0
  %v9614 = vadd.f32 %v9612, %v9613
  %v9615 = vsel %vm2942, %v9498, 0.0
  %v9616 = vadd.f32 %v9614, %v9615
  %v9617 = vsel %vm2942, %v9499, 0.0
  %v9618 = vadd.f32 %v9616, %v9617
  %v9619 = vsel %vm2942, %v9500, 0.0
  %v9620 = vadd.f32 %v9618, %v9619
  %v9621 = vsel %vm2942, %v9501, 0.0
  %v9622 = vadd.f32 %v9620, %v9621
  %v9623 = vsel %vm2942, %v9502, 0.0
  %v9624 = vadd.f32 %v9622, %v9623
  %v9625 = vsel %vm2942, %v9503, 0.0
  %v9626 = vadd.f32 %v9624, %v9625
  %v9627 = vsel %vm2942, %v9504, 0.0
  %v9628 = vadd.f32 %v9626, %v9627
  %v9629 = vsel %vm2942, %v9505, 0.0
  %v9630 = vadd.f32 %v9628, %v9629
  %v9631 = vsel %vm2942, %v9506, 0.0
  %v9632 = vadd.f32 %v9630, %v9631
  %v9633 = vsel %vm2942, %v9507, 0.0
  %v9634 = vadd.f32 %v9632, %v9633
  %v9635 = vrot.slane %v9634, 4
  %v9636 = vadd.f32 %v9634, %v9635
  %v9637 = vrot.slane %v9636, 2
  %v9638 = vadd.f32 %v9636, %v9637
  %v9639 = vrot.slane %v9638, 1
  %v9640 = vadd.f32 %v9638, %v9639
  %v9641 = vmul.f32 %v9443, 0.001953125
  %v9642 = vmul.f32 %v9640, 0.001953125
  %v9643 = vmul.f32 %v9641, %v9641
  %v9644 = vsub.f32 %v9642, %v9643
  %v9645 = vmax.f32 %v9644, 0.0
  %v9646 = vadd.f32 %v9641, %v8987
  %v9647 = vadd.f32 %v9645, 1e-05
  %v9648 = vrsqrt.pop %v9647
  %v9649 = vmul.f32 %v9241, %v9648
  %v9650 = vmul.f32 %v9646, %v9649
  %v9651 = vsub.f32 %v9242, %v9650
  %v9653 = vlaneseq
  %v9654 = vshrl.u32 %v9653, 7
  %v9655 = vsub.s32 0, %v9654
  %v9656 = vrot.slane %v9649, %v9655
  %v9658 = vmul.f32 %v8987, %v9656
  %v9659 = vmul.f32 %v8990, %v9656
  %v9660 = vmul.f32 %v8995, %v9656
  %v9661 = vmul.f32 %v8998, %v9656
  %v9662 = vmul.f32 %v9003, %v9656
  %v9663 = vmul.f32 %v9006, %v9656
  %v9664 = vmul.f32 %v9011, %v9656
  %v9665 = vmul.f32 %v9014, %v9656
  %v9666 = vmul.f32 %v9019, %v9656
  %v9667 = vmul.f32 %v9022, %v9656
  %v9668 = vmul.f32 %v9027, %v9656
  %v9669 = vmul.f32 %v9030, %v9656
  %v9670 = vmul.f32 %v9035, %v9656
  %v9671 = vmul.f32 %v9038, %v9656
  %v9672 = vmul.f32 %v9043, %v9656
  %v9673 = vmul.f32 %v9046, %v9656
  %v9674 = vmul.f32 %v9051, %v9656
  %v9675 = vmul.f32 %v9054, %v9656
  %v9676 = vmul.f32 %v9059, %v9656
  %v9677 = vmul.f32 %v9062, %v9656
  %v9678 = vmul.f32 %v9067, %v9656
  %v9679 = vmul.f32 %v9070, %v9656
  %v9680 = vmul.f32 %v9075, %v9656
  %v9681 = vmul.f32 %v9078, %v9656
  %v9682 = vmul.f32 %v9083, %v9656
  %v9683 = vmul.f32 %v9086, %v9656
  %v9684 = vmul.f32 %v9091, %v9656
  %v9685 = vmul.f32 %v9094, %v9656
  %v9686 = vmul.f32 %v9099, %v9656
  %v9687 = vmul.f32 %v9102, %v9656
  %v9688 = vmul.f32 %v9107, %v9656
  %v9689 = vmul.f32 %v9110, %v9656
  %v9690 = vmul.f32 %v9115, %v9656
  %v9691 = vmul.f32 %v9118, %v9656
  %v9692 = vmul.f32 %v9123, %v9656
  %v9693 = vmul.f32 %v9126, %v9656
  %v9694 = vmul.f32 %v9131, %v9656
  %v9695 = vmul.f32 %v9134, %v9656
  %v9696 = vmul.f32 %v9139, %v9656
  %v9697 = vmul.f32 %v9142, %v9656
  %v9698 = vmul.f32 %v9147, %v9656
  %v9699 = vmul.f32 %v9150, %v9656
  %v9700 = vmul.f32 %v9155, %v9656
  %v9701 = vmul.f32 %v9158, %v9656
  %v9702 = vmul.f32 %v9163, %v9656
  %v9703 = vmul.f32 %v9166, %v9656
  %v9704 = vmul.f32 %v9171, %v9656
  %v9705 = vmul.f32 %v9174, %v9656
  %v9706 = vmul.f32 %v9179, %v9656
  %v9707 = vmul.f32 %v9182, %v9656
  %v9708 = vmul.f32 %v9187, %v9656
  %v9709 = vmul.f32 %v9190, %v9656
  %v9710 = vmul.f32 %v9195, %v9656
  %v9711 = vmul.f32 %v9198, %v9656
  %v9712 = vmul.f32 %v9203, %v9656
  %v9713 = vmul.f32 %v9206, %v9656
  %v9714 = vmul.f32 %v9211, %v9656
  %v9715 = vmul.f32 %v9214, %v9656
  %v9716 = vmul.f32 %v9219, %v9656
  %v9717 = vmul.f32 %v9222, %v9656
  %v9718 = vmul.f32 %v9227, %v9656
  %v9719 = vmul.f32 %v9230, %v9656
  %v9720 = vmul.f32 %v9235, %v9656
  %v9721 = vmul.f32 %v9238, %v9656
  %v9723 = vlaneseq
  %v9724 = vshrl.u32 %v9723, 7
  %v9725 = vsub.s32 0, %v9724
  %v9726 = vrot.slane %v9651, %v9725
  %v9728 = vadd.f32 %v9658, %v9726
  %v9729 = vadd.f32 %v9659, %v9726
  %v9730 = vadd.f32 %v9660, %v9726
  %v9731 = vadd.f32 %v9661, %v9726
  %v9732 = vadd.f32 %v9662, %v9726
  %v9733 = vadd.f32 %v9663, %v9726
  %v9734 = vadd.f32 %v9664, %v9726
  %v9735 = vadd.f32 %v9665, %v9726
  %v9736 = vadd.f32 %v9666, %v9726
  %v9737 = vadd.f32 %v9667, %v9726
  %v9738 = vadd.f32 %v9668, %v9726
  %v9739 = vadd.f32 %v9669, %v9726
  %v9740 = vadd.f32 %v9670, %v9726
  %v9741 = vadd.f32 %v9671, %v9726
  %v9742 = vadd.f32 %v9672, %v9726
  %v9743 = vadd.f32 %v9673, %v9726
  %v9744 = vadd.f32 %v9674, %v9726
  %v9745 = vadd.f32 %v9675, %v9726
  %v9746 = vadd.f32 %v9676, %v9726
  %v9747 = vadd.f32 %v9677, %v9726
  %v9748 = vadd.f32 %v9678, %v9726
  %v9749 = vadd.f32 %v9679, %v9726
  %v9750 = vadd.f32 %v9680, %v9726
  %v9751 = vadd.f32 %v9681, %v9726
  %v9752 = vadd.f32 %v9682, %v9726
  %v9753 = vadd.f32 %v9683, %v9726
  %v9754 = vadd.f32 %v9684, %v9726
  %v9755 = vadd.f32 %v9685, %v9726
  %v9756 = vadd.f32 %v9686, %v9726
  %v9757 = vadd.f32 %v9687, %v9726
  %v9758 = vadd.f32 %v9688, %v9726
  %v9759 = vadd.f32 %v9689, %v9726
  %v9760 = vadd.f32 %v9690, %v9726
  %v9761 = vadd.f32 %v9691, %v9726
  %v9762 = vadd.f32 %v9692, %v9726
  %v9763 = vadd.f32 %v9693, %v9726
  %v9764 = vadd.f32 %v9694, %v9726
  %v9765 = vadd.f32 %v9695, %v9726
  %v9766 = vadd.f32 %v9696, %v9726
  %v9767 = vadd.f32 %v9697, %v9726
  %v9768 = vadd.f32 %v9698, %v9726
  %v9769 = vadd.f32 %v9699, %v9726
  %v9770 = vadd.f32 %v9700, %v9726
  %v9771 = vadd.f32 %v9701, %v9726
  %v9772 = vadd.f32 %v9702, %v9726
  %v9773 = vadd.f32 %v9703, %v9726
  %v9774 = vadd.f32 %v9704, %v9726
  %v9775 = vadd.f32 %v9705, %v9726
  %v9776 = vadd.f32 %v9706, %v9726
  %v9777 = vadd.f32 %v9707, %v9726
  %v9778 = vadd.f32 %v9708, %v9726
  %v9779 = vadd.f32 %v9709, %v9726
  %v9780 = vadd.f32 %v9710, %v9726
  %v9781 = vadd.f32 %v9711, %v9726
  %v9782 = vadd.f32 %v9712, %v9726
  %v9783 = vadd.f32 %v9713, %v9726
  %v9784 = vadd.f32 %v9714, %v9726
  %v9785 = vadd.f32 %v9715, %v9726
  %v9786 = vadd.f32 %v9716, %v9726
  %v9787 = vadd.f32 %v9717, %v9726
  %v9788 = vadd.f32 %v9718, %v9726
  %v9789 = vadd.f32 %v9719, %v9726
  %v9790 = vadd.f32 %v9720, %v9726
  %v9791 = vadd.f32 %v9721, %v9726
  %v9792 = vadd.f32 %v8692, %v9728
  %v9793 = vadd.f32 %v8693, %v9729
  %v9794 = vadd.f32 %v8694, %v9730
  %v9795 = vadd.f32 %v8695, %v9731
  %v9796 = vadd.f32 %v8696, %v9732
  %v9797 = vadd.f32 %v8697, %v9733
  %v9798 = vadd.f32 %v8698, %v9734
  %v9799 = vadd.f32 %v8699, %v9735
  %v9800 = vadd.f32 %v8700, %v9736
  %v9801 = vadd.f32 %v8701, %v9737
  %v9802 = vadd.f32 %v8702, %v9738
  %v9803 = vadd.f32 %v8703, %v9739
  %v9804 = vadd.f32 %v8704, %v9740
  %v9805 = vadd.f32 %v8705, %v9741
  %v9806 = vadd.f32 %v8706, %v9742
  %v9807 = vadd.f32 %v8707, %v9743
  %v9808 = vadd.f32 %v8708, %v9744
  %v9809 = vadd.f32 %v8709, %v9745
  %v9810 = vadd.f32 %v8710, %v9746
  %v9811 = vadd.f32 %v8711, %v9747
  %v9812 = vadd.f32 %v8712, %v9748
  %v9813 = vadd.f32 %v8713, %v9749
  %v9814 = vadd.f32 %v8714, %v9750
  %v9815 = vadd.f32 %v8715, %v9751
  %v9816 = vadd.f32 %v8716, %v9752
  %v9817 = vadd.f32 %v8717, %v9753
  %v9818 = vadd.f32 %v8718, %v9754
  %v9819 = vadd.f32 %v8719, %v9755
  %v9820 = vadd.f32 %v8720, %v9756
  %v9821 = vadd.f32 %v8721, %v9757
  %v9822 = vadd.f32 %v8722, %v9758
  %v9823 = vadd.f32 %v8723, %v9759
  %v9824 = vadd.f32 %v8724, %v9760
  %v9825 = vadd.f32 %v8725, %v9761
  %v9826 = vadd.f32 %v8726, %v9762
  %v9827 = vadd.f32 %v8727, %v9763
  %v9828 = vadd.f32 %v8728, %v9764
  %v9829 = vadd.f32 %v8729, %v9765
  %v9830 = vadd.f32 %v8730, %v9766
  %v9831 = vadd.f32 %v8731, %v9767
  %v9832 = vadd.f32 %v8732, %v9768
  %v9833 = vadd.f32 %v8733, %v9769
  %v9834 = vadd.f32 %v8734, %v9770
  %v9835 = vadd.f32 %v8735, %v9771
  %v9836 = vadd.f32 %v8736, %v9772
  %v9837 = vadd.f32 %v8737, %v9773
  %v9838 = vadd.f32 %v8738, %v9774
  %v9839 = vadd.f32 %v8739, %v9775
  %v9840 = vadd.f32 %v8740, %v9776
  %v9841 = vadd.f32 %v8741, %v9777
  %v9842 = vadd.f32 %v8742, %v9778
  %v9843 = vadd.f32 %v8743, %v9779
  %v9844 = vadd.f32 %v8744, %v9780
  %v9845 = vadd.f32 %v8745, %v9781
  %v9846 = vadd.f32 %v8746, %v9782
  %v9847 = vadd.f32 %v8747, %v9783
  %v9848 = vadd.f32 %v8748, %v9784
  %v9849 = vadd.f32 %v8749, %v9785
  %v9850 = vadd.f32 %v8750, %v9786
  %v9851 = vadd.f32 %v8751, %v9787
  %v9852 = vadd.f32 %v8752, %v9788
  %v9853 = vadd.f32 %v8753, %v9789
  %v9854 = vadd.f32 %v8754, %v9790
  %v9855 = vadd.f32 %v8755, %v9791
  %v9856 = vmax.f32 %v9792, 0.0
  %v9857 = vmax.f32 %v9793, 0.0
  %v9858 = vmax.f32 %v9794, 0.0
  %v9859 = vmax.f32 %v9795, 0.0
  %v9860 = vmax.f32 %v9796, 0.0
  %v9861 = vmax.f32 %v9797, 0.0
  %v9862 = vmax.f32 %v9798, 0.0
  %v9863 = vmax.f32 %v9799, 0.0
  %v9864 = vmax.f32 %v9800, 0.0
  %v9865 = vmax.f32 %v9801, 0.0
  %v9866 = vmax.f32 %v9802, 0.0
  %v9867 = vmax.f32 %v9803, 0.0
  %v9868 = vmax.f32 %v9804, 0.0
  %v9869 = vmax.f32 %v9805, 0.0
  %v9870 = vmax.f32 %v9806, 0.0
  %v9871 = vmax.f32 %v9807, 0.0
  %v9872 = vmax.f32 %v9808, 0.0
  %v9873 = vmax.f32 %v9809, 0.0
  %v9874 = vmax.f32 %v9810, 0.0
  %v9875 = vmax.f32 %v9811, 0.0
  %v9876 = vmax.f32 %v9812, 0.0
  %v9877 = vmax.f32 %v9813, 0.0
  %v9878 = vmax.f32 %v9814, 0.0
  %v9879 = vmax.f32 %v9815, 0.0
  %v9880 = vmax.f32 %v9816, 0.0
  %v9881 = vmax.f32 %v9817, 0.0
  %v9882 = vmax.f32 %v9818, 0.0
  %v9883 = vmax.f32 %v9819, 0.0
  %v9884 = vmax.f32 %v9820, 0.0
  %v9885 = vmax.f32 %v9821, 0.0
  %v9886 = vmax.f32 %v9822, 0.0
  %v9887 = vmax.f32 %v9823, 0.0
  %v9888 = vmax.f32 %v9824, 0.0
  %v9889 = vmax.f32 %v9825, 0.0
  %v9890 = vmax.f32 %v9826, 0.0
  %v9891 = vmax.f32 %v9827, 0.0
  %v9892 = vmax.f32 %v9828, 0.0
  %v9893 = vmax.f32 %v9829, 0.0
  %v9894 = vmax.f32 %v9830, 0.0
  %v9895 = vmax.f32 %v9831, 0.0
  %v9896 = vmax.f32 %v9832, 0.0
  %v9897 = vmax.f32 %v9833, 0.0
  %v9898 = vmax.f32 %v9834, 0.0
  %v9899 = vmax.f32 %v9835, 0.0
  %v9900 = vmax.f32 %v9836, 0.0
  %v9901 = vmax.f32 %v9837, 0.0
  %v9902 = vmax.f32 %v9838, 0.0
  %v9903 = vmax.f32 %v9839, 0.0
  %v9904 = vmax.f32 %v9840, 0.0
  %v9905 = vmax.f32 %v9841, 0.0
  %v9906 = vmax.f32 %v9842, 0.0
  %v9907 = vmax.f32 %v9843, 0.0
  %v9908 = vmax.f32 %v9844, 0.0
  %v9909 = vmax.f32 %v9845, 0.0
  %v9910 = vmax.f32 %v9846, 0.0
  %v9911 = vmax.f32 %v9847, 0.0
  %v9912 = vmax.f32 %v9848, 0.0
  %v9913 = vmax.f32 %v9849, 0.0
  %v9914 = vmax.f32 %v9850, 0.0
  %v9915 = vmax.f32 %v9851, 0.0
  %v9916 = vmax.f32 %v9852, 0.0
  %v9917 = vmax.f32 %v9853, 0.0
  %v9918 = vmax.f32 %v9854, 0.0
  %v9919 = vmax.f32 %v9855, 0.0
  %9920 = vst.msk [vmem:[%s10] sm:$0xff] %vm2942, %v9856
  %9921 = vst.msk [vmem:[%s10 + $0x8] sm:$0xff] %vm2942, %v9857
  %9922 = vst.msk [vmem:[%s10 + $0x10] sm:$0xff] %vm2942, %v9858
  %9923 = vst.msk [vmem:[%s10 + $0x18] sm:$0xff] %vm2942, %v9859
  %9924 = vst.msk [vmem:[%s10 + $0x20] sm:$0xff] %vm2942, %v9860
  %9925 = vst.msk [vmem:[%s10 + $0x28] sm:$0xff] %vm2942, %v9861
  %9926 = vst.msk [vmem:[%s10 + $0x30] sm:$0xff] %vm2942, %v9862
  %9927 = vst.msk [vmem:[%s10 + $0x38] sm:$0xff] %vm2942, %v9863
  %9928 = vst.msk [vmem:[%s10 + $0x40] sm:$0xff] %vm2942, %v9864
  %9929 = vst.msk [vmem:[%s10 + $0x48] sm:$0xff] %vm2942, %v9865
  %9930 = vst.msk [vmem:[%s10 + $0x50] sm:$0xff] %vm2942, %v9866
  %9931 = vst.msk [vmem:[%s10 + $0x58] sm:$0xff] %vm2942, %v9867
  %9932 = vst.msk [vmem:[%s10 + $0x60] sm:$0xff] %vm2942, %v9868
  %9933 = vst.msk [vmem:[%s10 + $0x68] sm:$0xff] %vm2942, %v9869
  %9934 = vst.msk [vmem:[%s10 + $0x70] sm:$0xff] %vm2942, %v9870
  %9935 = vst.msk [vmem:[%s10 + $0x78] sm:$0xff] %vm2942, %v9871
  %9936 = vst.msk [vmem:[%s10 + $0x80] sm:$0xff] %vm2942, %v9872
  %9937 = vst.msk [vmem:[%s10 + $0x88] sm:$0xff] %vm2942, %v9873
  %9938 = vst.msk [vmem:[%s10 + $0x90] sm:$0xff] %vm2942, %v9874
  %9939 = vst.msk [vmem:[%s10 + $0x98] sm:$0xff] %vm2942, %v9875
  %9940 = vst.msk [vmem:[%s10 + $0xa0] sm:$0xff] %vm2942, %v9876
  %9941 = vst.msk [vmem:[%s10 + $0xa8] sm:$0xff] %vm2942, %v9877
  %9942 = vst.msk [vmem:[%s10 + $0xb0] sm:$0xff] %vm2942, %v9878
  %9943 = vst.msk [vmem:[%s10 + $0xb8] sm:$0xff] %vm2942, %v9879
  %9944 = vst.msk [vmem:[%s10 + $0xc0] sm:$0xff] %vm2942, %v9880
  %9945 = vst.msk [vmem:[%s10 + $0xc8] sm:$0xff] %vm2942, %v9881
  %9946 = vst.msk [vmem:[%s10 + $0xd0] sm:$0xff] %vm2942, %v9882
  %9947 = vst.msk [vmem:[%s10 + $0xd8] sm:$0xff] %vm2942, %v9883
  %9948 = vst.msk [vmem:[%s10 + $0xe0] sm:$0xff] %vm2942, %v9884
  %9949 = vst.msk [vmem:[%s10 + $0xe8] sm:$0xff] %vm2942, %v9885
  %9950 = vst.msk [vmem:[%s10 + $0xf0] sm:$0xff] %vm2942, %v9886
  %9951 = vst.msk [vmem:[%s10 + $0xf8] sm:$0xff] %vm2942, %v9887
  %9952 = vst.msk [vmem:[%s10 + $0x100] sm:$0xff] %vm2942, %v9888
  %9953 = vst.msk [vmem:[%s10 + $0x108] sm:$0xff] %vm2942, %v9889
  %9954 = vst.msk [vmem:[%s10 + $0x110] sm:$0xff] %vm2942, %v9890
  %9955 = vst.msk [vmem:[%s10 + $0x118] sm:$0xff] %vm2942, %v9891
  %9956 = vst.msk [vmem:[%s10 + $0x120] sm:$0xff] %vm2942, %v9892
  %9957 = vst.msk [vmem:[%s10 + $0x128] sm:$0xff] %vm2942, %v9893
  %9958 = vst.msk [vmem:[%s10 + $0x130] sm:$0xff] %vm2942, %v9894
  %9959 = vst.msk [vmem:[%s10 + $0x138] sm:$0xff] %vm2942, %v9895
  %9960 = vst.msk [vmem:[%s10 + $0x140] sm:$0xff] %vm2942, %v9896
  %9961 = vst.msk [vmem:[%s10 + $0x148] sm:$0xff] %vm2942, %v9897
  %9962 = vst.msk [vmem:[%s10 + $0x150] sm:$0xff] %vm2942, %v9898
  %9963 = vst.msk [vmem:[%s10 + $0x158] sm:$0xff] %vm2942, %v9899
  %9964 = vst.msk [vmem:[%s10 + $0x160] sm:$0xff] %vm2942, %v9900
  %9965 = vst.msk [vmem:[%s10 + $0x168] sm:$0xff] %vm2942, %v9901
  %9966 = vst.msk [vmem:[%s10 + $0x170] sm:$0xff] %vm2942, %v9902
  %9967 = vst.msk [vmem:[%s10 + $0x178] sm:$0xff] %vm2942, %v9903
  %9968 = vst.msk [vmem:[%s10 + $0x180] sm:$0xff] %vm2942, %v9904
  %9969 = vst.msk [vmem:[%s10 + $0x188] sm:$0xff] %vm2942, %v9905
  %9970 = vst.msk [vmem:[%s10 + $0x190] sm:$0xff] %vm2942, %v9906
  %9971 = vst.msk [vmem:[%s10 + $0x198] sm:$0xff] %vm2942, %v9907
  %9972 = vst.msk [vmem:[%s10 + $0x1a0] sm:$0xff] %vm2942, %v9908
  %9973 = vst.msk [vmem:[%s10 + $0x1a8] sm:$0xff] %vm2942, %v9909
  %9974 = vst.msk [vmem:[%s10 + $0x1b0] sm:$0xff] %vm2942, %v9910
  %9975 = vst.msk [vmem:[%s10 + $0x1b8] sm:$0xff] %vm2942, %v9911
  %9976 = vst.msk [vmem:[%s10 + $0x1c0] sm:$0xff] %vm2942, %v9912
  %9977 = vst.msk [vmem:[%s10 + $0x1c8] sm:$0xff] %vm2942, %v9913
  %9978 = vst.msk [vmem:[%s10 + $0x1d0] sm:$0xff] %vm2942, %v9914
  %9979 = vst.msk [vmem:[%s10 + $0x1d8] sm:$0xff] %vm2942, %v9915
  %9980 = vst.msk [vmem:[%s10 + $0x1e0] sm:$0xff] %vm2942, %v9916
  %9981 = vst.msk [vmem:[%s10 + $0x1e8] sm:$0xff] %vm2942, %v9917
  %9982 = vst.msk [vmem:[%s10 + $0x1f0] sm:$0xff] %vm2942, %v9918
  %9983 = vst.msk [vmem:[%s10 + $0x1f8] sm:$0xff] %vm2942, %v9919
  // Predicated region
  $region42: #{resnet_basic_block.1} parent=0 // pred_check
    _
  $region43: #{resnet_basic_block.1} parent=0 // pred_check_branch
    %9985 = sbr.rel (0) target = $region45
  $region44: #{resnet_basic_block.1} parent=0 // pred_region
    _
  $region45: #{resnet_basic_block.1} parent=0 // pred_fallthru
    _
  // Predicated region
  $region46: #{resnet_basic_block.1} parent=0 // pred_check
    _
  $region47: #{resnet_basic_block.1} parent=0 // pred_check_branch
    %9987 = sbr.rel (0) target = $region49
  $region48: #{resnet_basic_block.1} parent=0 // pred_region
    _
  $region49: #{resnet_basic_block.1} parent=0 // pred_fallthru
    _

</llo_original>
